<compile_context>
chip_gen: v7x
topology: tpu7x:2x2x1
jax: 0.10.0
libtpu: 0.0.40
codegen_flags: <defaults>
</compile_context>

<pallas_src>
import functools
import math

import jax
import jax.numpy as jnp
from jax.experimental import pallas as pl

_EPS = 1e-5


# ------------------------------ in-kernel helpers ------------------------------

def _ln(x, g, b, eps=_EPS):
    """LayerNorm over the last axis; g, b of shape (1, D)."""
    mu = jnp.mean(x, axis=-1, keepdims=True)
    var = jnp.mean((x - mu) ** 2, axis=-1, keepdims=True)
    return (x - mu) * jax.lax.rsqrt(var + eps) * g + b


def _softmax_rows(s):
    s = s - jnp.max(s, axis=-1, keepdims=True)
    p = jnp.exp(s)
    return p / jnp.sum(p, axis=-1, keepdims=True)


def _mha(q, k, v, *, n_heads, batch, sq, sk):
    """q: (batch*sq, d), k/v: (batch*sk, d) -> (batch*sq, d).

    Static (batch, head) unroll with 2-D slices / 2-D dots only (robust Mosaic lowering
    at sub-vreg head dims); everything stays in VMEM.
    """
    d = q.shape[-1]
    hd = d // n_heads
    scale = 1.0 / math.sqrt(hd)
    rows = []
    for b in range(batch):
        qb = q[b * sq:(b + 1) * sq, :]
        kb = k[b * sk:(b + 1) * sk, :]
        vb = v[b * sk:(b + 1) * sk, :]
        heads = []
        for h in range(n_heads):
            ql = qb[:, h * hd:(h + 1) * hd]
            kl = kb[:, h * hd:(h + 1) * hd]
            vl = vb[:, h * hd:(h + 1) * hd]
            s = jnp.dot(ql, kl.T, preferred_element_type=jnp.float32) * scale
            p = _softmax_rows(s)
            heads.append(jnp.dot(p, vl, preferred_element_type=jnp.float32))
        rows.append(jnp.concatenate(heads, axis=-1))
    return jnp.concatenate(rows, axis=0)


def _embed(x_ref, w, pe, *, batch, s):
    """Conv1d(kernel=3, circular pad, bias=False) as im2col matmul + positional encoding.

    x_ref: (batch, s, c) ref.  Returns (batch*s, d).  (DataEmbedding dropout = identity.)
    """
    cols = []
    for b in range(batch):
        xb = x_ref[b]                                          # (s, c)
        xp = jnp.concatenate([xb[-1:], xb, xb[:1]], axis=0)    # circular pad by 1
        cols.append(jnp.concatenate([xp[0:s], xp[1:s + 1], xp[2:s + 2]], axis=-1))
    cols = jnp.concatenate(cols, axis=0)                       # (batch*s, 3c)
    tok = jnp.dot(cols, w, preferred_element_type=jnp.float32)
    pe_full = jnp.concatenate([pe[:s]] * batch, axis=0)        # (batch*s, d)
    return tok + pe_full


# -------------------------------- fused kernel ----------------------------------

def _forward_kernel(*refs, B, S_enc, S_dec, n_heads, n_enc, n_dec, n_fc):
    o_ref = refs[-1]
    it = iter(refs[:-1])
    nxt = lambda: next(it)

    en_x = nxt()                  # (B, S_enc, C_enc) ref
    de_x = nxt()                  # (B, S_dec, C_dec) ref
    enc_w = nxt()[...]            # (3*C_enc, d)
    dec_w = nxt()[...]            # (3*C_dec, d)
    pe = nxt()[...]               # (seq_len, d)

    src = _embed(en_x, enc_w, pe, batch=B, s=S_enc)            # (B*S_enc, d)
    tgt = _embed(de_x, dec_w, pe, batch=B, s=S_dec)            # (B*S_dec, d)
    d = src.shape[-1]

    # ------------------------------ encoder stack ------------------------------
    mem = src
    for _ in range(n_enc):
        wqkv = nxt()[...]; bqkv = nxt()[...]; wo = nxt()[...]; bo = nxt()[...]
        g1 = nxt()[...]; b1 = nxt()[...]
        w1 = nxt()[...]; bf1 = nxt()[...]; w2 = nxt()[...]; bf2 = nxt()[...]
        g2 = nxt()[...]; b2 = nxt()[...]

        qkv = jnp.dot(mem, wqkv, preferred_element_type=jnp.float32) + bqkv
        attn = _mha(qkv[:, :d], qkv[:, d:2 * d], qkv[:, 2 * d:],
                    n_heads=n_heads, batch=B, sq=S_enc, sk=S_enc)
        attn = jnp.dot(attn, wo, preferred_element_type=jnp.float32) + bo
        h = _ln(mem + attn, g1, b1)                            # post-LN (norm_first=False)
        f = jnp.maximum(jnp.dot(h, w1, preferred_element_type=jnp.float32) + bf1, 0.0)
        f = jnp.dot(f, w2, preferred_element_type=jnp.float32) + bf2
        mem = _ln(h + f, g2, b2)

    enc_gf = nxt()[...]; enc_bf = nxt()[...]
    mem = _ln(mem, enc_gf, enc_bf)                             # TransformerEncoder final norm

    # ------------------------------ decoder stack ------------------------------
    out = tgt
    for _ in range(n_dec):
        swqkv = nxt()[...]; sbqkv = nxt()[...]; swo = nxt()[...]; sbo = nxt()[...]
        g1 = nxt()[...]; b1 = nxt()[...]
        cwq = nxt()[...]; cbq = nxt()[...]; cwkv = nxt()[...]; cbkv = nxt()[...]
        cwo = nxt()[...]; cbo = nxt()[...]
        g2 = nxt()[...]; b2 = nxt()[...]
        w1 = nxt()[...]; bf1 = nxt()[...]; w2 = nxt()[...]; bf2 = nxt()[...]
        g3 = nxt()[...]; b3 = nxt()[...]

        # self-attention (reference passes no tgt_mask -> no causal mask)
        qkv = jnp.dot(out, swqkv, preferred_element_type=jnp.float32) + sbqkv
        sa = _mha(qkv[:, :d], qkv[:, d:2 * d], qkv[:, 2 * d:],
                  n_heads=n_heads, batch=B, sq=S_dec, sk=S_dec)
        sa = jnp.dot(sa, swo, preferred_element_type=jnp.float32) + sbo
        h1 = _ln(out + sa, g1, b1)

        # cross-attention over encoder memory
        q = jnp.dot(h1, cwq, preferred_element_type=jnp.float32) + cbq
        kv = jnp.dot(mem, cwkv, preferred_element_type=jnp.float32) + cbkv
        ca = _mha(q, kv[:, :d], kv[:, d:],
                  n_heads=n_heads, batch=B, sq=S_dec, sk=S_enc)
        ca = jnp.dot(ca, cwo, preferred_element_type=jnp.float32) + cbo
        h2 = _ln(h1 + ca, g2, b2)

        # FFN
        f = jnp.maximum(jnp.dot(h2, w1, preferred_element_type=jnp.float32) + bf1, 0.0)
        f = jnp.dot(f, w2, preferred_element_type=jnp.float32) + bf2
        out = _ln(h2 + f, g3, b3)

    dec_gf = nxt()[...]; dec_bf = nxt()[...]

    # Only the last timestep of each batch feeds the FC head (fc is per-timestep, so
    # fc(out)[:, -1] == fc(out[:, -1])).  Decoder final LayerNorm applied on that slice.
    last = jnp.concatenate(
        [out[(b + 1) * S_dec - 1:(b + 1) * S_dec, :] for b in range(B)], axis=0)   # (B, d)
    h = _ln(last, dec_gf, dec_bf)

    # TODO(synk): exact fully_connected_layer source is not in the reference file; implemented
    # as [Linear -> LayerNorm -> tanh] per hidden width (dropout identity, eval), final Linear -> 1.
    for _ in range(n_fc):
        w = nxt()[...]; bw = nxt()[...]; g = nxt()[...]; beta = nxt()[...]
        h = jnp.tanh(_ln(jnp.dot(h, w, preferred_element_type=jnp.float32) + bw, g, beta))
    w_out = nxt()[...]; b_out = nxt()[...]
    o_ref[...] = jnp.dot(h, w_out, preferred_element_type=jnp.float32) + b_out


# ---------------------------------- forward -------------------------------------

def transformer_forward(params, x, cfg):
    seq_len, horizon = cfg["seq_len"], cfg["horizon"]
    input_dim, encode_dim = cfg["input_dim"], cfg["encode_dim"]
    n_heads = cfg["n_header"]

    # cheap JAX slicing glue (same as the PyTorch forward)
    x = x[:, -seq_len:, -input_dim:]
    en_input = x[:, : seq_len - horizon, :encode_dim]      # (B, S_enc, C_enc)
    de_input = x[:, -horizon:, encode_dim:]                # (B, S_dec, C_dec)
    B = x.shape[0]
    S_enc, S_dec = seq_len - horizon, horizon

    def row(v):  # (n,) -> (1, n) for broadcastable bias / LN params
        return v.reshape(1, -1)

    args = [en_input, de_input, params["enc_emb_w"], params["dec_emb_w"], params["pe"]]
    for p in params["enc_layers"]:
        args += [p["wqkv"], row(p["bqkv"]), p["wo"], row(p["bo"]),
                 row(p["ln1_g"]), row(p["ln1_b"]),
                 p["w1"], row(p["b1"]), p["w2"], row(p["b2"]),
                 row(p["ln2_g"]), row(p["ln2_b"])]
    args += [row(params["enc_norm_g"]), row(params["enc_norm_b"])]
    for p in params["dec_layers"]:
        sa, ca, ff = p["self_attn"], p["cross_attn"], p["ffn"]
        args += [sa["wqkv"], row(sa["bqkv"]), sa["wo"], row(sa["bo"]),
                 row(p["ln1_g"]), row(p["ln1_b"]),
                 ca["wq"], row(ca["bq"]), ca["wkv"], row(ca["bkv"]),
                 ca["wo"], row(ca["bo"]),
                 row(p["ln2_g"]), row(p["ln2_b"]),
                 ff["w1"], row(ff["b1"]), ff["w2"], row(ff["b2"]),
                 row(p["ln3_g"]), row(p["ln3_b"])]
    args += [row(params["dec_norm_g"]), row(params["dec_norm_b"])]
    for layer in params["fc"]["hidden"]:
        args += [layer["w"], row(layer["b"]), row(layer["g"]), row(layer["beta"])]
    args += [params["fc"]["w_out"], row(params["fc"]["b_out"])]

    kernel = functools.partial(
        _forward_kernel, B=B, S_enc=S_enc, S_dec=S_dec, n_heads=n_heads,
        n_enc=len(params["enc_layers"]), n_dec=len(params["dec_layers"]),
        n_fc=len(params["fc"]["hidden"]))

    # Single fused call: no grid, every operand is a full-array VMEM block (default specs);
    # the only HBM write is the final (B, 1) result.
    return pl.pallas_call(
        kernel,
        out_shape=jax.ShapeDtypeStruct((B, 1), jnp.float32),
    )(*args)


# ------------------------------ parameter creation --------------------------------

def positional_encoding(max_len, d):
    pos = jnp.arange(max_len, dtype=jnp.float32)[:, None]
    div = jnp.exp(jnp.arange(0, d, 2, dtype=jnp.float32) * (-math.log(10000.0) / d))
    pe = jnp.zeros((max_len, d), jnp.float32)
    pe = pe.at[:, 0::2].set(jnp.sin(pos * div))
    pe = pe.at[:, 1::2].set(jnp.cos(pos * div))
    return pe


def _dense_init(key, fan_in, fan_out):
    kw, kb = jax.random.split(key)
    limit = 1.0 / math.sqrt(fan_in)
    w = jax.random.uniform(kw, (fan_in, fan_out), jnp.float32, -limit, limit)
    b = jax.random.uniform(kb, (fan_out,), jnp.float32, -limit, limit)
    return w, b


def _self_attn_params(key, d):
    ks = jax.random.split(key, 4)
    wq, bq = _dense_init(ks[0], d, d)
    wk, bk = _dense_init(ks[1], d, d)
    wv, bv = _dense_init(ks[2], d, d)
    wo, bo = _dense_init(ks[3], d, d)
    return dict(wqkv=jnp.concatenate([wq, wk, wv], axis=1),
                bqkv=jnp.concatenate([bq, bk, bv]), wo=wo, bo=bo)


def _cross_attn_params(key, d):
    ks = jax.random.split(key, 4)
    wq, bq = _dense_init(ks[0], d, d)
    wk, bk = _dense_init(ks[1], d, d)
    wv, bv = _dense_init(ks[2], d, d)
    wo, bo = _dense_init(ks[3], d, d)
    return dict(wq=wq, bq=bq, wkv=jnp.concatenate([wk, wv], axis=1),
                bkv=jnp.concatenate([bk, bv]), wo=wo, bo=bo)


def _ffn_params(key, d, dff):
    k1, k2 = jax.random.split(key)
    w1, b1 = _dense_init(k1, d, dff)
    w2, b2 = _dense_init(k2, dff, d)
    return dict(w1=w1, b1=b1, w2=w2, b2=b2)


def init_params(key, cfg):
    d, dff = cfg["d_model"], cfg["dim_feedforward"]
    enc_c = cfg["encode_dim"]
    dec_c = cfg["input_dim"] - cfg["encode_dim"]
    n_layers = cfg["num_layers"]

    keys = iter(jax.random.split(key, 64))
    params = {}
    le = 1.0 / math.sqrt(3 * enc_c)
    params["enc_emb_w"] = jax.random.uniform(next(keys), (3 * enc_c, d), jnp.float32, -le, le)
    ld = 1.0 / math.sqrt(3 * dec_c)
    params["dec_emb_w"] = jax.random.uniform(next(keys), (3 * dec_c, d), jnp.float32, -ld, ld)
    params["pe"] = positional_encoding(cfg["seq_len"], d)

    def enc_layer(k):
        k1, k2 = jax.random.split(k)
        return dict(ln1_g=jnp.ones((d,)), ln1_b=jnp.zeros((d,)),
                    ln2_g=jnp.ones((d,)), ln2_b=jnp.zeros((d,)),
                    **_self_attn_params(k1, d), **_ffn_params(k2, d, dff))

    def dec_layer(k):
        k1, k2, k3 = jax.random.split(k, 3)
        return dict(self_attn=_self_attn_params(k1, d), cross_attn=_cross_attn_params(k2, d),
                    ffn=_ffn_params(k3, d, dff),
                    ln1_g=jnp.ones((d,)), ln1_b=jnp.zeros((d,)),
                    ln2_g=jnp.ones((d,)), ln2_b=jnp.zeros((d,)),
                    ln3_g=jnp.ones((d,)), ln3_b=jnp.zeros((d,)))

    params["enc_layers"] = [enc_layer(next(keys)) for _ in range(n_layers)]
    params["dec_layers"] = [dec_layer(next(keys)) for _ in range(n_layers)]
    params["enc_norm_g"] = jnp.ones((d,)); params["enc_norm_b"] = jnp.zeros((d,))
    params["dec_norm_g"] = jnp.ones((d,)); params["dec_norm_b"] = jnp.zeros((d,))

    hidden_dims = [d, 128, 128, 64, 64]
    fc_hidden, prev = [], d
    for h in hidden_dims:
        w, b = _dense_init(next(keys), prev, h)
        fc_hidden.append(dict(w=w, b=b, g=jnp.ones((h,)), beta=jnp.zeros((h,))))
        prev = h
    w_out, b_out = _dense_init(next(keys), prev, 1)
    params["fc"] = dict(hidden=fc_hidden, w_out=w_out, b_out=b_out)
    return params


# ------------------------------------ main ----------------------------------------

if __name__ == "__main__":
    cfg = dict(seq_len=8, horizon=2, input_dim=6, encode_dim=4,
               d_model=32, n_header=4, num_layers=1, dim_feedforward=64)

    key = jax.random.PRNGKey(0)
    kp, kx = jax.random.split(key)
    params = init_params(kp, cfg)

    # raw input: (batch, total_seq, num_features); forward slices to seq_len / input_dim
    x = jax.random.normal(kx, (2, 10, 8), dtype=jnp.float32)

    fwd = jax.jit(functools.partial(transformer_forward, cfg=cfg))
    out = fwd(params, x)
    jax.block_until_ready(out)
    assert out.shape == (2, 1), out.shape
    print("KERNEL_OK")
</pallas_src>

<mosaic_0001>
module attributes {stable_mosaic.version = 11 : i64} {
  func.func @_forward_kernel(%arg0: memref<2x6x4xf32, #tpu.memory_space<vmem>>, %arg1: memref<2x2x2xf32, #tpu.memory_space<vmem>>, %arg2: memref<12x32xf32, #tpu.memory_space<vmem>>, %arg3: memref<6x32xf32, #tpu.memory_space<vmem>>, %arg4: memref<8x32xf32, #tpu.memory_space<vmem>>, %arg5: memref<32x96xf32, #tpu.memory_space<vmem>>, %arg6: memref<1x96xf32, #tpu.memory_space<vmem>>, %arg7: memref<32x32xf32, #tpu.memory_space<vmem>>, %arg8: memref<1x32xf32, #tpu.memory_space<vmem>>, %arg9: memref<1x32xf32, #tpu.memory_space<vmem>>, %arg10: memref<1x32xf32, #tpu.memory_space<vmem>>, %arg11: memref<32x64xf32, #tpu.memory_space<vmem>>, %arg12: memref<1x64xf32, #tpu.memory_space<vmem>>, %arg13: memref<64x32xf32, #tpu.memory_space<vmem>>, %arg14: memref<1x32xf32, #tpu.memory_space<vmem>>, %arg15: memref<1x32xf32, #tpu.memory_space<vmem>>, %arg16: memref<1x32xf32, #tpu.memory_space<vmem>>, %arg17: memref<1x32xf32, #tpu.memory_space<vmem>>, %arg18: memref<1x32xf32, #tpu.memory_space<vmem>>, %arg19: memref<32x96xf32, #tpu.memory_space<vmem>>, %arg20: memref<1x96xf32, #tpu.memory_space<vmem>>, %arg21: memref<32x32xf32, #tpu.memory_space<vmem>>, %arg22: memref<1x32xf32, #tpu.memory_space<vmem>>, %arg23: memref<1x32xf32, #tpu.memory_space<vmem>>, %arg24: memref<1x32xf32, #tpu.memory_space<vmem>>, %arg25: memref<32x32xf32, #tpu.memory_space<vmem>>, %arg26: memref<1x32xf32, #tpu.memory_space<vmem>>, %arg27: memref<32x64xf32, #tpu.memory_space<vmem>>, %arg28: memref<1x64xf32, #tpu.memory_space<vmem>>, %arg29: memref<32x32xf32, #tpu.memory_space<vmem>>, %arg30: memref<1x32xf32, #tpu.memory_space<vmem>>, %arg31: memref<1x32xf32, #tpu.memory_space<vmem>>, %arg32: memref<1x32xf32, #tpu.memory_space<vmem>>, %arg33: memref<32x64xf32, #tpu.memory_space<vmem>>, %arg34: memref<1x64xf32, #tpu.memory_space<vmem>>, %arg35: memref<64x32xf32, #tpu.memory_space<vmem>>, %arg36: memref<1x32xf32, #tpu.memory_space<vmem>>, %arg37: memref<1x32xf32, #tpu.memory_space<vmem>>, %arg38: memref<1x32xf32, #tpu.memory_space<vmem>>, %arg39: memref<1x32xf32, #tpu.memory_space<vmem>>, %arg40: memref<1x32xf32, #tpu.memory_space<vmem>>, %arg41: memref<32x32xf32, #tpu.memory_space<vmem>>, %arg42: memref<1x32xf32, #tpu.memory_space<vmem>>, %arg43: memref<1x32xf32, #tpu.memory_space<vmem>>, %arg44: memref<1x32xf32, #tpu.memory_space<vmem>>, %arg45: memref<32x128xf32, #tpu.memory_space<vmem>>, %arg46: memref<1x128xf32, #tpu.memory_space<vmem>>, %arg47: memref<1x128xf32, #tpu.memory_space<vmem>>, %arg48: memref<1x128xf32, #tpu.memory_space<vmem>>, %arg49: memref<128x128xf32, #tpu.memory_space<vmem>>, %arg50: memref<1x128xf32, #tpu.memory_space<vmem>>, %arg51: memref<1x128xf32, #tpu.memory_space<vmem>>, %arg52: memref<1x128xf32, #tpu.memory_space<vmem>>, %arg53: memref<128x64xf32, #tpu.memory_space<vmem>>, %arg54: memref<1x64xf32, #tpu.memory_space<vmem>>, %arg55: memref<1x64xf32, #tpu.memory_space<vmem>>, %arg56: memref<1x64xf32, #tpu.memory_space<vmem>>, %arg57: memref<64x64xf32, #tpu.memory_space<vmem>>, %arg58: memref<1x64xf32, #tpu.memory_space<vmem>>, %arg59: memref<1x64xf32, #tpu.memory_space<vmem>>, %arg60: memref<1x64xf32, #tpu.memory_space<vmem>>, %arg61: memref<64x1xf32, #tpu.memory_space<vmem>>, %arg62: memref<1x1xf32, #tpu.memory_space<vmem>>, %arg63: memref<2x1xf32, #tpu.memory_space<vmem>>) attributes {dimension_semantics = [], scalar_prefetch = 0 : i64, scratch_operands = 0 : i64, tpu.core_type = #tpu.core_type<tc>} {
    %c0 = arith.constant 0 : index
    %c0_0 = arith.constant 0 : index
    %0 = vector.load %arg2[%c0, %c0_0] : memref<12x32xf32, #tpu.memory_space<vmem>>, vector<12x32xf32>
    %c0_1 = arith.constant 0 : index
    %c0_2 = arith.constant 0 : index
    %1 = vector.load %arg3[%c0_1, %c0_2] : memref<6x32xf32, #tpu.memory_space<vmem>>, vector<6x32xf32>
    %c0_3 = arith.constant 0 : index
    %c0_4 = arith.constant 0 : index
    %2 = vector.load %arg4[%c0_3, %c0_4] : memref<8x32xf32, #tpu.memory_space<vmem>>, vector<8x32xf32>
    %c0_5 = arith.constant 0 : index
    %c0_6 = arith.constant 0 : index
    %c0_7 = arith.constant 0 : index
    %3 = vector.load %arg0[%c0_5, %c0_6, %c0_7] : memref<2x6x4xf32, #tpu.memory_space<vmem>>, vector<1x6x4xf32>
    %4 = vector.shape_cast %3 : vector<1x6x4xf32> to vector<6x4xf32>
    %5 = vector.extract_strided_slice %4 {offsets = [5, 0], sizes = [1, 4], strides = [1, 1]} : vector<6x4xf32> to vector<1x4xf32>
    %6 = vector.extract_strided_slice %4 {offsets = [0, 0], sizes = [1, 4], strides = [1, 1]} : vector<6x4xf32> to vector<1x4xf32>
    %7 = tpu.concatenate %5, %4, %6 in 0 : vector<1x4xf32>, vector<6x4xf32>, vector<1x4xf32> -> vector<8x4xf32>
    %8 = vector.extract_strided_slice %7 {offsets = [0, 0], sizes = [6, 4], strides = [1, 1]} : vector<8x4xf32> to vector<6x4xf32>
    %9 = vector.extract_strided_slice %7 {offsets = [1, 0], sizes = [6, 4], strides = [1, 1]} : vector<8x4xf32> to vector<6x4xf32>
    %10 = vector.extract_strided_slice %7 {offsets = [2, 0], sizes = [6, 4], strides = [1, 1]} : vector<8x4xf32> to vector<6x4xf32>
    %11 = tpu.concatenate %8, %9, %10 in 1 : vector<6x4xf32>, vector<6x4xf32>, vector<6x4xf32> -> vector<6x12xf32>
    %c1 = arith.constant 1 : index
    %c0_8 = arith.constant 0 : index
    %c0_9 = arith.constant 0 : index
    %12 = vector.load %arg0[%c1, %c0_8, %c0_9] : memref<2x6x4xf32, #tpu.memory_space<vmem>>, vector<1x6x4xf32>
    %13 = vector.shape_cast %12 : vector<1x6x4xf32> to vector<6x4xf32>
    %14 = vector.extract_strided_slice %13 {offsets = [5, 0], sizes = [1, 4], strides = [1, 1]} : vector<6x4xf32> to vector<1x4xf32>
    %15 = vector.extract_strided_slice %13 {offsets = [0, 0], sizes = [1, 4], strides = [1, 1]} : vector<6x4xf32> to vector<1x4xf32>
    %16 = tpu.concatenate %14, %13, %15 in 0 : vector<1x4xf32>, vector<6x4xf32>, vector<1x4xf32> -> vector<8x4xf32>
    %17 = vector.extract_strided_slice %16 {offsets = [0, 0], sizes = [6, 4], strides = [1, 1]} : vector<8x4xf32> to vector<6x4xf32>
    %18 = vector.extract_strided_slice %16 {offsets = [1, 0], sizes = [6, 4], strides = [1, 1]} : vector<8x4xf32> to vector<6x4xf32>
    %19 = vector.extract_strided_slice %16 {offsets = [2, 0], sizes = [6, 4], strides = [1, 1]} : vector<8x4xf32> to vector<6x4xf32>
    %20 = tpu.concatenate %17, %18, %19 in 1 : vector<6x4xf32>, vector<6x4xf32>, vector<6x4xf32> -> vector<6x12xf32>
    %21 = tpu.concatenate %11, %20 in 0 : vector<6x12xf32>, vector<6x12xf32> -> vector<12x12xf32>
    %cst = arith.constant dense<0.000000e+00> : vector<12x32xf32>
    %22 = tpu.matmul %21, %0, %cst {dimension_numbers = #tpu.dot_dimension_numbers<[1], [0], [0], [1], [0, 0, 1, 1], [], []>} : vector<12x12xf32>, vector<12x32xf32>, vector<12x32xf32> -> vector<12x32xf32>
    %23 = vector.extract_strided_slice %2 {offsets = [0, 0], sizes = [6, 32], strides = [1, 1]} : vector<8x32xf32> to vector<6x32xf32>
    %24 = tpu.concatenate %23, %23 in 0 : vector<6x32xf32>, vector<6x32xf32> -> vector<12x32xf32>
    %25 = arith.addf %22, %24 : vector<12x32xf32>
    %c0_10 = arith.constant 0 : index
    %c0_11 = arith.constant 0 : index
    %c0_12 = arith.constant 0 : index
    %26 = vector.load %arg1[%c0_10, %c0_11, %c0_12] : memref<2x2x2xf32, #tpu.memory_space<vmem>>, vector<1x2x2xf32>
    %27 = vector.shape_cast %26 : vector<1x2x2xf32> to vector<2x2xf32>
    %28 = vector.extract_strided_slice %27 {offsets = [1, 0], sizes = [1, 2], strides = [1, 1]} : vector<2x2xf32> to vector<1x2xf32>
    %29 = vector.extract_strided_slice %27 {offsets = [0, 0], sizes = [1, 2], strides = [1, 1]} : vector<2x2xf32> to vector<1x2xf32>
    %30 = tpu.concatenate %28, %27, %29 in 0 : vector<1x2xf32>, vector<2x2xf32>, vector<1x2xf32> -> vector<4x2xf32>
    %31 = vector.extract_strided_slice %30 {offsets = [0, 0], sizes = [2, 2], strides = [1, 1]} : vector<4x2xf32> to vector<2x2xf32>
    %32 = vector.extract_strided_slice %30 {offsets = [1, 0], sizes = [2, 2], strides = [1, 1]} : vector<4x2xf32> to vector<2x2xf32>
    %33 = vector.extract_strided_slice %30 {offsets = [2, 0], sizes = [2, 2], strides = [1, 1]} : vector<4x2xf32> to vector<2x2xf32>
    %34 = tpu.concatenate %31, %32, %33 in 1 : vector<2x2xf32>, vector<2x2xf32>, vector<2x2xf32> -> vector<2x6xf32>
    %c1_13 = arith.constant 1 : index
    %c0_14 = arith.constant 0 : index
    %c0_15 = arith.constant 0 : index
    %35 = vector.load %arg1[%c1_13, %c0_14, %c0_15] : memref<2x2x2xf32, #tpu.memory_space<vmem>>, vector<1x2x2xf32>
    %36 = vector.shape_cast %35 : vector<1x2x2xf32> to vector<2x2xf32>
    %37 = vector.extract_strided_slice %36 {offsets = [1, 0], sizes = [1, 2], strides = [1, 1]} : vector<2x2xf32> to vector<1x2xf32>
    %38 = vector.extract_strided_slice %36 {offsets = [0, 0], sizes = [1, 2], strides = [1, 1]} : vector<2x2xf32> to vector<1x2xf32>
    %39 = tpu.concatenate %37, %36, %38 in 0 : vector<1x2xf32>, vector<2x2xf32>, vector<1x2xf32> -> vector<4x2xf32>
    %40 = vector.extract_strided_slice %39 {offsets = [0, 0], sizes = [2, 2], strides = [1, 1]} : vector<4x2xf32> to vector<2x2xf32>
    %41 = vector.extract_strided_slice %39 {offsets = [1, 0], sizes = [2, 2], strides = [1, 1]} : vector<4x2xf32> to vector<2x2xf32>
    %42 = vector.extract_strided_slice %39 {offsets = [2, 0], sizes = [2, 2], strides = [1, 1]} : vector<4x2xf32> to vector<2x2xf32>
    %43 = tpu.concatenate %40, %41, %42 in 1 : vector<2x2xf32>, vector<2x2xf32>, vector<2x2xf32> -> vector<2x6xf32>
    %44 = tpu.concatenate %34, %43 in 0 : vector<2x6xf32>, vector<2x6xf32> -> vector<4x6xf32>
    %cst_16 = arith.constant dense<0.000000e+00> : vector<4x32xf32>
    %45 = tpu.matmul %44, %1, %cst_16 {dimension_numbers = #tpu.dot_dimension_numbers<[1], [0], [0], [1], [0, 0, 1, 1], [], []>} : vector<4x6xf32>, vector<6x32xf32>, vector<4x32xf32> -> vector<4x32xf32>
    %46 = vector.extract_strided_slice %2 {offsets = [0, 0], sizes = [2, 32], strides = [1, 1]} : vector<8x32xf32> to vector<2x32xf32>
    %47 = tpu.concatenate %46, %46 in 0 : vector<2x32xf32>, vector<2x32xf32> -> vector<4x32xf32>
    %48 = arith.addf %45, %47 : vector<4x32xf32>
    %c0_17 = arith.constant 0 : index
    %c0_18 = arith.constant 0 : index
    %49 = vector.load %arg5[%c0_17, %c0_18] : memref<32x96xf32, #tpu.memory_space<vmem>>, vector<32x96xf32>
    %c0_19 = arith.constant 0 : index
    %c0_20 = arith.constant 0 : index
    %50 = vector.load %arg6[%c0_19, %c0_20] : memref<1x96xf32, #tpu.memory_space<vmem>>, vector<1x96xf32>
    %c0_21 = arith.constant 0 : index
    %c0_22 = arith.constant 0 : index
    %51 = vector.load %arg7[%c0_21, %c0_22] : memref<32x32xf32, #tpu.memory_space<vmem>>, vector<32x32xf32>
    %c0_23 = arith.constant 0 : index
    %c0_24 = arith.constant 0 : index
    %52 = vector.load %arg8[%c0_23, %c0_24] : memref<1x32xf32, #tpu.memory_space<vmem>>, vector<1x32xf32>
    %c0_25 = arith.constant 0 : index
    %c0_26 = arith.constant 0 : index
    %53 = vector.load %arg9[%c0_25, %c0_26] : memref<1x32xf32, #tpu.memory_space<vmem>>, vector<1x32xf32>
    %c0_27 = arith.constant 0 : index
    %c0_28 = arith.constant 0 : index
    %54 = vector.load %arg10[%c0_27, %c0_28] : memref<1x32xf32, #tpu.memory_space<vmem>>, vector<1x32xf32>
    %c0_29 = arith.constant 0 : index
    %c0_30 = arith.constant 0 : index
    %55 = vector.load %arg11[%c0_29, %c0_30] : memref<32x64xf32, #tpu.memory_space<vmem>>, vector<32x64xf32>
    %c0_31 = arith.constant 0 : index
    %c0_32 = arith.constant 0 : index
    %56 = vector.load %arg12[%c0_31, %c0_32] : memref<1x64xf32, #tpu.memory_space<vmem>>, vector<1x64xf32>
    %c0_33 = arith.constant 0 : index
    %c0_34 = arith.constant 0 : index
    %57 = vector.load %arg13[%c0_33, %c0_34] : memref<64x32xf32, #tpu.memory_space<vmem>>, vector<64x32xf32>
    %c0_35 = arith.constant 0 : index
    %c0_36 = arith.constant 0 : index
    %58 = vector.load %arg14[%c0_35, %c0_36] : memref<1x32xf32, #tpu.memory_space<vmem>>, vector<1x32xf32>
    %c0_37 = arith.constant 0 : index
    %c0_38 = arith.constant 0 : index
    %59 = vector.load %arg15[%c0_37, %c0_38] : memref<1x32xf32, #tpu.memory_space<vmem>>, vector<1x32xf32>
    %c0_39 = arith.constant 0 : index
    %c0_40 = arith.constant 0 : index
    %60 = vector.load %arg16[%c0_39, %c0_40] : memref<1x32xf32, #tpu.memory_space<vmem>>, vector<1x32xf32>
    %cst_41 = arith.constant dense<0.000000e+00> : vector<12x96xf32>
    %61 = tpu.matmul %25, %49, %cst_41 {dimension_numbers = #tpu.dot_dimension_numbers<[1], [0], [0], [1], [0, 0, 1, 1], [], []>} : vector<12x32xf32>, vector<32x96xf32>, vector<12x96xf32> -> vector<12x96xf32>
    %62 = vector.broadcast %50 : vector<1x96xf32> to vector<12x96xf32>
    %63 = arith.addf %61, %62 : vector<12x96xf32>
    %64 = vector.extract_strided_slice %63 {offsets = [0, 0], sizes = [12, 32], strides = [1, 1]} : vector<12x96xf32> to vector<12x32xf32>
    %65 = vector.extract_strided_slice %63 {offsets = [0, 32], sizes = [12, 32], strides = [1, 1]} : vector<12x96xf32> to vector<12x32xf32>
    %66 = vector.extract_strided_slice %63 {offsets = [0, 64], sizes = [12, 32], strides = [1, 1]} : vector<12x96xf32> to vector<12x32xf32>
    %67 = vector.extract_strided_slice %64 {offsets = [0, 0], sizes = [6, 32], strides = [1, 1]} : vector<12x32xf32> to vector<6x32xf32>
    %68 = vector.extract_strided_slice %65 {offsets = [0, 0], sizes = [6, 32], strides = [1, 1]} : vector<12x32xf32> to vector<6x32xf32>
    %69 = vector.extract_strided_slice %66 {offsets = [0, 0], sizes = [6, 32], strides = [1, 1]} : vector<12x32xf32> to vector<6x32xf32>
    %70 = vector.extract_strided_slice %67 {offsets = [0, 0], sizes = [6, 8], strides = [1, 1]} : vector<6x32xf32> to vector<6x8xf32>
    %71 = vector.extract_strided_slice %68 {offsets = [0, 0], sizes = [6, 8], strides = [1, 1]} : vector<6x32xf32> to vector<6x8xf32>
    %72 = vector.extract_strided_slice %69 {offsets = [0, 0], sizes = [6, 8], strides = [1, 1]} : vector<6x32xf32> to vector<6x8xf32>
    %73 = tpu.transpose %71, [1, 0] : vector<6x8xf32> -> vector<8x6xf32>
    %cst_42 = arith.constant dense<0.000000e+00> : vector<6x6xf32>
    %74 = tpu.matmul %70, %73, %cst_42 {dimension_numbers = #tpu.dot_dimension_numbers<[1], [0], [0], [1], [0, 0, 1, 1], [], []>} : vector<6x8xf32>, vector<8x6xf32>, vector<6x6xf32> -> vector<6x6xf32>
    %cst_43 = arith.constant 0.353553385 : f32
    %75 = vector.broadcast %cst_43 : f32 to vector<6x6xf32>
    %76 = arith.mulf %74, %75 : vector<6x6xf32>
    %cst_44 = arith.constant dense<0xFF800000> : vector<6xf32>
    %77 = vector.multi_reduction <maximumf>, %76, %cst_44 [1] : vector<6x6xf32> to vector<6xf32>
    %78 = vector.shape_cast %77 : vector<6xf32> to vector<6x1xf32>
    %79 = vector.broadcast %78 : vector<6x1xf32> to vector<6x6xf32>
    %80 = arith.subf %76, %79 : vector<6x6xf32>
    %81 = math.exp %80 : vector<6x6xf32>
    %cst_45 = arith.constant dense<0.000000e+00> : vector<6xf32>
    %82 = vector.multi_reduction <add>, %81, %cst_45 [1] : vector<6x6xf32> to vector<6xf32>
    %83 = vector.shape_cast %82 : vector<6xf32> to vector<6x1xf32>
    %84 = vector.broadcast %83 : vector<6x1xf32> to vector<6x6xf32>
    %85 = arith.divf %81, %84 : vector<6x6xf32>
    %cst_46 = arith.constant dense<0.000000e+00> : vector<6x8xf32>
    %86 = tpu.matmul %85, %72, %cst_46 {dimension_numbers = #tpu.dot_dimension_numbers<[1], [0], [0], [1], [0, 0, 1, 1], [], []>} : vector<6x6xf32>, vector<6x8xf32>, vector<6x8xf32> -> vector<6x8xf32>
    %87 = vector.extract_strided_slice %67 {offsets = [0, 8], sizes = [6, 8], strides = [1, 1]} : vector<6x32xf32> to vector<6x8xf32>
    %88 = vector.extract_strided_slice %68 {offsets = [0, 8], sizes = [6, 8], strides = [1, 1]} : vector<6x32xf32> to vector<6x8xf32>
    %89 = vector.extract_strided_slice %69 {offsets = [0, 8], sizes = [6, 8], strides = [1, 1]} : vector<6x32xf32> to vector<6x8xf32>
    %90 = tpu.transpose %88, [1, 0] : vector<6x8xf32> -> vector<8x6xf32>
    %cst_47 = arith.constant dense<0.000000e+00> : vector<6x6xf32>
    %91 = tpu.matmul %87, %90, %cst_47 {dimension_numbers = #tpu.dot_dimension_numbers<[1], [0], [0], [1], [0, 0, 1, 1], [], []>} : vector<6x8xf32>, vector<8x6xf32>, vector<6x6xf32> -> vector<6x6xf32>
    %cst_48 = arith.constant 0.353553385 : f32
    %92 = vector.broadcast %cst_48 : f32 to vector<6x6xf32>
    %93 = arith.mulf %91, %92 : vector<6x6xf32>
    %cst_49 = arith.constant dense<0xFF800000> : vector<6xf32>
    %94 = vector.multi_reduction <maximumf>, %93, %cst_49 [1] : vector<6x6xf32> to vector<6xf32>
    %95 = vector.shape_cast %94 : vector<6xf32> to vector<6x1xf32>
    %96 = vector.broadcast %95 : vector<6x1xf32> to vector<6x6xf32>
    %97 = arith.subf %93, %96 : vector<6x6xf32>
    %98 = math.exp %97 : vector<6x6xf32>
    %cst_50 = arith.constant dense<0.000000e+00> : vector<6xf32>
    %99 = vector.multi_reduction <add>, %98, %cst_50 [1] : vector<6x6xf32> to vector<6xf32>
    %100 = vector.shape_cast %99 : vector<6xf32> to vector<6x1xf32>
    %101 = vector.broadcast %100 : vector<6x1xf32> to vector<6x6xf32>
    %102 = arith.divf %98, %101 : vector<6x6xf32>
    %cst_51 = arith.constant dense<0.000000e+00> : vector<6x8xf32>
    %103 = tpu.matmul %102, %89, %cst_51 {dimension_numbers = #tpu.dot_dimension_numbers<[1], [0], [0], [1], [0, 0, 1, 1], [], []>} : vector<6x6xf32>, vector<6x8xf32>, vector<6x8xf32> -> vector<6x8xf32>
    %104 = vector.extract_strided_slice %67 {offsets = [0, 16], sizes = [6, 8], strides = [1, 1]} : vector<6x32xf32> to vector<6x8xf32>
    %105 = vector.extract_strided_slice %68 {offsets = [0, 16], sizes = [6, 8], strides = [1, 1]} : vector<6x32xf32> to vector<6x8xf32>
    %106 = vector.extract_strided_slice %69 {offsets = [0, 16], sizes = [6, 8], strides = [1, 1]} : vector<6x32xf32> to vector<6x8xf32>
    %107 = tpu.transpose %105, [1, 0] : vector<6x8xf32> -> vector<8x6xf32>
    %cst_52 = arith.constant dense<0.000000e+00> : vector<6x6xf32>
    %108 = tpu.matmul %104, %107, %cst_52 {dimension_numbers = #tpu.dot_dimension_numbers<[1], [0], [0], [1], [0, 0, 1, 1], [], []>} : vector<6x8xf32>, vector<8x6xf32>, vector<6x6xf32> -> vector<6x6xf32>
    %cst_53 = arith.constant 0.353553385 : f32
    %109 = vector.broadcast %cst_53 : f32 to vector<6x6xf32>
    %110 = arith.mulf %108, %109 : vector<6x6xf32>
    %cst_54 = arith.constant dense<0xFF800000> : vector<6xf32>
    %111 = vector.multi_reduction <maximumf>, %110, %cst_54 [1] : vector<6x6xf32> to vector<6xf32>
    %112 = vector.shape_cast %111 : vector<6xf32> to vector<6x1xf32>
    %113 = vector.broadcast %112 : vector<6x1xf32> to vector<6x6xf32>
    %114 = arith.subf %110, %113 : vector<6x6xf32>
    %115 = math.exp %114 : vector<6x6xf32>
    %cst_55 = arith.constant dense<0.000000e+00> : vector<6xf32>
    %116 = vector.multi_reduction <add>, %115, %cst_55 [1] : vector<6x6xf32> to vector<6xf32>
    %117 = vector.shape_cast %116 : vector<6xf32> to vector<6x1xf32>
    %118 = vector.broadcast %117 : vector<6x1xf32> to vector<6x6xf32>
    %119 = arith.divf %115, %118 : vector<6x6xf32>
    %cst_56 = arith.constant dense<0.000000e+00> : vector<6x8xf32>
    %120 = tpu.matmul %119, %106, %cst_56 {dimension_numbers = #tpu.dot_dimension_numbers<[1], [0], [0], [1], [0, 0, 1, 1], [], []>} : vector<6x6xf32>, vector<6x8xf32>, vector<6x8xf32> -> vector<6x8xf32>
    %121 = vector.extract_strided_slice %67 {offsets = [0, 24], sizes = [6, 8], strides = [1, 1]} : vector<6x32xf32> to vector<6x8xf32>
    %122 = vector.extract_strided_slice %68 {offsets = [0, 24], sizes = [6, 8], strides = [1, 1]} : vector<6x32xf32> to vector<6x8xf32>
    %123 = vector.extract_strided_slice %69 {offsets = [0, 24], sizes = [6, 8], strides = [1, 1]} : vector<6x32xf32> to vector<6x8xf32>
    %124 = tpu.transpose %122, [1, 0] : vector<6x8xf32> -> vector<8x6xf32>
    %cst_57 = arith.constant dense<0.000000e+00> : vector<6x6xf32>
    %125 = tpu.matmul %121, %124, %cst_57 {dimension_numbers = #tpu.dot_dimension_numbers<[1], [0], [0], [1], [0, 0, 1, 1], [], []>} : vector<6x8xf32>, vector<8x6xf32>, vector<6x6xf32> -> vector<6x6xf32>
    %cst_58 = arith.constant 0.353553385 : f32
    %126 = vector.broadcast %cst_58 : f32 to vector<6x6xf32>
    %127 = arith.mulf %125, %126 : vector<6x6xf32>
    %cst_59 = arith.constant dense<0xFF800000> : vector<6xf32>
    %128 = vector.multi_reduction <maximumf>, %127, %cst_59 [1] : vector<6x6xf32> to vector<6xf32>
    %129 = vector.shape_cast %128 : vector<6xf32> to vector<6x1xf32>
    %130 = vector.broadcast %129 : vector<6x1xf32> to vector<6x6xf32>
    %131 = arith.subf %127, %130 : vector<6x6xf32>
    %132 = math.exp %131 : vector<6x6xf32>
    %cst_60 = arith.constant dense<0.000000e+00> : vector<6xf32>
    %133 = vector.multi_reduction <add>, %132, %cst_60 [1] : vector<6x6xf32> to vector<6xf32>
    %134 = vector.shape_cast %133 : vector<6xf32> to vector<6x1xf32>
    %135 = vector.broadcast %134 : vector<6x1xf32> to vector<6x6xf32>
    %136 = arith.divf %132, %135 : vector<6x6xf32>
    %cst_61 = arith.constant dense<0.000000e+00> : vector<6x8xf32>
    %137 = tpu.matmul %136, %123, %cst_61 {dimension_numbers = #tpu.dot_dimension_numbers<[1], [0], [0], [1], [0, 0, 1, 1], [], []>} : vector<6x6xf32>, vector<6x8xf32>, vector<6x8xf32> -> vector<6x8xf32>
    %138 = tpu.concatenate %86, %103, %120, %137 in 1 : vector<6x8xf32>, vector<6x8xf32>, vector<6x8xf32>, vector<6x8xf32> -> vector<6x32xf32>
    %139 = vector.extract_strided_slice %64 {offsets = [6, 0], sizes = [6, 32], strides = [1, 1]} : vector<12x32xf32> to vector<6x32xf32>
    %140 = vector.extract_strided_slice %65 {offsets = [6, 0], sizes = [6, 32], strides = [1, 1]} : vector<12x32xf32> to vector<6x32xf32>
    %141 = vector.extract_strided_slice %66 {offsets = [6, 0], sizes = [6, 32], strides = [1, 1]} : vector<12x32xf32> to vector<6x32xf32>
    %142 = vector.extract_strided_slice %139 {offsets = [0, 0], sizes = [6, 8], strides = [1, 1]} : vector<6x32xf32> to vector<6x8xf32>
    %143 = vector.extract_strided_slice %140 {offsets = [0, 0], sizes = [6, 8], strides = [1, 1]} : vector<6x32xf32> to vector<6x8xf32>
    %144 = vector.extract_strided_slice %141 {offsets = [0, 0], sizes = [6, 8], strides = [1, 1]} : vector<6x32xf32> to vector<6x8xf32>
    %145 = tpu.transpose %143, [1, 0] : vector<6x8xf32> -> vector<8x6xf32>
    %cst_62 = arith.constant dense<0.000000e+00> : vector<6x6xf32>
    %146 = tpu.matmul %142, %145, %cst_62 {dimension_numbers = #tpu.dot_dimension_numbers<[1], [0], [0], [1], [0, 0, 1, 1], [], []>} : vector<6x8xf32>, vector<8x6xf32>, vector<6x6xf32> -> vector<6x6xf32>
    %cst_63 = arith.constant 0.353553385 : f32
    %147 = vector.broadcast %cst_63 : f32 to vector<6x6xf32>
    %148 = arith.mulf %146, %147 : vector<6x6xf32>
    %cst_64 = arith.constant dense<0xFF800000> : vector<6xf32>
    %149 = vector.multi_reduction <maximumf>, %148, %cst_64 [1] : vector<6x6xf32> to vector<6xf32>
    %150 = vector.shape_cast %149 : vector<6xf32> to vector<6x1xf32>
    %151 = vector.broadcast %150 : vector<6x1xf32> to vector<6x6xf32>
    %152 = arith.subf %148, %151 : vector<6x6xf32>
    %153 = math.exp %152 : vector<6x6xf32>
    %cst_65 = arith.constant dense<0.000000e+00> : vector<6xf32>
    %154 = vector.multi_reduction <add>, %153, %cst_65 [1] : vector<6x6xf32> to vector<6xf32>
    %155 = vector.shape_cast %154 : vector<6xf32> to vector<6x1xf32>
    %156 = vector.broadcast %155 : vector<6x1xf32> to vector<6x6xf32>
    %157 = arith.divf %153, %156 : vector<6x6xf32>
    %cst_66 = arith.constant dense<0.000000e+00> : vector<6x8xf32>
    %158 = tpu.matmul %157, %144, %cst_66 {dimension_numbers = #tpu.dot_dimension_numbers<[1], [0], [0], [1], [0, 0, 1, 1], [], []>} : vector<6x6xf32>, vector<6x8xf32>, vector<6x8xf32> -> vector<6x8xf32>
    %159 = vector.extract_strided_slice %139 {offsets = [0, 8], sizes = [6, 8], strides = [1, 1]} : vector<6x32xf32> to vector<6x8xf32>
    %160 = vector.extract_strided_slice %140 {offsets = [0, 8], sizes = [6, 8], strides = [1, 1]} : vector<6x32xf32> to vector<6x8xf32>
    %161 = vector.extract_strided_slice %141 {offsets = [0, 8], sizes = [6, 8], strides = [1, 1]} : vector<6x32xf32> to vector<6x8xf32>
    %162 = tpu.transpose %160, [1, 0] : vector<6x8xf32> -> vector<8x6xf32>
    %cst_67 = arith.constant dense<0.000000e+00> : vector<6x6xf32>
    %163 = tpu.matmul %159, %162, %cst_67 {dimension_numbers = #tpu.dot_dimension_numbers<[1], [0], [0], [1], [0, 0, 1, 1], [], []>} : vector<6x8xf32>, vector<8x6xf32>, vector<6x6xf32> -> vector<6x6xf32>
    %cst_68 = arith.constant 0.353553385 : f32
    %164 = vector.broadcast %cst_68 : f32 to vector<6x6xf32>
    %165 = arith.mulf %163, %164 : vector<6x6xf32>
    %cst_69 = arith.constant dense<0xFF800000> : vector<6xf32>
    %166 = vector.multi_reduction <maximumf>, %165, %cst_69 [1] : vector<6x6xf32> to vector<6xf32>
    %167 = vector.shape_cast %166 : vector<6xf32> to vector<6x1xf32>
    %168 = vector.broadcast %167 : vector<6x1xf32> to vector<6x6xf32>
    %169 = arith.subf %165, %168 : vector<6x6xf32>
    %170 = math.exp %169 : vector<6x6xf32>
    %cst_70 = arith.constant dense<0.000000e+00> : vector<6xf32>
    %171 = vector.multi_reduction <add>, %170, %cst_70 [1] : vector<6x6xf32> to vector<6xf32>
    %172 = vector.shape_cast %171 : vector<6xf32> to vector<6x1xf32>
    %173 = vector.broadcast %172 : vector<6x1xf32> to vector<6x6xf32>
    %174 = arith.divf %170, %173 : vector<6x6xf32>
    %cst_71 = arith.constant dense<0.000000e+00> : vector<6x8xf32>
    %175 = tpu.matmul %174, %161, %cst_71 {dimension_numbers = #tpu.dot_dimension_numbers<[1], [0], [0], [1], [0, 0, 1, 1], [], []>} : vector<6x6xf32>, vector<6x8xf32>, vector<6x8xf32> -> vector<6x8xf32>
    %176 = vector.extract_strided_slice %139 {offsets = [0, 16], sizes = [6, 8], strides = [1, 1]} : vector<6x32xf32> to vector<6x8xf32>
    %177 = vector.extract_strided_slice %140 {offsets = [0, 16], sizes = [6, 8], strides = [1, 1]} : vector<6x32xf32> to vector<6x8xf32>
    %178 = vector.extract_strided_slice %141 {offsets = [0, 16], sizes = [6, 8], strides = [1, 1]} : vector<6x32xf32> to vector<6x8xf32>
    %179 = tpu.transpose %177, [1, 0] : vector<6x8xf32> -> vector<8x6xf32>
    %cst_72 = arith.constant dense<0.000000e+00> : vector<6x6xf32>
    %180 = tpu.matmul %176, %179, %cst_72 {dimension_numbers = #tpu.dot_dimension_numbers<[1], [0], [0], [1], [0, 0, 1, 1], [], []>} : vector<6x8xf32>, vector<8x6xf32>, vector<6x6xf32> -> vector<6x6xf32>
    %cst_73 = arith.constant 0.353553385 : f32
    %181 = vector.broadcast %cst_73 : f32 to vector<6x6xf32>
    %182 = arith.mulf %180, %181 : vector<6x6xf32>
    %cst_74 = arith.constant dense<0xFF800000> : vector<6xf32>
    %183 = vector.multi_reduction <maximumf>, %182, %cst_74 [1] : vector<6x6xf32> to vector<6xf32>
    %184 = vector.shape_cast %183 : vector<6xf32> to vector<6x1xf32>
    %185 = vector.broadcast %184 : vector<6x1xf32> to vector<6x6xf32>
    %186 = arith.subf %182, %185 : vector<6x6xf32>
    %187 = math.exp %186 : vector<6x6xf32>
    %cst_75 = arith.constant dense<0.000000e+00> : vector<6xf32>
    %188 = vector.multi_reduction <add>, %187, %cst_75 [1] : vector<6x6xf32> to vector<6xf32>
    %189 = vector.shape_cast %188 : vector<6xf32> to vector<6x1xf32>
    %190 = vector.broadcast %189 : vector<6x1xf32> to vector<6x6xf32>
    %191 = arith.divf %187, %190 : vector<6x6xf32>
    %cst_76 = arith.constant dense<0.000000e+00> : vector<6x8xf32>
    %192 = tpu.matmul %191, %178, %cst_76 {dimension_numbers = #tpu.dot_dimension_numbers<[1], [0], [0], [1], [0, 0, 1, 1], [], []>} : vector<6x6xf32>, vector<6x8xf32>, vector<6x8xf32> -> vector<6x8xf32>
    %193 = vector.extract_strided_slice %139 {offsets = [0, 24], sizes = [6, 8], strides = [1, 1]} : vector<6x32xf32> to vector<6x8xf32>
    %194 = vector.extract_strided_slice %140 {offsets = [0, 24], sizes = [6, 8], strides = [1, 1]} : vector<6x32xf32> to vector<6x8xf32>
    %195 = vector.extract_strided_slice %141 {offsets = [0, 24], sizes = [6, 8], strides = [1, 1]} : vector<6x32xf32> to vector<6x8xf32>
    %196 = tpu.transpose %194, [1, 0] : vector<6x8xf32> -> vector<8x6xf32>
    %cst_77 = arith.constant dense<0.000000e+00> : vector<6x6xf32>
    %197 = tpu.matmul %193, %196, %cst_77 {dimension_numbers = #tpu.dot_dimension_numbers<[1], [0], [0], [1], [0, 0, 1, 1], [], []>} : vector<6x8xf32>, vector<8x6xf32>, vector<6x6xf32> -> vector<6x6xf32>
    %cst_78 = arith.constant 0.353553385 : f32
    %198 = vector.broadcast %cst_78 : f32 to vector<6x6xf32>
    %199 = arith.mulf %197, %198 : vector<6x6xf32>
    %cst_79 = arith.constant dense<0xFF800000> : vector<6xf32>
    %200 = vector.multi_reduction <maximumf>, %199, %cst_79 [1] : vector<6x6xf32> to vector<6xf32>
    %201 = vector.shape_cast %200 : vector<6xf32> to vector<6x1xf32>
    %202 = vector.broadcast %201 : vector<6x1xf32> to vector<6x6xf32>
    %203 = arith.subf %199, %202 : vector<6x6xf32>
    %204 = math.exp %203 : vector<6x6xf32>
    %cst_80 = arith.constant dense<0.000000e+00> : vector<6xf32>
    %205 = vector.multi_reduction <add>, %204, %cst_80 [1] : vector<6x6xf32> to vector<6xf32>
    %206 = vector.shape_cast %205 : vector<6xf32> to vector<6x1xf32>
    %207 = vector.broadcast %206 : vector<6x1xf32> to vector<6x6xf32>
    %208 = arith.divf %204, %207 : vector<6x6xf32>
    %cst_81 = arith.constant dense<0.000000e+00> : vector<6x8xf32>
    %209 = tpu.matmul %208, %195, %cst_81 {dimension_numbers = #tpu.dot_dimension_numbers<[1], [0], [0], [1], [0, 0, 1, 1], [], []>} : vector<6x6xf32>, vector<6x8xf32>, vector<6x8xf32> -> vector<6x8xf32>
    %210 = tpu.concatenate %158, %175, %192, %209 in 1 : vector<6x8xf32>, vector<6x8xf32>, vector<6x8xf32>, vector<6x8xf32> -> vector<6x32xf32>
    %211 = tpu.concatenate %138, %210 in 0 : vector<6x32xf32>, vector<6x32xf32> -> vector<12x32xf32>
    %cst_82 = arith.constant dense<0.000000e+00> : vector<12x32xf32>
    %212 = tpu.matmul %211, %51, %cst_82 {dimension_numbers = #tpu.dot_dimension_numbers<[1], [0], [0], [1], [0, 0, 1, 1], [], []>} : vector<12x32xf32>, vector<32x32xf32>, vector<12x32xf32> -> vector<12x32xf32>
    %213 = vector.broadcast %52 : vector<1x32xf32> to vector<12x32xf32>
    %214 = arith.addf %212, %213 : vector<12x32xf32>
    %215 = arith.addf %25, %214 : vector<12x32xf32>
    %cst_83 = arith.constant dense<0.000000e+00> : vector<12xf32>
    %216 = vector.multi_reduction <add>, %215, %cst_83 [1] : vector<12x32xf32> to vector<12xf32>
    %217 = vector.shape_cast %216 : vector<12xf32> to vector<12x1xf32>
    %cst_84 = arith.constant 3.200000e+01 : f32
    %218 = vector.broadcast %cst_84 : f32 to vector<12x1xf32>
    %219 = arith.divf %217, %218 : vector<12x1xf32>
    %220 = vector.broadcast %219 : vector<12x1xf32> to vector<12x32xf32>
    %221 = arith.subf %215, %220 : vector<12x32xf32>
    %222 = arith.mulf %221, %221 : vector<12x32xf32>
    %cst_85 = arith.constant dense<0.000000e+00> : vector<12xf32>
    %223 = vector.multi_reduction <add>, %222, %cst_85 [1] : vector<12x32xf32> to vector<12xf32>
    %224 = vector.shape_cast %223 : vector<12xf32> to vector<12x1xf32>
    %cst_86 = arith.constant 3.200000e+01 : f32
    %225 = vector.broadcast %cst_86 : f32 to vector<12x1xf32>
    %226 = arith.divf %224, %225 : vector<12x1xf32>
    %227 = vector.broadcast %219 : vector<12x1xf32> to vector<12x32xf32>
    %228 = arith.subf %215, %227 : vector<12x32xf32>
    %cst_87 = arith.constant 9.99999974E-6 : f32
    %229 = vector.broadcast %cst_87 : f32 to vector<12x1xf32>
    %230 = arith.addf %226, %229 : vector<12x1xf32>
    %231 = math.rsqrt %230 : vector<12x1xf32>
    %232 = vector.broadcast %231 : vector<12x1xf32> to vector<12x32xf32>
    %233 = arith.mulf %228, %232 : vector<12x32xf32>
    %234 = vector.broadcast %53 : vector<1x32xf32> to vector<12x32xf32>
    %235 = arith.mulf %233, %234 : vector<12x32xf32>
    %236 = vector.broadcast %54 : vector<1x32xf32> to vector<12x32xf32>
    %237 = arith.addf %235, %236 : vector<12x32xf32>
    %cst_88 = arith.constant dense<0.000000e+00> : vector<12x64xf32>
    %238 = tpu.matmul %237, %55, %cst_88 {dimension_numbers = #tpu.dot_dimension_numbers<[1], [0], [0], [1], [0, 0, 1, 1], [], []>} : vector<12x32xf32>, vector<32x64xf32>, vector<12x64xf32> -> vector<12x64xf32>
    %239 = vector.broadcast %56 : vector<1x64xf32> to vector<12x64xf32>
    %240 = arith.addf %238, %239 : vector<12x64xf32>
    %cst_89 = arith.constant 0.000000e+00 : f32
    %241 = vector.broadcast %cst_89 : f32 to vector<12x64xf32>
    %242 = arith.maximumf %240, %241 : vector<12x64xf32>
    %cst_90 = arith.constant dense<0.000000e+00> : vector<12x32xf32>
    %243 = tpu.matmul %242, %57, %cst_90 {dimension_numbers = #tpu.dot_dimension_numbers<[1], [0], [0], [1], [0, 0, 1, 1], [], []>} : vector<12x64xf32>, vector<64x32xf32>, vector<12x32xf32> -> vector<12x32xf32>
    %244 = vector.broadcast %58 : vector<1x32xf32> to vector<12x32xf32>
    %245 = arith.addf %243, %244 : vector<12x32xf32>
    %246 = arith.addf %237, %245 : vector<12x32xf32>
    %cst_91 = arith.constant dense<0.000000e+00> : vector<12xf32>
    %247 = vector.multi_reduction <add>, %246, %cst_91 [1] : vector<12x32xf32> to vector<12xf32>
    %248 = vector.shape_cast %247 : vector<12xf32> to vector<12x1xf32>
    %cst_92 = arith.constant 3.200000e+01 : f32
    %249 = vector.broadcast %cst_92 : f32 to vector<12x1xf32>
    %250 = arith.divf %248, %249 : vector<12x1xf32>
    %251 = vector.broadcast %250 : vector<12x1xf32> to vector<12x32xf32>
    %252 = arith.subf %246, %251 : vector<12x32xf32>
    %253 = arith.mulf %252, %252 : vector<12x32xf32>
    %cst_93 = arith.constant dense<0.000000e+00> : vector<12xf32>
    %254 = vector.multi_reduction <add>, %253, %cst_93 [1] : vector<12x32xf32> to vector<12xf32>
    %255 = vector.shape_cast %254 : vector<12xf32> to vector<12x1xf32>
    %cst_94 = arith.constant 3.200000e+01 : f32
    %256 = vector.broadcast %cst_94 : f32 to vector<12x1xf32>
    %257 = arith.divf %255, %256 : vector<12x1xf32>
    %258 = vector.broadcast %250 : vector<12x1xf32> to vector<12x32xf32>
    %259 = arith.subf %246, %258 : vector<12x32xf32>
    %cst_95 = arith.constant 9.99999974E-6 : f32
    %260 = vector.broadcast %cst_95 : f32 to vector<12x1xf32>
    %261 = arith.addf %257, %260 : vector<12x1xf32>
    %262 = math.rsqrt %261 : vector<12x1xf32>
    %263 = vector.broadcast %262 : vector<12x1xf32> to vector<12x32xf32>
    %264 = arith.mulf %259, %263 : vector<12x32xf32>
    %265 = vector.broadcast %59 : vector<1x32xf32> to vector<12x32xf32>
    %266 = arith.mulf %264, %265 : vector<12x32xf32>
    %267 = vector.broadcast %60 : vector<1x32xf32> to vector<12x32xf32>
    %268 = arith.addf %266, %267 : vector<12x32xf32>
    %c0_96 = arith.constant 0 : index
    %c0_97 = arith.constant 0 : index
    %269 = vector.load %arg17[%c0_96, %c0_97] : memref<1x32xf32, #tpu.memory_space<vmem>>, vector<1x32xf32>
    %c0_98 = arith.constant 0 : index
    %c0_99 = arith.constant 0 : index
    %270 = vector.load %arg18[%c0_98, %c0_99] : memref<1x32xf32, #tpu.memory_space<vmem>>, vector<1x32xf32>
    %cst_100 = arith.constant dense<0.000000e+00> : vector<12xf32>
    %271 = vector.multi_reduction <add>, %268, %cst_100 [1] : vector<12x32xf32> to vector<12xf32>
    %272 = vector.shape_cast %271 : vector<12xf32> to vector<12x1xf32>
    %cst_101 = arith.constant 3.200000e+01 : f32
    %273 = vector.broadcast %cst_101 : f32 to vector<12x1xf32>
    %274 = arith.divf %272, %273 : vector<12x1xf32>
    %275 = vector.broadcast %274 : vector<12x1xf32> to vector<12x32xf32>
    %276 = arith.subf %268, %275 : vector<12x32xf32>
    %277 = arith.mulf %276, %276 : vector<12x32xf32>
    %cst_102 = arith.constant dense<0.000000e+00> : vector<12xf32>
    %278 = vector.multi_reduction <add>, %277, %cst_102 [1] : vector<12x32xf32> to vector<12xf32>
    %279 = vector.shape_cast %278 : vector<12xf32> to vector<12x1xf32>
    %cst_103 = arith.constant 3.200000e+01 : f32
    %280 = vector.broadcast %cst_103 : f32 to vector<12x1xf32>
    %281 = arith.divf %279, %280 : vector<12x1xf32>
    %282 = vector.broadcast %274 : vector<12x1xf32> to vector<12x32xf32>
    %283 = arith.subf %268, %282 : vector<12x32xf32>
    %cst_104 = arith.constant 9.99999974E-6 : f32
    %284 = vector.broadcast %cst_104 : f32 to vector<12x1xf32>
    %285 = arith.addf %281, %284 : vector<12x1xf32>
    %286 = math.rsqrt %285 : vector<12x1xf32>
    %287 = vector.broadcast %286 : vector<12x1xf32> to vector<12x32xf32>
    %288 = arith.mulf %283, %287 : vector<12x32xf32>
    %289 = vector.broadcast %269 : vector<1x32xf32> to vector<12x32xf32>
    %290 = arith.mulf %288, %289 : vector<12x32xf32>
    %291 = vector.broadcast %270 : vector<1x32xf32> to vector<12x32xf32>
    %292 = arith.addf %290, %291 : vector<12x32xf32>
    %c0_105 = arith.constant 0 : index
    %c0_106 = arith.constant 0 : index
    %293 = vector.load %arg19[%c0_105, %c0_106] : memref<32x96xf32, #tpu.memory_space<vmem>>, vector<32x96xf32>
    %c0_107 = arith.constant 0 : index
    %c0_108 = arith.constant 0 : index
    %294 = vector.load %arg20[%c0_107, %c0_108] : memref<1x96xf32, #tpu.memory_space<vmem>>, vector<1x96xf32>
    %c0_109 = arith.constant 0 : index
    %c0_110 = arith.constant 0 : index
    %295 = vector.load %arg21[%c0_109, %c0_110] : memref<32x32xf32, #tpu.memory_space<vmem>>, vector<32x32xf32>
    %c0_111 = arith.constant 0 : index
    %c0_112 = arith.constant 0 : index
    %296 = vector.load %arg22[%c0_111, %c0_112] : memref<1x32xf32, #tpu.memory_space<vmem>>, vector<1x32xf32>
    %c0_113 = arith.constant 0 : index
    %c0_114 = arith.constant 0 : index
    %297 = vector.load %arg23[%c0_113, %c0_114] : memref<1x32xf32, #tpu.memory_space<vmem>>, vector<1x32xf32>
    %c0_115 = arith.constant 0 : index
    %c0_116 = arith.constant 0 : index
    %298 = vector.load %arg24[%c0_115, %c0_116] : memref<1x32xf32, #tpu.memory_space<vmem>>, vector<1x32xf32>
    %c0_117 = arith.constant 0 : index
    %c0_118 = arith.constant 0 : index
    %299 = vector.load %arg25[%c0_117, %c0_118] : memref<32x32xf32, #tpu.memory_space<vmem>>, vector<32x32xf32>
    %c0_119 = arith.constant 0 : index
    %c0_120 = arith.constant 0 : index
    %300 = vector.load %arg26[%c0_119, %c0_120] : memref<1x32xf32, #tpu.memory_space<vmem>>, vector<1x32xf32>
    %c0_121 = arith.constant 0 : index
    %c0_122 = arith.constant 0 : index
    %301 = vector.load %arg27[%c0_121, %c0_122] : memref<32x64xf32, #tpu.memory_space<vmem>>, vector<32x64xf32>
    %c0_123 = arith.constant 0 : index
    %c0_124 = arith.constant 0 : index
    %302 = vector.load %arg28[%c0_123, %c0_124] : memref<1x64xf32, #tpu.memory_space<vmem>>, vector<1x64xf32>
    %c0_125 = arith.constant 0 : index
    %c0_126 = arith.constant 0 : index
    %303 = vector.load %arg29[%c0_125, %c0_126] : memref<32x32xf32, #tpu.memory_space<vmem>>, vector<32x32xf32>
    %c0_127 = arith.constant 0 : index
    %c0_128 = arith.constant 0 : index
    %304 = vector.load %arg30[%c0_127, %c0_128] : memref<1x32xf32, #tpu.memory_space<vmem>>, vector<1x32xf32>
    %c0_129 = arith.constant 0 : index
    %c0_130 = arith.constant 0 : index
    %305 = vector.load %arg31[%c0_129, %c0_130] : memref<1x32xf32, #tpu.memory_space<vmem>>, vector<1x32xf32>
    %c0_131 = arith.constant 0 : index
    %c0_132 = arith.constant 0 : index
    %306 = vector.load %arg32[%c0_131, %c0_132] : memref<1x32xf32, #tpu.memory_space<vmem>>, vector<1x32xf32>
    %c0_133 = arith.constant 0 : index
    %c0_134 = arith.constant 0 : index
    %307 = vector.load %arg33[%c0_133, %c0_134] : memref<32x64xf32, #tpu.memory_space<vmem>>, vector<32x64xf32>
    %c0_135 = arith.constant 0 : index
    %c0_136 = arith.constant 0 : index
    %308 = vector.load %arg34[%c0_135, %c0_136] : memref<1x64xf32, #tpu.memory_space<vmem>>, vector<1x64xf32>
    %c0_137 = arith.constant 0 : index
    %c0_138 = arith.constant 0 : index
    %309 = vector.load %arg35[%c0_137, %c0_138] : memref<64x32xf32, #tpu.memory_space<vmem>>, vector<64x32xf32>
    %c0_139 = arith.constant 0 : index
    %c0_140 = arith.constant 0 : index
    %310 = vector.load %arg36[%c0_139, %c0_140] : memref<1x32xf32, #tpu.memory_space<vmem>>, vector<1x32xf32>
    %c0_141 = arith.constant 0 : index
    %c0_142 = arith.constant 0 : index
    %311 = vector.load %arg37[%c0_141, %c0_142] : memref<1x32xf32, #tpu.memory_space<vmem>>, vector<1x32xf32>
    %c0_143 = arith.constant 0 : index
    %c0_144 = arith.constant 0 : index
    %312 = vector.load %arg38[%c0_143, %c0_144] : memref<1x32xf32, #tpu.memory_space<vmem>>, vector<1x32xf32>
    %cst_145 = arith.constant dense<0.000000e+00> : vector<4x96xf32>
    %313 = tpu.matmul %48, %293, %cst_145 {dimension_numbers = #tpu.dot_dimension_numbers<[1], [0], [0], [1], [0, 0, 1, 1], [], []>} : vector<4x32xf32>, vector<32x96xf32>, vector<4x96xf32> -> vector<4x96xf32>
    %314 = vector.broadcast %294 : vector<1x96xf32> to vector<4x96xf32>
    %315 = arith.addf %313, %314 : vector<4x96xf32>
    %316 = vector.extract_strided_slice %315 {offsets = [0, 0], sizes = [4, 32], strides = [1, 1]} : vector<4x96xf32> to vector<4x32xf32>
    %317 = vector.extract_strided_slice %315 {offsets = [0, 32], sizes = [4, 32], strides = [1, 1]} : vector<4x96xf32> to vector<4x32xf32>
    %318 = vector.extract_strided_slice %315 {offsets = [0, 64], sizes = [4, 32], strides = [1, 1]} : vector<4x96xf32> to vector<4x32xf32>
    %319 = vector.extract_strided_slice %316 {offsets = [0, 0], sizes = [2, 32], strides = [1, 1]} : vector<4x32xf32> to vector<2x32xf32>
    %320 = vector.extract_strided_slice %317 {offsets = [0, 0], sizes = [2, 32], strides = [1, 1]} : vector<4x32xf32> to vector<2x32xf32>
    %321 = vector.extract_strided_slice %318 {offsets = [0, 0], sizes = [2, 32], strides = [1, 1]} : vector<4x32xf32> to vector<2x32xf32>
    %322 = vector.extract_strided_slice %319 {offsets = [0, 0], sizes = [2, 8], strides = [1, 1]} : vector<2x32xf32> to vector<2x8xf32>
    %323 = vector.extract_strided_slice %320 {offsets = [0, 0], sizes = [2, 8], strides = [1, 1]} : vector<2x32xf32> to vector<2x8xf32>
    %324 = vector.extract_strided_slice %321 {offsets = [0, 0], sizes = [2, 8], strides = [1, 1]} : vector<2x32xf32> to vector<2x8xf32>
    %325 = tpu.transpose %323, [1, 0] : vector<2x8xf32> -> vector<8x2xf32>
    %cst_146 = arith.constant dense<0.000000e+00> : vector<2x2xf32>
    %326 = tpu.matmul %322, %325, %cst_146 {dimension_numbers = #tpu.dot_dimension_numbers<[1], [0], [0], [1], [0, 0, 1, 1], [], []>} : vector<2x8xf32>, vector<8x2xf32>, vector<2x2xf32> -> vector<2x2xf32>
    %cst_147 = arith.constant 0.353553385 : f32
    %327 = vector.broadcast %cst_147 : f32 to vector<2x2xf32>
    %328 = arith.mulf %326, %327 : vector<2x2xf32>
    %cst_148 = arith.constant dense<0xFF800000> : vector<2xf32>
    %329 = vector.multi_reduction <maximumf>, %328, %cst_148 [1] : vector<2x2xf32> to vector<2xf32>
    %330 = vector.shape_cast %329 : vector<2xf32> to vector<2x1xf32>
    %331 = vector.broadcast %330 : vector<2x1xf32> to vector<2x2xf32>
    %332 = arith.subf %328, %331 : vector<2x2xf32>
    %333 = math.exp %332 : vector<2x2xf32>
    %cst_149 = arith.constant dense<0.000000e+00> : vector<2xf32>
    %334 = vector.multi_reduction <add>, %333, %cst_149 [1] : vector<2x2xf32> to vector<2xf32>
    %335 = vector.shape_cast %334 : vector<2xf32> to vector<2x1xf32>
    %336 = vector.broadcast %335 : vector<2x1xf32> to vector<2x2xf32>
    %337 = arith.divf %333, %336 : vector<2x2xf32>
    %cst_150 = arith.constant dense<0.000000e+00> : vector<2x8xf32>
    %338 = tpu.matmul %337, %324, %cst_150 {dimension_numbers = #tpu.dot_dimension_numbers<[1], [0], [0], [1], [0, 0, 1, 1], [], []>} : vector<2x2xf32>, vector<2x8xf32>, vector<2x8xf32> -> vector<2x8xf32>
    %339 = vector.extract_strided_slice %319 {offsets = [0, 8], sizes = [2, 8], strides = [1, 1]} : vector<2x32xf32> to vector<2x8xf32>
    %340 = vector.extract_strided_slice %320 {offsets = [0, 8], sizes = [2, 8], strides = [1, 1]} : vector<2x32xf32> to vector<2x8xf32>
    %341 = vector.extract_strided_slice %321 {offsets = [0, 8], sizes = [2, 8], strides = [1, 1]} : vector<2x32xf32> to vector<2x8xf32>
    %342 = tpu.transpose %340, [1, 0] : vector<2x8xf32> -> vector<8x2xf32>
    %cst_151 = arith.constant dense<0.000000e+00> : vector<2x2xf32>
    %343 = tpu.matmul %339, %342, %cst_151 {dimension_numbers = #tpu.dot_dimension_numbers<[1], [0], [0], [1], [0, 0, 1, 1], [], []>} : vector<2x8xf32>, vector<8x2xf32>, vector<2x2xf32> -> vector<2x2xf32>
    %cst_152 = arith.constant 0.353553385 : f32
    %344 = vector.broadcast %cst_152 : f32 to vector<2x2xf32>
    %345 = arith.mulf %343, %344 : vector<2x2xf32>
    %cst_153 = arith.constant dense<0xFF800000> : vector<2xf32>
    %346 = vector.multi_reduction <maximumf>, %345, %cst_153 [1] : vector<2x2xf32> to vector<2xf32>
    %347 = vector.shape_cast %346 : vector<2xf32> to vector<2x1xf32>
    %348 = vector.broadcast %347 : vector<2x1xf32> to vector<2x2xf32>
    %349 = arith.subf %345, %348 : vector<2x2xf32>
    %350 = math.exp %349 : vector<2x2xf32>
    %cst_154 = arith.constant dense<0.000000e+00> : vector<2xf32>
    %351 = vector.multi_reduction <add>, %350, %cst_154 [1] : vector<2x2xf32> to vector<2xf32>
    %352 = vector.shape_cast %351 : vector<2xf32> to vector<2x1xf32>
    %353 = vector.broadcast %352 : vector<2x1xf32> to vector<2x2xf32>
    %354 = arith.divf %350, %353 : vector<2x2xf32>
    %cst_155 = arith.constant dense<0.000000e+00> : vector<2x8xf32>
    %355 = tpu.matmul %354, %341, %cst_155 {dimension_numbers = #tpu.dot_dimension_numbers<[1], [0], [0], [1], [0, 0, 1, 1], [], []>} : vector<2x2xf32>, vector<2x8xf32>, vector<2x8xf32> -> vector<2x8xf32>
    %356 = vector.extract_strided_slice %319 {offsets = [0, 16], sizes = [2, 8], strides = [1, 1]} : vector<2x32xf32> to vector<2x8xf32>
    %357 = vector.extract_strided_slice %320 {offsets = [0, 16], sizes = [2, 8], strides = [1, 1]} : vector<2x32xf32> to vector<2x8xf32>
    %358 = vector.extract_strided_slice %321 {offsets = [0, 16], sizes = [2, 8], strides = [1, 1]} : vector<2x32xf32> to vector<2x8xf32>
    %359 = tpu.transpose %357, [1, 0] : vector<2x8xf32> -> vector<8x2xf32>
    %cst_156 = arith.constant dense<0.000000e+00> : vector<2x2xf32>
    %360 = tpu.matmul %356, %359, %cst_156 {dimension_numbers = #tpu.dot_dimension_numbers<[1], [0], [0], [1], [0, 0, 1, 1], [], []>} : vector<2x8xf32>, vector<8x2xf32>, vector<2x2xf32> -> vector<2x2xf32>
    %cst_157 = arith.constant 0.353553385 : f32
    %361 = vector.broadcast %cst_157 : f32 to vector<2x2xf32>
    %362 = arith.mulf %360, %361 : vector<2x2xf32>
    %cst_158 = arith.constant dense<0xFF800000> : vector<2xf32>
    %363 = vector.multi_reduction <maximumf>, %362, %cst_158 [1] : vector<2x2xf32> to vector<2xf32>
    %364 = vector.shape_cast %363 : vector<2xf32> to vector<2x1xf32>
    %365 = vector.broadcast %364 : vector<2x1xf32> to vector<2x2xf32>
    %366 = arith.subf %362, %365 : vector<2x2xf32>
    %367 = math.exp %366 : vector<2x2xf32>
    %cst_159 = arith.constant dense<0.000000e+00> : vector<2xf32>
    %368 = vector.multi_reduction <add>, %367, %cst_159 [1] : vector<2x2xf32> to vector<2xf32>
    %369 = vector.shape_cast %368 : vector<2xf32> to vector<2x1xf32>
    %370 = vector.broadcast %369 : vector<2x1xf32> to vector<2x2xf32>
    %371 = arith.divf %367, %370 : vector<2x2xf32>
    %cst_160 = arith.constant dense<0.000000e+00> : vector<2x8xf32>
    %372 = tpu.matmul %371, %358, %cst_160 {dimension_numbers = #tpu.dot_dimension_numbers<[1], [0], [0], [1], [0, 0, 1, 1], [], []>} : vector<2x2xf32>, vector<2x8xf32>, vector<2x8xf32> -> vector<2x8xf32>
    %373 = vector.extract_strided_slice %319 {offsets = [0, 24], sizes = [2, 8], strides = [1, 1]} : vector<2x32xf32> to vector<2x8xf32>
    %374 = vector.extract_strided_slice %320 {offsets = [0, 24], sizes = [2, 8], strides = [1, 1]} : vector<2x32xf32> to vector<2x8xf32>
    %375 = vector.extract_strided_slice %321 {offsets = [0, 24], sizes = [2, 8], strides = [1, 1]} : vector<2x32xf32> to vector<2x8xf32>
    %376 = tpu.transpose %374, [1, 0] : vector<2x8xf32> -> vector<8x2xf32>
    %cst_161 = arith.constant dense<0.000000e+00> : vector<2x2xf32>
    %377 = tpu.matmul %373, %376, %cst_161 {dimension_numbers = #tpu.dot_dimension_numbers<[1], [0], [0], [1], [0, 0, 1, 1], [], []>} : vector<2x8xf32>, vector<8x2xf32>, vector<2x2xf32> -> vector<2x2xf32>
    %cst_162 = arith.constant 0.353553385 : f32
    %378 = vector.broadcast %cst_162 : f32 to vector<2x2xf32>
    %379 = arith.mulf %377, %378 : vector<2x2xf32>
    %cst_163 = arith.constant dense<0xFF800000> : vector<2xf32>
    %380 = vector.multi_reduction <maximumf>, %379, %cst_163 [1] : vector<2x2xf32> to vector<2xf32>
    %381 = vector.shape_cast %380 : vector<2xf32> to vector<2x1xf32>
    %382 = vector.broadcast %381 : vector<2x1xf32> to vector<2x2xf32>
    %383 = arith.subf %379, %382 : vector<2x2xf32>
    %384 = math.exp %383 : vector<2x2xf32>
    %cst_164 = arith.constant dense<0.000000e+00> : vector<2xf32>
    %385 = vector.multi_reduction <add>, %384, %cst_164 [1] : vector<2x2xf32> to vector<2xf32>
    %386 = vector.shape_cast %385 : vector<2xf32> to vector<2x1xf32>
    %387 = vector.broadcast %386 : vector<2x1xf32> to vector<2x2xf32>
    %388 = arith.divf %384, %387 : vector<2x2xf32>
    %cst_165 = arith.constant dense<0.000000e+00> : vector<2x8xf32>
    %389 = tpu.matmul %388, %375, %cst_165 {dimension_numbers = #tpu.dot_dimension_numbers<[1], [0], [0], [1], [0, 0, 1, 1], [], []>} : vector<2x2xf32>, vector<2x8xf32>, vector<2x8xf32> -> vector<2x8xf32>
    %390 = tpu.concatenate %338, %355, %372, %389 in 1 : vector<2x8xf32>, vector<2x8xf32>, vector<2x8xf32>, vector<2x8xf32> -> vector<2x32xf32>
    %391 = vector.extract_strided_slice %316 {offsets = [2, 0], sizes = [2, 32], strides = [1, 1]} : vector<4x32xf32> to vector<2x32xf32>
    %392 = vector.extract_strided_slice %317 {offsets = [2, 0], sizes = [2, 32], strides = [1, 1]} : vector<4x32xf32> to vector<2x32xf32>
    %393 = vector.extract_strided_slice %318 {offsets = [2, 0], sizes = [2, 32], strides = [1, 1]} : vector<4x32xf32> to vector<2x32xf32>
    %394 = vector.extract_strided_slice %391 {offsets = [0, 0], sizes = [2, 8], strides = [1, 1]} : vector<2x32xf32> to vector<2x8xf32>
    %395 = vector.extract_strided_slice %392 {offsets = [0, 0], sizes = [2, 8], strides = [1, 1]} : vector<2x32xf32> to vector<2x8xf32>
    %396 = vector.extract_strided_slice %393 {offsets = [0, 0], sizes = [2, 8], strides = [1, 1]} : vector<2x32xf32> to vector<2x8xf32>
    %397 = tpu.transpose %395, [1, 0] : vector<2x8xf32> -> vector<8x2xf32>
    %cst_166 = arith.constant dense<0.000000e+00> : vector<2x2xf32>
    %398 = tpu.matmul %394, %397, %cst_166 {dimension_numbers = #tpu.dot_dimension_numbers<[1], [0], [0], [1], [0, 0, 1, 1], [], []>} : vector<2x8xf32>, vector<8x2xf32>, vector<2x2xf32> -> vector<2x2xf32>
    %cst_167 = arith.constant 0.353553385 : f32
    %399 = vector.broadcast %cst_167 : f32 to vector<2x2xf32>
    %400 = arith.mulf %398, %399 : vector<2x2xf32>
    %cst_168 = arith.constant dense<0xFF800000> : vector<2xf32>
    %401 = vector.multi_reduction <maximumf>, %400, %cst_168 [1] : vector<2x2xf32> to vector<2xf32>
    %402 = vector.shape_cast %401 : vector<2xf32> to vector<2x1xf32>
    %403 = vector.broadcast %402 : vector<2x1xf32> to vector<2x2xf32>
    %404 = arith.subf %400, %403 : vector<2x2xf32>
    %405 = math.exp %404 : vector<2x2xf32>
    %cst_169 = arith.constant dense<0.000000e+00> : vector<2xf32>
    %406 = vector.multi_reduction <add>, %405, %cst_169 [1] : vector<2x2xf32> to vector<2xf32>
    %407 = vector.shape_cast %406 : vector<2xf32> to vector<2x1xf32>
    %408 = vector.broadcast %407 : vector<2x1xf32> to vector<2x2xf32>
    %409 = arith.divf %405, %408 : vector<2x2xf32>
    %cst_170 = arith.constant dense<0.000000e+00> : vector<2x8xf32>
    %410 = tpu.matmul %409, %396, %cst_170 {dimension_numbers = #tpu.dot_dimension_numbers<[1], [0], [0], [1], [0, 0, 1, 1], [], []>} : vector<2x2xf32>, vector<2x8xf32>, vector<2x8xf32> -> vector<2x8xf32>
    %411 = vector.extract_strided_slice %391 {offsets = [0, 8], sizes = [2, 8], strides = [1, 1]} : vector<2x32xf32> to vector<2x8xf32>
    %412 = vector.extract_strided_slice %392 {offsets = [0, 8], sizes = [2, 8], strides = [1, 1]} : vector<2x32xf32> to vector<2x8xf32>
    %413 = vector.extract_strided_slice %393 {offsets = [0, 8], sizes = [2, 8], strides = [1, 1]} : vector<2x32xf32> to vector<2x8xf32>
    %414 = tpu.transpose %412, [1, 0] : vector<2x8xf32> -> vector<8x2xf32>
    %cst_171 = arith.constant dense<0.000000e+00> : vector<2x2xf32>
    %415 = tpu.matmul %411, %414, %cst_171 {dimension_numbers = #tpu.dot_dimension_numbers<[1], [0], [0], [1], [0, 0, 1, 1], [], []>} : vector<2x8xf32>, vector<8x2xf32>, vector<2x2xf32> -> vector<2x2xf32>
    %cst_172 = arith.constant 0.353553385 : f32
    %416 = vector.broadcast %cst_172 : f32 to vector<2x2xf32>
    %417 = arith.mulf %415, %416 : vector<2x2xf32>
    %cst_173 = arith.constant dense<0xFF800000> : vector<2xf32>
    %418 = vector.multi_reduction <maximumf>, %417, %cst_173 [1] : vector<2x2xf32> to vector<2xf32>
    %419 = vector.shape_cast %418 : vector<2xf32> to vector<2x1xf32>
    %420 = vector.broadcast %419 : vector<2x1xf32> to vector<2x2xf32>
    %421 = arith.subf %417, %420 : vector<2x2xf32>
    %422 = math.exp %421 : vector<2x2xf32>
    %cst_174 = arith.constant dense<0.000000e+00> : vector<2xf32>
    %423 = vector.multi_reduction <add>, %422, %cst_174 [1] : vector<2x2xf32> to vector<2xf32>
    %424 = vector.shape_cast %423 : vector<2xf32> to vector<2x1xf32>
    %425 = vector.broadcast %424 : vector<2x1xf32> to vector<2x2xf32>
    %426 = arith.divf %422, %425 : vector<2x2xf32>
    %cst_175 = arith.constant dense<0.000000e+00> : vector<2x8xf32>
    %427 = tpu.matmul %426, %413, %cst_175 {dimension_numbers = #tpu.dot_dimension_numbers<[1], [0], [0], [1], [0, 0, 1, 1], [], []>} : vector<2x2xf32>, vector<2x8xf32>, vector<2x8xf32> -> vector<2x8xf32>
    %428 = vector.extract_strided_slice %391 {offsets = [0, 16], sizes = [2, 8], strides = [1, 1]} : vector<2x32xf32> to vector<2x8xf32>
    %429 = vector.extract_strided_slice %392 {offsets = [0, 16], sizes = [2, 8], strides = [1, 1]} : vector<2x32xf32> to vector<2x8xf32>
    %430 = vector.extract_strided_slice %393 {offsets = [0, 16], sizes = [2, 8], strides = [1, 1]} : vector<2x32xf32> to vector<2x8xf32>
    %431 = tpu.transpose %429, [1, 0] : vector<2x8xf32> -> vector<8x2xf32>
    %cst_176 = arith.constant dense<0.000000e+00> : vector<2x2xf32>
    %432 = tpu.matmul %428, %431, %cst_176 {dimension_numbers = #tpu.dot_dimension_numbers<[1], [0], [0], [1], [0, 0, 1, 1], [], []>} : vector<2x8xf32>, vector<8x2xf32>, vector<2x2xf32> -> vector<2x2xf32>
    %cst_177 = arith.constant 0.353553385 : f32
    %433 = vector.broadcast %cst_177 : f32 to vector<2x2xf32>
    %434 = arith.mulf %432, %433 : vector<2x2xf32>
    %cst_178 = arith.constant dense<0xFF800000> : vector<2xf32>
    %435 = vector.multi_reduction <maximumf>, %434, %cst_178 [1] : vector<2x2xf32> to vector<2xf32>
    %436 = vector.shape_cast %435 : vector<2xf32> to vector<2x1xf32>
    %437 = vector.broadcast %436 : vector<2x1xf32> to vector<2x2xf32>
    %438 = arith.subf %434, %437 : vector<2x2xf32>
    %439 = math.exp %438 : vector<2x2xf32>
    %cst_179 = arith.constant dense<0.000000e+00> : vector<2xf32>
    %440 = vector.multi_reduction <add>, %439, %cst_179 [1] : vector<2x2xf32> to vector<2xf32>
    %441 = vector.shape_cast %440 : vector<2xf32> to vector<2x1xf32>
    %442 = vector.broadcast %441 : vector<2x1xf32> to vector<2x2xf32>
    %443 = arith.divf %439, %442 : vector<2x2xf32>
    %cst_180 = arith.constant dense<0.000000e+00> : vector<2x8xf32>
    %444 = tpu.matmul %443, %430, %cst_180 {dimension_numbers = #tpu.dot_dimension_numbers<[1], [0], [0], [1], [0, 0, 1, 1], [], []>} : vector<2x2xf32>, vector<2x8xf32>, vector<2x8xf32> -> vector<2x8xf32>
    %445 = vector.extract_strided_slice %391 {offsets = [0, 24], sizes = [2, 8], strides = [1, 1]} : vector<2x32xf32> to vector<2x8xf32>
    %446 = vector.extract_strided_slice %392 {offsets = [0, 24], sizes = [2, 8], strides = [1, 1]} : vector<2x32xf32> to vector<2x8xf32>
    %447 = vector.extract_strided_slice %393 {offsets = [0, 24], sizes = [2, 8], strides = [1, 1]} : vector<2x32xf32> to vector<2x8xf32>
    %448 = tpu.transpose %446, [1, 0] : vector<2x8xf32> -> vector<8x2xf32>
    %cst_181 = arith.constant dense<0.000000e+00> : vector<2x2xf32>
    %449 = tpu.matmul %445, %448, %cst_181 {dimension_numbers = #tpu.dot_dimension_numbers<[1], [0], [0], [1], [0, 0, 1, 1], [], []>} : vector<2x8xf32>, vector<8x2xf32>, vector<2x2xf32> -> vector<2x2xf32>
    %cst_182 = arith.constant 0.353553385 : f32
    %450 = vector.broadcast %cst_182 : f32 to vector<2x2xf32>
    %451 = arith.mulf %449, %450 : vector<2x2xf32>
    %cst_183 = arith.constant dense<0xFF800000> : vector<2xf32>
    %452 = vector.multi_reduction <maximumf>, %451, %cst_183 [1] : vector<2x2xf32> to vector<2xf32>
    %453 = vector.shape_cast %452 : vector<2xf32> to vector<2x1xf32>
    %454 = vector.broadcast %453 : vector<2x1xf32> to vector<2x2xf32>
    %455 = arith.subf %451, %454 : vector<2x2xf32>
    %456 = math.exp %455 : vector<2x2xf32>
    %cst_184 = arith.constant dense<0.000000e+00> : vector<2xf32>
    %457 = vector.multi_reduction <add>, %456, %cst_184 [1] : vector<2x2xf32> to vector<2xf32>
    %458 = vector.shape_cast %457 : vector<2xf32> to vector<2x1xf32>
    %459 = vector.broadcast %458 : vector<2x1xf32> to vector<2x2xf32>
    %460 = arith.divf %456, %459 : vector<2x2xf32>
    %cst_185 = arith.constant dense<0.000000e+00> : vector<2x8xf32>
    %461 = tpu.matmul %460, %447, %cst_185 {dimension_numbers = #tpu.dot_dimension_numbers<[1], [0], [0], [1], [0, 0, 1, 1], [], []>} : vector<2x2xf32>, vector<2x8xf32>, vector<2x8xf32> -> vector<2x8xf32>
    %462 = tpu.concatenate %410, %427, %444, %461 in 1 : vector<2x8xf32>, vector<2x8xf32>, vector<2x8xf32>, vector<2x8xf32> -> vector<2x32xf32>
    %463 = tpu.concatenate %390, %462 in 0 : vector<2x32xf32>, vector<2x32xf32> -> vector<4x32xf32>
    %cst_186 = arith.constant dense<0.000000e+00> : vector<4x32xf32>
    %464 = tpu.matmul %463, %295, %cst_186 {dimension_numbers = #tpu.dot_dimension_numbers<[1], [0], [0], [1], [0, 0, 1, 1], [], []>} : vector<4x32xf32>, vector<32x32xf32>, vector<4x32xf32> -> vector<4x32xf32>
    %465 = vector.broadcast %296 : vector<1x32xf32> to vector<4x32xf32>
    %466 = arith.addf %464, %465 : vector<4x32xf32>
    %467 = arith.addf %48, %466 : vector<4x32xf32>
    %cst_187 = arith.constant dense<0.000000e+00> : vector<4xf32>
    %468 = vector.multi_reduction <add>, %467, %cst_187 [1] : vector<4x32xf32> to vector<4xf32>
    %469 = vector.shape_cast %468 : vector<4xf32> to vector<4x1xf32>
    %cst_188 = arith.constant 3.200000e+01 : f32
    %470 = vector.broadcast %cst_188 : f32 to vector<4x1xf32>
    %471 = arith.divf %469, %470 : vector<4x1xf32>
    %472 = vector.broadcast %471 : vector<4x1xf32> to vector<4x32xf32>
    %473 = arith.subf %467, %472 : vector<4x32xf32>
    %474 = arith.mulf %473, %473 : vector<4x32xf32>
    %cst_189 = arith.constant dense<0.000000e+00> : vector<4xf32>
    %475 = vector.multi_reduction <add>, %474, %cst_189 [1] : vector<4x32xf32> to vector<4xf32>
    %476 = vector.shape_cast %475 : vector<4xf32> to vector<4x1xf32>
    %cst_190 = arith.constant 3.200000e+01 : f32
    %477 = vector.broadcast %cst_190 : f32 to vector<4x1xf32>
    %478 = arith.divf %476, %477 : vector<4x1xf32>
    %479 = vector.broadcast %471 : vector<4x1xf32> to vector<4x32xf32>
    %480 = arith.subf %467, %479 : vector<4x32xf32>
    %cst_191 = arith.constant 9.99999974E-6 : f32
    %481 = vector.broadcast %cst_191 : f32 to vector<4x1xf32>
    %482 = arith.addf %478, %481 : vector<4x1xf32>
    %483 = math.rsqrt %482 : vector<4x1xf32>
    %484 = vector.broadcast %483 : vector<4x1xf32> to vector<4x32xf32>
    %485 = arith.mulf %480, %484 : vector<4x32xf32>
    %486 = vector.broadcast %297 : vector<1x32xf32> to vector<4x32xf32>
    %487 = arith.mulf %485, %486 : vector<4x32xf32>
    %488 = vector.broadcast %298 : vector<1x32xf32> to vector<4x32xf32>
    %489 = arith.addf %487, %488 : vector<4x32xf32>
    %cst_192 = arith.constant dense<0.000000e+00> : vector<4x32xf32>
    %490 = tpu.matmul %489, %299, %cst_192 {dimension_numbers = #tpu.dot_dimension_numbers<[1], [0], [0], [1], [0, 0, 1, 1], [], []>} : vector<4x32xf32>, vector<32x32xf32>, vector<4x32xf32> -> vector<4x32xf32>
    %491 = vector.broadcast %300 : vector<1x32xf32> to vector<4x32xf32>
    %492 = arith.addf %490, %491 : vector<4x32xf32>
    %cst_193 = arith.constant dense<0.000000e+00> : vector<12x64xf32>
    %493 = tpu.matmul %292, %301, %cst_193 {dimension_numbers = #tpu.dot_dimension_numbers<[1], [0], [0], [1], [0, 0, 1, 1], [], []>} : vector<12x32xf32>, vector<32x64xf32>, vector<12x64xf32> -> vector<12x64xf32>
    %494 = vector.broadcast %302 : vector<1x64xf32> to vector<12x64xf32>
    %495 = arith.addf %493, %494 : vector<12x64xf32>
    %496 = vector.extract_strided_slice %495 {offsets = [0, 0], sizes = [12, 32], strides = [1, 1]} : vector<12x64xf32> to vector<12x32xf32>
    %497 = vector.extract_strided_slice %495 {offsets = [0, 32], sizes = [12, 32], strides = [1, 1]} : vector<12x64xf32> to vector<12x32xf32>
    %498 = vector.extract_strided_slice %492 {offsets = [0, 0], sizes = [2, 32], strides = [1, 1]} : vector<4x32xf32> to vector<2x32xf32>
    %499 = vector.extract_strided_slice %496 {offsets = [0, 0], sizes = [6, 32], strides = [1, 1]} : vector<12x32xf32> to vector<6x32xf32>
    %500 = vector.extract_strided_slice %497 {offsets = [0, 0], sizes = [6, 32], strides = [1, 1]} : vector<12x32xf32> to vector<6x32xf32>
    %501 = vector.extract_strided_slice %498 {offsets = [0, 0], sizes = [2, 8], strides = [1, 1]} : vector<2x32xf32> to vector<2x8xf32>
    %502 = vector.extract_strided_slice %499 {offsets = [0, 0], sizes = [6, 8], strides = [1, 1]} : vector<6x32xf32> to vector<6x8xf32>
    %503 = vector.extract_strided_slice %500 {offsets = [0, 0], sizes = [6, 8], strides = [1, 1]} : vector<6x32xf32> to vector<6x8xf32>
    %504 = tpu.transpose %502, [1, 0] : vector<6x8xf32> -> vector<8x6xf32>
    %cst_194 = arith.constant dense<0.000000e+00> : vector<2x6xf32>
    %505 = tpu.matmul %501, %504, %cst_194 {dimension_numbers = #tpu.dot_dimension_numbers<[1], [0], [0], [1], [0, 0, 1, 1], [], []>} : vector<2x8xf32>, vector<8x6xf32>, vector<2x6xf32> -> vector<2x6xf32>
    %cst_195 = arith.constant 0.353553385 : f32
    %506 = vector.broadcast %cst_195 : f32 to vector<2x6xf32>
    %507 = arith.mulf %505, %506 : vector<2x6xf32>
    %cst_196 = arith.constant dense<0xFF800000> : vector<2xf32>
    %508 = vector.multi_reduction <maximumf>, %507, %cst_196 [1] : vector<2x6xf32> to vector<2xf32>
    %509 = vector.shape_cast %508 : vector<2xf32> to vector<2x1xf32>
    %510 = vector.broadcast %509 : vector<2x1xf32> to vector<2x6xf32>
    %511 = arith.subf %507, %510 : vector<2x6xf32>
    %512 = math.exp %511 : vector<2x6xf32>
    %cst_197 = arith.constant dense<0.000000e+00> : vector<2xf32>
    %513 = vector.multi_reduction <add>, %512, %cst_197 [1] : vector<2x6xf32> to vector<2xf32>
    %514 = vector.shape_cast %513 : vector<2xf32> to vector<2x1xf32>
    %515 = vector.broadcast %514 : vector<2x1xf32> to vector<2x6xf32>
    %516 = arith.divf %512, %515 : vector<2x6xf32>
    %cst_198 = arith.constant dense<0.000000e+00> : vector<2x8xf32>
    %517 = tpu.matmul %516, %503, %cst_198 {dimension_numbers = #tpu.dot_dimension_numbers<[1], [0], [0], [1], [0, 0, 1, 1], [], []>} : vector<2x6xf32>, vector<6x8xf32>, vector<2x8xf32> -> vector<2x8xf32>
    %518 = vector.extract_strided_slice %498 {offsets = [0, 8], sizes = [2, 8], strides = [1, 1]} : vector<2x32xf32> to vector<2x8xf32>
    %519 = vector.extract_strided_slice %499 {offsets = [0, 8], sizes = [6, 8], strides = [1, 1]} : vector<6x32xf32> to vector<6x8xf32>
    %520 = vector.extract_strided_slice %500 {offsets = [0, 8], sizes = [6, 8], strides = [1, 1]} : vector<6x32xf32> to vector<6x8xf32>
    %521 = tpu.transpose %519, [1, 0] : vector<6x8xf32> -> vector<8x6xf32>
    %cst_199 = arith.constant dense<0.000000e+00> : vector<2x6xf32>
    %522 = tpu.matmul %518, %521, %cst_199 {dimension_numbers = #tpu.dot_dimension_numbers<[1], [0], [0], [1], [0, 0, 1, 1], [], []>} : vector<2x8xf32>, vector<8x6xf32>, vector<2x6xf32> -> vector<2x6xf32>
    %cst_200 = arith.constant 0.353553385 : f32
    %523 = vector.broadcast %cst_200 : f32 to vector<2x6xf32>
    %524 = arith.mulf %522, %523 : vector<2x6xf32>
    %cst_201 = arith.constant dense<0xFF800000> : vector<2xf32>
    %525 = vector.multi_reduction <maximumf>, %524, %cst_201 [1] : vector<2x6xf32> to vector<2xf32>
    %526 = vector.shape_cast %525 : vector<2xf32> to vector<2x1xf32>
    %527 = vector.broadcast %526 : vector<2x1xf32> to vector<2x6xf32>
    %528 = arith.subf %524, %527 : vector<2x6xf32>
    %529 = math.exp %528 : vector<2x6xf32>
    %cst_202 = arith.constant dense<0.000000e+00> : vector<2xf32>
    %530 = vector.multi_reduction <add>, %529, %cst_202 [1] : vector<2x6xf32> to vector<2xf32>
    %531 = vector.shape_cast %530 : vector<2xf32> to vector<2x1xf32>
    %532 = vector.broadcast %531 : vector<2x1xf32> to vector<2x6xf32>
    %533 = arith.divf %529, %532 : vector<2x6xf32>
    %cst_203 = arith.constant dense<0.000000e+00> : vector<2x8xf32>
    %534 = tpu.matmul %533, %520, %cst_203 {dimension_numbers = #tpu.dot_dimension_numbers<[1], [0], [0], [1], [0, 0, 1, 1], [], []>} : vector<2x6xf32>, vector<6x8xf32>, vector<2x8xf32> -> vector<2x8xf32>
    %535 = vector.extract_strided_slice %498 {offsets = [0, 16], sizes = [2, 8], strides = [1, 1]} : vector<2x32xf32> to vector<2x8xf32>
    %536 = vector.extract_strided_slice %499 {offsets = [0, 16], sizes = [6, 8], strides = [1, 1]} : vector<6x32xf32> to vector<6x8xf32>
    %537 = vector.extract_strided_slice %500 {offsets = [0, 16], sizes = [6, 8], strides = [1, 1]} : vector<6x32xf32> to vector<6x8xf32>
    %538 = tpu.transpose %536, [1, 0] : vector<6x8xf32> -> vector<8x6xf32>
    %cst_204 = arith.constant dense<0.000000e+00> : vector<2x6xf32>
    %539 = tpu.matmul %535, %538, %cst_204 {dimension_numbers = #tpu.dot_dimension_numbers<[1], [0], [0], [1], [0, 0, 1, 1], [], []>} : vector<2x8xf32>, vector<8x6xf32>, vector<2x6xf32> -> vector<2x6xf32>
    %cst_205 = arith.constant 0.353553385 : f32
    %540 = vector.broadcast %cst_205 : f32 to vector<2x6xf32>
    %541 = arith.mulf %539, %540 : vector<2x6xf32>
    %cst_206 = arith.constant dense<0xFF800000> : vector<2xf32>
    %542 = vector.multi_reduction <maximumf>, %541, %cst_206 [1] : vector<2x6xf32> to vector<2xf32>
    %543 = vector.shape_cast %542 : vector<2xf32> to vector<2x1xf32>
    %544 = vector.broadcast %543 : vector<2x1xf32> to vector<2x6xf32>
    %545 = arith.subf %541, %544 : vector<2x6xf32>
    %546 = math.exp %545 : vector<2x6xf32>
    %cst_207 = arith.constant dense<0.000000e+00> : vector<2xf32>
    %547 = vector.multi_reduction <add>, %546, %cst_207 [1] : vector<2x6xf32> to vector<2xf32>
    %548 = vector.shape_cast %547 : vector<2xf32> to vector<2x1xf32>
    %549 = vector.broadcast %548 : vector<2x1xf32> to vector<2x6xf32>
    %550 = arith.divf %546, %549 : vector<2x6xf32>
    %cst_208 = arith.constant dense<0.000000e+00> : vector<2x8xf32>
    %551 = tpu.matmul %550, %537, %cst_208 {dimension_numbers = #tpu.dot_dimension_numbers<[1], [0], [0], [1], [0, 0, 1, 1], [], []>} : vector<2x6xf32>, vector<6x8xf32>, vector<2x8xf32> -> vector<2x8xf32>
    %552 = vector.extract_strided_slice %498 {offsets = [0, 24], sizes = [2, 8], strides = [1, 1]} : vector<2x32xf32> to vector<2x8xf32>
    %553 = vector.extract_strided_slice %499 {offsets = [0, 24], sizes = [6, 8], strides = [1, 1]} : vector<6x32xf32> to vector<6x8xf32>
    %554 = vector.extract_strided_slice %500 {offsets = [0, 24], sizes = [6, 8], strides = [1, 1]} : vector<6x32xf32> to vector<6x8xf32>
    %555 = tpu.transpose %553, [1, 0] : vector<6x8xf32> -> vector<8x6xf32>
    %cst_209 = arith.constant dense<0.000000e+00> : vector<2x6xf32>
    %556 = tpu.matmul %552, %555, %cst_209 {dimension_numbers = #tpu.dot_dimension_numbers<[1], [0], [0], [1], [0, 0, 1, 1], [], []>} : vector<2x8xf32>, vector<8x6xf32>, vector<2x6xf32> -> vector<2x6xf32>
    %cst_210 = arith.constant 0.353553385 : f32
    %557 = vector.broadcast %cst_210 : f32 to vector<2x6xf32>
    %558 = arith.mulf %556, %557 : vector<2x6xf32>
    %cst_211 = arith.constant dense<0xFF800000> : vector<2xf32>
    %559 = vector.multi_reduction <maximumf>, %558, %cst_211 [1] : vector<2x6xf32> to vector<2xf32>
    %560 = vector.shape_cast %559 : vector<2xf32> to vector<2x1xf32>
    %561 = vector.broadcast %560 : vector<2x1xf32> to vector<2x6xf32>
    %562 = arith.subf %558, %561 : vector<2x6xf32>
    %563 = math.exp %562 : vector<2x6xf32>
    %cst_212 = arith.constant dense<0.000000e+00> : vector<2xf32>
    %564 = vector.multi_reduction <add>, %563, %cst_212 [1] : vector<2x6xf32> to vector<2xf32>
    %565 = vector.shape_cast %564 : vector<2xf32> to vector<2x1xf32>
    %566 = vector.broadcast %565 : vector<2x1xf32> to vector<2x6xf32>
    %567 = arith.divf %563, %566 : vector<2x6xf32>
    %cst_213 = arith.constant dense<0.000000e+00> : vector<2x8xf32>
    %568 = tpu.matmul %567, %554, %cst_213 {dimension_numbers = #tpu.dot_dimension_numbers<[1], [0], [0], [1], [0, 0, 1, 1], [], []>} : vector<2x6xf32>, vector<6x8xf32>, vector<2x8xf32> -> vector<2x8xf32>
    %569 = tpu.concatenate %517, %534, %551, %568 in 1 : vector<2x8xf32>, vector<2x8xf32>, vector<2x8xf32>, vector<2x8xf32> -> vector<2x32xf32>
    %570 = vector.extract_strided_slice %492 {offsets = [2, 0], sizes = [2, 32], strides = [1, 1]} : vector<4x32xf32> to vector<2x32xf32>
    %571 = vector.extract_strided_slice %496 {offsets = [6, 0], sizes = [6, 32], strides = [1, 1]} : vector<12x32xf32> to vector<6x32xf32>
    %572 = vector.extract_strided_slice %497 {offsets = [6, 0], sizes = [6, 32], strides = [1, 1]} : vector<12x32xf32> to vector<6x32xf32>
    %573 = vector.extract_strided_slice %570 {offsets = [0, 0], sizes = [2, 8], strides = [1, 1]} : vector<2x32xf32> to vector<2x8xf32>
    %574 = vector.extract_strided_slice %571 {offsets = [0, 0], sizes = [6, 8], strides = [1, 1]} : vector<6x32xf32> to vector<6x8xf32>
    %575 = vector.extract_strided_slice %572 {offsets = [0, 0], sizes = [6, 8], strides = [1, 1]} : vector<6x32xf32> to vector<6x8xf32>
    %576 = tpu.transpose %574, [1, 0] : vector<6x8xf32> -> vector<8x6xf32>
    %cst_214 = arith.constant dense<0.000000e+00> : vector<2x6xf32>
    %577 = tpu.matmul %573, %576, %cst_214 {dimension_numbers = #tpu.dot_dimension_numbers<[1], [0], [0], [1], [0, 0, 1, 1], [], []>} : vector<2x8xf32>, vector<8x6xf32>, vector<2x6xf32> -> vector<2x6xf32>
    %cst_215 = arith.constant 0.353553385 : f32
    %578 = vector.broadcast %cst_215 : f32 to vector<2x6xf32>
    %579 = arith.mulf %577, %578 : vector<2x6xf32>
    %cst_216 = arith.constant dense<0xFF800000> : vector<2xf32>
    %580 = vector.multi_reduction <maximumf>, %579, %cst_216 [1] : vector<2x6xf32> to vector<2xf32>
    %581 = vector.shape_cast %580 : vector<2xf32> to vector<2x1xf32>
    %582 = vector.broadcast %581 : vector<2x1xf32> to vector<2x6xf32>
    %583 = arith.subf %579, %582 : vector<2x6xf32>
    %584 = math.exp %583 : vector<2x6xf32>
    %cst_217 = arith.constant dense<0.000000e+00> : vector<2xf32>
    %585 = vector.multi_reduction <add>, %584, %cst_217 [1] : vector<2x6xf32> to vector<2xf32>
    %586 = vector.shape_cast %585 : vector<2xf32> to vector<2x1xf32>
    %587 = vector.broadcast %586 : vector<2x1xf32> to vector<2x6xf32>
    %588 = arith.divf %584, %587 : vector<2x6xf32>
    %cst_218 = arith.constant dense<0.000000e+00> : vector<2x8xf32>
    %589 = tpu.matmul %588, %575, %cst_218 {dimension_numbers = #tpu.dot_dimension_numbers<[1], [0], [0], [1], [0, 0, 1, 1], [], []>} : vector<2x6xf32>, vector<6x8xf32>, vector<2x8xf32> -> vector<2x8xf32>
    %590 = vector.extract_strided_slice %570 {offsets = [0, 8], sizes = [2, 8], strides = [1, 1]} : vector<2x32xf32> to vector<2x8xf32>
    %591 = vector.extract_strided_slice %571 {offsets = [0, 8], sizes = [6, 8], strides = [1, 1]} : vector<6x32xf32> to vector<6x8xf32>
    %592 = vector.extract_strided_slice %572 {offsets = [0, 8], sizes = [6, 8], strides = [1, 1]} : vector<6x32xf32> to vector<6x8xf32>
    %593 = tpu.transpose %591, [1, 0] : vector<6x8xf32> -> vector<8x6xf32>
    %cst_219 = arith.constant dense<0.000000e+00> : vector<2x6xf32>
    %594 = tpu.matmul %590, %593, %cst_219 {dimension_numbers = #tpu.dot_dimension_numbers<[1], [0], [0], [1], [0, 0, 1, 1], [], []>} : vector<2x8xf32>, vector<8x6xf32>, vector<2x6xf32> -> vector<2x6xf32>
    %cst_220 = arith.constant 0.353553385 : f32
    %595 = vector.broadcast %cst_220 : f32 to vector<2x6xf32>
    %596 = arith.mulf %594, %595 : vector<2x6xf32>
    %cst_221 = arith.constant dense<0xFF800000> : vector<2xf32>
    %597 = vector.multi_reduction <maximumf>, %596, %cst_221 [1] : vector<2x6xf32> to vector<2xf32>
    %598 = vector.shape_cast %597 : vector<2xf32> to vector<2x1xf32>
    %599 = vector.broadcast %598 : vector<2x1xf32> to vector<2x6xf32>
    %600 = arith.subf %596, %599 : vector<2x6xf32>
    %601 = math.exp %600 : vector<2x6xf32>
    %cst_222 = arith.constant dense<0.000000e+00> : vector<2xf32>
    %602 = vector.multi_reduction <add>, %601, %cst_222 [1] : vector<2x6xf32> to vector<2xf32>
    %603 = vector.shape_cast %602 : vector<2xf32> to vector<2x1xf32>
    %604 = vector.broadcast %603 : vector<2x1xf32> to vector<2x6xf32>
    %605 = arith.divf %601, %604 : vector<2x6xf32>
    %cst_223 = arith.constant dense<0.000000e+00> : vector<2x8xf32>
    %606 = tpu.matmul %605, %592, %cst_223 {dimension_numbers = #tpu.dot_dimension_numbers<[1], [0], [0], [1], [0, 0, 1, 1], [], []>} : vector<2x6xf32>, vector<6x8xf32>, vector<2x8xf32> -> vector<2x8xf32>
    %607 = vector.extract_strided_slice %570 {offsets = [0, 16], sizes = [2, 8], strides = [1, 1]} : vector<2x32xf32> to vector<2x8xf32>
    %608 = vector.extract_strided_slice %571 {offsets = [0, 16], sizes = [6, 8], strides = [1, 1]} : vector<6x32xf32> to vector<6x8xf32>
    %609 = vector.extract_strided_slice %572 {offsets = [0, 16], sizes = [6, 8], strides = [1, 1]} : vector<6x32xf32> to vector<6x8xf32>
    %610 = tpu.transpose %608, [1, 0] : vector<6x8xf32> -> vector<8x6xf32>
    %cst_224 = arith.constant dense<0.000000e+00> : vector<2x6xf32>
    %611 = tpu.matmul %607, %610, %cst_224 {dimension_numbers = #tpu.dot_dimension_numbers<[1], [0], [0], [1], [0, 0, 1, 1], [], []>} : vector<2x8xf32>, vector<8x6xf32>, vector<2x6xf32> -> vector<2x6xf32>
    %cst_225 = arith.constant 0.353553385 : f32
    %612 = vector.broadcast %cst_225 : f32 to vector<2x6xf32>
    %613 = arith.mulf %611, %612 : vector<2x6xf32>
    %cst_226 = arith.constant dense<0xFF800000> : vector<2xf32>
    %614 = vector.multi_reduction <maximumf>, %613, %cst_226 [1] : vector<2x6xf32> to vector<2xf32>
    %615 = vector.shape_cast %614 : vector<2xf32> to vector<2x1xf32>
    %616 = vector.broadcast %615 : vector<2x1xf32> to vector<2x6xf32>
    %617 = arith.subf %613, %616 : vector<2x6xf32>
    %618 = math.exp %617 : vector<2x6xf32>
    %cst_227 = arith.constant dense<0.000000e+00> : vector<2xf32>
    %619 = vector.multi_reduction <add>, %618, %cst_227 [1] : vector<2x6xf32> to vector<2xf32>
    %620 = vector.shape_cast %619 : vector<2xf32> to vector<2x1xf32>
    %621 = vector.broadcast %620 : vector<2x1xf32> to vector<2x6xf32>
    %622 = arith.divf %618, %621 : vector<2x6xf32>
    %cst_228 = arith.constant dense<0.000000e+00> : vector<2x8xf32>
    %623 = tpu.matmul %622, %609, %cst_228 {dimension_numbers = #tpu.dot_dimension_numbers<[1], [0], [0], [1], [0, 0, 1, 1], [], []>} : vector<2x6xf32>, vector<6x8xf32>, vector<2x8xf32> -> vector<2x8xf32>
    %624 = vector.extract_strided_slice %570 {offsets = [0, 24], sizes = [2, 8], strides = [1, 1]} : vector<2x32xf32> to vector<2x8xf32>
    %625 = vector.extract_strided_slice %571 {offsets = [0, 24], sizes = [6, 8], strides = [1, 1]} : vector<6x32xf32> to vector<6x8xf32>
    %626 = vector.extract_strided_slice %572 {offsets = [0, 24], sizes = [6, 8], strides = [1, 1]} : vector<6x32xf32> to vector<6x8xf32>
    %627 = tpu.transpose %625, [1, 0] : vector<6x8xf32> -> vector<8x6xf32>
    %cst_229 = arith.constant dense<0.000000e+00> : vector<2x6xf32>
    %628 = tpu.matmul %624, %627, %cst_229 {dimension_numbers = #tpu.dot_dimension_numbers<[1], [0], [0], [1], [0, 0, 1, 1], [], []>} : vector<2x8xf32>, vector<8x6xf32>, vector<2x6xf32> -> vector<2x6xf32>
    %cst_230 = arith.constant 0.353553385 : f32
    %629 = vector.broadcast %cst_230 : f32 to vector<2x6xf32>
    %630 = arith.mulf %628, %629 : vector<2x6xf32>
    %cst_231 = arith.constant dense<0xFF800000> : vector<2xf32>
    %631 = vector.multi_reduction <maximumf>, %630, %cst_231 [1] : vector<2x6xf32> to vector<2xf32>
    %632 = vector.shape_cast %631 : vector<2xf32> to vector<2x1xf32>
    %633 = vector.broadcast %632 : vector<2x1xf32> to vector<2x6xf32>
    %634 = arith.subf %630, %633 : vector<2x6xf32>
    %635 = math.exp %634 : vector<2x6xf32>
    %cst_232 = arith.constant dense<0.000000e+00> : vector<2xf32>
    %636 = vector.multi_reduction <add>, %635, %cst_232 [1] : vector<2x6xf32> to vector<2xf32>
    %637 = vector.shape_cast %636 : vector<2xf32> to vector<2x1xf32>
    %638 = vector.broadcast %637 : vector<2x1xf32> to vector<2x6xf32>
    %639 = arith.divf %635, %638 : vector<2x6xf32>
    %cst_233 = arith.constant dense<0.000000e+00> : vector<2x8xf32>
    %640 = tpu.matmul %639, %626, %cst_233 {dimension_numbers = #tpu.dot_dimension_numbers<[1], [0], [0], [1], [0, 0, 1, 1], [], []>} : vector<2x6xf32>, vector<6x8xf32>, vector<2x8xf32> -> vector<2x8xf32>
    %641 = tpu.concatenate %589, %606, %623, %640 in 1 : vector<2x8xf32>, vector<2x8xf32>, vector<2x8xf32>, vector<2x8xf32> -> vector<2x32xf32>
    %642 = tpu.concatenate %569, %641 in 0 : vector<2x32xf32>, vector<2x32xf32> -> vector<4x32xf32>
    %cst_234 = arith.constant dense<0.000000e+00> : vector<4x32xf32>
    %643 = tpu.matmul %642, %303, %cst_234 {dimension_numbers = #tpu.dot_dimension_numbers<[1], [0], [0], [1], [0, 0, 1, 1], [], []>} : vector<4x32xf32>, vector<32x32xf32>, vector<4x32xf32> -> vector<4x32xf32>
    %644 = vector.broadcast %304 : vector<1x32xf32> to vector<4x32xf32>
    %645 = arith.addf %643, %644 : vector<4x32xf32>
    %646 = arith.addf %489, %645 : vector<4x32xf32>
    %cst_235 = arith.constant dense<0.000000e+00> : vector<4xf32>
    %647 = vector.multi_reduction <add>, %646, %cst_235 [1] : vector<4x32xf32> to vector<4xf32>
    %648 = vector.shape_cast %647 : vector<4xf32> to vector<4x1xf32>
    %cst_236 = arith.constant 3.200000e+01 : f32
    %649 = vector.broadcast %cst_236 : f32 to vector<4x1xf32>
    %650 = arith.divf %648, %649 : vector<4x1xf32>
    %651 = vector.broadcast %650 : vector<4x1xf32> to vector<4x32xf32>
    %652 = arith.subf %646, %651 : vector<4x32xf32>
    %653 = arith.mulf %652, %652 : vector<4x32xf32>
    %cst_237 = arith.constant dense<0.000000e+00> : vector<4xf32>
    %654 = vector.multi_reduction <add>, %653, %cst_237 [1] : vector<4x32xf32> to vector<4xf32>
    %655 = vector.shape_cast %654 : vector<4xf32> to vector<4x1xf32>
    %cst_238 = arith.constant 3.200000e+01 : f32
    %656 = vector.broadcast %cst_238 : f32 to vector<4x1xf32>
    %657 = arith.divf %655, %656 : vector<4x1xf32>
    %658 = vector.broadcast %650 : vector<4x1xf32> to vector<4x32xf32>
    %659 = arith.subf %646, %658 : vector<4x32xf32>
    %cst_239 = arith.constant 9.99999974E-6 : f32
    %660 = vector.broadcast %cst_239 : f32 to vector<4x1xf32>
    %661 = arith.addf %657, %660 : vector<4x1xf32>
    %662 = math.rsqrt %661 : vector<4x1xf32>
    %663 = vector.broadcast %662 : vector<4x1xf32> to vector<4x32xf32>
    %664 = arith.mulf %659, %663 : vector<4x32xf32>
    %665 = vector.broadcast %305 : vector<1x32xf32> to vector<4x32xf32>
    %666 = arith.mulf %664, %665 : vector<4x32xf32>
    %667 = vector.broadcast %306 : vector<1x32xf32> to vector<4x32xf32>
    %668 = arith.addf %666, %667 : vector<4x32xf32>
    %cst_240 = arith.constant dense<0.000000e+00> : vector<4x64xf32>
    %669 = tpu.matmul %668, %307, %cst_240 {dimension_numbers = #tpu.dot_dimension_numbers<[1], [0], [0], [1], [0, 0, 1, 1], [], []>} : vector<4x32xf32>, vector<32x64xf32>, vector<4x64xf32> -> vector<4x64xf32>
    %670 = vector.broadcast %308 : vector<1x64xf32> to vector<4x64xf32>
    %671 = arith.addf %669, %670 : vector<4x64xf32>
    %cst_241 = arith.constant 0.000000e+00 : f32
    %672 = vector.broadcast %cst_241 : f32 to vector<4x64xf32>
    %673 = arith.maximumf %671, %672 : vector<4x64xf32>
    %cst_242 = arith.constant dense<0.000000e+00> : vector<4x32xf32>
    %674 = tpu.matmul %673, %309, %cst_242 {dimension_numbers = #tpu.dot_dimension_numbers<[1], [0], [0], [1], [0, 0, 1, 1], [], []>} : vector<4x64xf32>, vector<64x32xf32>, vector<4x32xf32> -> vector<4x32xf32>
    %675 = vector.broadcast %310 : vector<1x32xf32> to vector<4x32xf32>
    %676 = arith.addf %674, %675 : vector<4x32xf32>
    %677 = arith.addf %668, %676 : vector<4x32xf32>
    %cst_243 = arith.constant dense<0.000000e+00> : vector<4xf32>
    %678 = vector.multi_reduction <add>, %677, %cst_243 [1] : vector<4x32xf32> to vector<4xf32>
    %679 = vector.shape_cast %678 : vector<4xf32> to vector<4x1xf32>
    %cst_244 = arith.constant 3.200000e+01 : f32
    %680 = vector.broadcast %cst_244 : f32 to vector<4x1xf32>
    %681 = arith.divf %679, %680 : vector<4x1xf32>
    %682 = vector.broadcast %681 : vector<4x1xf32> to vector<4x32xf32>
    %683 = arith.subf %677, %682 : vector<4x32xf32>
    %684 = arith.mulf %683, %683 : vector<4x32xf32>
    %cst_245 = arith.constant dense<0.000000e+00> : vector<4xf32>
    %685 = vector.multi_reduction <add>, %684, %cst_245 [1] : vector<4x32xf32> to vector<4xf32>
    %686 = vector.shape_cast %685 : vector<4xf32> to vector<4x1xf32>
    %cst_246 = arith.constant 3.200000e+01 : f32
    %687 = vector.broadcast %cst_246 : f32 to vector<4x1xf32>
    %688 = arith.divf %686, %687 : vector<4x1xf32>
    %689 = vector.broadcast %681 : vector<4x1xf32> to vector<4x32xf32>
    %690 = arith.subf %677, %689 : vector<4x32xf32>
    %cst_247 = arith.constant 9.99999974E-6 : f32
    %691 = vector.broadcast %cst_247 : f32 to vector<4x1xf32>
    %692 = arith.addf %688, %691 : vector<4x1xf32>
    %693 = math.rsqrt %692 : vector<4x1xf32>
    %694 = vector.broadcast %693 : vector<4x1xf32> to vector<4x32xf32>
    %695 = arith.mulf %690, %694 : vector<4x32xf32>
    %696 = vector.broadcast %311 : vector<1x32xf32> to vector<4x32xf32>
    %697 = arith.mulf %695, %696 : vector<4x32xf32>
    %698 = vector.broadcast %312 : vector<1x32xf32> to vector<4x32xf32>
    %699 = arith.addf %697, %698 : vector<4x32xf32>
    %c0_248 = arith.constant 0 : index
    %c0_249 = arith.constant 0 : index
    %700 = vector.load %arg39[%c0_248, %c0_249] : memref<1x32xf32, #tpu.memory_space<vmem>>, vector<1x32xf32>
    %c0_250 = arith.constant 0 : index
    %c0_251 = arith.constant 0 : index
    %701 = vector.load %arg40[%c0_250, %c0_251] : memref<1x32xf32, #tpu.memory_space<vmem>>, vector<1x32xf32>
    %702 = vector.extract_strided_slice %699 {offsets = [1, 0], sizes = [1, 32], strides = [1, 1]} : vector<4x32xf32> to vector<1x32xf32>
    %703 = vector.extract_strided_slice %699 {offsets = [3, 0], sizes = [1, 32], strides = [1, 1]} : vector<4x32xf32> to vector<1x32xf32>
    %704 = tpu.concatenate %702, %703 in 0 : vector<1x32xf32>, vector<1x32xf32> -> vector<2x32xf32>
    %cst_252 = arith.constant dense<0.000000e+00> : vector<2xf32>
    %705 = vector.multi_reduction <add>, %704, %cst_252 [1] : vector<2x32xf32> to vector<2xf32>
    %706 = vector.shape_cast %705 : vector<2xf32> to vector<2x1xf32>
    %cst_253 = arith.constant 3.200000e+01 : f32
    %707 = vector.broadcast %cst_253 : f32 to vector<2x1xf32>
    %708 = arith.divf %706, %707 : vector<2x1xf32>
    %709 = vector.broadcast %708 : vector<2x1xf32> to vector<2x32xf32>
    %710 = arith.subf %704, %709 : vector<2x32xf32>
    %711 = arith.mulf %710, %710 : vector<2x32xf32>
    %cst_254 = arith.constant dense<0.000000e+00> : vector<2xf32>
    %712 = vector.multi_reduction <add>, %711, %cst_254 [1] : vector<2x32xf32> to vector<2xf32>
    %713 = vector.shape_cast %712 : vector<2xf32> to vector<2x1xf32>
    %cst_255 = arith.constant 3.200000e+01 : f32
    %714 = vector.broadcast %cst_255 : f32 to vector<2x1xf32>
    %715 = arith.divf %713, %714 : vector<2x1xf32>
    %716 = vector.broadcast %708 : vector<2x1xf32> to vector<2x32xf32>
    %717 = arith.subf %704, %716 : vector<2x32xf32>
    %cst_256 = arith.constant 9.99999974E-6 : f32
    %718 = vector.broadcast %cst_256 : f32 to vector<2x1xf32>
    %719 = arith.addf %715, %718 : vector<2x1xf32>
    %720 = math.rsqrt %719 : vector<2x1xf32>
    %721 = vector.broadcast %720 : vector<2x1xf32> to vector<2x32xf32>
    %722 = arith.mulf %717, %721 : vector<2x32xf32>
    %723 = vector.broadcast %700 : vector<1x32xf32> to vector<2x32xf32>
    %724 = arith.mulf %722, %723 : vector<2x32xf32>
    %725 = vector.broadcast %701 : vector<1x32xf32> to vector<2x32xf32>
    %726 = arith.addf %724, %725 : vector<2x32xf32>
    %c0_257 = arith.constant 0 : index
    %c0_258 = arith.constant 0 : index
    %727 = vector.load %arg41[%c0_257, %c0_258] : memref<32x32xf32, #tpu.memory_space<vmem>>, vector<32x32xf32>
    %c0_259 = arith.constant 0 : index
    %c0_260 = arith.constant 0 : index
    %728 = vector.load %arg42[%c0_259, %c0_260] : memref<1x32xf32, #tpu.memory_space<vmem>>, vector<1x32xf32>
    %c0_261 = arith.constant 0 : index
    %c0_262 = arith.constant 0 : index
    %729 = vector.load %arg43[%c0_261, %c0_262] : memref<1x32xf32, #tpu.memory_space<vmem>>, vector<1x32xf32>
    %c0_263 = arith.constant 0 : index
    %c0_264 = arith.constant 0 : index
    %730 = vector.load %arg44[%c0_263, %c0_264] : memref<1x32xf32, #tpu.memory_space<vmem>>, vector<1x32xf32>
    %cst_265 = arith.constant dense<0.000000e+00> : vector<2x32xf32>
    %731 = tpu.matmul %726, %727, %cst_265 {dimension_numbers = #tpu.dot_dimension_numbers<[1], [0], [0], [1], [0, 0, 1, 1], [], []>} : vector<2x32xf32>, vector<32x32xf32>, vector<2x32xf32> -> vector<2x32xf32>
    %732 = vector.broadcast %728 : vector<1x32xf32> to vector<2x32xf32>
    %733 = arith.addf %731, %732 : vector<2x32xf32>
    %cst_266 = arith.constant dense<0.000000e+00> : vector<2xf32>
    %734 = vector.multi_reduction <add>, %733, %cst_266 [1] : vector<2x32xf32> to vector<2xf32>
    %735 = vector.shape_cast %734 : vector<2xf32> to vector<2x1xf32>
    %cst_267 = arith.constant 3.200000e+01 : f32
    %736 = vector.broadcast %cst_267 : f32 to vector<2x1xf32>
    %737 = arith.divf %735, %736 : vector<2x1xf32>
    %738 = vector.broadcast %737 : vector<2x1xf32> to vector<2x32xf32>
    %739 = arith.subf %733, %738 : vector<2x32xf32>
    %740 = arith.mulf %739, %739 : vector<2x32xf32>
    %cst_268 = arith.constant dense<0.000000e+00> : vector<2xf32>
    %741 = vector.multi_reduction <add>, %740, %cst_268 [1] : vector<2x32xf32> to vector<2xf32>
    %742 = vector.shape_cast %741 : vector<2xf32> to vector<2x1xf32>
    %cst_269 = arith.constant 3.200000e+01 : f32
    %743 = vector.broadcast %cst_269 : f32 to vector<2x1xf32>
    %744 = arith.divf %742, %743 : vector<2x1xf32>
    %745 = vector.broadcast %737 : vector<2x1xf32> to vector<2x32xf32>
    %746 = arith.subf %733, %745 : vector<2x32xf32>
    %cst_270 = arith.constant 9.99999974E-6 : f32
    %747 = vector.broadcast %cst_270 : f32 to vector<2x1xf32>
    %748 = arith.addf %744, %747 : vector<2x1xf32>
    %749 = math.rsqrt %748 : vector<2x1xf32>
    %750 = vector.broadcast %749 : vector<2x1xf32> to vector<2x32xf32>
    %751 = arith.mulf %746, %750 : vector<2x32xf32>
    %752 = vector.broadcast %729 : vector<1x32xf32> to vector<2x32xf32>
    %753 = arith.mulf %751, %752 : vector<2x32xf32>
    %754 = vector.broadcast %730 : vector<1x32xf32> to vector<2x32xf32>
    %755 = arith.addf %753, %754 : vector<2x32xf32>
    %756 = math.tanh %755 : vector<2x32xf32>
    %c0_271 = arith.constant 0 : index
    %c0_272 = arith.constant 0 : index
    %757 = vector.load %arg45[%c0_271, %c0_272] : memref<32x128xf32, #tpu.memory_space<vmem>>, vector<32x128xf32>
    %c0_273 = arith.constant 0 : index
    %c0_274 = arith.constant 0 : index
    %758 = vector.load %arg46[%c0_273, %c0_274] : memref<1x128xf32, #tpu.memory_space<vmem>>, vector<1x128xf32>
    %c0_275 = arith.constant 0 : index
    %c0_276 = arith.constant 0 : index
    %759 = vector.load %arg47[%c0_275, %c0_276] : memref<1x128xf32, #tpu.memory_space<vmem>>, vector<1x128xf32>
    %c0_277 = arith.constant 0 : index
    %c0_278 = arith.constant 0 : index
    %760 = vector.load %arg48[%c0_277, %c0_278] : memref<1x128xf32, #tpu.memory_space<vmem>>, vector<1x128xf32>
    %cst_279 = arith.constant dense<0.000000e+00> : vector<2x128xf32>
    %761 = tpu.matmul %756, %757, %cst_279 {dimension_numbers = #tpu.dot_dimension_numbers<[1], [0], [0], [1], [0, 0, 1, 1], [], []>} : vector<2x32xf32>, vector<32x128xf32>, vector<2x128xf32> -> vector<2x128xf32>
    %762 = vector.broadcast %758 : vector<1x128xf32> to vector<2x128xf32>
    %763 = arith.addf %761, %762 : vector<2x128xf32>
    %cst_280 = arith.constant dense<0.000000e+00> : vector<2xf32>
    %764 = vector.multi_reduction <add>, %763, %cst_280 [1] : vector<2x128xf32> to vector<2xf32>
    %765 = vector.shape_cast %764 : vector<2xf32> to vector<2x1xf32>
    %cst_281 = arith.constant 1.280000e+02 : f32
    %766 = vector.broadcast %cst_281 : f32 to vector<2x1xf32>
    %767 = arith.divf %765, %766 : vector<2x1xf32>
    %768 = vector.broadcast %767 : vector<2x1xf32> to vector<2x128xf32>
    %769 = arith.subf %763, %768 : vector<2x128xf32>
    %770 = arith.mulf %769, %769 : vector<2x128xf32>
    %cst_282 = arith.constant dense<0.000000e+00> : vector<2xf32>
    %771 = vector.multi_reduction <add>, %770, %cst_282 [1] : vector<2x128xf32> to vector<2xf32>
    %772 = vector.shape_cast %771 : vector<2xf32> to vector<2x1xf32>
    %cst_283 = arith.constant 1.280000e+02 : f32
    %773 = vector.broadcast %cst_283 : f32 to vector<2x1xf32>
    %774 = arith.divf %772, %773 : vector<2x1xf32>
    %775 = vector.broadcast %767 : vector<2x1xf32> to vector<2x128xf32>
    %776 = arith.subf %763, %775 : vector<2x128xf32>
    %cst_284 = arith.constant 9.99999974E-6 : f32
    %777 = vector.broadcast %cst_284 : f32 to vector<2x1xf32>
    %778 = arith.addf %774, %777 : vector<2x1xf32>
    %779 = math.rsqrt %778 : vector<2x1xf32>
    %780 = vector.broadcast %779 : vector<2x1xf32> to vector<2x128xf32>
    %781 = arith.mulf %776, %780 : vector<2x128xf32>
    %782 = vector.broadcast %759 : vector<1x128xf32> to vector<2x128xf32>
    %783 = arith.mulf %781, %782 : vector<2x128xf32>
    %784 = vector.broadcast %760 : vector<1x128xf32> to vector<2x128xf32>
    %785 = arith.addf %783, %784 : vector<2x128xf32>
    %786 = math.tanh %785 : vector<2x128xf32>
    %c0_285 = arith.constant 0 : index
    %c0_286 = arith.constant 0 : index
    %787 = vector.load %arg49[%c0_285, %c0_286] : memref<128x128xf32, #tpu.memory_space<vmem>>, vector<128x128xf32>
    %c0_287 = arith.constant 0 : index
    %c0_288 = arith.constant 0 : index
    %788 = vector.load %arg50[%c0_287, %c0_288] : memref<1x128xf32, #tpu.memory_space<vmem>>, vector<1x128xf32>
    %c0_289 = arith.constant 0 : index
    %c0_290 = arith.constant 0 : index
    %789 = vector.load %arg51[%c0_289, %c0_290] : memref<1x128xf32, #tpu.memory_space<vmem>>, vector<1x128xf32>
    %c0_291 = arith.constant 0 : index
    %c0_292 = arith.constant 0 : index
    %790 = vector.load %arg52[%c0_291, %c0_292] : memref<1x128xf32, #tpu.memory_space<vmem>>, vector<1x128xf32>
    %cst_293 = arith.constant dense<0.000000e+00> : vector<2x128xf32>
    %791 = tpu.matmul %786, %787, %cst_293 {dimension_numbers = #tpu.dot_dimension_numbers<[1], [0], [0], [1], [0, 0, 1, 1], [], []>} : vector<2x128xf32>, vector<128x128xf32>, vector<2x128xf32> -> vector<2x128xf32>
    %792 = vector.broadcast %788 : vector<1x128xf32> to vector<2x128xf32>
    %793 = arith.addf %791, %792 : vector<2x128xf32>
    %cst_294 = arith.constant dense<0.000000e+00> : vector<2xf32>
    %794 = vector.multi_reduction <add>, %793, %cst_294 [1] : vector<2x128xf32> to vector<2xf32>
    %795 = vector.shape_cast %794 : vector<2xf32> to vector<2x1xf32>
    %cst_295 = arith.constant 1.280000e+02 : f32
    %796 = vector.broadcast %cst_295 : f32 to vector<2x1xf32>
    %797 = arith.divf %795, %796 : vector<2x1xf32>
    %798 = vector.broadcast %797 : vector<2x1xf32> to vector<2x128xf32>
    %799 = arith.subf %793, %798 : vector<2x128xf32>
    %800 = arith.mulf %799, %799 : vector<2x128xf32>
    %cst_296 = arith.constant dense<0.000000e+00> : vector<2xf32>
    %801 = vector.multi_reduction <add>, %800, %cst_296 [1] : vector<2x128xf32> to vector<2xf32>
    %802 = vector.shape_cast %801 : vector<2xf32> to vector<2x1xf32>
    %cst_297 = arith.constant 1.280000e+02 : f32
    %803 = vector.broadcast %cst_297 : f32 to vector<2x1xf32>
    %804 = arith.divf %802, %803 : vector<2x1xf32>
    %805 = vector.broadcast %797 : vector<2x1xf32> to vector<2x128xf32>
    %806 = arith.subf %793, %805 : vector<2x128xf32>
    %cst_298 = arith.constant 9.99999974E-6 : f32
    %807 = vector.broadcast %cst_298 : f32 to vector<2x1xf32>
    %808 = arith.addf %804, %807 : vector<2x1xf32>
    %809 = math.rsqrt %808 : vector<2x1xf32>
    %810 = vector.broadcast %809 : vector<2x1xf32> to vector<2x128xf32>
    %811 = arith.mulf %806, %810 : vector<2x128xf32>
    %812 = vector.broadcast %789 : vector<1x128xf32> to vector<2x128xf32>
    %813 = arith.mulf %811, %812 : vector<2x128xf32>
    %814 = vector.broadcast %790 : vector<1x128xf32> to vector<2x128xf32>
    %815 = arith.addf %813, %814 : vector<2x128xf32>
    %816 = math.tanh %815 : vector<2x128xf32>
    %c0_299 = arith.constant 0 : index
    %c0_300 = arith.constant 0 : index
    %817 = vector.load %arg53[%c0_299, %c0_300] : memref<128x64xf32, #tpu.memory_space<vmem>>, vector<128x64xf32>
    %c0_301 = arith.constant 0 : index
    %c0_302 = arith.constant 0 : index
    %818 = vector.load %arg54[%c0_301, %c0_302] : memref<1x64xf32, #tpu.memory_space<vmem>>, vector<1x64xf32>
    %c0_303 = arith.constant 0 : index
    %c0_304 = arith.constant 0 : index
    %819 = vector.load %arg55[%c0_303, %c0_304] : memref<1x64xf32, #tpu.memory_space<vmem>>, vector<1x64xf32>
    %c0_305 = arith.constant 0 : index
    %c0_306 = arith.constant 0 : index
    %820 = vector.load %arg56[%c0_305, %c0_306] : memref<1x64xf32, #tpu.memory_space<vmem>>, vector<1x64xf32>
    %cst_307 = arith.constant dense<0.000000e+00> : vector<2x64xf32>
    %821 = tpu.matmul %816, %817, %cst_307 {dimension_numbers = #tpu.dot_dimension_numbers<[1], [0], [0], [1], [0, 0, 1, 1], [], []>} : vector<2x128xf32>, vector<128x64xf32>, vector<2x64xf32> -> vector<2x64xf32>
    %822 = vector.broadcast %818 : vector<1x64xf32> to vector<2x64xf32>
    %823 = arith.addf %821, %822 : vector<2x64xf32>
    %cst_308 = arith.constant dense<0.000000e+00> : vector<2xf32>
    %824 = vector.multi_reduction <add>, %823, %cst_308 [1] : vector<2x64xf32> to vector<2xf32>
    %825 = vector.shape_cast %824 : vector<2xf32> to vector<2x1xf32>
    %cst_309 = arith.constant 6.400000e+01 : f32
    %826 = vector.broadcast %cst_309 : f32 to vector<2x1xf32>
    %827 = arith.divf %825, %826 : vector<2x1xf32>
    %828 = vector.broadcast %827 : vector<2x1xf32> to vector<2x64xf32>
    %829 = arith.subf %823, %828 : vector<2x64xf32>
    %830 = arith.mulf %829, %829 : vector<2x64xf32>
    %cst_310 = arith.constant dense<0.000000e+00> : vector<2xf32>
    %831 = vector.multi_reduction <add>, %830, %cst_310 [1] : vector<2x64xf32> to vector<2xf32>
    %832 = vector.shape_cast %831 : vector<2xf32> to vector<2x1xf32>
    %cst_311 = arith.constant 6.400000e+01 : f32
    %833 = vector.broadcast %cst_311 : f32 to vector<2x1xf32>
    %834 = arith.divf %832, %833 : vector<2x1xf32>
    %835 = vector.broadcast %827 : vector<2x1xf32> to vector<2x64xf32>
    %836 = arith.subf %823, %835 : vector<2x64xf32>
    %cst_312 = arith.constant 9.99999974E-6 : f32
    %837 = vector.broadcast %cst_312 : f32 to vector<2x1xf32>
    %838 = arith.addf %834, %837 : vector<2x1xf32>
    %839 = math.rsqrt %838 : vector<2x1xf32>
    %840 = vector.broadcast %839 : vector<2x1xf32> to vector<2x64xf32>
    %841 = arith.mulf %836, %840 : vector<2x64xf32>
    %842 = vector.broadcast %819 : vector<1x64xf32> to vector<2x64xf32>
    %843 = arith.mulf %841, %842 : vector<2x64xf32>
    %844 = vector.broadcast %820 : vector<1x64xf32> to vector<2x64xf32>
    %845 = arith.addf %843, %844 : vector<2x64xf32>
    %846 = math.tanh %845 : vector<2x64xf32>
    %c0_313 = arith.constant 0 : index
    %c0_314 = arith.constant 0 : index
    %847 = vector.load %arg57[%c0_313, %c0_314] : memref<64x64xf32, #tpu.memory_space<vmem>>, vector<64x64xf32>
    %c0_315 = arith.constant 0 : index
    %c0_316 = arith.constant 0 : index
    %848 = vector.load %arg58[%c0_315, %c0_316] : memref<1x64xf32, #tpu.memory_space<vmem>>, vector<1x64xf32>
    %c0_317 = arith.constant 0 : index
    %c0_318 = arith.constant 0 : index
    %849 = vector.load %arg59[%c0_317, %c0_318] : memref<1x64xf32, #tpu.memory_space<vmem>>, vector<1x64xf32>
    %c0_319 = arith.constant 0 : index
    %c0_320 = arith.constant 0 : index
    %850 = vector.load %arg60[%c0_319, %c0_320] : memref<1x64xf32, #tpu.memory_space<vmem>>, vector<1x64xf32>
    %cst_321 = arith.constant dense<0.000000e+00> : vector<2x64xf32>
    %851 = tpu.matmul %846, %847, %cst_321 {dimension_numbers = #tpu.dot_dimension_numbers<[1], [0], [0], [1], [0, 0, 1, 1], [], []>} : vector<2x64xf32>, vector<64x64xf32>, vector<2x64xf32> -> vector<2x64xf32>
    %852 = vector.broadcast %848 : vector<1x64xf32> to vector<2x64xf32>
    %853 = arith.addf %851, %852 : vector<2x64xf32>
    %cst_322 = arith.constant dense<0.000000e+00> : vector<2xf32>
    %854 = vector.multi_reduction <add>, %853, %cst_322 [1] : vector<2x64xf32> to vector<2xf32>
    %855 = vector.shape_cast %854 : vector<2xf32> to vector<2x1xf32>
    %cst_323 = arith.constant 6.400000e+01 : f32
    %856 = vector.broadcast %cst_323 : f32 to vector<2x1xf32>
    %857 = arith.divf %855, %856 : vector<2x1xf32>
    %858 = vector.broadcast %857 : vector<2x1xf32> to vector<2x64xf32>
    %859 = arith.subf %853, %858 : vector<2x64xf32>
    %860 = arith.mulf %859, %859 : vector<2x64xf32>
    %cst_324 = arith.constant dense<0.000000e+00> : vector<2xf32>
    %861 = vector.multi_reduction <add>, %860, %cst_324 [1] : vector<2x64xf32> to vector<2xf32>
    %862 = vector.shape_cast %861 : vector<2xf32> to vector<2x1xf32>
    %cst_325 = arith.constant 6.400000e+01 : f32
    %863 = vector.broadcast %cst_325 : f32 to vector<2x1xf32>
    %864 = arith.divf %862, %863 : vector<2x1xf32>
    %865 = vector.broadcast %857 : vector<2x1xf32> to vector<2x64xf32>
    %866 = arith.subf %853, %865 : vector<2x64xf32>
    %cst_326 = arith.constant 9.99999974E-6 : f32
    %867 = vector.broadcast %cst_326 : f32 to vector<2x1xf32>
    %868 = arith.addf %864, %867 : vector<2x1xf32>
    %869 = math.rsqrt %868 : vector<2x1xf32>
    %870 = vector.broadcast %869 : vector<2x1xf32> to vector<2x64xf32>
    %871 = arith.mulf %866, %870 : vector<2x64xf32>
    %872 = vector.broadcast %849 : vector<1x64xf32> to vector<2x64xf32>
    %873 = arith.mulf %871, %872 : vector<2x64xf32>
    %874 = vector.broadcast %850 : vector<1x64xf32> to vector<2x64xf32>
    %875 = arith.addf %873, %874 : vector<2x64xf32>
    %876 = math.tanh %875 : vector<2x64xf32>
    %c0_327 = arith.constant 0 : index
    %c0_328 = arith.constant 0 : index
    %877 = vector.load %arg61[%c0_327, %c0_328] : memref<64x1xf32, #tpu.memory_space<vmem>>, vector<64x1xf32>
    %c0_329 = arith.constant 0 : index
    %c0_330 = arith.constant 0 : index
    %878 = vector.load %arg62[%c0_329, %c0_330] : memref<1x1xf32, #tpu.memory_space<vmem>>, vector<1x1xf32>
    %cst_331 = arith.constant dense<0.000000e+00> : vector<2x1xf32>
    %879 = tpu.matmul %876, %877, %cst_331 {dimension_numbers = #tpu.dot_dimension_numbers<[1], [0], [0], [1], [0, 0, 1, 1], [], []>} : vector<2x64xf32>, vector<64x1xf32>, vector<2x1xf32> -> vector<2x1xf32>
    %880 = vector.broadcast %878 : vector<1x1xf32> to vector<2x1xf32>
    %881 = arith.addf %879, %880 : vector<2x1xf32>
    %c0_332 = arith.constant 0 : index
    %c0_333 = arith.constant 0 : index
    %882 = vector.load %arg63[%c0_332, %c0_333] : memref<2x1xf32, #tpu.memory_space<vmem>>, vector<2x1xf32>
    tpu.vector_store %arg63[%c0_332, %c0_333], %881 {strides = array<i32>} : memref<2x1xf32, #tpu.memory_space<vmem>>, vector<2x1xf32>,
    return
  }
}

</mosaic_0001>

<llo_original>
// kernel: transformer_forward.1
$region0: #{transformer_forward.1}
  #allocation0 [shape = 'u32[]', space=smem, size = 0x4, offset = 0x4, fixed_abs, tag = 'smem constant byte address 0x4 - core index']
  #allocation1 [shape = 'u32[144,128]{1,0:T(1,128)}', space=vmem, size = 0x12000, scoped, tag = 'internal scratch']
  #allocation2 [shape = 'f32[1,1]{1,0:T(1,128)S(1)}', space=vmem, size = 0x200, scoped, tag = 'scoped memory for transformer_forward.1']
  %s0 = inlined_call_operand.smem [shape: u32[64], index: -1, kind: input, shape index: {}]
  %s1 = sld [smem:[%s0]]
  %s2 = scalar_lea.smem %s0, 1
  %s3 = sld [smem:[%s2]]
  %s4 = scalar_lea.smem %s0, 2
  %s5 = sld [smem:[%s4]]
  %s6 = scalar_lea.smem %s0, 3
  %s7 = sld [smem:[%s6]]
  %s8 = scalar_lea.smem %s0, 4
  %s9 = sld [smem:[%s8]]
  %s10 = scalar_lea.smem %s0, 5
  %s11 = sld [smem:[%s10]]
  %s12 = scalar_lea.smem %s0, 6
  %s13 = sld [smem:[%s12]]
  %s14 = scalar_lea.smem %s0, 7
  %s15 = sld [smem:[%s14]]
  %s16 = scalar_lea.smem %s0, 8
  %s17 = sld [smem:[%s16]]
  %s18 = scalar_lea.smem %s0, 9
  %s19 = sld [smem:[%s18]]
  %s20 = scalar_lea.smem %s0, 10
  %s21 = sld [smem:[%s20]]
  %s22 = scalar_lea.smem %s0, 11
  %s23 = sld [smem:[%s22]]
  %s24 = scalar_lea.smem %s0, 12
  %s25 = sld [smem:[%s24]]
  %s26 = scalar_lea.smem %s0, 13
  %s27 = sld [smem:[%s26]]
  %s28 = scalar_lea.smem %s0, 14
  %s29 = sld [smem:[%s28]]
  %s30 = scalar_lea.smem %s0, 15
  %s31 = sld [smem:[%s30]]
  %s32 = scalar_lea.smem %s0, 16
  %s33 = sld [smem:[%s32]]
  %s34 = scalar_lea.smem %s0, 17
  %s35 = sld [smem:[%s34]]
  %s36 = scalar_lea.smem %s0, 18
  %s37 = sld [smem:[%s36]]
  %s38 = scalar_lea.smem %s0, 19
  %s39 = sld [smem:[%s38]]
  %s40 = scalar_lea.smem %s0, 20
  %s41 = sld [smem:[%s40]]
  %s42 = scalar_lea.smem %s0, 21
  %s43 = sld [smem:[%s42]]
  %s44 = scalar_lea.smem %s0, 22
  %s45 = sld [smem:[%s44]]
  %s46 = scalar_lea.smem %s0, 23
  %s47 = sld [smem:[%s46]]
  %s48 = scalar_lea.smem %s0, 24
  %s49 = sld [smem:[%s48]]
  %s50 = scalar_lea.smem %s0, 25
  %s51 = sld [smem:[%s50]]
  %s52 = scalar_lea.smem %s0, 26
  %s53 = sld [smem:[%s52]]
  %s54 = scalar_lea.smem %s0, 27
  %s55 = sld [smem:[%s54]]
  %s56 = scalar_lea.smem %s0, 28
  %s57 = sld [smem:[%s56]]
  %s58 = scalar_lea.smem %s0, 29
  %s59 = sld [smem:[%s58]]
  %s60 = scalar_lea.smem %s0, 30
  %s61 = sld [smem:[%s60]]
  %s62 = scalar_lea.smem %s0, 31
  %s63 = sld [smem:[%s62]]
  %s64 = scalar_lea.smem %s0, 32
  %s65 = sld [smem:[%s64]]
  %s66 = scalar_lea.smem %s0, 33
  %s67 = sld [smem:[%s66]]
  %s68 = scalar_lea.smem %s0, 34
  %s69 = sld [smem:[%s68]]
  %s70 = scalar_lea.smem %s0, 35
  %s71 = sld [smem:[%s70]]
  %s72 = scalar_lea.smem %s0, 36
  %s73 = sld [smem:[%s72]]
  %s74 = scalar_lea.smem %s0, 37
  %s75 = sld [smem:[%s74]]
  %s76 = scalar_lea.smem %s0, 38
  %s77 = sld [smem:[%s76]]
  %s78 = scalar_lea.smem %s0, 39
  %s79 = sld [smem:[%s78]]
  %s80 = scalar_lea.smem %s0, 40
  %s81 = sld [smem:[%s80]]
  %s82 = scalar_lea.smem %s0, 41
  %s83 = sld [smem:[%s82]]
  %s84 = scalar_lea.smem %s0, 42
  %s85 = sld [smem:[%s84]]
  %s86 = scalar_lea.smem %s0, 43
  %s87 = sld [smem:[%s86]]
  %s88 = scalar_lea.smem %s0, 44
  %s89 = sld [smem:[%s88]]
  %s90 = scalar_lea.smem %s0, 45
  %s91 = sld [smem:[%s90]]
  %s92 = scalar_lea.smem %s0, 46
  %s93 = sld [smem:[%s92]]
  %s94 = scalar_lea.smem %s0, 47
  %s95 = sld [smem:[%s94]]
  %s96 = scalar_lea.smem %s0, 48
  %s97 = sld [smem:[%s96]]
  %s98 = scalar_lea.smem %s0, 49
  %s99 = sld [smem:[%s98]]
  %s100 = scalar_lea.smem %s0, 50
  %s101 = sld [smem:[%s100]]
  %s102 = scalar_lea.smem %s0, 51
  %s103 = sld [smem:[%s102]]
  %s104 = scalar_lea.smem %s0, 52
  %s105 = sld [smem:[%s104]]
  %s106 = scalar_lea.smem %s0, 53
  %s107 = sld [smem:[%s106]]
  %s108 = scalar_lea.smem %s0, 54
  %s109 = sld [smem:[%s108]]
  %s110 = scalar_lea.smem %s0, 55
  %s111 = sld [smem:[%s110]]
  %s112 = scalar_lea.smem %s0, 56
  %s113 = sld [smem:[%s112]]
  %s114 = scalar_lea.smem %s0, 57
  %s115 = sld [smem:[%s114]]
  %s116 = scalar_lea.smem %s0, 58
  %s117 = sld [smem:[%s116]]
  %s118 = scalar_lea.smem %s0, 59
  %s119 = sld [smem:[%s118]]
  %s120 = scalar_lea.smem %s0, 60
  %s121 = sld [smem:[%s120]]
  %s122 = scalar_lea.smem %s0, 61
  %s123 = sld [smem:[%s122]]
  %s124 = scalar_lea.smem %s0, 62
  %s125 = sld [smem:[%s124]]
  %s126 = scalar_lea.smem %s0, 63
  %s127 = sld [smem:[%s126]]
  %s128 = sld [smem:[#allocation0]]
  $region346: #{transformer_forward.1} parent=0
    _
  %s130 = ssub.s32 1, %s128
  %s131 = scalar_select 0, %s130, %s128
  %v132 = vstv %s125
  %133 = vst [vmem:[#allocation2] sm:$0x1] %v132
  $region1: #{transformer_forward.1} parent=0
    #allocation3 [shape = 'u8[4096]{0}', space=vmem, size = 0x1000, scoped, tag = 'input window, operand 3, single buffered']
    #allocation4 [shape = 's32[1]{0}', space=sflag, size = 0x4, scoped, tag = 'scoped memory for transformer_forward.1']
    #allocation5 [shape = 'u8[512]{0}', space=vmem, size = 0x400, scoped, tag = 'input window, operand 23, single buffered']
    #allocation6 [shape = 's32[1]{0}', space=sflag, size = 0x4, scoped, tag = 'scoped memory for transformer_forward.1']
    #allocation7 [shape = 'u8[512]{0}', space=vmem, size = 0x400, scoped, tag = 'input window, operand 24, single buffered']
    #allocation8 [shape = 'u8[512]{0}', space=vmem, size = 0x400, scoped, tag = 'input window, operand 26, single buffered']
    #allocation9 [shape = 's32[1]{0}', space=sflag, size = 0x4, scoped, tag = 'scoped memory for transformer_forward.1']
    #allocation10 [shape = 'u8[512]{0}', space=vmem, size = 0x400, scoped, tag = 'input window, operand 28, single buffered']
    #allocation11 [shape = 'u8[512]{0}', space=vmem, size = 0x400, scoped, tag = 'input window, operand 30, single buffered']
    #allocation12 [shape = 's32[1]{0}', space=sflag, size = 0x4, scoped, tag = 'scoped memory for transformer_forward.1']
    #allocation13 [shape = 'u8[512]{0}', space=vmem, size = 0x400, scoped, tag = 'input window, operand 31, single buffered']
    #allocation14 [shape = 'u8[512]{0}', space=vmem, size = 0x400, scoped, tag = 'input window, operand 32, single buffered']
    #allocation15 [shape = 's32[1]{0}', space=sflag, size = 0x4, scoped, tag = 'scoped memory for transformer_forward.1']
    #allocation16 [shape = 'u8[512]{0}', space=vmem, size = 0x400, scoped, tag = 'input window, operand 34, single buffered']
    #allocation17 [shape = 'u8[512]{0}', space=vmem, size = 0x400, scoped, tag = 'input window, operand 36, single buffered']
    #allocation18 [shape = 's32[1]{0}', space=sflag, size = 0x4, scoped, tag = 'scoped memory for transformer_forward.1']
    #allocation19 [shape = 'u8[512]{0}', space=vmem, size = 0x400, scoped, tag = 'input window, operand 38, single buffered']
    #allocation20 [shape = 'u8[512]{0}', space=vmem, size = 0x400, scoped, tag = 'input window, operand 48, single buffered']
    #allocation21 [shape = 's32[1]{0}', space=sflag, size = 0x4, scoped, tag = 'scoped memory for transformer_forward.1']
    #allocation22 [shape = 'u8[512]{0}', space=vmem, size = 0x400, scoped, tag = 'input window, operand 50, single buffered']
    #allocation23 [shape = 'u8[512]{0}', space=vmem, size = 0x400, scoped, tag = 'input window, operand 51, single buffered']
    #allocation24 [shape = 's32[1]{0}', space=sflag, size = 0x4, scoped, tag = 'scoped memory for transformer_forward.1']
    #allocation25 [shape = 'u8[512]{0}', space=vmem, size = 0x400, scoped, tag = 'input window, operand 52, single buffered']
    #allocation26 [shape = 'u8[512]{0}', space=vmem, size = 0x400, scoped, tag = 'input window, operand 54, single buffered']
    #allocation27 [shape = 's32[1]{0}', space=sflag, size = 0x4, scoped, tag = 'scoped memory for transformer_forward.1']
    #allocation28 [shape = 'u8[512]{0}', space=vmem, size = 0x400, scoped, tag = 'input window, operand 55, single buffered']
    #allocation29 [shape = 'u8[512]{0}', space=vmem, size = 0x400, scoped, tag = 'input window, operand 56, single buffered']
    #allocation30 [shape = 's32[1]{0}', space=sflag, size = 0x4, scoped, tag = 'scoped memory for transformer_forward.1']
    #allocation31 [shape = 'u8[512]{0}', space=vmem, size = 0x400, scoped, tag = 'input window, operand 58, single buffered']
    #allocation32 [shape = 'u8[512]{0}', space=vmem, size = 0x400, scoped, tag = 'input window, operand 59, single buffered']
    #allocation33 [shape = 's32[1]{0}', space=sflag, size = 0x4, scoped, tag = 'scoped memory for transformer_forward.1']
    #allocation34 [shape = 'u8[512]{0}', space=vmem, size = 0x400, scoped, tag = 'input window, operand 60, single buffered']
    %134 = vsyncpa [#allocation4], 0
    %135 = vsyncpa [#allocation6], 0
    %136 = vsyncpa [#allocation9], 0
    %137 = vsyncpa [#allocation12], 0
    %138 = vsyncpa [#allocation15], 0
    %139 = vsyncpa [#allocation18], 0
    %140 = vsyncpa [#allocation21], 0
    %141 = vsyncpa [#allocation24], 0
    %142 = vsyncpa [#allocation27], 0
    %143 = vsyncpa [#allocation30], 0
    %144 = vsyncpa [#allocation33], 0
    // Predicated region
    $region2: #{transformer_forward.1} parent=1 // pred_check
      _
    $region3: #{transformer_forward.1} parent=1 // pred_check_branch
      %146 = sbr.rel (0) target = $region5
    $region4: #{transformer_forward.1} parent=1 // pred_region
      _
    $region5: #{transformer_forward.1} parent=1 // pred_fallthru
      _
    // Predicated region
    $region6: #{transformer_forward.1} parent=1 // pred_check
      _
    $region7: #{transformer_forward.1} parent=1 // pred_check_branch
      %148 = sbr.rel (0) target = $region9
    $region8: #{transformer_forward.1} parent=1 // pred_region
      _
    $region9: #{transformer_forward.1} parent=1 // pred_fallthru
      _
    // Predicated region
    $region10: #{transformer_forward.1} parent=1 // pred_check
      _
    $region11: #{transformer_forward.1} parent=1 // pred_check_branch
      %150 = sbr.rel (0) target = $region13
    $region12: #{transformer_forward.1} parent=1 // pred_region
      _
    $region13: #{transformer_forward.1} parent=1 // pred_fallthru
      _
    // Predicated region
    $region14: #{transformer_forward.1} parent=1 // pred_check
      _
    $region15: #{transformer_forward.1} parent=1 // pred_check_branch
      %152 = sbr.rel (0) target = $region17
    $region16: #{transformer_forward.1} parent=1 // pred_region
      %s154 = ssub.s32 128, 128
      %155 = vsyncadd [#allocation4], %s154
      %s157 = sshll.u32 [#allocation3], 4
      %s158 = int_to_ptr.vmem [resolvable:$true] %s157
      %160 = dma.hbm_to_vmem [thread:$0]  %s7, 128, %s158, [#allocation4]
    $region17: #{transformer_forward.1} parent=1 // pred_fallthru
      _
    // Predicated region
    $region18: #{transformer_forward.1} parent=1 // pred_check
      _
    $region19: #{transformer_forward.1} parent=1 // pred_check_branch
      %162 = sbr.rel (0) target = $region21
    $region20: #{transformer_forward.1} parent=1 // pred_region
      _
    $region21: #{transformer_forward.1} parent=1 // pred_fallthru
      _
    // Predicated region
    $region22: #{transformer_forward.1} parent=1 // pred_check
      _
    $region23: #{transformer_forward.1} parent=1 // pred_check_branch
      %164 = sbr.rel (0) target = $region25
    $region24: #{transformer_forward.1} parent=1 // pred_region
      _
    $region25: #{transformer_forward.1} parent=1 // pred_fallthru
      _
    // Predicated region
    $region26: #{transformer_forward.1} parent=1 // pred_check
      _
    $region27: #{transformer_forward.1} parent=1 // pred_check_branch
      %166 = sbr.rel (0) target = $region29
    $region28: #{transformer_forward.1} parent=1 // pred_region
      _
    $region29: #{transformer_forward.1} parent=1 // pred_fallthru
      _
    // Predicated region
    $region30: #{transformer_forward.1} parent=1 // pred_check
      _
    $region31: #{transformer_forward.1} parent=1 // pred_check_branch
      %168 = sbr.rel (0) target = $region33
    $region32: #{transformer_forward.1} parent=1 // pred_region
      _
    $region33: #{transformer_forward.1} parent=1 // pred_fallthru
      _
    // Predicated region
    $region34: #{transformer_forward.1} parent=1 // pred_check
      _
    $region35: #{transformer_forward.1} parent=1 // pred_check_branch
      %170 = sbr.rel (0) target = $region37
    $region36: #{transformer_forward.1} parent=1 // pred_region
      _
    $region37: #{transformer_forward.1} parent=1 // pred_fallthru
      _
    // Predicated region
    $region38: #{transformer_forward.1} parent=1 // pred_check
      _
    $region39: #{transformer_forward.1} parent=1 // pred_check_branch
      %172 = sbr.rel (0) target = $region41
    $region40: #{transformer_forward.1} parent=1 // pred_region
      _
    $region41: #{transformer_forward.1} parent=1 // pred_fallthru
      _
    // Predicated region
    $region42: #{transformer_forward.1} parent=1 // pred_check
      _
    $region43: #{transformer_forward.1} parent=1 // pred_check_branch
      %174 = sbr.rel (0) target = $region45
    $region44: #{transformer_forward.1} parent=1 // pred_region
      _
    $region45: #{transformer_forward.1} parent=1 // pred_fallthru
      _
    // Predicated region
    $region46: #{transformer_forward.1} parent=1 // pred_check
      _
    $region47: #{transformer_forward.1} parent=1 // pred_check_branch
      %176 = sbr.rel (0) target = $region49
    $region48: #{transformer_forward.1} parent=1 // pred_region
      _
    $region49: #{transformer_forward.1} parent=1 // pred_fallthru
      _
    // Predicated region
    $region50: #{transformer_forward.1} parent=1 // pred_check
      _
    $region51: #{transformer_forward.1} parent=1 // pred_check_branch
      %178 = sbr.rel (0) target = $region53
    $region52: #{transformer_forward.1} parent=1 // pred_region
      _
    $region53: #{transformer_forward.1} parent=1 // pred_fallthru
      _
    // Predicated region
    $region54: #{transformer_forward.1} parent=1 // pred_check
      _
    $region55: #{transformer_forward.1} parent=1 // pred_check_branch
      %180 = sbr.rel (0) target = $region57
    $region56: #{transformer_forward.1} parent=1 // pred_region
      _
    $region57: #{transformer_forward.1} parent=1 // pred_fallthru
      _
    // Predicated region
    $region58: #{transformer_forward.1} parent=1 // pred_check
      _
    $region59: #{transformer_forward.1} parent=1 // pred_check_branch
      %182 = sbr.rel (0) target = $region61
    $region60: #{transformer_forward.1} parent=1 // pred_region
      _
    $region61: #{transformer_forward.1} parent=1 // pred_fallthru
      _
    // Predicated region
    $region62: #{transformer_forward.1} parent=1 // pred_check
      _
    $region63: #{transformer_forward.1} parent=1 // pred_check_branch
      %184 = sbr.rel (0) target = $region65
    $region64: #{transformer_forward.1} parent=1 // pred_region
      _
    $region65: #{transformer_forward.1} parent=1 // pred_fallthru
      _
    // Predicated region
    $region66: #{transformer_forward.1} parent=1 // pred_check
      _
    $region67: #{transformer_forward.1} parent=1 // pred_check_branch
      %186 = sbr.rel (0) target = $region69
    $region68: #{transformer_forward.1} parent=1 // pred_region
      _
    $region69: #{transformer_forward.1} parent=1 // pred_fallthru
      _
    // Predicated region
    $region70: #{transformer_forward.1} parent=1 // pred_check
      _
    $region71: #{transformer_forward.1} parent=1 // pred_check_branch
      %188 = sbr.rel (0) target = $region73
    $region72: #{transformer_forward.1} parent=1 // pred_region
      _
    $region73: #{transformer_forward.1} parent=1 // pred_fallthru
      _
    // Predicated region
    $region74: #{transformer_forward.1} parent=1 // pred_check
      _
    $region75: #{transformer_forward.1} parent=1 // pred_check_branch
      %190 = sbr.rel (0) target = $region77
    $region76: #{transformer_forward.1} parent=1 // pred_region
      _
    $region77: #{transformer_forward.1} parent=1 // pred_fallthru
      _
    // Predicated region
    $region78: #{transformer_forward.1} parent=1 // pred_check
      _
    $region79: #{transformer_forward.1} parent=1 // pred_check_branch
      %192 = sbr.rel (0) target = $region81
    $region80: #{transformer_forward.1} parent=1 // pred_region
      _
    $region81: #{transformer_forward.1} parent=1 // pred_fallthru
      _
    // Predicated region
    $region82: #{transformer_forward.1} parent=1 // pred_check
      _
    $region83: #{transformer_forward.1} parent=1 // pred_check_branch
      %194 = sbr.rel (0) target = $region85
    $region84: #{transformer_forward.1} parent=1 // pred_region
      _
    $region85: #{transformer_forward.1} parent=1 // pred_fallthru
      _
    // Predicated region
    $region86: #{transformer_forward.1} parent=1 // pred_check
      _
    $region87: #{transformer_forward.1} parent=1 // pred_check_branch
      %196 = sbr.rel (0) target = $region89
    $region88: #{transformer_forward.1} parent=1 // pred_region
      _
    $region89: #{transformer_forward.1} parent=1 // pred_fallthru
      _
    // Predicated region
    $region90: #{transformer_forward.1} parent=1 // pred_check
      _
    $region91: #{transformer_forward.1} parent=1 // pred_check_branch
      %198 = sbr.rel (0) target = $region93
    $region92: #{transformer_forward.1} parent=1 // pred_region
      _
    $region93: #{transformer_forward.1} parent=1 // pred_fallthru
      _
    // Predicated region
    $region94: #{transformer_forward.1} parent=1 // pred_check
      _
    $region95: #{transformer_forward.1} parent=1 // pred_check_branch
      %200 = sbr.rel (0) target = $region97
    $region96: #{transformer_forward.1} parent=1 // pred_region
      %s202 = ssub.s32 16, 16
      %203 = vsyncadd [#allocation6], %s202
      %s205 = sshll.u32 [#allocation5], 4
      %s206 = int_to_ptr.vmem [resolvable:$true] %s205
      %208 = dma.hbm_to_vmem [thread:$0]  %s47, 16, %s206, [#allocation6]
    $region97: #{transformer_forward.1} parent=1 // pred_fallthru
      _
    // Predicated region
    $region98: #{transformer_forward.1} parent=1 // pred_check
      _
    $region99: #{transformer_forward.1} parent=1 // pred_check_branch
      %210 = sbr.rel (0) target = $region101
    $region100: #{transformer_forward.1} parent=1 // pred_region
      %s212 = ssub.s32 16, 16
      %213 = vsyncadd [#allocation6], %s212
      %s215 = sshll.u32 [#allocation7], 4
      %s216 = int_to_ptr.vmem [resolvable:$true] %s215
      %218 = dma.hbm_to_vmem [thread:$0]  %s49, 16, %s216, [#allocation6]
    $region101: #{transformer_forward.1} parent=1 // pred_fallthru
      _
    // Predicated region
    $region102: #{transformer_forward.1} parent=1 // pred_check
      _
    $region103: #{transformer_forward.1} parent=1 // pred_check_branch
      %220 = sbr.rel (0) target = $region105
    $region104: #{transformer_forward.1} parent=1 // pred_region
      _
    $region105: #{transformer_forward.1} parent=1 // pred_fallthru
      _
    // Predicated region
    $region106: #{transformer_forward.1} parent=1 // pred_check
      _
    $region107: #{transformer_forward.1} parent=1 // pred_check_branch
      %222 = sbr.rel (0) target = $region109
    $region108: #{transformer_forward.1} parent=1 // pred_region
      %s224 = ssub.s32 16, 16
      %225 = vsyncadd [#allocation9], %s224
      %s227 = sshll.u32 [#allocation8], 4
      %s228 = int_to_ptr.vmem [resolvable:$true] %s227
      %230 = dma.hbm_to_vmem [thread:$0]  %s53, 16, %s228, [#allocation9]
    $region109: #{transformer_forward.1} parent=1 // pred_fallthru
      _
    // Predicated region
    $region110: #{transformer_forward.1} parent=1 // pred_check
      _
    $region111: #{transformer_forward.1} parent=1 // pred_check_branch
      %232 = sbr.rel (0) target = $region113
    $region112: #{transformer_forward.1} parent=1 // pred_region
      _
    $region113: #{transformer_forward.1} parent=1 // pred_fallthru
      _
    // Predicated region
    $region114: #{transformer_forward.1} parent=1 // pred_check
      _
    $region115: #{transformer_forward.1} parent=1 // pred_check_branch
      %234 = sbr.rel (0) target = $region117
    $region116: #{transformer_forward.1} parent=1 // pred_region
      %s236 = ssub.s32 16, 16
      %237 = vsyncadd [#allocation9], %s236
      %s239 = sshll.u32 [#allocation10], 4
      %s240 = int_to_ptr.vmem [resolvable:$true] %s239
      %242 = dma.hbm_to_vmem [thread:$0]  %s57, 16, %s240, [#allocation9]
    $region117: #{transformer_forward.1} parent=1 // pred_fallthru
      _
    // Predicated region
    $region118: #{transformer_forward.1} parent=1 // pred_check
      _
    $region119: #{transformer_forward.1} parent=1 // pred_check_branch
      %244 = sbr.rel (0) target = $region121
    $region120: #{transformer_forward.1} parent=1 // pred_region
      _
    $region121: #{transformer_forward.1} parent=1 // pred_fallthru
      _
    // Predicated region
    $region122: #{transformer_forward.1} parent=1 // pred_check
      _
    $region123: #{transformer_forward.1} parent=1 // pred_check_branch
      %246 = sbr.rel (0) target = $region125
    $region124: #{transformer_forward.1} parent=1 // pred_region
      %s248 = ssub.s32 16, 16
      %249 = vsyncadd [#allocation12], %s248
      %s251 = sshll.u32 [#allocation11], 4
      %s252 = int_to_ptr.vmem [resolvable:$true] %s251
      %254 = dma.hbm_to_vmem [thread:$0]  %s61, 16, %s252, [#allocation12]
    $region125: #{transformer_forward.1} parent=1 // pred_fallthru
      _
    // Predicated region
    $region126: #{transformer_forward.1} parent=1 // pred_check
      _
    $region127: #{transformer_forward.1} parent=1 // pred_check_branch
      %256 = sbr.rel (0) target = $region129
    $region128: #{transformer_forward.1} parent=1 // pred_region
      %s258 = ssub.s32 16, 16
      %259 = vsyncadd [#allocation12], %s258
      %s261 = sshll.u32 [#allocation13], 4
      %s262 = int_to_ptr.vmem [resolvable:$true] %s261
      %264 = dma.hbm_to_vmem [thread:$0]  %s63, 16, %s262, [#allocation12]
    $region129: #{transformer_forward.1} parent=1 // pred_fallthru
      _
    // Predicated region
    $region130: #{transformer_forward.1} parent=1 // pred_check
      _
    $region131: #{transformer_forward.1} parent=1 // pred_check_branch
      %266 = sbr.rel (0) target = $region133
    $region132: #{transformer_forward.1} parent=1 // pred_region
      %s268 = ssub.s32 16, 16
      %269 = vsyncadd [#allocation15], %s268
      %s271 = sshll.u32 [#allocation14], 4
      %s272 = int_to_ptr.vmem [resolvable:$true] %s271
      %274 = dma.hbm_to_vmem [thread:$0]  %s65, 16, %s272, [#allocation15]
    $region133: #{transformer_forward.1} parent=1 // pred_fallthru
      _
    // Predicated region
    $region134: #{transformer_forward.1} parent=1 // pred_check
      _
    $region135: #{transformer_forward.1} parent=1 // pred_check_branch
      %276 = sbr.rel (0) target = $region137
    $region136: #{transformer_forward.1} parent=1 // pred_region
      _
    $region137: #{transformer_forward.1} parent=1 // pred_fallthru
      _
    // Predicated region
    $region138: #{transformer_forward.1} parent=1 // pred_check
      _
    $region139: #{transformer_forward.1} parent=1 // pred_check_branch
      %278 = sbr.rel (0) target = $region141
    $region140: #{transformer_forward.1} parent=1 // pred_region
      %s280 = ssub.s32 16, 16
      %281 = vsyncadd [#allocation15], %s280
      %s283 = sshll.u32 [#allocation16], 4
      %s284 = int_to_ptr.vmem [resolvable:$true] %s283
      %286 = dma.hbm_to_vmem [thread:$0]  %s69, 16, %s284, [#allocation15]
    $region141: #{transformer_forward.1} parent=1 // pred_fallthru
      _
    // Predicated region
    $region142: #{transformer_forward.1} parent=1 // pred_check
      _
    $region143: #{transformer_forward.1} parent=1 // pred_check_branch
      %288 = sbr.rel (0) target = $region145
    $region144: #{transformer_forward.1} parent=1 // pred_region
      _
    $region145: #{transformer_forward.1} parent=1 // pred_fallthru
      _
    // Predicated region
    $region146: #{transformer_forward.1} parent=1 // pred_check
      _
    $region147: #{transformer_forward.1} parent=1 // pred_check_branch
      %290 = sbr.rel (0) target = $region149
    $region148: #{transformer_forward.1} parent=1 // pred_region
      %s292 = ssub.s32 16, 16
      %293 = vsyncadd [#allocation18], %s292
      %s295 = sshll.u32 [#allocation17], 4
      %s296 = int_to_ptr.vmem [resolvable:$true] %s295
      %298 = dma.hbm_to_vmem [thread:$0]  %s73, 16, %s296, [#allocation18]
    $region149: #{transformer_forward.1} parent=1 // pred_fallthru
      _
    // Predicated region
    $region150: #{transformer_forward.1} parent=1 // pred_check
      _
    $region151: #{transformer_forward.1} parent=1 // pred_check_branch
      %300 = sbr.rel (0) target = $region153
    $region152: #{transformer_forward.1} parent=1 // pred_region
      _
    $region153: #{transformer_forward.1} parent=1 // pred_fallthru
      _
    // Predicated region
    $region154: #{transformer_forward.1} parent=1 // pred_check
      _
    $region155: #{transformer_forward.1} parent=1 // pred_check_branch
      %302 = sbr.rel (0) target = $region157
    $region156: #{transformer_forward.1} parent=1 // pred_region
      %s304 = ssub.s32 16, 16
      %305 = vsyncadd [#allocation18], %s304
      %s307 = sshll.u32 [#allocation19], 4
      %s308 = int_to_ptr.vmem [resolvable:$true] %s307
      %310 = dma.hbm_to_vmem [thread:$0]  %s77, 16, %s308, [#allocation18]
    $region157: #{transformer_forward.1} parent=1 // pred_fallthru
      _
    // Predicated region
    $region158: #{transformer_forward.1} parent=1 // pred_check
      _
    $region159: #{transformer_forward.1} parent=1 // pred_check_branch
      %312 = sbr.rel (0) target = $region161
    $region160: #{transformer_forward.1} parent=1 // pred_region
      _
    $region161: #{transformer_forward.1} parent=1 // pred_fallthru
      _
    // Predicated region
    $region162: #{transformer_forward.1} parent=1 // pred_check
      _
    $region163: #{transformer_forward.1} parent=1 // pred_check_branch
      %314 = sbr.rel (0) target = $region165
    $region164: #{transformer_forward.1} parent=1 // pred_region
      _
    $region165: #{transformer_forward.1} parent=1 // pred_fallthru
      _
    // Predicated region
    $region166: #{transformer_forward.1} parent=1 // pred_check
      _
    $region167: #{transformer_forward.1} parent=1 // pred_check_branch
      %316 = sbr.rel (0) target = $region169
    $region168: #{transformer_forward.1} parent=1 // pred_region
      _
    $region169: #{transformer_forward.1} parent=1 // pred_fallthru
      _
    // Predicated region
    $region170: #{transformer_forward.1} parent=1 // pred_check
      _
    $region171: #{transformer_forward.1} parent=1 // pred_check_branch
      %318 = sbr.rel (0) target = $region173
    $region172: #{transformer_forward.1} parent=1 // pred_region
      _
    $region173: #{transformer_forward.1} parent=1 // pred_fallthru
      _
    // Predicated region
    $region174: #{transformer_forward.1} parent=1 // pred_check
      _
    $region175: #{transformer_forward.1} parent=1 // pred_check_branch
      %320 = sbr.rel (0) target = $region177
    $region176: #{transformer_forward.1} parent=1 // pred_region
      _
    $region177: #{transformer_forward.1} parent=1 // pred_fallthru
      _
    // Predicated region
    $region178: #{transformer_forward.1} parent=1 // pred_check
      _
    $region179: #{transformer_forward.1} parent=1 // pred_check_branch
      %322 = sbr.rel (0) target = $region181
    $region180: #{transformer_forward.1} parent=1 // pred_region
      _
    $region181: #{transformer_forward.1} parent=1 // pred_fallthru
      _
    // Predicated region
    $region182: #{transformer_forward.1} parent=1 // pred_check
      _
    $region183: #{transformer_forward.1} parent=1 // pred_check_branch
      %324 = sbr.rel (0) target = $region185
    $region184: #{transformer_forward.1} parent=1 // pred_region
      _
    $region185: #{transformer_forward.1} parent=1 // pred_fallthru
      _
    // Predicated region
    $region186: #{transformer_forward.1} parent=1 // pred_check
      _
    $region187: #{transformer_forward.1} parent=1 // pred_check_branch
      %326 = sbr.rel (0) target = $region189
    $region188: #{transformer_forward.1} parent=1 // pred_region
      _
    $region189: #{transformer_forward.1} parent=1 // pred_fallthru
      _
    // Predicated region
    $region190: #{transformer_forward.1} parent=1 // pred_check
      _
    $region191: #{transformer_forward.1} parent=1 // pred_check_branch
      %328 = sbr.rel (0) target = $region193
    $region192: #{transformer_forward.1} parent=1 // pred_region
      _
    $region193: #{transformer_forward.1} parent=1 // pred_fallthru
      _
    // Predicated region
    $region194: #{transformer_forward.1} parent=1 // pred_check
      _
    $region195: #{transformer_forward.1} parent=1 // pred_check_branch
      %330 = sbr.rel (0) target = $region197
    $region196: #{transformer_forward.1} parent=1 // pred_region
      %s332 = ssub.s32 16, 16
      %333 = vsyncadd [#allocation21], %s332
      %s335 = sshll.u32 [#allocation20], 4
      %s336 = int_to_ptr.vmem [resolvable:$true] %s335
      %338 = dma.hbm_to_vmem [thread:$0]  %s97, 16, %s336, [#allocation21]
    $region197: #{transformer_forward.1} parent=1 // pred_fallthru
      _
    // Predicated region
    $region198: #{transformer_forward.1} parent=1 // pred_check
      _
    $region199: #{transformer_forward.1} parent=1 // pred_check_branch
      %340 = sbr.rel (0) target = $region201
    $region200: #{transformer_forward.1} parent=1 // pred_region
      _
    $region201: #{transformer_forward.1} parent=1 // pred_fallthru
      _
    // Predicated region
    $region202: #{transformer_forward.1} parent=1 // pred_check
      _
    $region203: #{transformer_forward.1} parent=1 // pred_check_branch
      %342 = sbr.rel (0) target = $region205
    $region204: #{transformer_forward.1} parent=1 // pred_region
      %s344 = ssub.s32 16, 16
      %345 = vsyncadd [#allocation21], %s344
      %s347 = sshll.u32 [#allocation22], 4
      %s348 = int_to_ptr.vmem [resolvable:$true] %s347
      %350 = dma.hbm_to_vmem [thread:$0]  %s101, 16, %s348, [#allocation21]
    $region205: #{transformer_forward.1} parent=1 // pred_fallthru
      _
    // Predicated region
    $region206: #{transformer_forward.1} parent=1 // pred_check
      _
    $region207: #{transformer_forward.1} parent=1 // pred_check_branch
      %352 = sbr.rel (0) target = $region209
    $region208: #{transformer_forward.1} parent=1 // pred_region
      %s354 = ssub.s32 16, 16
      %355 = vsyncadd [#allocation24], %s354
      %s357 = sshll.u32 [#allocation23], 4
      %s358 = int_to_ptr.vmem [resolvable:$true] %s357
      %360 = dma.hbm_to_vmem [thread:$0]  %s103, 16, %s358, [#allocation24]
    $region209: #{transformer_forward.1} parent=1 // pred_fallthru
      _
    // Predicated region
    $region210: #{transformer_forward.1} parent=1 // pred_check
      _
    $region211: #{transformer_forward.1} parent=1 // pred_check_branch
      %362 = sbr.rel (0) target = $region213
    $region212: #{transformer_forward.1} parent=1 // pred_region
      %s364 = ssub.s32 16, 16
      %365 = vsyncadd [#allocation24], %s364
      %s367 = sshll.u32 [#allocation25], 4
      %s368 = int_to_ptr.vmem [resolvable:$true] %s367
      %370 = dma.hbm_to_vmem [thread:$0]  %s105, 16, %s368, [#allocation24]
    $region213: #{transformer_forward.1} parent=1 // pred_fallthru
      _
    // Predicated region
    $region214: #{transformer_forward.1} parent=1 // pred_check
      _
    $region215: #{transformer_forward.1} parent=1 // pred_check_branch
      %372 = sbr.rel (0) target = $region217
    $region216: #{transformer_forward.1} parent=1 // pred_region
      _
    $region217: #{transformer_forward.1} parent=1 // pred_fallthru
      _
    // Predicated region
    $region218: #{transformer_forward.1} parent=1 // pred_check
      _
    $region219: #{transformer_forward.1} parent=1 // pred_check_branch
      %374 = sbr.rel (0) target = $region221
    $region220: #{transformer_forward.1} parent=1 // pred_region
      %s376 = ssub.s32 16, 16
      %377 = vsyncadd [#allocation27], %s376
      %s379 = sshll.u32 [#allocation26], 4
      %s380 = int_to_ptr.vmem [resolvable:$true] %s379
      %382 = dma.hbm_to_vmem [thread:$0]  %s109, 16, %s380, [#allocation27]
    $region221: #{transformer_forward.1} parent=1 // pred_fallthru
      _
    // Predicated region
    $region222: #{transformer_forward.1} parent=1 // pred_check
      _
    $region223: #{transformer_forward.1} parent=1 // pred_check_branch
      %384 = sbr.rel (0) target = $region225
    $region224: #{transformer_forward.1} parent=1 // pred_region
      %s386 = ssub.s32 16, 16
      %387 = vsyncadd [#allocation27], %s386
      %s389 = sshll.u32 [#allocation28], 4
      %s390 = int_to_ptr.vmem [resolvable:$true] %s389
      %392 = dma.hbm_to_vmem [thread:$0]  %s111, 16, %s390, [#allocation27]
    $region225: #{transformer_forward.1} parent=1 // pred_fallthru
      _
    // Predicated region
    $region226: #{transformer_forward.1} parent=1 // pred_check
      _
    $region227: #{transformer_forward.1} parent=1 // pred_check_branch
      %394 = sbr.rel (0) target = $region229
    $region228: #{transformer_forward.1} parent=1 // pred_region
      %s396 = ssub.s32 16, 16
      %397 = vsyncadd [#allocation30], %s396
      %s399 = sshll.u32 [#allocation29], 4
      %s400 = int_to_ptr.vmem [resolvable:$true] %s399
      %402 = dma.hbm_to_vmem [thread:$0]  %s113, 16, %s400, [#allocation30]
    $region229: #{transformer_forward.1} parent=1 // pred_fallthru
      _
    // Predicated region
    $region230: #{transformer_forward.1} parent=1 // pred_check
      _
    $region231: #{transformer_forward.1} parent=1 // pred_check_branch
      %404 = sbr.rel (0) target = $region233
    $region232: #{transformer_forward.1} parent=1 // pred_region
      _
    $region233: #{transformer_forward.1} parent=1 // pred_fallthru
      _
    // Predicated region
    $region234: #{transformer_forward.1} parent=1 // pred_check
      _
    $region235: #{transformer_forward.1} parent=1 // pred_check_branch
      %406 = sbr.rel (0) target = $region237
    $region236: #{transformer_forward.1} parent=1 // pred_region
      %s408 = ssub.s32 16, 16
      %409 = vsyncadd [#allocation30], %s408
      %s411 = sshll.u32 [#allocation31], 4
      %s412 = int_to_ptr.vmem [resolvable:$true] %s411
      %414 = dma.hbm_to_vmem [thread:$0]  %s117, 16, %s412, [#allocation30]
    $region237: #{transformer_forward.1} parent=1 // pred_fallthru
      _
    // Predicated region
    $region238: #{transformer_forward.1} parent=1 // pred_check
      _
    $region239: #{transformer_forward.1} parent=1 // pred_check_branch
      %416 = sbr.rel (0) target = $region241
    $region240: #{transformer_forward.1} parent=1 // pred_region
      %s418 = ssub.s32 16, 16
      %419 = vsyncadd [#allocation33], %s418
      %s421 = sshll.u32 [#allocation32], 4
      %s422 = int_to_ptr.vmem [resolvable:$true] %s421
      %424 = dma.hbm_to_vmem [thread:$0]  %s119, 16, %s422, [#allocation33]
    $region241: #{transformer_forward.1} parent=1 // pred_fallthru
      _
    // Predicated region
    $region242: #{transformer_forward.1} parent=1 // pred_check
      _
    $region243: #{transformer_forward.1} parent=1 // pred_check_branch
      %426 = sbr.rel (0) target = $region245
    $region244: #{transformer_forward.1} parent=1 // pred_region
      %s428 = ssub.s32 16, 16
      %429 = vsyncadd [#allocation33], %s428
      %s431 = sshll.u32 [#allocation34], 4
      %s432 = int_to_ptr.vmem [resolvable:$true] %s431
      %434 = dma.hbm_to_vmem [thread:$0]  %s121, 16, %s432, [#allocation33]
    $region245: #{transformer_forward.1} parent=1 // pred_fallthru
      _
    // Predicated region
    $region246: #{transformer_forward.1} parent=1 // pred_check
      _
    $region247: #{transformer_forward.1} parent=1 // pred_check_branch
      %436 = sbr.rel (0) target = $region249
    $region248: #{transformer_forward.1} parent=1 // pred_region
      _
    $region249: #{transformer_forward.1} parent=1 // pred_fallthru
      _
    // Predicated region
    $region250: #{transformer_forward.1} parent=1 // pred_check
      _
    $region251: #{transformer_forward.1} parent=1 // pred_check_branch
      %438 = sbr.rel (0) target = $region253
    $region252: #{transformer_forward.1} parent=1 // pred_region
      _
    $region253: #{transformer_forward.1} parent=1 // pred_fallthru
      _
    // Predicated region
    $region254: #{transformer_forward.1} parent=1 // pred_check
      _
    $region255: #{transformer_forward.1} parent=1 // pred_check_branch
      %440 = sbr.rel (0) target = $region257
    $region256: #{transformer_forward.1} parent=1 // pred_region
      %441 = dma.done [#allocation4], 128
    $region257: #{transformer_forward.1} parent=1 // pred_fallthru
      _
    // Predicated region
    $region258: #{transformer_forward.1} parent=1 // pred_check
      _
    $region259: #{transformer_forward.1} parent=1 // pred_check_branch
      %443 = sbr.rel (0) target = $region261
    $region260: #{transformer_forward.1} parent=1 // pred_region
      %444 = dma.done [#allocation6], 16
    $region261: #{transformer_forward.1} parent=1 // pred_fallthru
      _
    // Predicated region
    $region262: #{transformer_forward.1} parent=1 // pred_check
      _
    $region263: #{transformer_forward.1} parent=1 // pred_check_branch
      %446 = sbr.rel (0) target = $region265
    $region264: #{transformer_forward.1} parent=1 // pred_region
      %447 = dma.done [#allocation6], 16
    $region265: #{transformer_forward.1} parent=1 // pred_fallthru
      _
    // Predicated region
    $region266: #{transformer_forward.1} parent=1 // pred_check
      _
    $region267: #{transformer_forward.1} parent=1 // pred_check_branch
      %449 = sbr.rel (0) target = $region269
    $region268: #{transformer_forward.1} parent=1 // pred_region
      %450 = dma.done [#allocation9], 16
    $region269: #{transformer_forward.1} parent=1 // pred_fallthru
      _
    // Predicated region
    $region270: #{transformer_forward.1} parent=1 // pred_check
      _
    $region271: #{transformer_forward.1} parent=1 // pred_check_branch
      %452 = sbr.rel (0) target = $region273
    $region272: #{transformer_forward.1} parent=1 // pred_region
      %453 = dma.done [#allocation9], 16
    $region273: #{transformer_forward.1} parent=1 // pred_fallthru
      _
    // Predicated region
    $region274: #{transformer_forward.1} parent=1 // pred_check
      _
    $region275: #{transformer_forward.1} parent=1 // pred_check_branch
      %455 = sbr.rel (0) target = $region277
    $region276: #{transformer_forward.1} parent=1 // pred_region
      %456 = dma.done [#allocation12], 16
    $region277: #{transformer_forward.1} parent=1 // pred_fallthru
      _
    // Predicated region
    $region278: #{transformer_forward.1} parent=1 // pred_check
      _
    $region279: #{transformer_forward.1} parent=1 // pred_check_branch
      %458 = sbr.rel (0) target = $region281
    $region280: #{transformer_forward.1} parent=1 // pred_region
      %459 = dma.done [#allocation12], 16
    $region281: #{transformer_forward.1} parent=1 // pred_fallthru
      _
    // Predicated region
    $region282: #{transformer_forward.1} parent=1 // pred_check
      _
    $region283: #{transformer_forward.1} parent=1 // pred_check_branch
      %461 = sbr.rel (0) target = $region285
    $region284: #{transformer_forward.1} parent=1 // pred_region
      %462 = dma.done [#allocation15], 16
    $region285: #{transformer_forward.1} parent=1 // pred_fallthru
      _
    // Predicated region
    $region286: #{transformer_forward.1} parent=1 // pred_check
      _
    $region287: #{transformer_forward.1} parent=1 // pred_check_branch
      %464 = sbr.rel (0) target = $region289
    $region288: #{transformer_forward.1} parent=1 // pred_region
      %465 = dma.done [#allocation15], 16
    $region289: #{transformer_forward.1} parent=1 // pred_fallthru
      _
    // Predicated region
    $region290: #{transformer_forward.1} parent=1 // pred_check
      _
    $region291: #{transformer_forward.1} parent=1 // pred_check_branch
      %467 = sbr.rel (0) target = $region293
    $region292: #{transformer_forward.1} parent=1 // pred_region
      %468 = dma.done [#allocation18], 16
    $region293: #{transformer_forward.1} parent=1 // pred_fallthru
      _
    // Predicated region
    $region294: #{transformer_forward.1} parent=1 // pred_check
      _
    $region295: #{transformer_forward.1} parent=1 // pred_check_branch
      %470 = sbr.rel (0) target = $region297
    $region296: #{transformer_forward.1} parent=1 // pred_region
      %471 = dma.done [#allocation18], 16
    $region297: #{transformer_forward.1} parent=1 // pred_fallthru
      _
    // Predicated region
    $region298: #{transformer_forward.1} parent=1 // pred_check
      _
    $region299: #{transformer_forward.1} parent=1 // pred_check_branch
      %473 = sbr.rel (0) target = $region301
    $region300: #{transformer_forward.1} parent=1 // pred_region
      %474 = dma.done [#allocation21], 16
    $region301: #{transformer_forward.1} parent=1 // pred_fallthru
      _
    // Predicated region
    $region302: #{transformer_forward.1} parent=1 // pred_check
      _
    $region303: #{transformer_forward.1} parent=1 // pred_check_branch
      %476 = sbr.rel (0) target = $region305
    $region304: #{transformer_forward.1} parent=1 // pred_region
      %477 = dma.done [#allocation21], 16
    $region305: #{transformer_forward.1} parent=1 // pred_fallthru
      _
    // Predicated region
    $region306: #{transformer_forward.1} parent=1 // pred_check
      _
    $region307: #{transformer_forward.1} parent=1 // pred_check_branch
      %479 = sbr.rel (0) target = $region309
    $region308: #{transformer_forward.1} parent=1 // pred_region
      %480 = dma.done [#allocation24], 16
    $region309: #{transformer_forward.1} parent=1 // pred_fallthru
      _
    // Predicated region
    $region310: #{transformer_forward.1} parent=1 // pred_check
      _
    $region311: #{transformer_forward.1} parent=1 // pred_check_branch
      %482 = sbr.rel (0) target = $region313
    $region312: #{transformer_forward.1} parent=1 // pred_region
      %483 = dma.done [#allocation24], 16
    $region313: #{transformer_forward.1} parent=1 // pred_fallthru
      _
    // Predicated region
    $region314: #{transformer_forward.1} parent=1 // pred_check
      _
    $region315: #{transformer_forward.1} parent=1 // pred_check_branch
      %485 = sbr.rel (0) target = $region317
    $region316: #{transformer_forward.1} parent=1 // pred_region
      %486 = dma.done [#allocation27], 16
    $region317: #{transformer_forward.1} parent=1 // pred_fallthru
      _
    // Predicated region
    $region318: #{transformer_forward.1} parent=1 // pred_check
      _
    $region319: #{transformer_forward.1} parent=1 // pred_check_branch
      %488 = sbr.rel (0) target = $region321
    $region320: #{transformer_forward.1} parent=1 // pred_region
      %489 = dma.done [#allocation27], 16
    $region321: #{transformer_forward.1} parent=1 // pred_fallthru
      _
    // Predicated region
    $region322: #{transformer_forward.1} parent=1 // pred_check
      _
    $region323: #{transformer_forward.1} parent=1 // pred_check_branch
      %491 = sbr.rel (0) target = $region325
    $region324: #{transformer_forward.1} parent=1 // pred_region
      %492 = dma.done [#allocation30], 16
    $region325: #{transformer_forward.1} parent=1 // pred_fallthru
      _
    // Predicated region
    $region326: #{transformer_forward.1} parent=1 // pred_check
      _
    $region327: #{transformer_forward.1} parent=1 // pred_check_branch
      %494 = sbr.rel (0) target = $region329
    $region328: #{transformer_forward.1} parent=1 // pred_region
      %495 = dma.done [#allocation30], 16
    $region329: #{transformer_forward.1} parent=1 // pred_fallthru
      _
    // Predicated region
    $region330: #{transformer_forward.1} parent=1 // pred_check
      _
    $region331: #{transformer_forward.1} parent=1 // pred_check_branch
      %497 = sbr.rel (0) target = $region333
    $region332: #{transformer_forward.1} parent=1 // pred_region
      %498 = dma.done [#allocation33], 16
    $region333: #{transformer_forward.1} parent=1 // pred_fallthru
      _
    // Predicated region
    $region334: #{transformer_forward.1} parent=1 // pred_check
      _
    $region335: #{transformer_forward.1} parent=1 // pred_check_branch
      %500 = sbr.rel (0) target = $region337
    $region336: #{transformer_forward.1} parent=1 // pred_region
      %501 = dma.done [#allocation33], 16
    $region337: #{transformer_forward.1} parent=1 // pred_fallthru
      _
    %v502 = vld [vmem:[%s5] sm:$0xff]
    %v503 = vld [vmem:[%s5 + $0x8] sm:$0xf]
    %v504 = vld [vmem:[#allocation3] sm:$0x3f]
    %v505 = vld [vmem:[%s9] sm:$0xff]
    %v506 = vld [vmem:[%s1] sm:$0x3f]
    %v508 = vrot.slane %v506, 5
    %v510 = vrot.slane %v506, 7
    %v512 = vrot.slane %v506, 1
    %vm514 = vcmask 1040384
    %v515 = vsel %vm514, %v508, %v510
    %vm516 = vcmask 1046528
    %v517 = vsel %vm516, %v515, %v512
    %v519 = vrot.slane %v517, 1
    %520 = vrot.lane.b32.xlu0 %v519, 4
    %v521 = vpop.permute.xlu0 %520
    %v523 = vrot.slane %v517, 2
    %524 = vrot.lane.b32.xlu0 %v523, 8
    %v525 = vpop.permute.xlu0 %524
    %vm527 = vcmask 31744
    %v528 = vsel %vm527, %v517, %v521
    %vm529 = vcmask 64512
    %v530 = vsel %vm529, %v528, %v525
    %s531 = scalar_lea.vmem %s1, 8
    %v532 = vld [vmem:[%s531] sm:$0x3f]
    %v534 = vrot.slane %v532, 5
    %v536 = vrot.slane %v532, 7
    %v538 = vrot.slane %v532, 1
    %v540 = vsel %vm514, %v534, %v536
    %v541 = vsel %vm516, %v540, %v538
    %v543 = vrot.slane %v541, 1
    %544 = vrot.lane.b32.xlu0 %v543, 4
    %v545 = vpop.permute.xlu0 %544
    %v547 = vrot.slane %v541, 2
    %548 = vrot.lane.b32.xlu0 %v547, 8
    %v549 = vpop.permute.xlu0 %548
    %v551 = vsel %vm527, %v541, %v545
    %v552 = vsel %vm529, %v551, %v549
    %v554 = vrot.slane %v552, 2
    %vm556 = vcmask 1045504
    %v557 = vsel %vm556, %v530, %v554
    %v559 = vrot.slane %v505, 2
    %v561 = vsel %vm556, %v505, %v559
    %vm562 = vcmask 97280
    %v564 = vsel %vm562, %v557, 0
    %v566 = vsel %vm562, %v554, 0
    %vm568 = vcmask 1043456
    %v570 = vsel %vm568, %v503, 0
    %572 = vmatprep.subr.mxu0 0.0
    %573 = vmatpush1.msra.mxu0 %v502
    %574 = vmatprep.subr.mxu0 0.0
    %575 = vmatpush1.msra.mxu0 %v570
    %576 = vmatprep.subr.mxu0 0.0
    %577 = vmatpush1.msra.mxu0 0.0
    %578 = vmatprep.subr.mxu0 0.0
    %579 = vmatpush1.msra.mxu0 0.0
    %580 = vmatprep.subr.mxu0 0.0
    %581 = vmatpush1.msra.mxu0 0.0
    %582 = vmatprep.subr.mxu0 0.0
    %583 = vmatpush1.msra.mxu0 0.0
    %584 = vmatprep.subr.mxu0 0.0
    %585 = vmatpush1.msra.mxu0 0.0
    %586 = vmatprep.subr.mxu0 0.0
    %587 = vmatpush1.msra.mxu0 0.0
    %588 = vmatprep.subr.mxu0 0.0
    %589 = vmatpush1.msra.mxu0 0.0
    %590 = vmatprep.subr.mxu0 0.0
    %591 = vmatpush1.msra.mxu0 0.0
    %592 = vmatprep.subr.mxu0 0.0
    %593 = vmatpush1.msra.mxu0 0.0
    %594 = vmatprep.subr.mxu0 0.0
    %595 = vmatpush1.msra.mxu0 0.0
    %596 = vmatprep.subr.mxu0 0.0
    %597 = vmatpush1.msra.mxu0 0.0
    %598 = vmatprep.subr.mxu0 0.0
    %599 = vmatpush1.msra.mxu0 0.0
    %600 = vmatprep.subr.mxu0 0.0
    %601 = vmatpush1.msra.mxu0 0.0
    %602 = vmatprep.subr.mxu0 0.0
    %603 = vmatpush1.msra.mxu0 0.0
    %604 = vmatprep.subr.mxu0 0.0
    %605 = vmatpush1.msra.mxu0 0.0
    %606 = vmatprep.subr.mxu0 0.0
    %607 = vmatpush1.msra.mxu0 0.0
    %608 = vmatprep.subr.mxu0 0.0
    %609 = vmatpush1.msra.mxu0 0.0
    %610 = vmatprep.subr.mxu0 0.0
    %611 = vmatpush1.msra.mxu0 0.0
    %612 = vmatprep.subr.mxu0 0.0
    %613 = vmatpush1.msra.mxu0 0.0
    %614 = vmatprep.subr.mxu0 0.0
    %615 = vmatpush1.msra.mxu0 0.0
    %616 = vmatprep.subr.mxu0 0.0
    %617 = vmatpush1.msra.mxu0 0.0
    %618 = vmatprep.subr.mxu0 0.0
    %619 = vmatpush1.msra.mxu0 0.0
    %620 = vmatprep.subr.mxu0 0.0
    %621 = vmatpush1.msra.mxu0 0.0
    %622 = vmatprep.subr.mxu0 0.0
    %623 = vmatpush1.msra.mxu0 0.0
    %624 = vmatprep.subr.mxu0 0.0
    %625 = vmatpush1.msra.mxu0 0.0
    %626 = vmatprep.subr.mxu0 0.0
    %627 = vmatpush1.msra.mxu0 0.0
    %628 = vmatprep.subr.mxu0 0.0
    %629 = vmatpush1.msra.mxu0 0.0
    %630 = vmatprep.subr.mxu0 0.0
    %631 = vmatpush1.msra.mxu0 0.0
    %632 = vmatprep.subr.mxu0 0.0
    %633 = vmatpush1.msra.mxu0 0.0
    %634 = vmatprep.subr.mxu0 0.0
    %635 = vmatpush1.msra.mxu0 0.0
    %636 = vmatprep.mubr.f32.mxu0 0.0
    %637 = vmatmul.mubr.f32.gmra.mrb[0].mxu0 %v564
    %v638 = vpop.f32.mrb[0].mxu0
    %v639 = vadd.f32 %v561, %v638
    %v640 = vpop.f32.mrb[0].mxu0
    %641 = vmatprep.mubr.f32.mxu0 0.0
    %642 = vmatmul.mubr.f32.gmra.mrb[0].mxu0 %v566
    %v643 = vpop.f32.mrb[0].mxu0
    %v644 = vadd.f32 %v559, %v643
    %v645 = vpop.f32.mrb[0].mxu0
    %646 = vdwg.mxu0
    %v647 = vld [vmem:[%s3] sm:$0x3]
    %v649 = vrot.slane %v647, 1
    %v651 = vrot.slane %v647, 7
    %v653 = vrot.slane %v647, 5
    %v655 = vsel %vm514, %v649, %v651
    %vm656 = vcmask 1042432
    %v657 = vsel %vm656, %v655, %v653
    %v659 = vrot.slane %v657, 1
    %660 = vrot.lane.b32.xlu0 %v659, 2
    %v661 = vpop.permute.xlu0 %660
    %v663 = vrot.slane %v657, 2
    %664 = vrot.lane.b32.xlu0 %v663, 4
    %v665 = vpop.permute.xlu0 %664
    %vm667 = vcmask 15360
    %v668 = vsel %vm667, %v657, %v661
    %v669 = vsel %vm527, %v668, %v665
    %s670 = scalar_lea.vmem %s3, 2
    %v671 = vld [vmem:[%s670] sm:$0x3]
    %v673 = vrot.slane %v671, 1
    %v675 = vrot.slane %v671, 7
    %v677 = vrot.slane %v671, 5
    %v679 = vsel %vm514, %v673, %v675
    %v680 = vsel %vm656, %v679, %v677
    %v682 = vrot.slane %v680, 1
    %683 = vrot.lane.b32.xlu0 %v682, 2
    %v684 = vpop.permute.xlu0 %683
    %v686 = vrot.slane %v680, 2
    %687 = vrot.lane.b32.xlu0 %v686, 4
    %v688 = vpop.permute.xlu0 %687
    %v690 = vsel %vm667, %v680, %v684
    %v691 = vsel %vm527, %v690, %v688
    %v693 = vrot.slane %v691, 6
    %vm695 = vcmask 1041408
    %v696 = vsel %vm695, %v669, %v693
    %v697 = vrot.slane %v505, 6
    %v699 = vsel %vm695, %v505, %v697
    %vm700 = vcmask 48128
    %v702 = vsel %vm700, %v696, 0
    %v705 = vsel %vm556, %v504, 0
    %707 = vmatprep.subr.mxu0 0.0
    %708 = vmatpush1.msra.mxu0 %v705
    %709 = vmatprep.subr.mxu0 0.0
    %710 = vmatpush1.msra.mxu0 0.0
    %711 = vmatprep.subr.mxu0 0.0
    %712 = vmatpush1.msra.mxu0 0.0
    %713 = vmatprep.subr.mxu0 0.0
    %714 = vmatpush1.msra.mxu0 0.0
    %715 = vmatprep.subr.mxu0 0.0
    %716 = vmatpush1.msra.mxu0 0.0
    %717 = vmatprep.subr.mxu0 0.0
    %718 = vmatpush1.msra.mxu0 0.0
    %719 = vmatprep.subr.mxu0 0.0
    %720 = vmatpush1.msra.mxu0 0.0
    %721 = vmatprep.subr.mxu0 0.0
    %722 = vmatpush1.msra.mxu0 0.0
    %723 = vmatprep.subr.mxu0 0.0
    %724 = vmatpush1.msra.mxu0 0.0
    %725 = vmatprep.subr.mxu0 0.0
    %726 = vmatpush1.msra.mxu0 0.0
    %727 = vmatprep.subr.mxu0 0.0
    %728 = vmatpush1.msra.mxu0 0.0
    %729 = vmatprep.subr.mxu0 0.0
    %730 = vmatpush1.msra.mxu0 0.0
    %731 = vmatprep.subr.mxu0 0.0
    %732 = vmatpush1.msra.mxu0 0.0
    %733 = vmatprep.subr.mxu0 0.0
    %734 = vmatpush1.msra.mxu0 0.0
    %735 = vmatprep.subr.mxu0 0.0
    %736 = vmatpush1.msra.mxu0 0.0
    %737 = vmatprep.subr.mxu0 0.0
    %738 = vmatpush1.msra.mxu0 0.0
    %739 = vmatprep.subr.mxu0 0.0
    %740 = vmatpush1.msra.mxu0 0.0
    %741 = vmatprep.subr.mxu0 0.0
    %742 = vmatpush1.msra.mxu0 0.0
    %743 = vmatprep.subr.mxu0 0.0
    %744 = vmatpush1.msra.mxu0 0.0
    %745 = vmatprep.subr.mxu0 0.0
    %746 = vmatpush1.msra.mxu0 0.0
    %747 = vmatprep.subr.mxu0 0.0
    %748 = vmatpush1.msra.mxu0 0.0
    %749 = vmatprep.subr.mxu0 0.0
    %750 = vmatpush1.msra.mxu0 0.0
    %751 = vmatprep.subr.mxu0 0.0
    %752 = vmatpush1.msra.mxu0 0.0
    %753 = vmatprep.subr.mxu0 0.0
    %754 = vmatpush1.msra.mxu0 0.0
    %755 = vmatprep.subr.mxu0 0.0
    %756 = vmatpush1.msra.mxu0 0.0
    %757 = vmatprep.subr.mxu0 0.0
    %758 = vmatpush1.msra.mxu0 0.0
    %759 = vmatprep.subr.mxu0 0.0
    %760 = vmatpush1.msra.mxu0 0.0
    %761 = vmatprep.subr.mxu0 0.0
    %762 = vmatpush1.msra.mxu0 0.0
    %763 = vmatprep.subr.mxu0 0.0
    %764 = vmatpush1.msra.mxu0 0.0
    %765 = vmatprep.subr.mxu0 0.0
    %766 = vmatpush1.msra.mxu0 0.0
    %767 = vmatprep.subr.mxu0 0.0
    %768 = vmatpush1.msra.mxu0 0.0
    %769 = vmatprep.subr.mxu0 0.0
    %770 = vmatpush1.msra.mxu0 0.0
    %771 = vmatprep.mubr.f32.mxu0 0.0
    %772 = vmatmul.mubr.f32.gmra.mrb[0].mxu0 %v702
    %v773 = vpop.f32.mrb[0].mxu0
    %v774 = vadd.f32 %v699, %v773
    %v775 = vpop.f32.mrb[0].mxu0
    %776 = vdwg.mxu0
    %v777 = vld [vmem:[%s11] sm:$0xff]
    %v778 = vld [vmem:[%s11 + $0x8] sm:$0xff]
    %v779 = vld [vmem:[%s11 + $0x10] sm:$0xff]
    %v780 = vld [vmem:[%s11 + $0x18] sm:$0xff]
    %v781 = vld [vmem:[%s13] sm:$0x1]
    %v782 = vld [vmem:[%s15] sm:$0xff]
    %v783 = vld [vmem:[%s15 + $0x8] sm:$0xff]
    %v784 = vld [vmem:[%s15 + $0x10] sm:$0xff]
    %v785 = vld [vmem:[%s15 + $0x18] sm:$0xff]
    %v786 = vld [vmem:[%s17] sm:$0x1]
    %v787 = vld [vmem:[%s19] sm:$0x1]
    %v788 = vld [vmem:[%s21] sm:$0x1]
    %v789 = vld [vmem:[%s23] sm:$0xff]
    %v790 = vld [vmem:[%s23 + $0x8] sm:$0xff]
    %v791 = vld [vmem:[%s23 + $0x10] sm:$0xff]
    %v792 = vld [vmem:[%s23 + $0x18] sm:$0xff]
    %v793 = vld [vmem:[%s25] sm:$0x1]
    %v794 = vld [vmem:[%s27] sm:$0xff]
    %v795 = vld [vmem:[%s27 + $0x8] sm:$0xff]
    %v796 = vld [vmem:[%s27 + $0x10] sm:$0xff]
    %v797 = vld [vmem:[%s27 + $0x18] sm:$0xff]
    %v798 = vld [vmem:[%s27 + $0x20] sm:$0xff]
    %v799 = vld [vmem:[%s27 + $0x28] sm:$0xff]
    %v800 = vld [vmem:[%s27 + $0x30] sm:$0xff]
    %v801 = vld [vmem:[%s27 + $0x38] sm:$0xff]
    %v802 = vld [vmem:[%s29] sm:$0x1]
    %v803 = vld [vmem:[%s31] sm:$0x1]
    %v804 = vld [vmem:[%s33] sm:$0x1]
    %v806 = vlaneseq
    %v807 = vshrl.u32 %v806, 7
    %v808 = vsub.s32 0, %v807
    %v809 = vrot.slane %v781, %v808
    %vm811 = vcmask 261120
    %v813 = vsel %vm811, %v639, 0
    %v816 = vsel %vm811, %v644, 0
    %818 = vmatprep.subr.mxu0 0.0
    %819 = vmatpush1.msra.mxu0 %v777
    %820 = vmatprep.subr.mxu0 0.0
    %821 = vmatpush1.msra.mxu0 %v778
    %822 = vmatprep.subr.mxu0 0.0
    %823 = vmatpush1.msra.mxu0 %v779
    %824 = vmatprep.subr.mxu0 0.0
    %825 = vmatpush1.msra.mxu0 %v780
    %826 = vmatprep.subr.mxu0 0.0
    %827 = vmatpush1.msra.mxu0 0.0
    %828 = vmatprep.subr.mxu0 0.0
    %829 = vmatpush1.msra.mxu0 0.0
    %830 = vmatprep.subr.mxu0 0.0
    %831 = vmatpush1.msra.mxu0 0.0
    %832 = vmatprep.subr.mxu0 0.0
    %833 = vmatpush1.msra.mxu0 0.0
    %834 = vmatprep.subr.mxu0 0.0
    %835 = vmatpush1.msra.mxu0 0.0
    %836 = vmatprep.subr.mxu0 0.0
    %837 = vmatpush1.msra.mxu0 0.0
    %838 = vmatprep.subr.mxu0 0.0
    %839 = vmatpush1.msra.mxu0 0.0
    %840 = vmatprep.subr.mxu0 0.0
    %841 = vmatpush1.msra.mxu0 0.0
    %842 = vmatprep.subr.mxu0 0.0
    %843 = vmatpush1.msra.mxu0 0.0
    %844 = vmatprep.subr.mxu0 0.0
    %845 = vmatpush1.msra.mxu0 0.0
    %846 = vmatprep.subr.mxu0 0.0
    %847 = vmatpush1.msra.mxu0 0.0
    %848 = vmatprep.subr.mxu0 0.0
    %849 = vmatpush1.msra.mxu0 0.0
    %850 = vmatprep.subr.mxu0 0.0
    %851 = vmatpush1.msra.mxu0 0.0
    %852 = vmatprep.subr.mxu0 0.0
    %853 = vmatpush1.msra.mxu0 0.0
    %854 = vmatprep.subr.mxu0 0.0
    %855 = vmatpush1.msra.mxu0 0.0
    %856 = vmatprep.subr.mxu0 0.0
    %857 = vmatpush1.msra.mxu0 0.0
    %858 = vmatprep.subr.mxu0 0.0
    %859 = vmatpush1.msra.mxu0 0.0
    %860 = vmatprep.subr.mxu0 0.0
    %861 = vmatpush1.msra.mxu0 0.0
    %862 = vmatprep.subr.mxu0 0.0
    %863 = vmatpush1.msra.mxu0 0.0
    %864 = vmatprep.subr.mxu0 0.0
    %865 = vmatpush1.msra.mxu0 0.0
    %866 = vmatprep.subr.mxu0 0.0
    %867 = vmatpush1.msra.mxu0 0.0
    %868 = vmatprep.subr.mxu0 0.0
    %869 = vmatpush1.msra.mxu0 0.0
    %870 = vmatprep.subr.mxu0 0.0
    %871 = vmatpush1.msra.mxu0 0.0
    %872 = vmatprep.subr.mxu0 0.0
    %873 = vmatpush1.msra.mxu0 0.0
    %874 = vmatprep.subr.mxu0 0.0
    %875 = vmatpush1.msra.mxu0 0.0
    %876 = vmatprep.subr.mxu0 0.0
    %877 = vmatpush1.msra.mxu0 0.0
    %878 = vmatprep.subr.mxu0 0.0
    %879 = vmatpush1.msra.mxu0 0.0
    %880 = vmatprep.subr.mxu0 0.0
    %881 = vmatpush1.msra.mxu0 0.0
    %882 = vmatprep.mubr.f32.mxu0 0.0
    %883 = vmatmul.mubr.f32.gmra.mrb[0].mxu0 %v813
    %v884 = vpop.f32.mrb[0].mxu0
    %v885 = vadd.f32 %v809, %v884
    %v886 = vpop.f32.mrb[0].mxu0
    %887 = vmatprep.mubr.f32.mxu0 0.0
    %888 = vmatmul.mubr.f32.gmra.mrb[0].mxu0 %v816
    %v889 = vpop.f32.mrb[0].mxu0
    %v890 = vadd.f32 %v809, %v889
    %v891 = vpop.f32.mrb[0].mxu0
    %892 = vdwg.mxu0
    %894 = vrot.lane.b32.xlu0 %v885, 96
    %v895 = vpop.permute.xlu0 %894
    %v896 = vsel %vm529, %v885, 0
    %v898 = vsel %vm529, %v895, 0
    %900 = vmatprep.subr.mxu0 0.0
    %901 = vmatpush1.xpose.msra.mxu0 %v898
    %902 = vmatprep.subr.mxu0 0.0
    %903 = vmatpush1.xpose.msra.mxu0 0.0
    %904 = vmatprep.subr.mxu0 0.0
    %905 = vmatpush1.xpose.msra.mxu0 0.0
    %906 = vmatprep.subr.mxu0 0.0
    %907 = vmatpush1.xpose.msra.mxu0 0.0
    %908 = vmatprep.subr.mxu0 0.0
    %909 = vmatpush1.xpose.msra.mxu0 0.0
    %910 = vmatprep.subr.mxu0 0.0
    %911 = vmatpush1.xpose.msra.mxu0 0.0
    %912 = vmatprep.subr.mxu0 0.0
    %913 = vmatpush1.xpose.msra.mxu0 0.0
    %914 = vmatprep.subr.mxu0 0.0
    %915 = vmatpush1.xpose.msra.mxu0 0.0
    %916 = vmatprep.subr.mxu0 0.0
    %917 = vmatpush1.xpose.msra.mxu0 0.0
    %918 = vmatprep.subr.mxu0 0.0
    %919 = vmatpush1.xpose.msra.mxu0 0.0
    %920 = vmatprep.subr.mxu0 0.0
    %921 = vmatpush1.xpose.msra.mxu0 0.0
    %922 = vmatprep.subr.mxu0 0.0
    %923 = vmatpush1.xpose.msra.mxu0 0.0
    %924 = vmatprep.subr.mxu0 0.0
    %925 = vmatpush1.xpose.msra.mxu0 0.0
    %926 = vmatprep.subr.mxu0 0.0
    %927 = vmatpush1.xpose.msra.mxu0 0.0
    %928 = vmatprep.subr.mxu0 0.0
    %929 = vmatpush1.xpose.msra.mxu0 0.0
    %930 = vmatprep.subr.mxu0 0.0
    %931 = vmatpush1.xpose.msra.mxu0 0.0
    %932 = vmatprep.subr.mxu0 0.0
    %933 = vmatpush1.xpose.msra.mxu0 0.0
    %934 = vmatprep.subr.mxu0 0.0
    %935 = vmatpush1.xpose.msra.mxu0 0.0
    %936 = vmatprep.subr.mxu0 0.0
    %937 = vmatpush1.xpose.msra.mxu0 0.0
    %938 = vmatprep.subr.mxu0 0.0
    %939 = vmatpush1.xpose.msra.mxu0 0.0
    %940 = vmatprep.subr.mxu0 0.0
    %941 = vmatpush1.xpose.msra.mxu0 0.0
    %942 = vmatprep.subr.mxu0 0.0
    %943 = vmatpush1.xpose.msra.mxu0 0.0
    %944 = vmatprep.subr.mxu0 0.0
    %945 = vmatpush1.xpose.msra.mxu0 0.0
    %946 = vmatprep.subr.mxu0 0.0
    %947 = vmatpush1.xpose.msra.mxu0 0.0
    %948 = vmatprep.subr.mxu0 0.0
    %949 = vmatpush1.xpose.msra.mxu0 0.0
    %950 = vmatprep.subr.mxu0 0.0
    %951 = vmatpush1.xpose.msra.mxu0 0.0
    %952 = vmatprep.subr.mxu0 0.0
    %953 = vmatpush1.xpose.msra.mxu0 0.0
    %954 = vmatprep.subr.mxu0 0.0
    %955 = vmatpush1.xpose.msra.mxu0 0.0
    %956 = vmatprep.subr.mxu0 0.0
    %957 = vmatpush1.xpose.msra.mxu0 0.0
    %958 = vmatprep.subr.mxu0 0.0
    %959 = vmatpush1.xpose.msra.mxu0 0.0
    %960 = vmatprep.subr.mxu0 0.0
    %961 = vmatpush1.xpose.msra.mxu0 0.0
    %962 = vmatprep.subr.mxu0 0.0
    %963 = vmatpush1.xpose.msra.mxu0 0.0
    %964 = vmatprep.mubr.f32.mxu0 0.0
    %965 = vmatmul.mubr.f32.gmra.mrb[0].mxu0 %v896
    %v966 = vpop.f32.mrb[0].mxu0
    %v967 = vadd.f32 0.0, %v966
    %v968 = vpop.f32.mrb[0].mxu0
    %969 = vdwg.mxu0
    %v970 = vmul.f32 %v967, 0.35355338
    %vm971 = vcmask 46080
    %v972 = vsel %vm971, %v970, -inf
    %973 = vmax.xlane.f32.xlu0 %v972
    %v974 = vpop.xlane.xlu0 %973
    %v975 = vsub.f32 %v970, %v974
    %v976 = vmul.f32 %v975, 1.442695
    %v977 = vpow.pop %v976
    %v978 = vsel %vm971, %v977, 0.0
    %979 = vadd.xlane.f32.xlu0 %v978
    %v980 = vpop.xlane.xlu0 %979
    %v981 = vrcp.pop %v980
    %v982 = vmul.f32 %v977, %v981
    %983 = vrot.lane.b32.xlu0 %v885, 64
    %v984 = vpop.permute.xlu0 %983
    %v986 = vsel %vm700, %v982, 0
    %v988 = vsel %vm556, %v984, 0
    %990 = vmatprep.subr.mxu0 0.0
    %991 = vmatpush1.msra.mxu0 %v988
    %992 = vmatprep.subr.mxu0 0.0
    %993 = vmatpush1.msra.mxu0 0.0
    %994 = vmatprep.subr.mxu0 0.0
    %995 = vmatpush1.msra.mxu0 0.0
    %996 = vmatprep.subr.mxu0 0.0
    %997 = vmatpush1.msra.mxu0 0.0
    %998 = vmatprep.subr.mxu0 0.0
    %999 = vmatpush1.msra.mxu0 0.0
    %1000 = vmatprep.subr.mxu0 0.0
    %1001 = vmatpush1.msra.mxu0 0.0
    %1002 = vmatprep.subr.mxu0 0.0
    %1003 = vmatpush1.msra.mxu0 0.0
    %1004 = vmatprep.subr.mxu0 0.0
    %1005 = vmatpush1.msra.mxu0 0.0
    %1006 = vmatprep.subr.mxu0 0.0
    %1007 = vmatpush1.msra.mxu0 0.0
    %1008 = vmatprep.subr.mxu0 0.0
    %1009 = vmatpush1.msra.mxu0 0.0
    %1010 = vmatprep.subr.mxu0 0.0
    %1011 = vmatpush1.msra.mxu0 0.0
    %1012 = vmatprep.subr.mxu0 0.0
    %1013 = vmatpush1.msra.mxu0 0.0
    %1014 = vmatprep.subr.mxu0 0.0
    %1015 = vmatpush1.msra.mxu0 0.0
    %1016 = vmatprep.subr.mxu0 0.0
    %1017 = vmatpush1.msra.mxu0 0.0
    %1018 = vmatprep.subr.mxu0 0.0
    %1019 = vmatpush1.msra.mxu0 0.0
    %1020 = vmatprep.subr.mxu0 0.0
    %1021 = vmatpush1.msra.mxu0 0.0
    %1022 = vmatprep.subr.mxu0 0.0
    %1023 = vmatpush1.msra.mxu0 0.0
    %1024 = vmatprep.subr.mxu0 0.0
    %1025 = vmatpush1.msra.mxu0 0.0
    %1026 = vmatprep.subr.mxu0 0.0
    %1027 = vmatpush1.msra.mxu0 0.0
    %1028 = vmatprep.subr.mxu0 0.0
    %1029 = vmatpush1.msra.mxu0 0.0
    %1030 = vmatprep.subr.mxu0 0.0
    %1031 = vmatpush1.msra.mxu0 0.0
    %1032 = vmatprep.subr.mxu0 0.0
    %1033 = vmatpush1.msra.mxu0 0.0
    %1034 = vmatprep.subr.mxu0 0.0
    %1035 = vmatpush1.msra.mxu0 0.0
    %1036 = vmatprep.subr.mxu0 0.0
    %1037 = vmatpush1.msra.mxu0 0.0
    %1038 = vmatprep.subr.mxu0 0.0
    %1039 = vmatpush1.msra.mxu0 0.0
    %1040 = vmatprep.subr.mxu0 0.0
    %1041 = vmatpush1.msra.mxu0 0.0
    %1042 = vmatprep.subr.mxu0 0.0
    %1043 = vmatpush1.msra.mxu0 0.0
    %1044 = vmatprep.subr.mxu0 0.0
    %1045 = vmatpush1.msra.mxu0 0.0
    %1046 = vmatprep.subr.mxu0 0.0
    %1047 = vmatpush1.msra.mxu0 0.0
    %1048 = vmatprep.subr.mxu0 0.0
    %1049 = vmatpush1.msra.mxu0 0.0
    %1050 = vmatprep.subr.mxu0 0.0
    %1051 = vmatpush1.msra.mxu0 0.0
    %1052 = vmatprep.subr.mxu0 0.0
    %1053 = vmatpush1.msra.mxu0 0.0
    %1054 = vmatprep.mubr.f32.mxu0 0.0
    %1055 = vmatmul.mubr.f32.gmra.mrb[0].mxu0 %v986
    %v1056 = vpop.f32.mrb[0].mxu0
    %v1057 = vadd.f32 0.0, %v1056
    %v1058 = vpop.f32.mrb[0].mxu0
    %1059 = vdwg.mxu0
    %1060 = vrot.lane.b32.xlu0 %v885, 120
    %v1061 = vpop.permute.xlu0 %1060
    %1062 = vrot.lane.b32.xlu0 %v885, 88
    %v1063 = vpop.permute.xlu0 %1062
    %v1064 = vsel %vm529, %v1061, 0
    %v1066 = vsel %vm529, %v1063, 0
    %1068 = vmatprep.subr.mxu0 0.0
    %1069 = vmatpush1.xpose.msra.mxu0 %v1066
    %1070 = vmatprep.subr.mxu0 0.0
    %1071 = vmatpush1.xpose.msra.mxu0 0.0
    %1072 = vmatprep.subr.mxu0 0.0
    %1073 = vmatpush1.xpose.msra.mxu0 0.0
    %1074 = vmatprep.subr.mxu0 0.0
    %1075 = vmatpush1.xpose.msra.mxu0 0.0
    %1076 = vmatprep.subr.mxu0 0.0
    %1077 = vmatpush1.xpose.msra.mxu0 0.0
    %1078 = vmatprep.subr.mxu0 0.0
    %1079 = vmatpush1.xpose.msra.mxu0 0.0
    %1080 = vmatprep.subr.mxu0 0.0
    %1081 = vmatpush1.xpose.msra.mxu0 0.0
    %1082 = vmatprep.subr.mxu0 0.0
    %1083 = vmatpush1.xpose.msra.mxu0 0.0
    %1084 = vmatprep.subr.mxu0 0.0
    %1085 = vmatpush1.xpose.msra.mxu0 0.0
    %1086 = vmatprep.subr.mxu0 0.0
    %1087 = vmatpush1.xpose.msra.mxu0 0.0
    %1088 = vmatprep.subr.mxu0 0.0
    %1089 = vmatpush1.xpose.msra.mxu0 0.0
    %1090 = vmatprep.subr.mxu0 0.0
    %1091 = vmatpush1.xpose.msra.mxu0 0.0
    %1092 = vmatprep.subr.mxu0 0.0
    %1093 = vmatpush1.xpose.msra.mxu0 0.0
    %1094 = vmatprep.subr.mxu0 0.0
    %1095 = vmatpush1.xpose.msra.mxu0 0.0
    %1096 = vmatprep.subr.mxu0 0.0
    %1097 = vmatpush1.xpose.msra.mxu0 0.0
    %1098 = vmatprep.subr.mxu0 0.0
    %1099 = vmatpush1.xpose.msra.mxu0 0.0
    %1100 = vmatprep.subr.mxu0 0.0
    %1101 = vmatpush1.xpose.msra.mxu0 0.0
    %1102 = vmatprep.subr.mxu0 0.0
    %1103 = vmatpush1.xpose.msra.mxu0 0.0
    %1104 = vmatprep.subr.mxu0 0.0
    %1105 = vmatpush1.xpose.msra.mxu0 0.0
    %1106 = vmatprep.subr.mxu0 0.0
    %1107 = vmatpush1.xpose.msra.mxu0 0.0
    %1108 = vmatprep.subr.mxu0 0.0
    %1109 = vmatpush1.xpose.msra.mxu0 0.0
    %1110 = vmatprep.subr.mxu0 0.0
    %1111 = vmatpush1.xpose.msra.mxu0 0.0
    %1112 = vmatprep.subr.mxu0 0.0
    %1113 = vmatpush1.xpose.msra.mxu0 0.0
    %1114 = vmatprep.subr.mxu0 0.0
    %1115 = vmatpush1.xpose.msra.mxu0 0.0
    %1116 = vmatprep.subr.mxu0 0.0
    %1117 = vmatpush1.xpose.msra.mxu0 0.0
    %1118 = vmatprep.subr.mxu0 0.0
    %1119 = vmatpush1.xpose.msra.mxu0 0.0
    %1120 = vmatprep.subr.mxu0 0.0
    %1121 = vmatpush1.xpose.msra.mxu0 0.0
    %1122 = vmatprep.subr.mxu0 0.0
    %1123 = vmatpush1.xpose.msra.mxu0 0.0
    %1124 = vmatprep.subr.mxu0 0.0
    %1125 = vmatpush1.xpose.msra.mxu0 0.0
    %1126 = vmatprep.subr.mxu0 0.0
    %1127 = vmatpush1.xpose.msra.mxu0 0.0
    %1128 = vmatprep.subr.mxu0 0.0
    %1129 = vmatpush1.xpose.msra.mxu0 0.0
    %1130 = vmatprep.subr.mxu0 0.0
    %1131 = vmatpush1.xpose.msra.mxu0 0.0
    %1132 = vmatprep.mubr.f32.mxu0 0.0
    %1133 = vmatmul.mubr.f32.gmra.mrb[0].mxu0 %v1064
    %v1134 = vpop.f32.mrb[0].mxu0
    %v1135 = vadd.f32 0.0, %v1134
    %v1136 = vpop.f32.mrb[0].mxu0
    %1137 = vdwg.mxu0
    %v1138 = vmul.f32 %v1135, 0.35355338
    %v1139 = vsel %vm971, %v1138, -inf
    %1140 = vmax.xlane.f32.xlu0 %v1139
    %v1141 = vpop.xlane.xlu0 %1140
    %v1142 = vsub.f32 %v1138, %v1141
    %v1143 = vmul.f32 %v1142, 1.442695
    %v1144 = vpow.pop %v1143
    %v1145 = vsel %vm971, %v1144, 0.0
    %1146 = vadd.xlane.f32.xlu0 %v1145
    %v1147 = vpop.xlane.xlu0 %1146
    %v1148 = vrcp.pop %v1147
    %v1149 = vmul.f32 %v1144, %v1148
    %1150 = vrot.lane.b32.xlu0 %v885, 56
    %v1151 = vpop.permute.xlu0 %1150
    %v1153 = vsel %vm700, %v1149, 0
    %v1155 = vsel %vm556, %v1151, 0
    %1157 = vmatprep.subr.mxu0 0.0
    %1158 = vmatpush1.msra.mxu0 %v1155
    %1159 = vmatprep.subr.mxu0 0.0
    %1160 = vmatpush1.msra.mxu0 0.0
    %1161 = vmatprep.subr.mxu0 0.0
    %1162 = vmatpush1.msra.mxu0 0.0
    %1163 = vmatprep.subr.mxu0 0.0
    %1164 = vmatpush1.msra.mxu0 0.0
    %1165 = vmatprep.subr.mxu0 0.0
    %1166 = vmatpush1.msra.mxu0 0.0
    %1167 = vmatprep.subr.mxu0 0.0
    %1168 = vmatpush1.msra.mxu0 0.0
    %1169 = vmatprep.subr.mxu0 0.0
    %1170 = vmatpush1.msra.mxu0 0.0
    %1171 = vmatprep.subr.mxu0 0.0
    %1172 = vmatpush1.msra.mxu0 0.0
    %1173 = vmatprep.subr.mxu0 0.0
    %1174 = vmatpush1.msra.mxu0 0.0
    %1175 = vmatprep.subr.mxu0 0.0
    %1176 = vmatpush1.msra.mxu0 0.0
    %1177 = vmatprep.subr.mxu0 0.0
    %1178 = vmatpush1.msra.mxu0 0.0
    %1179 = vmatprep.subr.mxu0 0.0
    %1180 = vmatpush1.msra.mxu0 0.0
    %1181 = vmatprep.subr.mxu0 0.0
    %1182 = vmatpush1.msra.mxu0 0.0
    %1183 = vmatprep.subr.mxu0 0.0
    %1184 = vmatpush1.msra.mxu0 0.0
    %1185 = vmatprep.subr.mxu0 0.0
    %1186 = vmatpush1.msra.mxu0 0.0
    %1187 = vmatprep.subr.mxu0 0.0
    %1188 = vmatpush1.msra.mxu0 0.0
    %1189 = vmatprep.subr.mxu0 0.0
    %1190 = vmatpush1.msra.mxu0 0.0
    %1191 = vmatprep.subr.mxu0 0.0
    %1192 = vmatpush1.msra.mxu0 0.0
    %1193 = vmatprep.subr.mxu0 0.0
    %1194 = vmatpush1.msra.mxu0 0.0
    %1195 = vmatprep.subr.mxu0 0.0
    %1196 = vmatpush1.msra.mxu0 0.0
    %1197 = vmatprep.subr.mxu0 0.0
    %1198 = vmatpush1.msra.mxu0 0.0
    %1199 = vmatprep.subr.mxu0 0.0
    %1200 = vmatpush1.msra.mxu0 0.0
    %1201 = vmatprep.subr.mxu0 0.0
    %1202 = vmatpush1.msra.mxu0 0.0
    %1203 = vmatprep.subr.mxu0 0.0
    %1204 = vmatpush1.msra.mxu0 0.0
    %1205 = vmatprep.subr.mxu0 0.0
    %1206 = vmatpush1.msra.mxu0 0.0
    %1207 = vmatprep.subr.mxu0 0.0
    %1208 = vmatpush1.msra.mxu0 0.0
    %1209 = vmatprep.subr.mxu0 0.0
    %1210 = vmatpush1.msra.mxu0 0.0
    %1211 = vmatprep.subr.mxu0 0.0
    %1212 = vmatpush1.msra.mxu0 0.0
    %1213 = vmatprep.subr.mxu0 0.0
    %1214 = vmatpush1.msra.mxu0 0.0
    %1215 = vmatprep.subr.mxu0 0.0
    %1216 = vmatpush1.msra.mxu0 0.0
    %1217 = vmatprep.subr.mxu0 0.0
    %1218 = vmatpush1.msra.mxu0 0.0
    %1219 = vmatprep.subr.mxu0 0.0
    %1220 = vmatpush1.msra.mxu0 0.0
    %1221 = vmatprep.mubr.f32.mxu0 0.0
    %1222 = vmatmul.mubr.f32.gmra.mrb[0].mxu0 %v1153
    %v1223 = vpop.f32.mrb[0].mxu0
    %v1224 = vadd.f32 0.0, %v1223
    %v1225 = vpop.f32.mrb[0].mxu0
    %1226 = vdwg.mxu0
    %1227 = vrot.lane.b32.xlu0 %v885, 112
    %v1228 = vpop.permute.xlu0 %1227
    %1229 = vrot.lane.b32.xlu0 %v885, 80
    %v1230 = vpop.permute.xlu0 %1229
    %v1231 = vsel %vm529, %v1228, 0
    %v1233 = vsel %vm529, %v1230, 0
    %1235 = vmatprep.subr.mxu0 0.0
    %1236 = vmatpush1.xpose.msra.mxu0 %v1233
    %1237 = vmatprep.subr.mxu0 0.0
    %1238 = vmatpush1.xpose.msra.mxu0 0.0
    %1239 = vmatprep.subr.mxu0 0.0
    %1240 = vmatpush1.xpose.msra.mxu0 0.0
    %1241 = vmatprep.subr.mxu0 0.0
    %1242 = vmatpush1.xpose.msra.mxu0 0.0
    %1243 = vmatprep.subr.mxu0 0.0
    %1244 = vmatpush1.xpose.msra.mxu0 0.0
    %1245 = vmatprep.subr.mxu0 0.0
    %1246 = vmatpush1.xpose.msra.mxu0 0.0
    %1247 = vmatprep.subr.mxu0 0.0
    %1248 = vmatpush1.xpose.msra.mxu0 0.0
    %1249 = vmatprep.subr.mxu0 0.0
    %1250 = vmatpush1.xpose.msra.mxu0 0.0
    %1251 = vmatprep.subr.mxu0 0.0
    %1252 = vmatpush1.xpose.msra.mxu0 0.0
    %1253 = vmatprep.subr.mxu0 0.0
    %1254 = vmatpush1.xpose.msra.mxu0 0.0
    %1255 = vmatprep.subr.mxu0 0.0
    %1256 = vmatpush1.xpose.msra.mxu0 0.0
    %1257 = vmatprep.subr.mxu0 0.0
    %1258 = vmatpush1.xpose.msra.mxu0 0.0
    %1259 = vmatprep.subr.mxu0 0.0
    %1260 = vmatpush1.xpose.msra.mxu0 0.0
    %1261 = vmatprep.subr.mxu0 0.0
    %1262 = vmatpush1.xpose.msra.mxu0 0.0
    %1263 = vmatprep.subr.mxu0 0.0
    %1264 = vmatpush1.xpose.msra.mxu0 0.0
    %1265 = vmatprep.subr.mxu0 0.0
    %1266 = vmatpush1.xpose.msra.mxu0 0.0
    %1267 = vmatprep.subr.mxu0 0.0
    %1268 = vmatpush1.xpose.msra.mxu0 0.0
    %1269 = vmatprep.subr.mxu0 0.0
    %1270 = vmatpush1.xpose.msra.mxu0 0.0
    %1271 = vmatprep.subr.mxu0 0.0
    %1272 = vmatpush1.xpose.msra.mxu0 0.0
    %1273 = vmatprep.subr.mxu0 0.0
    %1274 = vmatpush1.xpose.msra.mxu0 0.0
    %1275 = vmatprep.subr.mxu0 0.0
    %1276 = vmatpush1.xpose.msra.mxu0 0.0
    %1277 = vmatprep.subr.mxu0 0.0
    %1278 = vmatpush1.xpose.msra.mxu0 0.0
    %1279 = vmatprep.subr.mxu0 0.0
    %1280 = vmatpush1.xpose.msra.mxu0 0.0
    %1281 = vmatprep.subr.mxu0 0.0
    %1282 = vmatpush1.xpose.msra.mxu0 0.0
    %1283 = vmatprep.subr.mxu0 0.0
    %1284 = vmatpush1.xpose.msra.mxu0 0.0
    %1285 = vmatprep.subr.mxu0 0.0
    %1286 = vmatpush1.xpose.msra.mxu0 0.0
    %1287 = vmatprep.subr.mxu0 0.0
    %1288 = vmatpush1.xpose.msra.mxu0 0.0
    %1289 = vmatprep.subr.mxu0 0.0
    %1290 = vmatpush1.xpose.msra.mxu0 0.0
    %1291 = vmatprep.subr.mxu0 0.0
    %1292 = vmatpush1.xpose.msra.mxu0 0.0
    %1293 = vmatprep.subr.mxu0 0.0
    %1294 = vmatpush1.xpose.msra.mxu0 0.0
    %1295 = vmatprep.subr.mxu0 0.0
    %1296 = vmatpush1.xpose.msra.mxu0 0.0
    %1297 = vmatprep.subr.mxu0 0.0
    %1298 = vmatpush1.xpose.msra.mxu0 0.0
    %1299 = vmatprep.mubr.f32.mxu0 0.0
    %1300 = vmatmul.mubr.f32.gmra.mrb[0].mxu0 %v1231
    %v1301 = vpop.f32.mrb[0].mxu0
    %v1302 = vadd.f32 0.0, %v1301
    %v1303 = vpop.f32.mrb[0].mxu0
    %1304 = vdwg.mxu0
    %v1305 = vmul.f32 %v1302, 0.35355338
    %v1306 = vsel %vm971, %v1305, -inf
    %1307 = vmax.xlane.f32.xlu0 %v1306
    %v1308 = vpop.xlane.xlu0 %1307
    %v1309 = vsub.f32 %v1305, %v1308
    %v1310 = vmul.f32 %v1309, 1.442695
    %v1311 = vpow.pop %v1310
    %v1312 = vsel %vm971, %v1311, 0.0
    %1313 = vadd.xlane.f32.xlu0 %v1312
    %v1314 = vpop.xlane.xlu0 %1313
    %v1315 = vrcp.pop %v1314
    %v1316 = vmul.f32 %v1311, %v1315
    %1317 = vrot.lane.b32.xlu0 %v885, 48
    %v1318 = vpop.permute.xlu0 %1317
    %v1320 = vsel %vm700, %v1316, 0
    %v1322 = vsel %vm556, %v1318, 0
    %1324 = vmatprep.subr.mxu0 0.0
    %1325 = vmatpush1.msra.mxu0 %v1322
    %1326 = vmatprep.subr.mxu0 0.0
    %1327 = vmatpush1.msra.mxu0 0.0
    %1328 = vmatprep.subr.mxu0 0.0
    %1329 = vmatpush1.msra.mxu0 0.0
    %1330 = vmatprep.subr.mxu0 0.0
    %1331 = vmatpush1.msra.mxu0 0.0
    %1332 = vmatprep.subr.mxu0 0.0
    %1333 = vmatpush1.msra.mxu0 0.0
    %1334 = vmatprep.subr.mxu0 0.0
    %1335 = vmatpush1.msra.mxu0 0.0
    %1336 = vmatprep.subr.mxu0 0.0
    %1337 = vmatpush1.msra.mxu0 0.0
    %1338 = vmatprep.subr.mxu0 0.0
    %1339 = vmatpush1.msra.mxu0 0.0
    %1340 = vmatprep.subr.mxu0 0.0
    %1341 = vmatpush1.msra.mxu0 0.0
    %1342 = vmatprep.subr.mxu0 0.0
    %1343 = vmatpush1.msra.mxu0 0.0
    %1344 = vmatprep.subr.mxu0 0.0
    %1345 = vmatpush1.msra.mxu0 0.0
    %1346 = vmatprep.subr.mxu0 0.0
    %1347 = vmatpush1.msra.mxu0 0.0
    %1348 = vmatprep.subr.mxu0 0.0
    %1349 = vmatpush1.msra.mxu0 0.0
    %1350 = vmatprep.subr.mxu0 0.0
    %1351 = vmatpush1.msra.mxu0 0.0
    %1352 = vmatprep.subr.mxu0 0.0
    %1353 = vmatpush1.msra.mxu0 0.0
    %1354 = vmatprep.subr.mxu0 0.0
    %1355 = vmatpush1.msra.mxu0 0.0
    %1356 = vmatprep.subr.mxu0 0.0
    %1357 = vmatpush1.msra.mxu0 0.0
    %1358 = vmatprep.subr.mxu0 0.0
    %1359 = vmatpush1.msra.mxu0 0.0
    %1360 = vmatprep.subr.mxu0 0.0
    %1361 = vmatpush1.msra.mxu0 0.0
    %1362 = vmatprep.subr.mxu0 0.0
    %1363 = vmatpush1.msra.mxu0 0.0
    %1364 = vmatprep.subr.mxu0 0.0
    %1365 = vmatpush1.msra.mxu0 0.0
    %1366 = vmatprep.subr.mxu0 0.0
    %1367 = vmatpush1.msra.mxu0 0.0
    %1368 = vmatprep.subr.mxu0 0.0
    %1369 = vmatpush1.msra.mxu0 0.0
    %1370 = vmatprep.subr.mxu0 0.0
    %1371 = vmatpush1.msra.mxu0 0.0
    %1372 = vmatprep.subr.mxu0 0.0
    %1373 = vmatpush1.msra.mxu0 0.0
    %1374 = vmatprep.subr.mxu0 0.0
    %1375 = vmatpush1.msra.mxu0 0.0
    %1376 = vmatprep.subr.mxu0 0.0
    %1377 = vmatpush1.msra.mxu0 0.0
    %1378 = vmatprep.subr.mxu0 0.0
    %1379 = vmatpush1.msra.mxu0 0.0
    %1380 = vmatprep.subr.mxu0 0.0
    %1381 = vmatpush1.msra.mxu0 0.0
    %1382 = vmatprep.subr.mxu0 0.0
    %1383 = vmatpush1.msra.mxu0 0.0
    %1384 = vmatprep.subr.mxu0 0.0
    %1385 = vmatpush1.msra.mxu0 0.0
    %1386 = vmatprep.subr.mxu0 0.0
    %1387 = vmatpush1.msra.mxu0 0.0
    %1388 = vmatprep.mubr.f32.mxu0 0.0
    %1389 = vmatmul.mubr.f32.gmra.mrb[0].mxu0 %v1320
    %v1390 = vpop.f32.mrb[0].mxu0
    %v1391 = vadd.f32 0.0, %v1390
    %v1392 = vpop.f32.mrb[0].mxu0
    %1393 = vdwg.mxu0
    %1394 = vrot.lane.b32.xlu0 %v885, 104
    %v1395 = vpop.permute.xlu0 %1394
    %1396 = vrot.lane.b32.xlu0 %v885, 72
    %v1397 = vpop.permute.xlu0 %1396
    %v1398 = vsel %vm529, %v1395, 0
    %v1400 = vsel %vm529, %v1397, 0
    %1402 = vmatprep.subr.mxu0 0.0
    %1403 = vmatpush1.xpose.msra.mxu0 %v1400
    %1404 = vmatprep.subr.mxu0 0.0
    %1405 = vmatpush1.xpose.msra.mxu0 0.0
    %1406 = vmatprep.subr.mxu0 0.0
    %1407 = vmatpush1.xpose.msra.mxu0 0.0
    %1408 = vmatprep.subr.mxu0 0.0
    %1409 = vmatpush1.xpose.msra.mxu0 0.0
    %1410 = vmatprep.subr.mxu0 0.0
    %1411 = vmatpush1.xpose.msra.mxu0 0.0
    %1412 = vmatprep.subr.mxu0 0.0
    %1413 = vmatpush1.xpose.msra.mxu0 0.0
    %1414 = vmatprep.subr.mxu0 0.0
    %1415 = vmatpush1.xpose.msra.mxu0 0.0
    %1416 = vmatprep.subr.mxu0 0.0
    %1417 = vmatpush1.xpose.msra.mxu0 0.0
    %1418 = vmatprep.subr.mxu0 0.0
    %1419 = vmatpush1.xpose.msra.mxu0 0.0
    %1420 = vmatprep.subr.mxu0 0.0
    %1421 = vmatpush1.xpose.msra.mxu0 0.0
    %1422 = vmatprep.subr.mxu0 0.0
    %1423 = vmatpush1.xpose.msra.mxu0 0.0
    %1424 = vmatprep.subr.mxu0 0.0
    %1425 = vmatpush1.xpose.msra.mxu0 0.0
    %1426 = vmatprep.subr.mxu0 0.0
    %1427 = vmatpush1.xpose.msra.mxu0 0.0
    %1428 = vmatprep.subr.mxu0 0.0
    %1429 = vmatpush1.xpose.msra.mxu0 0.0
    %1430 = vmatprep.subr.mxu0 0.0
    %1431 = vmatpush1.xpose.msra.mxu0 0.0
    %1432 = vmatprep.subr.mxu0 0.0
    %1433 = vmatpush1.xpose.msra.mxu0 0.0
    %1434 = vmatprep.subr.mxu0 0.0
    %1435 = vmatpush1.xpose.msra.mxu0 0.0
    %1436 = vmatprep.subr.mxu0 0.0
    %1437 = vmatpush1.xpose.msra.mxu0 0.0
    %1438 = vmatprep.subr.mxu0 0.0
    %1439 = vmatpush1.xpose.msra.mxu0 0.0
    %1440 = vmatprep.subr.mxu0 0.0
    %1441 = vmatpush1.xpose.msra.mxu0 0.0
    %1442 = vmatprep.subr.mxu0 0.0
    %1443 = vmatpush1.xpose.msra.mxu0 0.0
    %1444 = vmatprep.subr.mxu0 0.0
    %1445 = vmatpush1.xpose.msra.mxu0 0.0
    %1446 = vmatprep.subr.mxu0 0.0
    %1447 = vmatpush1.xpose.msra.mxu0 0.0
    %1448 = vmatprep.subr.mxu0 0.0
    %1449 = vmatpush1.xpose.msra.mxu0 0.0
    %1450 = vmatprep.subr.mxu0 0.0
    %1451 = vmatpush1.xpose.msra.mxu0 0.0
    %1452 = vmatprep.subr.mxu0 0.0
    %1453 = vmatpush1.xpose.msra.mxu0 0.0
    %1454 = vmatprep.subr.mxu0 0.0
    %1455 = vmatpush1.xpose.msra.mxu0 0.0
    %1456 = vmatprep.subr.mxu0 0.0
    %1457 = vmatpush1.xpose.msra.mxu0 0.0
    %1458 = vmatprep.subr.mxu0 0.0
    %1459 = vmatpush1.xpose.msra.mxu0 0.0
    %1460 = vmatprep.subr.mxu0 0.0
    %1461 = vmatpush1.xpose.msra.mxu0 0.0
    %1462 = vmatprep.subr.mxu0 0.0
    %1463 = vmatpush1.xpose.msra.mxu0 0.0
    %1464 = vmatprep.subr.mxu0 0.0
    %1465 = vmatpush1.xpose.msra.mxu0 0.0
    %1466 = vmatprep.mubr.f32.mxu0 0.0
    %1467 = vmatmul.mubr.f32.gmra.mrb[0].mxu0 %v1398
    %v1468 = vpop.f32.mrb[0].mxu0
    %v1469 = vadd.f32 0.0, %v1468
    %v1470 = vpop.f32.mrb[0].mxu0
    %1471 = vdwg.mxu0
    %v1472 = vmul.f32 %v1469, 0.35355338
    %v1473 = vsel %vm971, %v1472, -inf
    %1474 = vmax.xlane.f32.xlu0 %v1473
    %v1475 = vpop.xlane.xlu0 %1474
    %v1476 = vsub.f32 %v1472, %v1475
    %v1477 = vmul.f32 %v1476, 1.442695
    %v1478 = vpow.pop %v1477
    %v1479 = vsel %vm971, %v1478, 0.0
    %1480 = vadd.xlane.f32.xlu0 %v1479
    %v1481 = vpop.xlane.xlu0 %1480
    %v1482 = vrcp.pop %v1481
    %v1483 = vmul.f32 %v1478, %v1482
    %1484 = vrot.lane.b32.xlu0 %v885, 40
    %v1485 = vpop.permute.xlu0 %1484
    %v1487 = vsel %vm700, %v1483, 0
    %v1489 = vsel %vm556, %v1485, 0
    %1491 = vmatprep.subr.mxu0 0.0
    %1492 = vmatpush1.msra.mxu0 %v1489
    %1493 = vmatprep.subr.mxu0 0.0
    %1494 = vmatpush1.msra.mxu0 0.0
    %1495 = vmatprep.subr.mxu0 0.0
    %1496 = vmatpush1.msra.mxu0 0.0
    %1497 = vmatprep.subr.mxu0 0.0
    %1498 = vmatpush1.msra.mxu0 0.0
    %1499 = vmatprep.subr.mxu0 0.0
    %1500 = vmatpush1.msra.mxu0 0.0
    %1501 = vmatprep.subr.mxu0 0.0
    %1502 = vmatpush1.msra.mxu0 0.0
    %1503 = vmatprep.subr.mxu0 0.0
    %1504 = vmatpush1.msra.mxu0 0.0
    %1505 = vmatprep.subr.mxu0 0.0
    %1506 = vmatpush1.msra.mxu0 0.0
    %1507 = vmatprep.subr.mxu0 0.0
    %1508 = vmatpush1.msra.mxu0 0.0
    %1509 = vmatprep.subr.mxu0 0.0
    %1510 = vmatpush1.msra.mxu0 0.0
    %1511 = vmatprep.subr.mxu0 0.0
    %1512 = vmatpush1.msra.mxu0 0.0
    %1513 = vmatprep.subr.mxu0 0.0
    %1514 = vmatpush1.msra.mxu0 0.0
    %1515 = vmatprep.subr.mxu0 0.0
    %1516 = vmatpush1.msra.mxu0 0.0
    %1517 = vmatprep.subr.mxu0 0.0
    %1518 = vmatpush1.msra.mxu0 0.0
    %1519 = vmatprep.subr.mxu0 0.0
    %1520 = vmatpush1.msra.mxu0 0.0
    %1521 = vmatprep.subr.mxu0 0.0
    %1522 = vmatpush1.msra.mxu0 0.0
    %1523 = vmatprep.subr.mxu0 0.0
    %1524 = vmatpush1.msra.mxu0 0.0
    %1525 = vmatprep.subr.mxu0 0.0
    %1526 = vmatpush1.msra.mxu0 0.0
    %1527 = vmatprep.subr.mxu0 0.0
    %1528 = vmatpush1.msra.mxu0 0.0
    %1529 = vmatprep.subr.mxu0 0.0
    %1530 = vmatpush1.msra.mxu0 0.0
    %1531 = vmatprep.subr.mxu0 0.0
    %1532 = vmatpush1.msra.mxu0 0.0
    %1533 = vmatprep.subr.mxu0 0.0
    %1534 = vmatpush1.msra.mxu0 0.0
    %1535 = vmatprep.subr.mxu0 0.0
    %1536 = vmatpush1.msra.mxu0 0.0
    %1537 = vmatprep.subr.mxu0 0.0
    %1538 = vmatpush1.msra.mxu0 0.0
    %1539 = vmatprep.subr.mxu0 0.0
    %1540 = vmatpush1.msra.mxu0 0.0
    %1541 = vmatprep.subr.mxu0 0.0
    %1542 = vmatpush1.msra.mxu0 0.0
    %1543 = vmatprep.subr.mxu0 0.0
    %1544 = vmatpush1.msra.mxu0 0.0
    %1545 = vmatprep.subr.mxu0 0.0
    %1546 = vmatpush1.msra.mxu0 0.0
    %1547 = vmatprep.subr.mxu0 0.0
    %1548 = vmatpush1.msra.mxu0 0.0
    %1549 = vmatprep.subr.mxu0 0.0
    %1550 = vmatpush1.msra.mxu0 0.0
    %1551 = vmatprep.subr.mxu0 0.0
    %1552 = vmatpush1.msra.mxu0 0.0
    %1553 = vmatprep.subr.mxu0 0.0
    %1554 = vmatpush1.msra.mxu0 0.0
    %1555 = vmatprep.mubr.f32.mxu0 0.0
    %1556 = vmatmul.mubr.f32.gmra.mrb[0].mxu0 %v1487
    %v1557 = vpop.f32.mrb[0].mxu0
    %v1558 = vadd.f32 0.0, %v1557
    %v1559 = vpop.f32.mrb[0].mxu0
    %1560 = vdwg.mxu0
    %1562 = vrot.lane.b32.xlu0 %v1224, 8
    %v1563 = vpop.permute.xlu0 %1562
    %1566 = vrot.lane.b32.xlu0 %v1391, 16
    %v1567 = vpop.permute.xlu0 %1566
    %1570 = vrot.lane.b32.xlu0 %v1558, 24
    %v1571 = vpop.permute.xlu0 %1570
    %v1573 = vsel %vm529, %v1057, %v1563
    %vm1574 = vcmask 130048
    %v1575 = vsel %vm1574, %v1573, %v1567
    %vm1576 = vcmask 195584
    %v1577 = vsel %vm1576, %v1575, %v1571
    %v1579 = vrot.slane %v885, 6
    %v1580 = vrot.slane %v890, 6
    %v1581 = vsel %vm695, %v1579, %v1580
    %1582 = vrot.lane.b32.xlu0 %v1581, 96
    %v1583 = vpop.permute.xlu0 %1582
    %v1584 = vsel %vm529, %v1581, 0
    %v1586 = vsel %vm529, %v1583, 0
    %1588 = vmatprep.subr.mxu0 0.0
    %1589 = vmatpush1.xpose.msra.mxu0 %v1586
    %1590 = vmatprep.subr.mxu0 0.0
    %1591 = vmatpush1.xpose.msra.mxu0 0.0
    %1592 = vmatprep.subr.mxu0 0.0
    %1593 = vmatpush1.xpose.msra.mxu0 0.0
    %1594 = vmatprep.subr.mxu0 0.0
    %1595 = vmatpush1.xpose.msra.mxu0 0.0
    %1596 = vmatprep.subr.mxu0 0.0
    %1597 = vmatpush1.xpose.msra.mxu0 0.0
    %1598 = vmatprep.subr.mxu0 0.0
    %1599 = vmatpush1.xpose.msra.mxu0 0.0
    %1600 = vmatprep.subr.mxu0 0.0
    %1601 = vmatpush1.xpose.msra.mxu0 0.0
    %1602 = vmatprep.subr.mxu0 0.0
    %1603 = vmatpush1.xpose.msra.mxu0 0.0
    %1604 = vmatprep.subr.mxu0 0.0
    %1605 = vmatpush1.xpose.msra.mxu0 0.0
    %1606 = vmatprep.subr.mxu0 0.0
    %1607 = vmatpush1.xpose.msra.mxu0 0.0
    %1608 = vmatprep.subr.mxu0 0.0
    %1609 = vmatpush1.xpose.msra.mxu0 0.0
    %1610 = vmatprep.subr.mxu0 0.0
    %1611 = vmatpush1.xpose.msra.mxu0 0.0
    %1612 = vmatprep.subr.mxu0 0.0
    %1613 = vmatpush1.xpose.msra.mxu0 0.0
    %1614 = vmatprep.subr.mxu0 0.0
    %1615 = vmatpush1.xpose.msra.mxu0 0.0
    %1616 = vmatprep.subr.mxu0 0.0
    %1617 = vmatpush1.xpose.msra.mxu0 0.0
    %1618 = vmatprep.subr.mxu0 0.0
    %1619 = vmatpush1.xpose.msra.mxu0 0.0
    %1620 = vmatprep.subr.mxu0 0.0
    %1621 = vmatpush1.xpose.msra.mxu0 0.0
    %1622 = vmatprep.subr.mxu0 0.0
    %1623 = vmatpush1.xpose.msra.mxu0 0.0
    %1624 = vmatprep.subr.mxu0 0.0
    %1625 = vmatpush1.xpose.msra.mxu0 0.0
    %1626 = vmatprep.subr.mxu0 0.0
    %1627 = vmatpush1.xpose.msra.mxu0 0.0
    %1628 = vmatprep.subr.mxu0 0.0
    %1629 = vmatpush1.xpose.msra.mxu0 0.0
    %1630 = vmatprep.subr.mxu0 0.0
    %1631 = vmatpush1.xpose.msra.mxu0 0.0
    %1632 = vmatprep.subr.mxu0 0.0
    %1633 = vmatpush1.xpose.msra.mxu0 0.0
    %1634 = vmatprep.subr.mxu0 0.0
    %1635 = vmatpush1.xpose.msra.mxu0 0.0
    %1636 = vmatprep.subr.mxu0 0.0
    %1637 = vmatpush1.xpose.msra.mxu0 0.0
    %1638 = vmatprep.subr.mxu0 0.0
    %1639 = vmatpush1.xpose.msra.mxu0 0.0
    %1640 = vmatprep.subr.mxu0 0.0
    %1641 = vmatpush1.xpose.msra.mxu0 0.0
    %1642 = vmatprep.subr.mxu0 0.0
    %1643 = vmatpush1.xpose.msra.mxu0 0.0
    %1644 = vmatprep.subr.mxu0 0.0
    %1645 = vmatpush1.xpose.msra.mxu0 0.0
    %1646 = vmatprep.subr.mxu0 0.0
    %1647 = vmatpush1.xpose.msra.mxu0 0.0
    %1648 = vmatprep.subr.mxu0 0.0
    %1649 = vmatpush1.xpose.msra.mxu0 0.0
    %1650 = vmatprep.subr.mxu0 0.0
    %1651 = vmatpush1.xpose.msra.mxu0 0.0
    %1652 = vmatprep.mubr.f32.mxu0 0.0
    %1653 = vmatmul.mubr.f32.gmra.mrb[0].mxu0 %v1584
    %v1654 = vpop.f32.mrb[0].mxu0
    %v1655 = vadd.f32 0.0, %v1654
    %v1656 = vpop.f32.mrb[0].mxu0
    %1657 = vdwg.mxu0
    %v1658 = vmul.f32 %v1655, 0.35355338
    %v1659 = vsel %vm971, %v1658, -inf
    %1660 = vmax.xlane.f32.xlu0 %v1659
    %v1661 = vpop.xlane.xlu0 %1660
    %v1662 = vsub.f32 %v1658, %v1661
    %v1663 = vmul.f32 %v1662, 1.442695
    %v1664 = vpow.pop %v1663
    %v1665 = vsel %vm971, %v1664, 0.0
    %1666 = vadd.xlane.f32.xlu0 %v1665
    %v1667 = vpop.xlane.xlu0 %1666
    %v1668 = vrcp.pop %v1667
    %v1669 = vmul.f32 %v1664, %v1668
    %1670 = vrot.lane.b32.xlu0 %v1581, 64
    %v1671 = vpop.permute.xlu0 %1670
    %v1673 = vsel %vm700, %v1669, 0
    %v1675 = vsel %vm556, %v1671, 0
    %1677 = vmatprep.subr.mxu0 0.0
    %1678 = vmatpush1.msra.mxu0 %v1675
    %1679 = vmatprep.subr.mxu0 0.0
    %1680 = vmatpush1.msra.mxu0 0.0
    %1681 = vmatprep.subr.mxu0 0.0
    %1682 = vmatpush1.msra.mxu0 0.0
    %1683 = vmatprep.subr.mxu0 0.0
    %1684 = vmatpush1.msra.mxu0 0.0
    %1685 = vmatprep.subr.mxu0 0.0
    %1686 = vmatpush1.msra.mxu0 0.0
    %1687 = vmatprep.subr.mxu0 0.0
    %1688 = vmatpush1.msra.mxu0 0.0
    %1689 = vmatprep.subr.mxu0 0.0
    %1690 = vmatpush1.msra.mxu0 0.0
    %1691 = vmatprep.subr.mxu0 0.0
    %1692 = vmatpush1.msra.mxu0 0.0
    %1693 = vmatprep.subr.mxu0 0.0
    %1694 = vmatpush1.msra.mxu0 0.0
    %1695 = vmatprep.subr.mxu0 0.0
    %1696 = vmatpush1.msra.mxu0 0.0
    %1697 = vmatprep.subr.mxu0 0.0
    %1698 = vmatpush1.msra.mxu0 0.0
    %1699 = vmatprep.subr.mxu0 0.0
    %1700 = vmatpush1.msra.mxu0 0.0
    %1701 = vmatprep.subr.mxu0 0.0
    %1702 = vmatpush1.msra.mxu0 0.0
    %1703 = vmatprep.subr.mxu0 0.0
    %1704 = vmatpush1.msra.mxu0 0.0
    %1705 = vmatprep.subr.mxu0 0.0
    %1706 = vmatpush1.msra.mxu0 0.0
    %1707 = vmatprep.subr.mxu0 0.0
    %1708 = vmatpush1.msra.mxu0 0.0
    %1709 = vmatprep.subr.mxu0 0.0
    %1710 = vmatpush1.msra.mxu0 0.0
    %1711 = vmatprep.subr.mxu0 0.0
    %1712 = vmatpush1.msra.mxu0 0.0
    %1713 = vmatprep.subr.mxu0 0.0
    %1714 = vmatpush1.msra.mxu0 0.0
    %1715 = vmatprep.subr.mxu0 0.0
    %1716 = vmatpush1.msra.mxu0 0.0
    %1717 = vmatprep.subr.mxu0 0.0
    %1718 = vmatpush1.msra.mxu0 0.0
    %1719 = vmatprep.subr.mxu0 0.0
    %1720 = vmatpush1.msra.mxu0 0.0
    %1721 = vmatprep.subr.mxu0 0.0
    %1722 = vmatpush1.msra.mxu0 0.0
    %1723 = vmatprep.subr.mxu0 0.0
    %1724 = vmatpush1.msra.mxu0 0.0
    %1725 = vmatprep.subr.mxu0 0.0
    %1726 = vmatpush1.msra.mxu0 0.0
    %1727 = vmatprep.subr.mxu0 0.0
    %1728 = vmatpush1.msra.mxu0 0.0
    %1729 = vmatprep.subr.mxu0 0.0
    %1730 = vmatpush1.msra.mxu0 0.0
    %1731 = vmatprep.subr.mxu0 0.0
    %1732 = vmatpush1.msra.mxu0 0.0
    %1733 = vmatprep.subr.mxu0 0.0
    %1734 = vmatpush1.msra.mxu0 0.0
    %1735 = vmatprep.subr.mxu0 0.0
    %1736 = vmatpush1.msra.mxu0 0.0
    %1737 = vmatprep.subr.mxu0 0.0
    %1738 = vmatpush1.msra.mxu0 0.0
    %1739 = vmatprep.subr.mxu0 0.0
    %1740 = vmatpush1.msra.mxu0 0.0
    %1741 = vmatprep.mubr.f32.mxu0 0.0
    %1742 = vmatmul.mubr.f32.gmra.mrb[0].mxu0 %v1673
    %v1743 = vpop.f32.mrb[0].mxu0
    %v1744 = vadd.f32 0.0, %v1743
    %v1745 = vpop.f32.mrb[0].mxu0
    %1746 = vdwg.mxu0
    %1747 = vrot.lane.b32.xlu0 %v1581, 120
    %v1748 = vpop.permute.xlu0 %1747
    %1749 = vrot.lane.b32.xlu0 %v1581, 88
    %v1750 = vpop.permute.xlu0 %1749
    %v1751 = vsel %vm529, %v1748, 0
    %v1753 = vsel %vm529, %v1750, 0
    %1755 = vmatprep.subr.mxu0 0.0
    %1756 = vmatpush1.xpose.msra.mxu0 %v1753
    %1757 = vmatprep.subr.mxu0 0.0
    %1758 = vmatpush1.xpose.msra.mxu0 0.0
    %1759 = vmatprep.subr.mxu0 0.0
    %1760 = vmatpush1.xpose.msra.mxu0 0.0
    %1761 = vmatprep.subr.mxu0 0.0
    %1762 = vmatpush1.xpose.msra.mxu0 0.0
    %1763 = vmatprep.subr.mxu0 0.0
    %1764 = vmatpush1.xpose.msra.mxu0 0.0
    %1765 = vmatprep.subr.mxu0 0.0
    %1766 = vmatpush1.xpose.msra.mxu0 0.0
    %1767 = vmatprep.subr.mxu0 0.0
    %1768 = vmatpush1.xpose.msra.mxu0 0.0
    %1769 = vmatprep.subr.mxu0 0.0
    %1770 = vmatpush1.xpose.msra.mxu0 0.0
    %1771 = vmatprep.subr.mxu0 0.0
    %1772 = vmatpush1.xpose.msra.mxu0 0.0
    %1773 = vmatprep.subr.mxu0 0.0
    %1774 = vmatpush1.xpose.msra.mxu0 0.0
    %1775 = vmatprep.subr.mxu0 0.0
    %1776 = vmatpush1.xpose.msra.mxu0 0.0
    %1777 = vmatprep.subr.mxu0 0.0
    %1778 = vmatpush1.xpose.msra.mxu0 0.0
    %1779 = vmatprep.subr.mxu0 0.0
    %1780 = vmatpush1.xpose.msra.mxu0 0.0
    %1781 = vmatprep.subr.mxu0 0.0
    %1782 = vmatpush1.xpose.msra.mxu0 0.0
    %1783 = vmatprep.subr.mxu0 0.0
    %1784 = vmatpush1.xpose.msra.mxu0 0.0
    %1785 = vmatprep.subr.mxu0 0.0
    %1786 = vmatpush1.xpose.msra.mxu0 0.0
    %1787 = vmatprep.subr.mxu0 0.0
    %1788 = vmatpush1.xpose.msra.mxu0 0.0
    %1789 = vmatprep.subr.mxu0 0.0
    %1790 = vmatpush1.xpose.msra.mxu0 0.0
    %1791 = vmatprep.subr.mxu0 0.0
    %1792 = vmatpush1.xpose.msra.mxu0 0.0
    %1793 = vmatprep.subr.mxu0 0.0
    %1794 = vmatpush1.xpose.msra.mxu0 0.0
    %1795 = vmatprep.subr.mxu0 0.0
    %1796 = vmatpush1.xpose.msra.mxu0 0.0
    %1797 = vmatprep.subr.mxu0 0.0
    %1798 = vmatpush1.xpose.msra.mxu0 0.0
    %1799 = vmatprep.subr.mxu0 0.0
    %1800 = vmatpush1.xpose.msra.mxu0 0.0
    %1801 = vmatprep.subr.mxu0 0.0
    %1802 = vmatpush1.xpose.msra.mxu0 0.0
    %1803 = vmatprep.subr.mxu0 0.0
    %1804 = vmatpush1.xpose.msra.mxu0 0.0
    %1805 = vmatprep.subr.mxu0 0.0
    %1806 = vmatpush1.xpose.msra.mxu0 0.0
    %1807 = vmatprep.subr.mxu0 0.0
    %1808 = vmatpush1.xpose.msra.mxu0 0.0
    %1809 = vmatprep.subr.mxu0 0.0
    %1810 = vmatpush1.xpose.msra.mxu0 0.0
    %1811 = vmatprep.subr.mxu0 0.0
    %1812 = vmatpush1.xpose.msra.mxu0 0.0
    %1813 = vmatprep.subr.mxu0 0.0
    %1814 = vmatpush1.xpose.msra.mxu0 0.0
    %1815 = vmatprep.subr.mxu0 0.0
    %1816 = vmatpush1.xpose.msra.mxu0 0.0
    %1817 = vmatprep.subr.mxu0 0.0
    %1818 = vmatpush1.xpose.msra.mxu0 0.0
    %1819 = vmatprep.mubr.f32.mxu0 0.0
    %1820 = vmatmul.mubr.f32.gmra.mrb[0].mxu0 %v1751
    %v1821 = vpop.f32.mrb[0].mxu0
    %v1822 = vadd.f32 0.0, %v1821
    %v1823 = vpop.f32.mrb[0].mxu0
    %1824 = vdwg.mxu0
    %v1825 = vmul.f32 %v1822, 0.35355338
    %v1826 = vsel %vm971, %v1825, -inf
    %1827 = vmax.xlane.f32.xlu0 %v1826
    %v1828 = vpop.xlane.xlu0 %1827
    %v1829 = vsub.f32 %v1825, %v1828
    %v1830 = vmul.f32 %v1829, 1.442695
    %v1831 = vpow.pop %v1830
    %v1832 = vsel %vm971, %v1831, 0.0
    %1833 = vadd.xlane.f32.xlu0 %v1832
    %v1834 = vpop.xlane.xlu0 %1833
    %v1835 = vrcp.pop %v1834
    %v1836 = vmul.f32 %v1831, %v1835
    %1837 = vrot.lane.b32.xlu0 %v1581, 56
    %v1838 = vpop.permute.xlu0 %1837
    %v1840 = vsel %vm700, %v1836, 0
    %v1842 = vsel %vm556, %v1838, 0
    %1844 = vmatprep.subr.mxu0 0.0
    %1845 = vmatpush1.msra.mxu0 %v1842
    %1846 = vmatprep.subr.mxu0 0.0
    %1847 = vmatpush1.msra.mxu0 0.0
    %1848 = vmatprep.subr.mxu0 0.0
    %1849 = vmatpush1.msra.mxu0 0.0
    %1850 = vmatprep.subr.mxu0 0.0
    %1851 = vmatpush1.msra.mxu0 0.0
    %1852 = vmatprep.subr.mxu0 0.0
    %1853 = vmatpush1.msra.mxu0 0.0
    %1854 = vmatprep.subr.mxu0 0.0
    %1855 = vmatpush1.msra.mxu0 0.0
    %1856 = vmatprep.subr.mxu0 0.0
    %1857 = vmatpush1.msra.mxu0 0.0
    %1858 = vmatprep.subr.mxu0 0.0
    %1859 = vmatpush1.msra.mxu0 0.0
    %1860 = vmatprep.subr.mxu0 0.0
    %1861 = vmatpush1.msra.mxu0 0.0
    %1862 = vmatprep.subr.mxu0 0.0
    %1863 = vmatpush1.msra.mxu0 0.0
    %1864 = vmatprep.subr.mxu0 0.0
    %1865 = vmatpush1.msra.mxu0 0.0
    %1866 = vmatprep.subr.mxu0 0.0
    %1867 = vmatpush1.msra.mxu0 0.0
    %1868 = vmatprep.subr.mxu0 0.0
    %1869 = vmatpush1.msra.mxu0 0.0
    %1870 = vmatprep.subr.mxu0 0.0
    %1871 = vmatpush1.msra.mxu0 0.0
    %1872 = vmatprep.subr.mxu0 0.0
    %1873 = vmatpush1.msra.mxu0 0.0
    %1874 = vmatprep.subr.mxu0 0.0
    %1875 = vmatpush1.msra.mxu0 0.0
    %1876 = vmatprep.subr.mxu0 0.0
    %1877 = vmatpush1.msra.mxu0 0.0
    %1878 = vmatprep.subr.mxu0 0.0
    %1879 = vmatpush1.msra.mxu0 0.0
    %1880 = vmatprep.subr.mxu0 0.0
    %1881 = vmatpush1.msra.mxu0 0.0
    %1882 = vmatprep.subr.mxu0 0.0
    %1883 = vmatpush1.msra.mxu0 0.0
    %1884 = vmatprep.subr.mxu0 0.0
    %1885 = vmatpush1.msra.mxu0 0.0
    %1886 = vmatprep.subr.mxu0 0.0
    %1887 = vmatpush1.msra.mxu0 0.0
    %1888 = vmatprep.subr.mxu0 0.0
    %1889 = vmatpush1.msra.mxu0 0.0
    %1890 = vmatprep.subr.mxu0 0.0
    %1891 = vmatpush1.msra.mxu0 0.0
    %1892 = vmatprep.subr.mxu0 0.0
    %1893 = vmatpush1.msra.mxu0 0.0
    %1894 = vmatprep.subr.mxu0 0.0
    %1895 = vmatpush1.msra.mxu0 0.0
    %1896 = vmatprep.subr.mxu0 0.0
    %1897 = vmatpush1.msra.mxu0 0.0
    %1898 = vmatprep.subr.mxu0 0.0
    %1899 = vmatpush1.msra.mxu0 0.0
    %1900 = vmatprep.subr.mxu0 0.0
    %1901 = vmatpush1.msra.mxu0 0.0
    %1902 = vmatprep.subr.mxu0 0.0
    %1903 = vmatpush1.msra.mxu0 0.0
    %1904 = vmatprep.subr.mxu0 0.0
    %1905 = vmatpush1.msra.mxu0 0.0
    %1906 = vmatprep.subr.mxu0 0.0
    %1907 = vmatpush1.msra.mxu0 0.0
    %1908 = vmatprep.mubr.f32.mxu0 0.0
    %1909 = vmatmul.mubr.f32.gmra.mrb[0].mxu0 %v1840
    %v1910 = vpop.f32.mrb[0].mxu0
    %v1911 = vadd.f32 0.0, %v1910
    %v1912 = vpop.f32.mrb[0].mxu0
    %1913 = vdwg.mxu0
    %1914 = vrot.lane.b32.xlu0 %v1581, 112
    %v1915 = vpop.permute.xlu0 %1914
    %1916 = vrot.lane.b32.xlu0 %v1581, 80
    %v1917 = vpop.permute.xlu0 %1916
    %v1918 = vsel %vm529, %v1915, 0
    %v1920 = vsel %vm529, %v1917, 0
    %1922 = vmatprep.subr.mxu0 0.0
    %1923 = vmatpush1.xpose.msra.mxu0 %v1920
    %1924 = vmatprep.subr.mxu0 0.0
    %1925 = vmatpush1.xpose.msra.mxu0 0.0
    %1926 = vmatprep.subr.mxu0 0.0
    %1927 = vmatpush1.xpose.msra.mxu0 0.0
    %1928 = vmatprep.subr.mxu0 0.0
    %1929 = vmatpush1.xpose.msra.mxu0 0.0
    %1930 = vmatprep.subr.mxu0 0.0
    %1931 = vmatpush1.xpose.msra.mxu0 0.0
    %1932 = vmatprep.subr.mxu0 0.0
    %1933 = vmatpush1.xpose.msra.mxu0 0.0
    %1934 = vmatprep.subr.mxu0 0.0
    %1935 = vmatpush1.xpose.msra.mxu0 0.0
    %1936 = vmatprep.subr.mxu0 0.0
    %1937 = vmatpush1.xpose.msra.mxu0 0.0
    %1938 = vmatprep.subr.mxu0 0.0
    %1939 = vmatpush1.xpose.msra.mxu0 0.0
    %1940 = vmatprep.subr.mxu0 0.0
    %1941 = vmatpush1.xpose.msra.mxu0 0.0
    %1942 = vmatprep.subr.mxu0 0.0
    %1943 = vmatpush1.xpose.msra.mxu0 0.0
    %1944 = vmatprep.subr.mxu0 0.0
    %1945 = vmatpush1.xpose.msra.mxu0 0.0
    %1946 = vmatprep.subr.mxu0 0.0
    %1947 = vmatpush1.xpose.msra.mxu0 0.0
    %1948 = vmatprep.subr.mxu0 0.0
    %1949 = vmatpush1.xpose.msra.mxu0 0.0
    %1950 = vmatprep.subr.mxu0 0.0
    %1951 = vmatpush1.xpose.msra.mxu0 0.0
    %1952 = vmatprep.subr.mxu0 0.0
    %1953 = vmatpush1.xpose.msra.mxu0 0.0
    %1954 = vmatprep.subr.mxu0 0.0
    %1955 = vmatpush1.xpose.msra.mxu0 0.0
    %1956 = vmatprep.subr.mxu0 0.0
    %1957 = vmatpush1.xpose.msra.mxu0 0.0
    %1958 = vmatprep.subr.mxu0 0.0
    %1959 = vmatpush1.xpose.msra.mxu0 0.0
    %1960 = vmatprep.subr.mxu0 0.0
    %1961 = vmatpush1.xpose.msra.mxu0 0.0
    %1962 = vmatprep.subr.mxu0 0.0
    %1963 = vmatpush1.xpose.msra.mxu0 0.0
    %1964 = vmatprep.subr.mxu0 0.0
    %1965 = vmatpush1.xpose.msra.mxu0 0.0
    %1966 = vmatprep.subr.mxu0 0.0
    %1967 = vmatpush1.xpose.msra.mxu0 0.0
    %1968 = vmatprep.subr.mxu0 0.0
    %1969 = vmatpush1.xpose.msra.mxu0 0.0
    %1970 = vmatprep.subr.mxu0 0.0
    %1971 = vmatpush1.xpose.msra.mxu0 0.0
    %1972 = vmatprep.subr.mxu0 0.0
    %1973 = vmatpush1.xpose.msra.mxu0 0.0
    %1974 = vmatprep.subr.mxu0 0.0
    %1975 = vmatpush1.xpose.msra.mxu0 0.0
    %1976 = vmatprep.subr.mxu0 0.0
    %1977 = vmatpush1.xpose.msra.mxu0 0.0
    %1978 = vmatprep.subr.mxu0 0.0
    %1979 = vmatpush1.xpose.msra.mxu0 0.0
    %1980 = vmatprep.subr.mxu0 0.0
    %1981 = vmatpush1.xpose.msra.mxu0 0.0
    %1982 = vmatprep.subr.mxu0 0.0
    %1983 = vmatpush1.xpose.msra.mxu0 0.0
    %1984 = vmatprep.subr.mxu0 0.0
    %1985 = vmatpush1.xpose.msra.mxu0 0.0
    %1986 = vmatprep.mubr.f32.mxu0 0.0
    %1987 = vmatmul.mubr.f32.gmra.mrb[0].mxu0 %v1918
    %v1988 = vpop.f32.mrb[0].mxu0
    %v1989 = vadd.f32 0.0, %v1988
    %v1990 = vpop.f32.mrb[0].mxu0
    %1991 = vdwg.mxu0
    %v1992 = vmul.f32 %v1989, 0.35355338
    %v1993 = vsel %vm971, %v1992, -inf
    %1994 = vmax.xlane.f32.xlu0 %v1993
    %v1995 = vpop.xlane.xlu0 %1994
    %v1996 = vsub.f32 %v1992, %v1995
    %v1997 = vmul.f32 %v1996, 1.442695
    %v1998 = vpow.pop %v1997
    %v1999 = vsel %vm971, %v1998, 0.0
    %2000 = vadd.xlane.f32.xlu0 %v1999
    %v2001 = vpop.xlane.xlu0 %2000
    %v2002 = vrcp.pop %v2001
    %v2003 = vmul.f32 %v1998, %v2002
    %2004 = vrot.lane.b32.xlu0 %v1581, 48
    %v2005 = vpop.permute.xlu0 %2004
    %v2007 = vsel %vm700, %v2003, 0
    %v2009 = vsel %vm556, %v2005, 0
    %2011 = vmatprep.subr.mxu0 0.0
    %2012 = vmatpush1.msra.mxu0 %v2009
    %2013 = vmatprep.subr.mxu0 0.0
    %2014 = vmatpush1.msra.mxu0 0.0
    %2015 = vmatprep.subr.mxu0 0.0
    %2016 = vmatpush1.msra.mxu0 0.0
    %2017 = vmatprep.subr.mxu0 0.0
    %2018 = vmatpush1.msra.mxu0 0.0
    %2019 = vmatprep.subr.mxu0 0.0
    %2020 = vmatpush1.msra.mxu0 0.0
    %2021 = vmatprep.subr.mxu0 0.0
    %2022 = vmatpush1.msra.mxu0 0.0
    %2023 = vmatprep.subr.mxu0 0.0
    %2024 = vmatpush1.msra.mxu0 0.0
    %2025 = vmatprep.subr.mxu0 0.0
    %2026 = vmatpush1.msra.mxu0 0.0
    %2027 = vmatprep.subr.mxu0 0.0
    %2028 = vmatpush1.msra.mxu0 0.0
    %2029 = vmatprep.subr.mxu0 0.0
    %2030 = vmatpush1.msra.mxu0 0.0
    %2031 = vmatprep.subr.mxu0 0.0
    %2032 = vmatpush1.msra.mxu0 0.0
    %2033 = vmatprep.subr.mxu0 0.0
    %2034 = vmatpush1.msra.mxu0 0.0
    %2035 = vmatprep.subr.mxu0 0.0
    %2036 = vmatpush1.msra.mxu0 0.0
    %2037 = vmatprep.subr.mxu0 0.0
    %2038 = vmatpush1.msra.mxu0 0.0
    %2039 = vmatprep.subr.mxu0 0.0
    %2040 = vmatpush1.msra.mxu0 0.0
    %2041 = vmatprep.subr.mxu0 0.0
    %2042 = vmatpush1.msra.mxu0 0.0
    %2043 = vmatprep.subr.mxu0 0.0
    %2044 = vmatpush1.msra.mxu0 0.0
    %2045 = vmatprep.subr.mxu0 0.0
    %2046 = vmatpush1.msra.mxu0 0.0
    %2047 = vmatprep.subr.mxu0 0.0
    %2048 = vmatpush1.msra.mxu0 0.0
    %2049 = vmatprep.subr.mxu0 0.0
    %2050 = vmatpush1.msra.mxu0 0.0
    %2051 = vmatprep.subr.mxu0 0.0
    %2052 = vmatpush1.msra.mxu0 0.0
    %2053 = vmatprep.subr.mxu0 0.0
    %2054 = vmatpush1.msra.mxu0 0.0
    %2055 = vmatprep.subr.mxu0 0.0
    %2056 = vmatpush1.msra.mxu0 0.0
    %2057 = vmatprep.subr.mxu0 0.0
    %2058 = vmatpush1.msra.mxu0 0.0
    %2059 = vmatprep.subr.mxu0 0.0
    %2060 = vmatpush1.msra.mxu0 0.0
    %2061 = vmatprep.subr.mxu0 0.0
    %2062 = vmatpush1.msra.mxu0 0.0
    %2063 = vmatprep.subr.mxu0 0.0
    %2064 = vmatpush1.msra.mxu0 0.0
    %2065 = vmatprep.subr.mxu0 0.0
    %2066 = vmatpush1.msra.mxu0 0.0
    %2067 = vmatprep.subr.mxu0 0.0
    %2068 = vmatpush1.msra.mxu0 0.0
    %2069 = vmatprep.subr.mxu0 0.0
    %2070 = vmatpush1.msra.mxu0 0.0
    %2071 = vmatprep.subr.mxu0 0.0
    %2072 = vmatpush1.msra.mxu0 0.0
    %2073 = vmatprep.subr.mxu0 0.0
    %2074 = vmatpush1.msra.mxu0 0.0
    %2075 = vmatprep.mubr.f32.mxu0 0.0
    %2076 = vmatmul.mubr.f32.gmra.mrb[0].mxu0 %v2007
    %v2077 = vpop.f32.mrb[0].mxu0
    %v2078 = vadd.f32 0.0, %v2077
    %v2079 = vpop.f32.mrb[0].mxu0
    %2080 = vdwg.mxu0
    %2081 = vrot.lane.b32.xlu0 %v1581, 104
    %v2082 = vpop.permute.xlu0 %2081
    %2083 = vrot.lane.b32.xlu0 %v1581, 72
    %v2084 = vpop.permute.xlu0 %2083
    %v2085 = vsel %vm529, %v2082, 0
    %v2087 = vsel %vm529, %v2084, 0
    %2089 = vmatprep.subr.mxu0 0.0
    %2090 = vmatpush1.xpose.msra.mxu0 %v2087
    %2091 = vmatprep.subr.mxu0 0.0
    %2092 = vmatpush1.xpose.msra.mxu0 0.0
    %2093 = vmatprep.subr.mxu0 0.0
    %2094 = vmatpush1.xpose.msra.mxu0 0.0
    %2095 = vmatprep.subr.mxu0 0.0
    %2096 = vmatpush1.xpose.msra.mxu0 0.0
    %2097 = vmatprep.subr.mxu0 0.0
    %2098 = vmatpush1.xpose.msra.mxu0 0.0
    %2099 = vmatprep.subr.mxu0 0.0
    %2100 = vmatpush1.xpose.msra.mxu0 0.0
    %2101 = vmatprep.subr.mxu0 0.0
    %2102 = vmatpush1.xpose.msra.mxu0 0.0
    %2103 = vmatprep.subr.mxu0 0.0
    %2104 = vmatpush1.xpose.msra.mxu0 0.0
    %2105 = vmatprep.subr.mxu0 0.0
    %2106 = vmatpush1.xpose.msra.mxu0 0.0
    %2107 = vmatprep.subr.mxu0 0.0
    %2108 = vmatpush1.xpose.msra.mxu0 0.0
    %2109 = vmatprep.subr.mxu0 0.0
    %2110 = vmatpush1.xpose.msra.mxu0 0.0
    %2111 = vmatprep.subr.mxu0 0.0
    %2112 = vmatpush1.xpose.msra.mxu0 0.0
    %2113 = vmatprep.subr.mxu0 0.0
    %2114 = vmatpush1.xpose.msra.mxu0 0.0
    %2115 = vmatprep.subr.mxu0 0.0
    %2116 = vmatpush1.xpose.msra.mxu0 0.0
    %2117 = vmatprep.subr.mxu0 0.0
    %2118 = vmatpush1.xpose.msra.mxu0 0.0
    %2119 = vmatprep.subr.mxu0 0.0
    %2120 = vmatpush1.xpose.msra.mxu0 0.0
    %2121 = vmatprep.subr.mxu0 0.0
    %2122 = vmatpush1.xpose.msra.mxu0 0.0
    %2123 = vmatprep.subr.mxu0 0.0
    %2124 = vmatpush1.xpose.msra.mxu0 0.0
    %2125 = vmatprep.subr.mxu0 0.0
    %2126 = vmatpush1.xpose.msra.mxu0 0.0
    %2127 = vmatprep.subr.mxu0 0.0
    %2128 = vmatpush1.xpose.msra.mxu0 0.0
    %2129 = vmatprep.subr.mxu0 0.0
    %2130 = vmatpush1.xpose.msra.mxu0 0.0
    %2131 = vmatprep.subr.mxu0 0.0
    %2132 = vmatpush1.xpose.msra.mxu0 0.0
    %2133 = vmatprep.subr.mxu0 0.0
    %2134 = vmatpush1.xpose.msra.mxu0 0.0
    %2135 = vmatprep.subr.mxu0 0.0
    %2136 = vmatpush1.xpose.msra.mxu0 0.0
    %2137 = vmatprep.subr.mxu0 0.0
    %2138 = vmatpush1.xpose.msra.mxu0 0.0
    %2139 = vmatprep.subr.mxu0 0.0
    %2140 = vmatpush1.xpose.msra.mxu0 0.0
    %2141 = vmatprep.subr.mxu0 0.0
    %2142 = vmatpush1.xpose.msra.mxu0 0.0
    %2143 = vmatprep.subr.mxu0 0.0
    %2144 = vmatpush1.xpose.msra.mxu0 0.0
    %2145 = vmatprep.subr.mxu0 0.0
    %2146 = vmatpush1.xpose.msra.mxu0 0.0
    %2147 = vmatprep.subr.mxu0 0.0
    %2148 = vmatpush1.xpose.msra.mxu0 0.0
    %2149 = vmatprep.subr.mxu0 0.0
    %2150 = vmatpush1.xpose.msra.mxu0 0.0
    %2151 = vmatprep.subr.mxu0 0.0
    %2152 = vmatpush1.xpose.msra.mxu0 0.0
    %2153 = vmatprep.mubr.f32.mxu0 0.0
    %2154 = vmatmul.mubr.f32.gmra.mrb[0].mxu0 %v2085
    %v2155 = vpop.f32.mrb[0].mxu0
    %v2156 = vadd.f32 0.0, %v2155
    %v2157 = vpop.f32.mrb[0].mxu0
    %2158 = vdwg.mxu0
    %v2159 = vmul.f32 %v2156, 0.35355338
    %v2160 = vsel %vm971, %v2159, -inf
    %2161 = vmax.xlane.f32.xlu0 %v2160
    %v2162 = vpop.xlane.xlu0 %2161
    %v2163 = vsub.f32 %v2159, %v2162
    %v2164 = vmul.f32 %v2163, 1.442695
    %v2165 = vpow.pop %v2164
    %v2166 = vsel %vm971, %v2165, 0.0
    %2167 = vadd.xlane.f32.xlu0 %v2166
    %v2168 = vpop.xlane.xlu0 %2167
    %v2169 = vrcp.pop %v2168
    %v2170 = vmul.f32 %v2165, %v2169
    %2171 = vrot.lane.b32.xlu0 %v1581, 40
    %v2172 = vpop.permute.xlu0 %2171
    %v2174 = vsel %vm700, %v2170, 0
    %v2176 = vsel %vm556, %v2172, 0
    %2178 = vmatprep.subr.mxu0 0.0
    %2179 = vmatpush1.msra.mxu0 %v2176
    %2180 = vmatprep.subr.mxu0 0.0
    %2181 = vmatpush1.msra.mxu0 0.0
    %2182 = vmatprep.subr.mxu0 0.0
    %2183 = vmatpush1.msra.mxu0 0.0
    %2184 = vmatprep.subr.mxu0 0.0
    %2185 = vmatpush1.msra.mxu0 0.0
    %2186 = vmatprep.subr.mxu0 0.0
    %2187 = vmatpush1.msra.mxu0 0.0
    %2188 = vmatprep.subr.mxu0 0.0
    %2189 = vmatpush1.msra.mxu0 0.0
    %2190 = vmatprep.subr.mxu0 0.0
    %2191 = vmatpush1.msra.mxu0 0.0
    %2192 = vmatprep.subr.mxu0 0.0
    %2193 = vmatpush1.msra.mxu0 0.0
    %2194 = vmatprep.subr.mxu0 0.0
    %2195 = vmatpush1.msra.mxu0 0.0
    %2196 = vmatprep.subr.mxu0 0.0
    %2197 = vmatpush1.msra.mxu0 0.0
    %2198 = vmatprep.subr.mxu0 0.0
    %2199 = vmatpush1.msra.mxu0 0.0
    %2200 = vmatprep.subr.mxu0 0.0
    %2201 = vmatpush1.msra.mxu0 0.0
    %2202 = vmatprep.subr.mxu0 0.0
    %2203 = vmatpush1.msra.mxu0 0.0
    %2204 = vmatprep.subr.mxu0 0.0
    %2205 = vmatpush1.msra.mxu0 0.0
    %2206 = vmatprep.subr.mxu0 0.0
    %2207 = vmatpush1.msra.mxu0 0.0
    %2208 = vmatprep.subr.mxu0 0.0
    %2209 = vmatpush1.msra.mxu0 0.0
    %2210 = vmatprep.subr.mxu0 0.0
    %2211 = vmatpush1.msra.mxu0 0.0
    %2212 = vmatprep.subr.mxu0 0.0
    %2213 = vmatpush1.msra.mxu0 0.0
    %2214 = vmatprep.subr.mxu0 0.0
    %2215 = vmatpush1.msra.mxu0 0.0
    %2216 = vmatprep.subr.mxu0 0.0
    %2217 = vmatpush1.msra.mxu0 0.0
    %2218 = vmatprep.subr.mxu0 0.0
    %2219 = vmatpush1.msra.mxu0 0.0
    %2220 = vmatprep.subr.mxu0 0.0
    %2221 = vmatpush1.msra.mxu0 0.0
    %2222 = vmatprep.subr.mxu0 0.0
    %2223 = vmatpush1.msra.mxu0 0.0
    %2224 = vmatprep.subr.mxu0 0.0
    %2225 = vmatpush1.msra.mxu0 0.0
    %2226 = vmatprep.subr.mxu0 0.0
    %2227 = vmatpush1.msra.mxu0 0.0
    %2228 = vmatprep.subr.mxu0 0.0
    %2229 = vmatpush1.msra.mxu0 0.0
    %2230 = vmatprep.subr.mxu0 0.0
    %2231 = vmatpush1.msra.mxu0 0.0
    %2232 = vmatprep.subr.mxu0 0.0
    %2233 = vmatpush1.msra.mxu0 0.0
    %2234 = vmatprep.subr.mxu0 0.0
    %2235 = vmatpush1.msra.mxu0 0.0
    %2236 = vmatprep.subr.mxu0 0.0
    %2237 = vmatpush1.msra.mxu0 0.0
    %2238 = vmatprep.subr.mxu0 0.0
    %2239 = vmatpush1.msra.mxu0 0.0
    %2240 = vmatprep.subr.mxu0 0.0
    %2241 = vmatpush1.msra.mxu0 0.0
    %2242 = vmatprep.mubr.f32.mxu0 0.0
    %2243 = vmatmul.mubr.f32.gmra.mrb[0].mxu0 %v2174
    %v2244 = vpop.f32.mrb[0].mxu0
    %v2245 = vadd.f32 0.0, %v2244
    %v2246 = vpop.f32.mrb[0].mxu0
    %2247 = vdwg.mxu0
    %2249 = vrot.lane.b32.xlu0 %v1911, 8
    %v2250 = vpop.permute.xlu0 %2249
    %2253 = vrot.lane.b32.xlu0 %v2078, 16
    %v2254 = vpop.permute.xlu0 %2253
    %2257 = vrot.lane.b32.xlu0 %v2245, 24
    %v2258 = vpop.permute.xlu0 %2257
    %v2260 = vsel %vm529, %v1744, %v2250
    %v2261 = vsel %vm1574, %v2260, %v2254
    %v2262 = vsel %vm1576, %v2261, %v2258
    %v2264 = vrot.slane %v2262, 2
    %v2266 = vsel %vm556, %v1577, %v2264
    %v2268 = vlaneseq
    %v2269 = vshrl.u32 %v2268, 7
    %v2270 = vsub.s32 0, %v2269
    %v2271 = vrot.slane %v786, %v2270
    %v2274 = vsel %vm811, %v2266, 0
    %v2276 = vsel %vm811, %v2264, 0
    %2278 = vmatprep.subr.mxu0 0.0
    %2279 = vmatpush1.msra.mxu0 %v782
    %2280 = vmatprep.subr.mxu0 0.0
    %2281 = vmatpush1.msra.mxu0 %v783
    %2282 = vmatprep.subr.mxu0 0.0
    %2283 = vmatpush1.msra.mxu0 %v784
    %2284 = vmatprep.subr.mxu0 0.0
    %2285 = vmatpush1.msra.mxu0 %v785
    %2286 = vmatprep.subr.mxu0 0.0
    %2287 = vmatpush1.msra.mxu0 0.0
    %2288 = vmatprep.subr.mxu0 0.0
    %2289 = vmatpush1.msra.mxu0 0.0
    %2290 = vmatprep.subr.mxu0 0.0
    %2291 = vmatpush1.msra.mxu0 0.0
    %2292 = vmatprep.subr.mxu0 0.0
    %2293 = vmatpush1.msra.mxu0 0.0
    %2294 = vmatprep.subr.mxu0 0.0
    %2295 = vmatpush1.msra.mxu0 0.0
    %2296 = vmatprep.subr.mxu0 0.0
    %2297 = vmatpush1.msra.mxu0 0.0
    %2298 = vmatprep.subr.mxu0 0.0
    %2299 = vmatpush1.msra.mxu0 0.0
    %2300 = vmatprep.subr.mxu0 0.0
    %2301 = vmatpush1.msra.mxu0 0.0
    %2302 = vmatprep.subr.mxu0 0.0
    %2303 = vmatpush1.msra.mxu0 0.0
    %2304 = vmatprep.subr.mxu0 0.0
    %2305 = vmatpush1.msra.mxu0 0.0
    %2306 = vmatprep.subr.mxu0 0.0
    %2307 = vmatpush1.msra.mxu0 0.0
    %2308 = vmatprep.subr.mxu0 0.0
    %2309 = vmatpush1.msra.mxu0 0.0
    %2310 = vmatprep.subr.mxu0 0.0
    %2311 = vmatpush1.msra.mxu0 0.0
    %2312 = vmatprep.subr.mxu0 0.0
    %2313 = vmatpush1.msra.mxu0 0.0
    %2314 = vmatprep.subr.mxu0 0.0
    %2315 = vmatpush1.msra.mxu0 0.0
    %2316 = vmatprep.subr.mxu0 0.0
    %2317 = vmatpush1.msra.mxu0 0.0
    %2318 = vmatprep.subr.mxu0 0.0
    %2319 = vmatpush1.msra.mxu0 0.0
    %2320 = vmatprep.subr.mxu0 0.0
    %2321 = vmatpush1.msra.mxu0 0.0
    %2322 = vmatprep.subr.mxu0 0.0
    %2323 = vmatpush1.msra.mxu0 0.0
    %2324 = vmatprep.subr.mxu0 0.0
    %2325 = vmatpush1.msra.mxu0 0.0
    %2326 = vmatprep.subr.mxu0 0.0
    %2327 = vmatpush1.msra.mxu0 0.0
    %2328 = vmatprep.subr.mxu0 0.0
    %2329 = vmatpush1.msra.mxu0 0.0
    %2330 = vmatprep.subr.mxu0 0.0
    %2331 = vmatpush1.msra.mxu0 0.0
    %2332 = vmatprep.subr.mxu0 0.0
    %2333 = vmatpush1.msra.mxu0 0.0
    %2334 = vmatprep.subr.mxu0 0.0
    %2335 = vmatpush1.msra.mxu0 0.0
    %2336 = vmatprep.subr.mxu0 0.0
    %2337 = vmatpush1.msra.mxu0 0.0
    %2338 = vmatprep.subr.mxu0 0.0
    %2339 = vmatpush1.msra.mxu0 0.0
    %2340 = vmatprep.subr.mxu0 0.0
    %2341 = vmatpush1.msra.mxu0 0.0
    %2342 = vmatprep.mubr.f32.mxu0 0.0
    %2343 = vmatmul.mubr.f32.gmra.mrb[0].mxu0 %v2274
    %v2344 = vpop.f32.mrb[0].mxu0
    %v2345 = vadd.f32 %v2271, %v2344
    %v2346 = vpop.f32.mrb[0].mxu0
    %2347 = vmatprep.mubr.f32.mxu0 0.0
    %2348 = vmatmul.mubr.f32.gmra.mrb[0].mxu0 %v2276
    %v2349 = vpop.f32.mrb[0].mxu0
    %v2350 = vadd.f32 %v2271, %v2349
    %v2351 = vpop.f32.mrb[0].mxu0
    %2352 = vdwg.mxu0
    %v2353 = vadd.f32 %v639, %v2345
    %v2354 = vadd.f32 %v644, %v2350
    %v2355 = vsel %vm811, %v2353, 0.0
    %2356 = vadd.xlane.f32.xlu0 %v2355
    %v2357 = vpop.xlane.xlu0 %2356
    %vm2358 = vcmask 257024
    %v2359 = vsel %vm2358, %v2354, 0.0
    %2360 = vadd.xlane.f32.xlu0 %v2359
    %v2361 = vpop.xlane.xlu0 %2360
    %v2362 = vrcp.pop 32.0
    %v2363 = vmul.f32 %v2357, %v2362
    %v2364 = vmul.f32 %v2361, %v2362
    %v2365 = vsub.f32 %v2353, %v2363
    %v2366 = vsub.f32 %v2354, %v2364
    %v2367 = vmul.f32 %v2365, %v2365
    %v2368 = vmul.f32 %v2366, %v2366
    %v2369 = vsel %vm811, %v2367, 0.0
    %2370 = vadd.xlane.f32.xlu0 %v2369
    %v2371 = vpop.xlane.xlu0 %2370
    %v2372 = vsel %vm2358, %v2368, 0.0
    %2373 = vadd.xlane.f32.xlu0 %v2372
    %v2374 = vpop.xlane.xlu0 %2373
    %v2375 = vmul.f32 %v2371, %v2362
    %v2376 = vmul.f32 %v2374, %v2362
    %v2377 = vadd.f32 %v2375, 1e-05
    %v2378 = vadd.f32 %v2376, 1e-05
    %v2379 = vrsqrt.pop %v2377
    %v2380 = vrsqrt.pop %v2378
    %v2381 = vmul.f32 %v2365, %v2379
    %v2382 = vmul.f32 %v2366, %v2380
    %v2384 = vlaneseq
    %v2385 = vshrl.u32 %v2384, 7
    %v2386 = vsub.s32 0, %v2385
    %v2387 = vrot.slane %v787, %v2386
    %v2389 = vmul.f32 %v2381, %v2387
    %v2390 = vmul.f32 %v2382, %v2387
    %v2392 = vlaneseq
    %v2393 = vshrl.u32 %v2392, 7
    %v2394 = vsub.s32 0, %v2393
    %v2395 = vrot.slane %v788, %v2394
    %v2397 = vadd.f32 %v2389, %v2395
    %v2398 = vadd.f32 %v2390, %v2395
    %v2400 = vlaneseq
    %v2401 = vshrl.u32 %v2400, 7
    %v2402 = vsub.s32 0, %v2401
    %v2403 = vrot.slane %v793, %v2402
    %v2406 = vsel %vm811, %v2397, 0
    %v2409 = vsel %vm811, %v2398, 0
    %2411 = vmatprep.subr.mxu0 0.0
    %2412 = vmatpush1.msra.mxu0 %v789
    %2413 = vmatprep.subr.mxu0 0.0
    %2414 = vmatpush1.msra.mxu0 %v790
    %2415 = vmatprep.subr.mxu0 0.0
    %2416 = vmatpush1.msra.mxu0 %v791
    %2417 = vmatprep.subr.mxu0 0.0
    %2418 = vmatpush1.msra.mxu0 %v792
    %2419 = vmatprep.subr.mxu0 0.0
    %2420 = vmatpush1.msra.mxu0 0.0
    %2421 = vmatprep.subr.mxu0 0.0
    %2422 = vmatpush1.msra.mxu0 0.0
    %2423 = vmatprep.subr.mxu0 0.0
    %2424 = vmatpush1.msra.mxu0 0.0
    %2425 = vmatprep.subr.mxu0 0.0
    %2426 = vmatpush1.msra.mxu0 0.0
    %2427 = vmatprep.subr.mxu0 0.0
    %2428 = vmatpush1.msra.mxu0 0.0
    %2429 = vmatprep.subr.mxu0 0.0
    %2430 = vmatpush1.msra.mxu0 0.0
    %2431 = vmatprep.subr.mxu0 0.0
    %2432 = vmatpush1.msra.mxu0 0.0
    %2433 = vmatprep.subr.mxu0 0.0
    %2434 = vmatpush1.msra.mxu0 0.0
    %2435 = vmatprep.subr.mxu0 0.0
    %2436 = vmatpush1.msra.mxu0 0.0
    %2437 = vmatprep.subr.mxu0 0.0
    %2438 = vmatpush1.msra.mxu0 0.0
    %2439 = vmatprep.subr.mxu0 0.0
    %2440 = vmatpush1.msra.mxu0 0.0
    %2441 = vmatprep.subr.mxu0 0.0
    %2442 = vmatpush1.msra.mxu0 0.0
    %2443 = vmatprep.subr.mxu0 0.0
    %2444 = vmatpush1.msra.mxu0 0.0
    %2445 = vmatprep.subr.mxu0 0.0
    %2446 = vmatpush1.msra.mxu0 0.0
    %2447 = vmatprep.subr.mxu0 0.0
    %2448 = vmatpush1.msra.mxu0 0.0
    %2449 = vmatprep.subr.mxu0 0.0
    %2450 = vmatpush1.msra.mxu0 0.0
    %2451 = vmatprep.subr.mxu0 0.0
    %2452 = vmatpush1.msra.mxu0 0.0
    %2453 = vmatprep.subr.mxu0 0.0
    %2454 = vmatpush1.msra.mxu0 0.0
    %2455 = vmatprep.subr.mxu0 0.0
    %2456 = vmatpush1.msra.mxu0 0.0
    %2457 = vmatprep.subr.mxu0 0.0
    %2458 = vmatpush1.msra.mxu0 0.0
    %2459 = vmatprep.subr.mxu0 0.0
    %2460 = vmatpush1.msra.mxu0 0.0
    %2461 = vmatprep.subr.mxu0 0.0
    %2462 = vmatpush1.msra.mxu0 0.0
    %2463 = vmatprep.subr.mxu0 0.0
    %2464 = vmatpush1.msra.mxu0 0.0
    %2465 = vmatprep.subr.mxu0 0.0
    %2466 = vmatpush1.msra.mxu0 0.0
    %2467 = vmatprep.subr.mxu0 0.0
    %2468 = vmatpush1.msra.mxu0 0.0
    %2469 = vmatprep.subr.mxu0 0.0
    %2470 = vmatpush1.msra.mxu0 0.0
    %2471 = vmatprep.subr.mxu0 0.0
    %2472 = vmatpush1.msra.mxu0 0.0
    %2473 = vmatprep.subr.mxu0 0.0
    %2474 = vmatpush1.msra.mxu0 0.0
    %2475 = vmatprep.mubr.f32.mxu0 0.0
    %2476 = vmatmul.mubr.f32.gmra.mrb[0].mxu0 %v2406
    %v2477 = vpop.f32.mrb[0].mxu0
    %v2478 = vadd.f32 %v2403, %v2477
    %v2479 = vpop.f32.mrb[0].mxu0
    %2480 = vmatprep.mubr.f32.mxu0 0.0
    %2481 = vmatmul.mubr.f32.gmra.mrb[0].mxu0 %v2409
    %v2482 = vpop.f32.mrb[0].mxu0
    %v2483 = vadd.f32 %v2403, %v2482
    %v2484 = vpop.f32.mrb[0].mxu0
    %2485 = vdwg.mxu0
    %v2486 = vmax.f32 %v2478, 0.0
    %v2487 = vmax.f32 %v2483, 0.0
    %v2489 = vlaneseq
    %v2490 = vshrl.u32 %v2489, 7
    %v2491 = vsub.s32 0, %v2490
    %v2492 = vrot.slane %v802, %v2491
    %vm2494 = vcmask 523264
    %v2496 = vsel %vm2494, %v2486, 0
    %v2499 = vsel %vm2494, %v2487, 0
    %2501 = vmatprep.subr.mxu0 0.0
    %2502 = vmatpush1.msra.mxu0 %v794
    %2503 = vmatprep.subr.mxu0 0.0
    %2504 = vmatpush1.msra.mxu0 %v795
    %2505 = vmatprep.subr.mxu0 0.0
    %2506 = vmatpush1.msra.mxu0 %v796
    %2507 = vmatprep.subr.mxu0 0.0
    %2508 = vmatpush1.msra.mxu0 %v797
    %2509 = vmatprep.subr.mxu0 0.0
    %2510 = vmatpush1.msra.mxu0 %v798
    %2511 = vmatprep.subr.mxu0 0.0
    %2512 = vmatpush1.msra.mxu0 %v799
    %2513 = vmatprep.subr.mxu0 0.0
    %2514 = vmatpush1.msra.mxu0 %v800
    %2515 = vmatprep.subr.mxu0 0.0
    %2516 = vmatpush1.msra.mxu0 %v801
    %2517 = vmatprep.subr.mxu0 0.0
    %2518 = vmatpush1.msra.mxu0 0.0
    %2519 = vmatprep.subr.mxu0 0.0
    %2520 = vmatpush1.msra.mxu0 0.0
    %2521 = vmatprep.subr.mxu0 0.0
    %2522 = vmatpush1.msra.mxu0 0.0
    %2523 = vmatprep.subr.mxu0 0.0
    %2524 = vmatpush1.msra.mxu0 0.0
    %2525 = vmatprep.subr.mxu0 0.0
    %2526 = vmatpush1.msra.mxu0 0.0
    %2527 = vmatprep.subr.mxu0 0.0
    %2528 = vmatpush1.msra.mxu0 0.0
    %2529 = vmatprep.subr.mxu0 0.0
    %2530 = vmatpush1.msra.mxu0 0.0
    %2531 = vmatprep.subr.mxu0 0.0
    %2532 = vmatpush1.msra.mxu0 0.0
    %2533 = vmatprep.subr.mxu0 0.0
    %2534 = vmatpush1.msra.mxu0 0.0
    %2535 = vmatprep.subr.mxu0 0.0
    %2536 = vmatpush1.msra.mxu0 0.0
    %2537 = vmatprep.subr.mxu0 0.0
    %2538 = vmatpush1.msra.mxu0 0.0
    %2539 = vmatprep.subr.mxu0 0.0
    %2540 = vmatpush1.msra.mxu0 0.0
    %2541 = vmatprep.subr.mxu0 0.0
    %2542 = vmatpush1.msra.mxu0 0.0
    %2543 = vmatprep.subr.mxu0 0.0
    %2544 = vmatpush1.msra.mxu0 0.0
    %2545 = vmatprep.subr.mxu0 0.0
    %2546 = vmatpush1.msra.mxu0 0.0
    %2547 = vmatprep.subr.mxu0 0.0
    %2548 = vmatpush1.msra.mxu0 0.0
    %2549 = vmatprep.subr.mxu0 0.0
    %2550 = vmatpush1.msra.mxu0 0.0
    %2551 = vmatprep.subr.mxu0 0.0
    %2552 = vmatpush1.msra.mxu0 0.0
    %2553 = vmatprep.subr.mxu0 0.0
    %2554 = vmatpush1.msra.mxu0 0.0
    %2555 = vmatprep.subr.mxu0 0.0
    %2556 = vmatpush1.msra.mxu0 0.0
    %2557 = vmatprep.subr.mxu0 0.0
    %2558 = vmatpush1.msra.mxu0 0.0
    %2559 = vmatprep.subr.mxu0 0.0
    %2560 = vmatpush1.msra.mxu0 0.0
    %2561 = vmatprep.subr.mxu0 0.0
    %2562 = vmatpush1.msra.mxu0 0.0
    %2563 = vmatprep.subr.mxu0 0.0
    %2564 = vmatpush1.msra.mxu0 0.0
    %2565 = vmatprep.mubr.f32.mxu0 0.0
    %2566 = vmatmul.mubr.f32.gmra.mrb[0].mxu0 %v2496
    %v2567 = vpop.f32.mrb[0].mxu0
    %v2568 = vadd.f32 %v2492, %v2567
    %v2569 = vpop.f32.mrb[0].mxu0
    %2570 = vmatprep.mubr.f32.mxu0 0.0
    %2571 = vmatmul.mubr.f32.gmra.mrb[0].mxu0 %v2499
    %v2572 = vpop.f32.mrb[0].mxu0
    %v2573 = vadd.f32 %v2492, %v2572
    %v2574 = vpop.f32.mrb[0].mxu0
    %2575 = vdwg.mxu0
    %v2576 = vadd.f32 %v2397, %v2568
    %v2577 = vadd.f32 %v2398, %v2573
    %v2578 = vsel %vm811, %v2576, 0.0
    %2579 = vadd.xlane.f32.xlu0 %v2578
    %v2580 = vpop.xlane.xlu0 %2579
    %v2581 = vsel %vm2358, %v2577, 0.0
    %2582 = vadd.xlane.f32.xlu0 %v2581
    %v2583 = vpop.xlane.xlu0 %2582
    %v2584 = vmul.f32 %v2580, %v2362
    %v2585 = vmul.f32 %v2583, %v2362
    %v2586 = vsub.f32 %v2576, %v2584
    %v2587 = vsub.f32 %v2577, %v2585
    %v2588 = vmul.f32 %v2586, %v2586
    %v2589 = vmul.f32 %v2587, %v2587
    %v2590 = vsel %vm811, %v2588, 0.0
    %2591 = vadd.xlane.f32.xlu0 %v2590
    %v2592 = vpop.xlane.xlu0 %2591
    %v2593 = vsel %vm2358, %v2589, 0.0
    %2594 = vadd.xlane.f32.xlu0 %v2593
    %v2595 = vpop.xlane.xlu0 %2594
    %v2596 = vmul.f32 %v2592, %v2362
    %v2597 = vmul.f32 %v2595, %v2362
    %v2598 = vadd.f32 %v2596, 1e-05
    %v2599 = vadd.f32 %v2597, 1e-05
    %v2600 = vrsqrt.pop %v2598
    %v2601 = vrsqrt.pop %v2599
    %v2602 = vmul.f32 %v2586, %v2600
    %v2603 = vmul.f32 %v2587, %v2601
    %v2605 = vlaneseq
    %v2606 = vshrl.u32 %v2605, 7
    %v2607 = vsub.s32 0, %v2606
    %v2608 = vrot.slane %v803, %v2607
    %v2610 = vmul.f32 %v2602, %v2608
    %v2611 = vmul.f32 %v2603, %v2608
    %v2613 = vlaneseq
    %v2614 = vshrl.u32 %v2613, 7
    %v2615 = vsub.s32 0, %v2614
    %v2616 = vrot.slane %v804, %v2615
    %v2618 = vadd.f32 %v2610, %v2616
    %v2619 = vadd.f32 %v2611, %v2616
    %v2620 = vld [vmem:[%s35] sm:$0x1]
    %v2621 = vld [vmem:[%s37] sm:$0x1]
    %v2622 = vsel %vm811, %v2618, 0.0
    %2623 = vadd.xlane.f32.xlu0 %v2622
    %v2624 = vpop.xlane.xlu0 %2623
    %v2625 = vsel %vm2358, %v2619, 0.0
    %2626 = vadd.xlane.f32.xlu0 %v2625
    %v2627 = vpop.xlane.xlu0 %2626
    %v2628 = vmul.f32 %v2624, %v2362
    %v2629 = vmul.f32 %v2627, %v2362
    %v2630 = vsub.f32 %v2618, %v2628
    %v2631 = vsub.f32 %v2619, %v2629
    %v2632 = vmul.f32 %v2630, %v2630
    %v2633 = vmul.f32 %v2631, %v2631
    %v2634 = vsel %vm811, %v2632, 0.0
    %2635 = vadd.xlane.f32.xlu0 %v2634
    %v2636 = vpop.xlane.xlu0 %2635
    %v2637 = vsel %vm2358, %v2633, 0.0
    %2638 = vadd.xlane.f32.xlu0 %v2637
    %v2639 = vpop.xlane.xlu0 %2638
    %v2640 = vmul.f32 %v2636, %v2362
    %v2641 = vmul.f32 %v2639, %v2362
    %v2642 = vadd.f32 %v2640, 1e-05
    %v2643 = vadd.f32 %v2641, 1e-05
    %v2644 = vrsqrt.pop %v2642
    %v2645 = vrsqrt.pop %v2643
    %v2646 = vmul.f32 %v2630, %v2644
    %v2647 = vmul.f32 %v2631, %v2645
    %v2649 = vlaneseq
    %v2650 = vshrl.u32 %v2649, 7
    %v2651 = vsub.s32 0, %v2650
    %v2652 = vrot.slane %v2620, %v2651
    %v2654 = vmul.f32 %v2646, %v2652
    %v2655 = vmul.f32 %v2647, %v2652
    %v2657 = vlaneseq
    %v2658 = vshrl.u32 %v2657, 7
    %v2659 = vsub.s32 0, %v2658
    %v2660 = vrot.slane %v2621, %v2659
    %v2662 = vadd.f32 %v2654, %v2660
    %v2663 = vadd.f32 %v2655, %v2660
    %v2664 = vld [vmem:[%s39] sm:$0xff]
    %v2665 = vld [vmem:[%s39 + $0x8] sm:$0xff]
    %v2666 = vld [vmem:[%s39 + $0x10] sm:$0xff]
    %v2667 = vld [vmem:[%s39 + $0x18] sm:$0xff]
    %v2668 = vld [vmem:[%s41] sm:$0x1]
    %v2669 = vld [vmem:[%s43] sm:$0xff]
    %v2670 = vld [vmem:[%s43 + $0x8] sm:$0xff]
    %v2671 = vld [vmem:[%s43 + $0x10] sm:$0xff]
    %v2672 = vld [vmem:[%s43 + $0x18] sm:$0xff]
    %v2673 = vld [vmem:[%s45] sm:$0x1]
    %v2674 = vld [vmem:[#allocation5] sm:$0x1]
    %v2675 = vld [vmem:[#allocation7] sm:$0x1]
    %v2676 = vld [vmem:[%s51] sm:$0xff]
    %v2677 = vld [vmem:[%s51 + $0x8] sm:$0xff]
    %v2678 = vld [vmem:[%s51 + $0x10] sm:$0xff]
    %v2679 = vld [vmem:[%s51 + $0x18] sm:$0xff]
    %v2680 = vld [vmem:[#allocation8] sm:$0x1]
    %v2681 = vld [vmem:[%s55] sm:$0xff]
    %v2682 = vld [vmem:[%s55 + $0x8] sm:$0xff]
    %v2683 = vld [vmem:[%s55 + $0x10] sm:$0xff]
    %v2684 = vld [vmem:[%s55 + $0x18] sm:$0xff]
    %v2685 = vld [vmem:[#allocation10] sm:$0x1]
    %v2686 = vld [vmem:[%s59] sm:$0xff]
    %v2687 = vld [vmem:[%s59 + $0x8] sm:$0xff]
    %v2688 = vld [vmem:[%s59 + $0x10] sm:$0xff]
    %v2689 = vld [vmem:[%s59 + $0x18] sm:$0xff]
    %v2690 = vld [vmem:[#allocation11] sm:$0x1]
    %v2691 = vld [vmem:[#allocation13] sm:$0x1]
    %v2692 = vld [vmem:[#allocation14] sm:$0x1]
    %v2693 = vld [vmem:[%s67] sm:$0xff]
    %v2694 = vld [vmem:[%s67 + $0x8] sm:$0xff]
    %v2695 = vld [vmem:[%s67 + $0x10] sm:$0xff]
    %v2696 = vld [vmem:[%s67 + $0x18] sm:$0xff]
    %v2697 = vld [vmem:[#allocation16] sm:$0x1]
    %v2698 = vld [vmem:[%s71] sm:$0xff]
    %v2699 = vld [vmem:[%s71 + $0x8] sm:$0xff]
    %v2700 = vld [vmem:[%s71 + $0x10] sm:$0xff]
    %v2701 = vld [vmem:[%s71 + $0x18] sm:$0xff]
    %v2702 = vld [vmem:[%s71 + $0x20] sm:$0xff]
    %v2703 = vld [vmem:[%s71 + $0x28] sm:$0xff]
    %v2704 = vld [vmem:[%s71 + $0x30] sm:$0xff]
    %v2705 = vld [vmem:[%s71 + $0x38] sm:$0xff]
    %v2706 = vld [vmem:[#allocation17] sm:$0x1]
    %v2707 = vld [vmem:[%s75] sm:$0x1]
    %v2708 = vld [vmem:[#allocation19] sm:$0x1]
    %v2710 = vlaneseq
    %v2711 = vshrl.u32 %v2710, 7
    %v2712 = vsub.s32 0, %v2711
    %v2713 = vrot.slane %v2668, %v2712
    %v2716 = vsel %vm811, %v774, 0
    %2718 = vmatprep.subr.mxu0 0.0
    %2719 = vmatpush1.msra.mxu0 %v2664
    %2720 = vmatprep.subr.mxu0 0.0
    %2721 = vmatpush1.msra.mxu0 %v2665
    %2722 = vmatprep.subr.mxu0 0.0
    %2723 = vmatpush1.msra.mxu0 %v2666
    %2724 = vmatprep.subr.mxu0 0.0
    %2725 = vmatpush1.msra.mxu0 %v2667
    %2726 = vmatprep.subr.mxu0 0.0
    %2727 = vmatpush1.msra.mxu0 0.0
    %2728 = vmatprep.subr.mxu0 0.0
    %2729 = vmatpush1.msra.mxu0 0.0
    %2730 = vmatprep.subr.mxu0 0.0
    %2731 = vmatpush1.msra.mxu0 0.0
    %2732 = vmatprep.subr.mxu0 0.0
    %2733 = vmatpush1.msra.mxu0 0.0
    %2734 = vmatprep.subr.mxu0 0.0
    %2735 = vmatpush1.msra.mxu0 0.0
    %2736 = vmatprep.subr.mxu0 0.0
    %2737 = vmatpush1.msra.mxu0 0.0
    %2738 = vmatprep.subr.mxu0 0.0
    %2739 = vmatpush1.msra.mxu0 0.0
    %2740 = vmatprep.subr.mxu0 0.0
    %2741 = vmatpush1.msra.mxu0 0.0
    %2742 = vmatprep.subr.mxu0 0.0
    %2743 = vmatpush1.msra.mxu0 0.0
    %2744 = vmatprep.subr.mxu0 0.0
    %2745 = vmatpush1.msra.mxu0 0.0
    %2746 = vmatprep.subr.mxu0 0.0
    %2747 = vmatpush1.msra.mxu0 0.0
    %2748 = vmatprep.subr.mxu0 0.0
    %2749 = vmatpush1.msra.mxu0 0.0
    %2750 = vmatprep.subr.mxu0 0.0
    %2751 = vmatpush1.msra.mxu0 0.0
    %2752 = vmatprep.subr.mxu0 0.0
    %2753 = vmatpush1.msra.mxu0 0.0
    %2754 = vmatprep.subr.mxu0 0.0
    %2755 = vmatpush1.msra.mxu0 0.0
    %2756 = vmatprep.subr.mxu0 0.0
    %2757 = vmatpush1.msra.mxu0 0.0
    %2758 = vmatprep.subr.mxu0 0.0
    %2759 = vmatpush1.msra.mxu0 0.0
    %2760 = vmatprep.subr.mxu0 0.0
    %2761 = vmatpush1.msra.mxu0 0.0
    %2762 = vmatprep.subr.mxu0 0.0
    %2763 = vmatpush1.msra.mxu0 0.0
    %2764 = vmatprep.subr.mxu0 0.0
    %2765 = vmatpush1.msra.mxu0 0.0
    %2766 = vmatprep.subr.mxu0 0.0
    %2767 = vmatpush1.msra.mxu0 0.0
    %2768 = vmatprep.subr.mxu0 0.0
    %2769 = vmatpush1.msra.mxu0 0.0
    %2770 = vmatprep.subr.mxu0 0.0
    %2771 = vmatpush1.msra.mxu0 0.0
    %2772 = vmatprep.subr.mxu0 0.0
    %2773 = vmatpush1.msra.mxu0 0.0
    %2774 = vmatprep.subr.mxu0 0.0
    %2775 = vmatpush1.msra.mxu0 0.0
    %2776 = vmatprep.subr.mxu0 0.0
    %2777 = vmatpush1.msra.mxu0 0.0
    %2778 = vmatprep.subr.mxu0 0.0
    %2779 = vmatpush1.msra.mxu0 0.0
    %2780 = vmatprep.subr.mxu0 0.0
    %2781 = vmatpush1.msra.mxu0 0.0
    %2782 = vmatprep.mubr.f32.mxu0 0.0
    %2783 = vmatmul.mubr.f32.gmra.mrb[0].mxu0 %v2716
    %v2784 = vpop.f32.mrb[0].mxu0
    %v2785 = vadd.f32 %v2713, %v2784
    %v2786 = vpop.f32.mrb[0].mxu0
    %2787 = vdwg.mxu0
    %2789 = vrot.lane.b32.xlu0 %v2785, 96
    %v2790 = vpop.permute.xlu0 %2789
    %v2791 = vsel %vm529, %v2785, 0
    %v2793 = vsel %vm529, %v2790, 0
    %2795 = vmatprep.subr.mxu0 0.0
    %2796 = vmatpush1.xpose.msra.mxu0 %v2793
    %2797 = vmatprep.subr.mxu0 0.0
    %2798 = vmatpush1.xpose.msra.mxu0 0.0
    %2799 = vmatprep.subr.mxu0 0.0
    %2800 = vmatpush1.xpose.msra.mxu0 0.0
    %2801 = vmatprep.subr.mxu0 0.0
    %2802 = vmatpush1.xpose.msra.mxu0 0.0
    %2803 = vmatprep.subr.mxu0 0.0
    %2804 = vmatpush1.xpose.msra.mxu0 0.0
    %2805 = vmatprep.subr.mxu0 0.0
    %2806 = vmatpush1.xpose.msra.mxu0 0.0
    %2807 = vmatprep.subr.mxu0 0.0
    %2808 = vmatpush1.xpose.msra.mxu0 0.0
    %2809 = vmatprep.subr.mxu0 0.0
    %2810 = vmatpush1.xpose.msra.mxu0 0.0
    %2811 = vmatprep.subr.mxu0 0.0
    %2812 = vmatpush1.xpose.msra.mxu0 0.0
    %2813 = vmatprep.subr.mxu0 0.0
    %2814 = vmatpush1.xpose.msra.mxu0 0.0
    %2815 = vmatprep.subr.mxu0 0.0
    %2816 = vmatpush1.xpose.msra.mxu0 0.0
    %2817 = vmatprep.subr.mxu0 0.0
    %2818 = vmatpush1.xpose.msra.mxu0 0.0
    %2819 = vmatprep.subr.mxu0 0.0
    %2820 = vmatpush1.xpose.msra.mxu0 0.0
    %2821 = vmatprep.subr.mxu0 0.0
    %2822 = vmatpush1.xpose.msra.mxu0 0.0
    %2823 = vmatprep.subr.mxu0 0.0
    %2824 = vmatpush1.xpose.msra.mxu0 0.0
    %2825 = vmatprep.subr.mxu0 0.0
    %2826 = vmatpush1.xpose.msra.mxu0 0.0
    %2827 = vmatprep.subr.mxu0 0.0
    %2828 = vmatpush1.xpose.msra.mxu0 0.0
    %2829 = vmatprep.subr.mxu0 0.0
    %2830 = vmatpush1.xpose.msra.mxu0 0.0
    %2831 = vmatprep.subr.mxu0 0.0
    %2832 = vmatpush1.xpose.msra.mxu0 0.0
    %2833 = vmatprep.subr.mxu0 0.0
    %2834 = vmatpush1.xpose.msra.mxu0 0.0
    %2835 = vmatprep.subr.mxu0 0.0
    %2836 = vmatpush1.xpose.msra.mxu0 0.0
    %2837 = vmatprep.subr.mxu0 0.0
    %2838 = vmatpush1.xpose.msra.mxu0 0.0
    %2839 = vmatprep.subr.mxu0 0.0
    %2840 = vmatpush1.xpose.msra.mxu0 0.0
    %2841 = vmatprep.subr.mxu0 0.0
    %2842 = vmatpush1.xpose.msra.mxu0 0.0
    %2843 = vmatprep.subr.mxu0 0.0
    %2844 = vmatpush1.xpose.msra.mxu0 0.0
    %2845 = vmatprep.subr.mxu0 0.0
    %2846 = vmatpush1.xpose.msra.mxu0 0.0
    %2847 = vmatprep.subr.mxu0 0.0
    %2848 = vmatpush1.xpose.msra.mxu0 0.0
    %2849 = vmatprep.subr.mxu0 0.0
    %2850 = vmatpush1.xpose.msra.mxu0 0.0
    %2851 = vmatprep.subr.mxu0 0.0
    %2852 = vmatpush1.xpose.msra.mxu0 0.0
    %2853 = vmatprep.subr.mxu0 0.0
    %2854 = vmatpush1.xpose.msra.mxu0 0.0
    %2855 = vmatprep.subr.mxu0 0.0
    %2856 = vmatpush1.xpose.msra.mxu0 0.0
    %2857 = vmatprep.subr.mxu0 0.0
    %2858 = vmatpush1.xpose.msra.mxu0 0.0
    %2859 = vmatprep.mubr.f32.mxu0 0.0
    %2860 = vmatmul.mubr.f32.gmra.mrb[0].mxu0 %v2791
    %v2861 = vpop.f32.mrb[0].mxu0
    %v2862 = vadd.f32 0.0, %v2861
    %v2863 = vpop.f32.mrb[0].mxu0
    %2864 = vdwg.mxu0
    %v2865 = vmul.f32 %v2862, 0.35355338
    %vm2866 = vcmask 9216
    %v2867 = vsel %vm2866, %v2865, -inf
    %2868 = vmax.xlane.f32.xlu0 %v2867
    %v2869 = vpop.xlane.xlu0 %2868
    %v2870 = vsub.f32 %v2865, %v2869
    %v2871 = vmul.f32 %v2870, 1.442695
    %v2872 = vpow.pop %v2871
    %v2873 = vsel %vm2866, %v2872, 0.0
    %2874 = vadd.xlane.f32.xlu0 %v2873
    %v2875 = vpop.xlane.xlu0 %2874
    %v2876 = vrcp.pop %v2875
    %v2877 = vmul.f32 %v2872, %v2876
    %2878 = vrot.lane.b32.xlu0 %v2785, 64
    %v2879 = vpop.permute.xlu0 %2878
    %v2881 = vsel %vm667, %v2877, 0
    %v2883 = vsel %vm695, %v2879, 0
    %2885 = vmatprep.subr.mxu0 0.0
    %2886 = vmatpush1.msra.mxu0 %v2883
    %2887 = vmatprep.subr.mxu0 0.0
    %2888 = vmatpush1.msra.mxu0 0.0
    %2889 = vmatprep.subr.mxu0 0.0
    %2890 = vmatpush1.msra.mxu0 0.0
    %2891 = vmatprep.subr.mxu0 0.0
    %2892 = vmatpush1.msra.mxu0 0.0
    %2893 = vmatprep.subr.mxu0 0.0
    %2894 = vmatpush1.msra.mxu0 0.0
    %2895 = vmatprep.subr.mxu0 0.0
    %2896 = vmatpush1.msra.mxu0 0.0
    %2897 = vmatprep.subr.mxu0 0.0
    %2898 = vmatpush1.msra.mxu0 0.0
    %2899 = vmatprep.subr.mxu0 0.0
    %2900 = vmatpush1.msra.mxu0 0.0
    %2901 = vmatprep.subr.mxu0 0.0
    %2902 = vmatpush1.msra.mxu0 0.0
    %2903 = vmatprep.subr.mxu0 0.0
    %2904 = vmatpush1.msra.mxu0 0.0
    %2905 = vmatprep.subr.mxu0 0.0
    %2906 = vmatpush1.msra.mxu0 0.0
    %2907 = vmatprep.subr.mxu0 0.0
    %2908 = vmatpush1.msra.mxu0 0.0
    %2909 = vmatprep.subr.mxu0 0.0
    %2910 = vmatpush1.msra.mxu0 0.0
    %2911 = vmatprep.subr.mxu0 0.0
    %2912 = vmatpush1.msra.mxu0 0.0
    %2913 = vmatprep.subr.mxu0 0.0
    %2914 = vmatpush1.msra.mxu0 0.0
    %2915 = vmatprep.subr.mxu0 0.0
    %2916 = vmatpush1.msra.mxu0 0.0
    %2917 = vmatprep.subr.mxu0 0.0
    %2918 = vmatpush1.msra.mxu0 0.0
    %2919 = vmatprep.subr.mxu0 0.0
    %2920 = vmatpush1.msra.mxu0 0.0
    %2921 = vmatprep.subr.mxu0 0.0
    %2922 = vmatpush1.msra.mxu0 0.0
    %2923 = vmatprep.subr.mxu0 0.0
    %2924 = vmatpush1.msra.mxu0 0.0
    %2925 = vmatprep.subr.mxu0 0.0
    %2926 = vmatpush1.msra.mxu0 0.0
    %2927 = vmatprep.subr.mxu0 0.0
    %2928 = vmatpush1.msra.mxu0 0.0
    %2929 = vmatprep.subr.mxu0 0.0
    %2930 = vmatpush1.msra.mxu0 0.0
    %2931 = vmatprep.subr.mxu0 0.0
    %2932 = vmatpush1.msra.mxu0 0.0
    %2933 = vmatprep.subr.mxu0 0.0
    %2934 = vmatpush1.msra.mxu0 0.0
    %2935 = vmatprep.subr.mxu0 0.0
    %2936 = vmatpush1.msra.mxu0 0.0
    %2937 = vmatprep.subr.mxu0 0.0
    %2938 = vmatpush1.msra.mxu0 0.0
    %2939 = vmatprep.subr.mxu0 0.0
    %2940 = vmatpush1.msra.mxu0 0.0
    %2941 = vmatprep.subr.mxu0 0.0
    %2942 = vmatpush1.msra.mxu0 0.0
    %2943 = vmatprep.subr.mxu0 0.0
    %2944 = vmatpush1.msra.mxu0 0.0
    %2945 = vmatprep.subr.mxu0 0.0
    %2946 = vmatpush1.msra.mxu0 0.0
    %2947 = vmatprep.subr.mxu0 0.0
    %2948 = vmatpush1.msra.mxu0 0.0
    %2949 = vmatprep.mubr.f32.mxu0 0.0
    %2950 = vmatmul.mubr.f32.gmra.mrb[0].mxu0 %v2881
    %v2951 = vpop.f32.mrb[0].mxu0
    %v2952 = vadd.f32 0.0, %v2951
    %v2953 = vpop.f32.mrb[0].mxu0
    %2954 = vdwg.mxu0
    %2955 = vrot.lane.b32.xlu0 %v2785, 120
    %v2956 = vpop.permute.xlu0 %2955
    %2957 = vrot.lane.b32.xlu0 %v2785, 88
    %v2958 = vpop.permute.xlu0 %2957
    %v2959 = vsel %vm529, %v2956, 0
    %v2961 = vsel %vm529, %v2958, 0
    %2963 = vmatprep.subr.mxu0 0.0
    %2964 = vmatpush1.xpose.msra.mxu0 %v2961
    %2965 = vmatprep.subr.mxu0 0.0
    %2966 = vmatpush1.xpose.msra.mxu0 0.0
    %2967 = vmatprep.subr.mxu0 0.0
    %2968 = vmatpush1.xpose.msra.mxu0 0.0
    %2969 = vmatprep.subr.mxu0 0.0
    %2970 = vmatpush1.xpose.msra.mxu0 0.0
    %2971 = vmatprep.subr.mxu0 0.0
    %2972 = vmatpush1.xpose.msra.mxu0 0.0
    %2973 = vmatprep.subr.mxu0 0.0
    %2974 = vmatpush1.xpose.msra.mxu0 0.0
    %2975 = vmatprep.subr.mxu0 0.0
    %2976 = vmatpush1.xpose.msra.mxu0 0.0
    %2977 = vmatprep.subr.mxu0 0.0
    %2978 = vmatpush1.xpose.msra.mxu0 0.0
    %2979 = vmatprep.subr.mxu0 0.0
    %2980 = vmatpush1.xpose.msra.mxu0 0.0
    %2981 = vmatprep.subr.mxu0 0.0
    %2982 = vmatpush1.xpose.msra.mxu0 0.0
    %2983 = vmatprep.subr.mxu0 0.0
    %2984 = vmatpush1.xpose.msra.mxu0 0.0
    %2985 = vmatprep.subr.mxu0 0.0
    %2986 = vmatpush1.xpose.msra.mxu0 0.0
    %2987 = vmatprep.subr.mxu0 0.0
    %2988 = vmatpush1.xpose.msra.mxu0 0.0
    %2989 = vmatprep.subr.mxu0 0.0
    %2990 = vmatpush1.xpose.msra.mxu0 0.0
    %2991 = vmatprep.subr.mxu0 0.0
    %2992 = vmatpush1.xpose.msra.mxu0 0.0
    %2993 = vmatprep.subr.mxu0 0.0
    %2994 = vmatpush1.xpose.msra.mxu0 0.0
    %2995 = vmatprep.subr.mxu0 0.0
    %2996 = vmatpush1.xpose.msra.mxu0 0.0
    %2997 = vmatprep.subr.mxu0 0.0
    %2998 = vmatpush1.xpose.msra.mxu0 0.0
    %2999 = vmatprep.subr.mxu0 0.0
    %3000 = vmatpush1.xpose.msra.mxu0 0.0
    %3001 = vmatprep.subr.mxu0 0.0
    %3002 = vmatpush1.xpose.msra.mxu0 0.0
    %3003 = vmatprep.subr.mxu0 0.0
    %3004 = vmatpush1.xpose.msra.mxu0 0.0
    %3005 = vmatprep.subr.mxu0 0.0
    %3006 = vmatpush1.xpose.msra.mxu0 0.0
    %3007 = vmatprep.subr.mxu0 0.0
    %3008 = vmatpush1.xpose.msra.mxu0 0.0
    %3009 = vmatprep.subr.mxu0 0.0
    %3010 = vmatpush1.xpose.msra.mxu0 0.0
    %3011 = vmatprep.subr.mxu0 0.0
    %3012 = vmatpush1.xpose.msra.mxu0 0.0
    %3013 = vmatprep.subr.mxu0 0.0
    %3014 = vmatpush1.xpose.msra.mxu0 0.0
    %3015 = vmatprep.subr.mxu0 0.0
    %3016 = vmatpush1.xpose.msra.mxu0 0.0
    %3017 = vmatprep.subr.mxu0 0.0
    %3018 = vmatpush1.xpose.msra.mxu0 0.0
    %3019 = vmatprep.subr.mxu0 0.0
    %3020 = vmatpush1.xpose.msra.mxu0 0.0
    %3021 = vmatprep.subr.mxu0 0.0
    %3022 = vmatpush1.xpose.msra.mxu0 0.0
    %3023 = vmatprep.subr.mxu0 0.0
    %3024 = vmatpush1.xpose.msra.mxu0 0.0
    %3025 = vmatprep.subr.mxu0 0.0
    %3026 = vmatpush1.xpose.msra.mxu0 0.0
    %3027 = vmatprep.mubr.f32.mxu0 0.0
    %3028 = vmatmul.mubr.f32.gmra.mrb[0].mxu0 %v2959
    %v3029 = vpop.f32.mrb[0].mxu0
    %v3030 = vadd.f32 0.0, %v3029
    %v3031 = vpop.f32.mrb[0].mxu0
    %3032 = vdwg.mxu0
    %v3033 = vmul.f32 %v3030, 0.35355338
    %v3034 = vsel %vm2866, %v3033, -inf
    %3035 = vmax.xlane.f32.xlu0 %v3034
    %v3036 = vpop.xlane.xlu0 %3035
    %v3037 = vsub.f32 %v3033, %v3036
    %v3038 = vmul.f32 %v3037, 1.442695
    %v3039 = vpow.pop %v3038
    %v3040 = vsel %vm2866, %v3039, 0.0
    %3041 = vadd.xlane.f32.xlu0 %v3040
    %v3042 = vpop.xlane.xlu0 %3041
    %v3043 = vrcp.pop %v3042
    %v3044 = vmul.f32 %v3039, %v3043
    %3045 = vrot.lane.b32.xlu0 %v2785, 56
    %v3046 = vpop.permute.xlu0 %3045
    %v3048 = vsel %vm667, %v3044, 0
    %v3050 = vsel %vm695, %v3046, 0
    %3052 = vmatprep.subr.mxu0 0.0
    %3053 = vmatpush1.msra.mxu0 %v3050
    %3054 = vmatprep.subr.mxu0 0.0
    %3055 = vmatpush1.msra.mxu0 0.0
    %3056 = vmatprep.subr.mxu0 0.0
    %3057 = vmatpush1.msra.mxu0 0.0
    %3058 = vmatprep.subr.mxu0 0.0
    %3059 = vmatpush1.msra.mxu0 0.0
    %3060 = vmatprep.subr.mxu0 0.0
    %3061 = vmatpush1.msra.mxu0 0.0
    %3062 = vmatprep.subr.mxu0 0.0
    %3063 = vmatpush1.msra.mxu0 0.0
    %3064 = vmatprep.subr.mxu0 0.0
    %3065 = vmatpush1.msra.mxu0 0.0
    %3066 = vmatprep.subr.mxu0 0.0
    %3067 = vmatpush1.msra.mxu0 0.0
    %3068 = vmatprep.subr.mxu0 0.0
    %3069 = vmatpush1.msra.mxu0 0.0
    %3070 = vmatprep.subr.mxu0 0.0
    %3071 = vmatpush1.msra.mxu0 0.0
    %3072 = vmatprep.subr.mxu0 0.0
    %3073 = vmatpush1.msra.mxu0 0.0
    %3074 = vmatprep.subr.mxu0 0.0
    %3075 = vmatpush1.msra.mxu0 0.0
    %3076 = vmatprep.subr.mxu0 0.0
    %3077 = vmatpush1.msra.mxu0 0.0
    %3078 = vmatprep.subr.mxu0 0.0
    %3079 = vmatpush1.msra.mxu0 0.0
    %3080 = vmatprep.subr.mxu0 0.0
    %3081 = vmatpush1.msra.mxu0 0.0
    %3082 = vmatprep.subr.mxu0 0.0
    %3083 = vmatpush1.msra.mxu0 0.0
    %3084 = vmatprep.subr.mxu0 0.0
    %3085 = vmatpush1.msra.mxu0 0.0
    %3086 = vmatprep.subr.mxu0 0.0
    %3087 = vmatpush1.msra.mxu0 0.0
    %3088 = vmatprep.subr.mxu0 0.0
    %3089 = vmatpush1.msra.mxu0 0.0
    %3090 = vmatprep.subr.mxu0 0.0
    %3091 = vmatpush1.msra.mxu0 0.0
    %3092 = vmatprep.subr.mxu0 0.0
    %3093 = vmatpush1.msra.mxu0 0.0
    %3094 = vmatprep.subr.mxu0 0.0
    %3095 = vmatpush1.msra.mxu0 0.0
    %3096 = vmatprep.subr.mxu0 0.0
    %3097 = vmatpush1.msra.mxu0 0.0
    %3098 = vmatprep.subr.mxu0 0.0
    %3099 = vmatpush1.msra.mxu0 0.0
    %3100 = vmatprep.subr.mxu0 0.0
    %3101 = vmatpush1.msra.mxu0 0.0
    %3102 = vmatprep.subr.mxu0 0.0
    %3103 = vmatpush1.msra.mxu0 0.0
    %3104 = vmatprep.subr.mxu0 0.0
    %3105 = vmatpush1.msra.mxu0 0.0
    %3106 = vmatprep.subr.mxu0 0.0
    %3107 = vmatpush1.msra.mxu0 0.0
    %3108 = vmatprep.subr.mxu0 0.0
    %3109 = vmatpush1.msra.mxu0 0.0
    %3110 = vmatprep.subr.mxu0 0.0
    %3111 = vmatpush1.msra.mxu0 0.0
    %3112 = vmatprep.subr.mxu0 0.0
    %3113 = vmatpush1.msra.mxu0 0.0
    %3114 = vmatprep.subr.mxu0 0.0
    %3115 = vmatpush1.msra.mxu0 0.0
    %3116 = vmatprep.mubr.f32.mxu0 0.0
    %3117 = vmatmul.mubr.f32.gmra.mrb[0].mxu0 %v3048
    %v3118 = vpop.f32.mrb[0].mxu0
    %v3119 = vadd.f32 0.0, %v3118
    %v3120 = vpop.f32.mrb[0].mxu0
    %3121 = vdwg.mxu0
    %3122 = vrot.lane.b32.xlu0 %v2785, 112
    %v3123 = vpop.permute.xlu0 %3122
    %3124 = vrot.lane.b32.xlu0 %v2785, 80
    %v3125 = vpop.permute.xlu0 %3124
    %v3126 = vsel %vm529, %v3123, 0
    %v3128 = vsel %vm529, %v3125, 0
    %3130 = vmatprep.subr.mxu0 0.0
    %3131 = vmatpush1.xpose.msra.mxu0 %v3128
    %3132 = vmatprep.subr.mxu0 0.0
    %3133 = vmatpush1.xpose.msra.mxu0 0.0
    %3134 = vmatprep.subr.mxu0 0.0
    %3135 = vmatpush1.xpose.msra.mxu0 0.0
    %3136 = vmatprep.subr.mxu0 0.0
    %3137 = vmatpush1.xpose.msra.mxu0 0.0
    %3138 = vmatprep.subr.mxu0 0.0
    %3139 = vmatpush1.xpose.msra.mxu0 0.0
    %3140 = vmatprep.subr.mxu0 0.0
    %3141 = vmatpush1.xpose.msra.mxu0 0.0
    %3142 = vmatprep.subr.mxu0 0.0
    %3143 = vmatpush1.xpose.msra.mxu0 0.0
    %3144 = vmatprep.subr.mxu0 0.0
    %3145 = vmatpush1.xpose.msra.mxu0 0.0
    %3146 = vmatprep.subr.mxu0 0.0
    %3147 = vmatpush1.xpose.msra.mxu0 0.0
    %3148 = vmatprep.subr.mxu0 0.0
    %3149 = vmatpush1.xpose.msra.mxu0 0.0
    %3150 = vmatprep.subr.mxu0 0.0
    %3151 = vmatpush1.xpose.msra.mxu0 0.0
    %3152 = vmatprep.subr.mxu0 0.0
    %3153 = vmatpush1.xpose.msra.mxu0 0.0
    %3154 = vmatprep.subr.mxu0 0.0
    %3155 = vmatpush1.xpose.msra.mxu0 0.0
    %3156 = vmatprep.subr.mxu0 0.0
    %3157 = vmatpush1.xpose.msra.mxu0 0.0
    %3158 = vmatprep.subr.mxu0 0.0
    %3159 = vmatpush1.xpose.msra.mxu0 0.0
    %3160 = vmatprep.subr.mxu0 0.0
    %3161 = vmatpush1.xpose.msra.mxu0 0.0
    %3162 = vmatprep.subr.mxu0 0.0
    %3163 = vmatpush1.xpose.msra.mxu0 0.0
    %3164 = vmatprep.subr.mxu0 0.0
    %3165 = vmatpush1.xpose.msra.mxu0 0.0
    %3166 = vmatprep.subr.mxu0 0.0
    %3167 = vmatpush1.xpose.msra.mxu0 0.0
    %3168 = vmatprep.subr.mxu0 0.0
    %3169 = vmatpush1.xpose.msra.mxu0 0.0
    %3170 = vmatprep.subr.mxu0 0.0
    %3171 = vmatpush1.xpose.msra.mxu0 0.0
    %3172 = vmatprep.subr.mxu0 0.0
    %3173 = vmatpush1.xpose.msra.mxu0 0.0
    %3174 = vmatprep.subr.mxu0 0.0
    %3175 = vmatpush1.xpose.msra.mxu0 0.0
    %3176 = vmatprep.subr.mxu0 0.0
    %3177 = vmatpush1.xpose.msra.mxu0 0.0
    %3178 = vmatprep.subr.mxu0 0.0
    %3179 = vmatpush1.xpose.msra.mxu0 0.0
    %3180 = vmatprep.subr.mxu0 0.0
    %3181 = vmatpush1.xpose.msra.mxu0 0.0
    %3182 = vmatprep.subr.mxu0 0.0
    %3183 = vmatpush1.xpose.msra.mxu0 0.0
    %3184 = vmatprep.subr.mxu0 0.0
    %3185 = vmatpush1.xpose.msra.mxu0 0.0
    %3186 = vmatprep.subr.mxu0 0.0
    %3187 = vmatpush1.xpose.msra.mxu0 0.0
    %3188 = vmatprep.subr.mxu0 0.0
    %3189 = vmatpush1.xpose.msra.mxu0 0.0
    %3190 = vmatprep.subr.mxu0 0.0
    %3191 = vmatpush1.xpose.msra.mxu0 0.0
    %3192 = vmatprep.subr.mxu0 0.0
    %3193 = vmatpush1.xpose.msra.mxu0 0.0
    %3194 = vmatprep.mubr.f32.mxu0 0.0
    %3195 = vmatmul.mubr.f32.gmra.mrb[0].mxu0 %v3126
    %v3196 = vpop.f32.mrb[0].mxu0
    %v3197 = vadd.f32 0.0, %v3196
    %v3198 = vpop.f32.mrb[0].mxu0
    %3199 = vdwg.mxu0
    %v3200 = vmul.f32 %v3197, 0.35355338
    %v3201 = vsel %vm2866, %v3200, -inf
    %3202 = vmax.xlane.f32.xlu0 %v3201
    %v3203 = vpop.xlane.xlu0 %3202
    %v3204 = vsub.f32 %v3200, %v3203
    %v3205 = vmul.f32 %v3204, 1.442695
    %v3206 = vpow.pop %v3205
    %v3207 = vsel %vm2866, %v3206, 0.0
    %3208 = vadd.xlane.f32.xlu0 %v3207
    %v3209 = vpop.xlane.xlu0 %3208
    %v3210 = vrcp.pop %v3209
    %v3211 = vmul.f32 %v3206, %v3210
    %3212 = vrot.lane.b32.xlu0 %v2785, 48
    %v3213 = vpop.permute.xlu0 %3212
    %v3215 = vsel %vm667, %v3211, 0
    %v3217 = vsel %vm695, %v3213, 0
    %3219 = vmatprep.subr.mxu0 0.0
    %3220 = vmatpush1.msra.mxu0 %v3217
    %3221 = vmatprep.subr.mxu0 0.0
    %3222 = vmatpush1.msra.mxu0 0.0
    %3223 = vmatprep.subr.mxu0 0.0
    %3224 = vmatpush1.msra.mxu0 0.0
    %3225 = vmatprep.subr.mxu0 0.0
    %3226 = vmatpush1.msra.mxu0 0.0
    %3227 = vmatprep.subr.mxu0 0.0
    %3228 = vmatpush1.msra.mxu0 0.0
    %3229 = vmatprep.subr.mxu0 0.0
    %3230 = vmatpush1.msra.mxu0 0.0
    %3231 = vmatprep.subr.mxu0 0.0
    %3232 = vmatpush1.msra.mxu0 0.0
    %3233 = vmatprep.subr.mxu0 0.0
    %3234 = vmatpush1.msra.mxu0 0.0
    %3235 = vmatprep.subr.mxu0 0.0
    %3236 = vmatpush1.msra.mxu0 0.0
    %3237 = vmatprep.subr.mxu0 0.0
    %3238 = vmatpush1.msra.mxu0 0.0
    %3239 = vmatprep.subr.mxu0 0.0
    %3240 = vmatpush1.msra.mxu0 0.0
    %3241 = vmatprep.subr.mxu0 0.0
    %3242 = vmatpush1.msra.mxu0 0.0
    %3243 = vmatprep.subr.mxu0 0.0
    %3244 = vmatpush1.msra.mxu0 0.0
    %3245 = vmatprep.subr.mxu0 0.0
    %3246 = vmatpush1.msra.mxu0 0.0
    %3247 = vmatprep.subr.mxu0 0.0
    %3248 = vmatpush1.msra.mxu0 0.0
    %3249 = vmatprep.subr.mxu0 0.0
    %3250 = vmatpush1.msra.mxu0 0.0
    %3251 = vmatprep.subr.mxu0 0.0
    %3252 = vmatpush1.msra.mxu0 0.0
    %3253 = vmatprep.subr.mxu0 0.0
    %3254 = vmatpush1.msra.mxu0 0.0
    %3255 = vmatprep.subr.mxu0 0.0
    %3256 = vmatpush1.msra.mxu0 0.0
    %3257 = vmatprep.subr.mxu0 0.0
    %3258 = vmatpush1.msra.mxu0 0.0
    %3259 = vmatprep.subr.mxu0 0.0
    %3260 = vmatpush1.msra.mxu0 0.0
    %3261 = vmatprep.subr.mxu0 0.0
    %3262 = vmatpush1.msra.mxu0 0.0
    %3263 = vmatprep.subr.mxu0 0.0
    %3264 = vmatpush1.msra.mxu0 0.0
    %3265 = vmatprep.subr.mxu0 0.0
    %3266 = vmatpush1.msra.mxu0 0.0
    %3267 = vmatprep.subr.mxu0 0.0
    %3268 = vmatpush1.msra.mxu0 0.0
    %3269 = vmatprep.subr.mxu0 0.0
    %3270 = vmatpush1.msra.mxu0 0.0
    %3271 = vmatprep.subr.mxu0 0.0
    %3272 = vmatpush1.msra.mxu0 0.0
    %3273 = vmatprep.subr.mxu0 0.0
    %3274 = vmatpush1.msra.mxu0 0.0
    %3275 = vmatprep.subr.mxu0 0.0
    %3276 = vmatpush1.msra.mxu0 0.0
    %3277 = vmatprep.subr.mxu0 0.0
    %3278 = vmatpush1.msra.mxu0 0.0
    %3279 = vmatprep.subr.mxu0 0.0
    %3280 = vmatpush1.msra.mxu0 0.0
    %3281 = vmatprep.subr.mxu0 0.0
    %3282 = vmatpush1.msra.mxu0 0.0
    %3283 = vmatprep.mubr.f32.mxu0 0.0
    %3284 = vmatmul.mubr.f32.gmra.mrb[0].mxu0 %v3215
    %v3285 = vpop.f32.mrb[0].mxu0
    %v3286 = vadd.f32 0.0, %v3285
    %v3287 = vpop.f32.mrb[0].mxu0
    %3288 = vdwg.mxu0
    %3289 = vrot.lane.b32.xlu0 %v2785, 104
    %v3290 = vpop.permute.xlu0 %3289
    %3291 = vrot.lane.b32.xlu0 %v2785, 72
    %v3292 = vpop.permute.xlu0 %3291
    %v3293 = vsel %vm529, %v3290, 0
    %v3295 = vsel %vm529, %v3292, 0
    %3297 = vmatprep.subr.mxu0 0.0
    %3298 = vmatpush1.xpose.msra.mxu0 %v3295
    %3299 = vmatprep.subr.mxu0 0.0
    %3300 = vmatpush1.xpose.msra.mxu0 0.0
    %3301 = vmatprep.subr.mxu0 0.0
    %3302 = vmatpush1.xpose.msra.mxu0 0.0
    %3303 = vmatprep.subr.mxu0 0.0
    %3304 = vmatpush1.xpose.msra.mxu0 0.0
    %3305 = vmatprep.subr.mxu0 0.0
    %3306 = vmatpush1.xpose.msra.mxu0 0.0
    %3307 = vmatprep.subr.mxu0 0.0
    %3308 = vmatpush1.xpose.msra.mxu0 0.0
    %3309 = vmatprep.subr.mxu0 0.0
    %3310 = vmatpush1.xpose.msra.mxu0 0.0
    %3311 = vmatprep.subr.mxu0 0.0
    %3312 = vmatpush1.xpose.msra.mxu0 0.0
    %3313 = vmatprep.subr.mxu0 0.0
    %3314 = vmatpush1.xpose.msra.mxu0 0.0
    %3315 = vmatprep.subr.mxu0 0.0
    %3316 = vmatpush1.xpose.msra.mxu0 0.0
    %3317 = vmatprep.subr.mxu0 0.0
    %3318 = vmatpush1.xpose.msra.mxu0 0.0
    %3319 = vmatprep.subr.mxu0 0.0
    %3320 = vmatpush1.xpose.msra.mxu0 0.0
    %3321 = vmatprep.subr.mxu0 0.0
    %3322 = vmatpush1.xpose.msra.mxu0 0.0
    %3323 = vmatprep.subr.mxu0 0.0
    %3324 = vmatpush1.xpose.msra.mxu0 0.0
    %3325 = vmatprep.subr.mxu0 0.0
    %3326 = vmatpush1.xpose.msra.mxu0 0.0
    %3327 = vmatprep.subr.mxu0 0.0
    %3328 = vmatpush1.xpose.msra.mxu0 0.0
    %3329 = vmatprep.subr.mxu0 0.0
    %3330 = vmatpush1.xpose.msra.mxu0 0.0
    %3331 = vmatprep.subr.mxu0 0.0
    %3332 = vmatpush1.xpose.msra.mxu0 0.0
    %3333 = vmatprep.subr.mxu0 0.0
    %3334 = vmatpush1.xpose.msra.mxu0 0.0
    %3335 = vmatprep.subr.mxu0 0.0
    %3336 = vmatpush1.xpose.msra.mxu0 0.0
    %3337 = vmatprep.subr.mxu0 0.0
    %3338 = vmatpush1.xpose.msra.mxu0 0.0
    %3339 = vmatprep.subr.mxu0 0.0
    %3340 = vmatpush1.xpose.msra.mxu0 0.0
    %3341 = vmatprep.subr.mxu0 0.0
    %3342 = vmatpush1.xpose.msra.mxu0 0.0
    %3343 = vmatprep.subr.mxu0 0.0
    %3344 = vmatpush1.xpose.msra.mxu0 0.0
    %3345 = vmatprep.subr.mxu0 0.0
    %3346 = vmatpush1.xpose.msra.mxu0 0.0
    %3347 = vmatprep.subr.mxu0 0.0
    %3348 = vmatpush1.xpose.msra.mxu0 0.0
    %3349 = vmatprep.subr.mxu0 0.0
    %3350 = vmatpush1.xpose.msra.mxu0 0.0
    %3351 = vmatprep.subr.mxu0 0.0
    %3352 = vmatpush1.xpose.msra.mxu0 0.0
    %3353 = vmatprep.subr.mxu0 0.0
    %3354 = vmatpush1.xpose.msra.mxu0 0.0
    %3355 = vmatprep.subr.mxu0 0.0
    %3356 = vmatpush1.xpose.msra.mxu0 0.0
    %3357 = vmatprep.subr.mxu0 0.0
    %3358 = vmatpush1.xpose.msra.mxu0 0.0
    %3359 = vmatprep.subr.mxu0 0.0
    %3360 = vmatpush1.xpose.msra.mxu0 0.0
    %3361 = vmatprep.mubr.f32.mxu0 0.0
    %3362 = vmatmul.mubr.f32.gmra.mrb[0].mxu0 %v3293
    %v3363 = vpop.f32.mrb[0].mxu0
    %v3364 = vadd.f32 0.0, %v3363
    %v3365 = vpop.f32.mrb[0].mxu0
    %3366 = vdwg.mxu0
    %v3367 = vmul.f32 %v3364, 0.35355338
    %v3368 = vsel %vm2866, %v3367, -inf
    %3369 = vmax.xlane.f32.xlu0 %v3368
    %v3370 = vpop.xlane.xlu0 %3369
    %v3371 = vsub.f32 %v3367, %v3370
    %v3372 = vmul.f32 %v3371, 1.442695
    %v3373 = vpow.pop %v3372
    %v3374 = vsel %vm2866, %v3373, 0.0
    %3375 = vadd.xlane.f32.xlu0 %v3374
    %v3376 = vpop.xlane.xlu0 %3375
    %v3377 = vrcp.pop %v3376
    %v3378 = vmul.f32 %v3373, %v3377
    %3379 = vrot.lane.b32.xlu0 %v2785, 40
    %v3380 = vpop.permute.xlu0 %3379
    %v3382 = vsel %vm667, %v3378, 0
    %v3384 = vsel %vm695, %v3380, 0
    %3386 = vmatprep.subr.mxu0 0.0
    %3387 = vmatpush1.msra.mxu0 %v3384
    %3388 = vmatprep.subr.mxu0 0.0
    %3389 = vmatpush1.msra.mxu0 0.0
    %3390 = vmatprep.subr.mxu0 0.0
    %3391 = vmatpush1.msra.mxu0 0.0
    %3392 = vmatprep.subr.mxu0 0.0
    %3393 = vmatpush1.msra.mxu0 0.0
    %3394 = vmatprep.subr.mxu0 0.0
    %3395 = vmatpush1.msra.mxu0 0.0
    %3396 = vmatprep.subr.mxu0 0.0
    %3397 = vmatpush1.msra.mxu0 0.0
    %3398 = vmatprep.subr.mxu0 0.0
    %3399 = vmatpush1.msra.mxu0 0.0
    %3400 = vmatprep.subr.mxu0 0.0
    %3401 = vmatpush1.msra.mxu0 0.0
    %3402 = vmatprep.subr.mxu0 0.0
    %3403 = vmatpush1.msra.mxu0 0.0
    %3404 = vmatprep.subr.mxu0 0.0
    %3405 = vmatpush1.msra.mxu0 0.0
    %3406 = vmatprep.subr.mxu0 0.0
    %3407 = vmatpush1.msra.mxu0 0.0
    %3408 = vmatprep.subr.mxu0 0.0
    %3409 = vmatpush1.msra.mxu0 0.0
    %3410 = vmatprep.subr.mxu0 0.0
    %3411 = vmatpush1.msra.mxu0 0.0
    %3412 = vmatprep.subr.mxu0 0.0
    %3413 = vmatpush1.msra.mxu0 0.0
    %3414 = vmatprep.subr.mxu0 0.0
    %3415 = vmatpush1.msra.mxu0 0.0
    %3416 = vmatprep.subr.mxu0 0.0
    %3417 = vmatpush1.msra.mxu0 0.0
    %3418 = vmatprep.subr.mxu0 0.0
    %3419 = vmatpush1.msra.mxu0 0.0
    %3420 = vmatprep.subr.mxu0 0.0
    %3421 = vmatpush1.msra.mxu0 0.0
    %3422 = vmatprep.subr.mxu0 0.0
    %3423 = vmatpush1.msra.mxu0 0.0
    %3424 = vmatprep.subr.mxu0 0.0
    %3425 = vmatpush1.msra.mxu0 0.0
    %3426 = vmatprep.subr.mxu0 0.0
    %3427 = vmatpush1.msra.mxu0 0.0
    %3428 = vmatprep.subr.mxu0 0.0
    %3429 = vmatpush1.msra.mxu0 0.0
    %3430 = vmatprep.subr.mxu0 0.0
    %3431 = vmatpush1.msra.mxu0 0.0
    %3432 = vmatprep.subr.mxu0 0.0
    %3433 = vmatpush1.msra.mxu0 0.0
    %3434 = vmatprep.subr.mxu0 0.0
    %3435 = vmatpush1.msra.mxu0 0.0
    %3436 = vmatprep.subr.mxu0 0.0
    %3437 = vmatpush1.msra.mxu0 0.0
    %3438 = vmatprep.subr.mxu0 0.0
    %3439 = vmatpush1.msra.mxu0 0.0
    %3440 = vmatprep.subr.mxu0 0.0
    %3441 = vmatpush1.msra.mxu0 0.0
    %3442 = vmatprep.subr.mxu0 0.0
    %3443 = vmatpush1.msra.mxu0 0.0
    %3444 = vmatprep.subr.mxu0 0.0
    %3445 = vmatpush1.msra.mxu0 0.0
    %3446 = vmatprep.subr.mxu0 0.0
    %3447 = vmatpush1.msra.mxu0 0.0
    %3448 = vmatprep.subr.mxu0 0.0
    %3449 = vmatpush1.msra.mxu0 0.0
    %3450 = vmatprep.mubr.f32.mxu0 0.0
    %3451 = vmatmul.mubr.f32.gmra.mrb[0].mxu0 %v3382
    %v3452 = vpop.f32.mrb[0].mxu0
    %v3453 = vadd.f32 0.0, %v3452
    %v3454 = vpop.f32.mrb[0].mxu0
    %3455 = vdwg.mxu0
    %3457 = vrot.lane.b32.xlu0 %v3119, 8
    %v3458 = vpop.permute.xlu0 %3457
    %3461 = vrot.lane.b32.xlu0 %v3286, 16
    %v3462 = vpop.permute.xlu0 %3461
    %3465 = vrot.lane.b32.xlu0 %v3453, 24
    %v3466 = vpop.permute.xlu0 %3465
    %v3468 = vsel %vm529, %v2952, %v3458
    %v3469 = vsel %vm1574, %v3468, %v3462
    %v3470 = vsel %vm1576, %v3469, %v3466
    %v3471 = vrot.slane %v2785, 2
    %3472 = vrot.lane.b32.xlu0 %v3471, 96
    %v3473 = vpop.permute.xlu0 %3472
    %v3474 = vsel %vm529, %v3471, 0
    %v3476 = vsel %vm529, %v3473, 0
    %3478 = vmatprep.subr.mxu0 0.0
    %3479 = vmatpush1.xpose.msra.mxu0 %v3476
    %3480 = vmatprep.subr.mxu0 0.0
    %3481 = vmatpush1.xpose.msra.mxu0 0.0
    %3482 = vmatprep.subr.mxu0 0.0
    %3483 = vmatpush1.xpose.msra.mxu0 0.0
    %3484 = vmatprep.subr.mxu0 0.0
    %3485 = vmatpush1.xpose.msra.mxu0 0.0
    %3486 = vmatprep.subr.mxu0 0.0
    %3487 = vmatpush1.xpose.msra.mxu0 0.0
    %3488 = vmatprep.subr.mxu0 0.0
    %3489 = vmatpush1.xpose.msra.mxu0 0.0
    %3490 = vmatprep.subr.mxu0 0.0
    %3491 = vmatpush1.xpose.msra.mxu0 0.0
    %3492 = vmatprep.subr.mxu0 0.0
    %3493 = vmatpush1.xpose.msra.mxu0 0.0
    %3494 = vmatprep.subr.mxu0 0.0
    %3495 = vmatpush1.xpose.msra.mxu0 0.0
    %3496 = vmatprep.subr.mxu0 0.0
    %3497 = vmatpush1.xpose.msra.mxu0 0.0
    %3498 = vmatprep.subr.mxu0 0.0
    %3499 = vmatpush1.xpose.msra.mxu0 0.0
    %3500 = vmatprep.subr.mxu0 0.0
    %3501 = vmatpush1.xpose.msra.mxu0 0.0
    %3502 = vmatprep.subr.mxu0 0.0
    %3503 = vmatpush1.xpose.msra.mxu0 0.0
    %3504 = vmatprep.subr.mxu0 0.0
    %3505 = vmatpush1.xpose.msra.mxu0 0.0
    %3506 = vmatprep.subr.mxu0 0.0
    %3507 = vmatpush1.xpose.msra.mxu0 0.0
    %3508 = vmatprep.subr.mxu0 0.0
    %3509 = vmatpush1.xpose.msra.mxu0 0.0
    %3510 = vmatprep.subr.mxu0 0.0
    %3511 = vmatpush1.xpose.msra.mxu0 0.0
    %3512 = vmatprep.subr.mxu0 0.0
    %3513 = vmatpush1.xpose.msra.mxu0 0.0
    %3514 = vmatprep.subr.mxu0 0.0
    %3515 = vmatpush1.xpose.msra.mxu0 0.0
    %3516 = vmatprep.subr.mxu0 0.0
    %3517 = vmatpush1.xpose.msra.mxu0 0.0
    %3518 = vmatprep.subr.mxu0 0.0
    %3519 = vmatpush1.xpose.msra.mxu0 0.0
    %3520 = vmatprep.subr.mxu0 0.0
    %3521 = vmatpush1.xpose.msra.mxu0 0.0
    %3522 = vmatprep.subr.mxu0 0.0
    %3523 = vmatpush1.xpose.msra.mxu0 0.0
    %3524 = vmatprep.subr.mxu0 0.0
    %3525 = vmatpush1.xpose.msra.mxu0 0.0
    %3526 = vmatprep.subr.mxu0 0.0
    %3527 = vmatpush1.xpose.msra.mxu0 0.0
    %3528 = vmatprep.subr.mxu0 0.0
    %3529 = vmatpush1.xpose.msra.mxu0 0.0
    %3530 = vmatprep.subr.mxu0 0.0
    %3531 = vmatpush1.xpose.msra.mxu0 0.0
    %3532 = vmatprep.subr.mxu0 0.0
    %3533 = vmatpush1.xpose.msra.mxu0 0.0
    %3534 = vmatprep.subr.mxu0 0.0
    %3535 = vmatpush1.xpose.msra.mxu0 0.0
    %3536 = vmatprep.subr.mxu0 0.0
    %3537 = vmatpush1.xpose.msra.mxu0 0.0
    %3538 = vmatprep.subr.mxu0 0.0
    %3539 = vmatpush1.xpose.msra.mxu0 0.0
    %3540 = vmatprep.subr.mxu0 0.0
    %3541 = vmatpush1.xpose.msra.mxu0 0.0
    %3542 = vmatprep.mubr.f32.mxu0 0.0
    %3543 = vmatmul.mubr.f32.gmra.mrb[0].mxu0 %v3474
    %v3544 = vpop.f32.mrb[0].mxu0
    %v3545 = vadd.f32 0.0, %v3544
    %v3546 = vpop.f32.mrb[0].mxu0
    %3547 = vdwg.mxu0
    %v3548 = vmul.f32 %v3545, 0.35355338
    %v3549 = vsel %vm2866, %v3548, -inf
    %3550 = vmax.xlane.f32.xlu0 %v3549
    %v3551 = vpop.xlane.xlu0 %3550
    %v3552 = vsub.f32 %v3548, %v3551
    %v3553 = vmul.f32 %v3552, 1.442695
    %v3554 = vpow.pop %v3553
    %v3555 = vsel %vm2866, %v3554, 0.0
    %3556 = vadd.xlane.f32.xlu0 %v3555
    %v3557 = vpop.xlane.xlu0 %3556
    %v3558 = vrcp.pop %v3557
    %v3559 = vmul.f32 %v3554, %v3558
    %3560 = vrot.lane.b32.xlu0 %v3471, 64
    %v3561 = vpop.permute.xlu0 %3560
    %v3563 = vsel %vm667, %v3559, 0
    %v3565 = vsel %vm695, %v3561, 0
    %3567 = vmatprep.subr.mxu0 0.0
    %3568 = vmatpush1.msra.mxu0 %v3565
    %3569 = vmatprep.subr.mxu0 0.0
    %3570 = vmatpush1.msra.mxu0 0.0
    %3571 = vmatprep.subr.mxu0 0.0
    %3572 = vmatpush1.msra.mxu0 0.0
    %3573 = vmatprep.subr.mxu0 0.0
    %3574 = vmatpush1.msra.mxu0 0.0
    %3575 = vmatprep.subr.mxu0 0.0
    %3576 = vmatpush1.msra.mxu0 0.0
    %3577 = vmatprep.subr.mxu0 0.0
    %3578 = vmatpush1.msra.mxu0 0.0
    %3579 = vmatprep.subr.mxu0 0.0
    %3580 = vmatpush1.msra.mxu0 0.0
    %3581 = vmatprep.subr.mxu0 0.0
    %3582 = vmatpush1.msra.mxu0 0.0
    %3583 = vmatprep.subr.mxu0 0.0
    %3584 = vmatpush1.msra.mxu0 0.0
    %3585 = vmatprep.subr.mxu0 0.0
    %3586 = vmatpush1.msra.mxu0 0.0
    %3587 = vmatprep.subr.mxu0 0.0
    %3588 = vmatpush1.msra.mxu0 0.0
    %3589 = vmatprep.subr.mxu0 0.0
    %3590 = vmatpush1.msra.mxu0 0.0
    %3591 = vmatprep.subr.mxu0 0.0
    %3592 = vmatpush1.msra.mxu0 0.0
    %3593 = vmatprep.subr.mxu0 0.0
    %3594 = vmatpush1.msra.mxu0 0.0
    %3595 = vmatprep.subr.mxu0 0.0
    %3596 = vmatpush1.msra.mxu0 0.0
    %3597 = vmatprep.subr.mxu0 0.0
    %3598 = vmatpush1.msra.mxu0 0.0
    %3599 = vmatprep.subr.mxu0 0.0
    %3600 = vmatpush1.msra.mxu0 0.0
    %3601 = vmatprep.subr.mxu0 0.0
    %3602 = vmatpush1.msra.mxu0 0.0
    %3603 = vmatprep.subr.mxu0 0.0
    %3604 = vmatpush1.msra.mxu0 0.0
    %3605 = vmatprep.subr.mxu0 0.0
    %3606 = vmatpush1.msra.mxu0 0.0
    %3607 = vmatprep.subr.mxu0 0.0
    %3608 = vmatpush1.msra.mxu0 0.0
    %3609 = vmatprep.subr.mxu0 0.0
    %3610 = vmatpush1.msra.mxu0 0.0
    %3611 = vmatprep.subr.mxu0 0.0
    %3612 = vmatpush1.msra.mxu0 0.0
    %3613 = vmatprep.subr.mxu0 0.0
    %3614 = vmatpush1.msra.mxu0 0.0
    %3615 = vmatprep.subr.mxu0 0.0
    %3616 = vmatpush1.msra.mxu0 0.0
    %3617 = vmatprep.subr.mxu0 0.0
    %3618 = vmatpush1.msra.mxu0 0.0
    %3619 = vmatprep.subr.mxu0 0.0
    %3620 = vmatpush1.msra.mxu0 0.0
    %3621 = vmatprep.subr.mxu0 0.0
    %3622 = vmatpush1.msra.mxu0 0.0
    %3623 = vmatprep.subr.mxu0 0.0
    %3624 = vmatpush1.msra.mxu0 0.0
    %3625 = vmatprep.subr.mxu0 0.0
    %3626 = vmatpush1.msra.mxu0 0.0
    %3627 = vmatprep.subr.mxu0 0.0
    %3628 = vmatpush1.msra.mxu0 0.0
    %3629 = vmatprep.subr.mxu0 0.0
    %3630 = vmatpush1.msra.mxu0 0.0
    %3631 = vmatprep.mubr.f32.mxu0 0.0
    %3632 = vmatmul.mubr.f32.gmra.mrb[0].mxu0 %v3563
    %v3633 = vpop.f32.mrb[0].mxu0
    %v3634 = vadd.f32 0.0, %v3633
    %v3635 = vpop.f32.mrb[0].mxu0
    %3636 = vdwg.mxu0
    %3637 = vrot.lane.b32.xlu0 %v3471, 120
    %v3638 = vpop.permute.xlu0 %3637
    %3639 = vrot.lane.b32.xlu0 %v3471, 88
    %v3640 = vpop.permute.xlu0 %3639
    %v3641 = vsel %vm529, %v3638, 0
    %v3643 = vsel %vm529, %v3640, 0
    %3645 = vmatprep.subr.mxu0 0.0
    %3646 = vmatpush1.xpose.msra.mxu0 %v3643
    %3647 = vmatprep.subr.mxu0 0.0
    %3648 = vmatpush1.xpose.msra.mxu0 0.0
    %3649 = vmatprep.subr.mxu0 0.0
    %3650 = vmatpush1.xpose.msra.mxu0 0.0
    %3651 = vmatprep.subr.mxu0 0.0
    %3652 = vmatpush1.xpose.msra.mxu0 0.0
    %3653 = vmatprep.subr.mxu0 0.0
    %3654 = vmatpush1.xpose.msra.mxu0 0.0
    %3655 = vmatprep.subr.mxu0 0.0
    %3656 = vmatpush1.xpose.msra.mxu0 0.0
    %3657 = vmatprep.subr.mxu0 0.0
    %3658 = vmatpush1.xpose.msra.mxu0 0.0
    %3659 = vmatprep.subr.mxu0 0.0
    %3660 = vmatpush1.xpose.msra.mxu0 0.0
    %3661 = vmatprep.subr.mxu0 0.0
    %3662 = vmatpush1.xpose.msra.mxu0 0.0
    %3663 = vmatprep.subr.mxu0 0.0
    %3664 = vmatpush1.xpose.msra.mxu0 0.0
    %3665 = vmatprep.subr.mxu0 0.0
    %3666 = vmatpush1.xpose.msra.mxu0 0.0
    %3667 = vmatprep.subr.mxu0 0.0
    %3668 = vmatpush1.xpose.msra.mxu0 0.0
    %3669 = vmatprep.subr.mxu0 0.0
    %3670 = vmatpush1.xpose.msra.mxu0 0.0
    %3671 = vmatprep.subr.mxu0 0.0
    %3672 = vmatpush1.xpose.msra.mxu0 0.0
    %3673 = vmatprep.subr.mxu0 0.0
    %3674 = vmatpush1.xpose.msra.mxu0 0.0
    %3675 = vmatprep.subr.mxu0 0.0
    %3676 = vmatpush1.xpose.msra.mxu0 0.0
    %3677 = vmatprep.subr.mxu0 0.0
    %3678 = vmatpush1.xpose.msra.mxu0 0.0
    %3679 = vmatprep.subr.mxu0 0.0
    %3680 = vmatpush1.xpose.msra.mxu0 0.0
    %3681 = vmatprep.subr.mxu0 0.0
    %3682 = vmatpush1.xpose.msra.mxu0 0.0
    %3683 = vmatprep.subr.mxu0 0.0
    %3684 = vmatpush1.xpose.msra.mxu0 0.0
    %3685 = vmatprep.subr.mxu0 0.0
    %3686 = vmatpush1.xpose.msra.mxu0 0.0
    %3687 = vmatprep.subr.mxu0 0.0
    %3688 = vmatpush1.xpose.msra.mxu0 0.0
    %3689 = vmatprep.subr.mxu0 0.0
    %3690 = vmatpush1.xpose.msra.mxu0 0.0
    %3691 = vmatprep.subr.mxu0 0.0
    %3692 = vmatpush1.xpose.msra.mxu0 0.0
    %3693 = vmatprep.subr.mxu0 0.0
    %3694 = vmatpush1.xpose.msra.mxu0 0.0
    %3695 = vmatprep.subr.mxu0 0.0
    %3696 = vmatpush1.xpose.msra.mxu0 0.0
    %3697 = vmatprep.subr.mxu0 0.0
    %3698 = vmatpush1.xpose.msra.mxu0 0.0
    %3699 = vmatprep.subr.mxu0 0.0
    %3700 = vmatpush1.xpose.msra.mxu0 0.0
    %3701 = vmatprep.subr.mxu0 0.0
    %3702 = vmatpush1.xpose.msra.mxu0 0.0
    %3703 = vmatprep.subr.mxu0 0.0
    %3704 = vmatpush1.xpose.msra.mxu0 0.0
    %3705 = vmatprep.subr.mxu0 0.0
    %3706 = vmatpush1.xpose.msra.mxu0 0.0
    %3707 = vmatprep.subr.mxu0 0.0
    %3708 = vmatpush1.xpose.msra.mxu0 0.0
    %3709 = vmatprep.mubr.f32.mxu0 0.0
    %3710 = vmatmul.mubr.f32.gmra.mrb[0].mxu0 %v3641
    %v3711 = vpop.f32.mrb[0].mxu0
    %v3712 = vadd.f32 0.0, %v3711
    %v3713 = vpop.f32.mrb[0].mxu0
    %3714 = vdwg.mxu0
    %v3715 = vmul.f32 %v3712, 0.35355338
    %v3716 = vsel %vm2866, %v3715, -inf
    %3717 = vmax.xlane.f32.xlu0 %v3716
    %v3718 = vpop.xlane.xlu0 %3717
    %v3719 = vsub.f32 %v3715, %v3718
    %v3720 = vmul.f32 %v3719, 1.442695
    %v3721 = vpow.pop %v3720
    %v3722 = vsel %vm2866, %v3721, 0.0
    %3723 = vadd.xlane.f32.xlu0 %v3722
    %v3724 = vpop.xlane.xlu0 %3723
    %v3725 = vrcp.pop %v3724
    %v3726 = vmul.f32 %v3721, %v3725
    %3727 = vrot.lane.b32.xlu0 %v3471, 56
    %v3728 = vpop.permute.xlu0 %3727
    %v3730 = vsel %vm667, %v3726, 0
    %v3732 = vsel %vm695, %v3728, 0
    %3734 = vmatprep.subr.mxu0 0.0
    %3735 = vmatpush1.msra.mxu0 %v3732
    %3736 = vmatprep.subr.mxu0 0.0
    %3737 = vmatpush1.msra.mxu0 0.0
    %3738 = vmatprep.subr.mxu0 0.0
    %3739 = vmatpush1.msra.mxu0 0.0
    %3740 = vmatprep.subr.mxu0 0.0
    %3741 = vmatpush1.msra.mxu0 0.0
    %3742 = vmatprep.subr.mxu0 0.0
    %3743 = vmatpush1.msra.mxu0 0.0
    %3744 = vmatprep.subr.mxu0 0.0
    %3745 = vmatpush1.msra.mxu0 0.0
    %3746 = vmatprep.subr.mxu0 0.0
    %3747 = vmatpush1.msra.mxu0 0.0
    %3748 = vmatprep.subr.mxu0 0.0
    %3749 = vmatpush1.msra.mxu0 0.0
    %3750 = vmatprep.subr.mxu0 0.0
    %3751 = vmatpush1.msra.mxu0 0.0
    %3752 = vmatprep.subr.mxu0 0.0
    %3753 = vmatpush1.msra.mxu0 0.0
    %3754 = vmatprep.subr.mxu0 0.0
    %3755 = vmatpush1.msra.mxu0 0.0
    %3756 = vmatprep.subr.mxu0 0.0
    %3757 = vmatpush1.msra.mxu0 0.0
    %3758 = vmatprep.subr.mxu0 0.0
    %3759 = vmatpush1.msra.mxu0 0.0
    %3760 = vmatprep.subr.mxu0 0.0
    %3761 = vmatpush1.msra.mxu0 0.0
    %3762 = vmatprep.subr.mxu0 0.0
    %3763 = vmatpush1.msra.mxu0 0.0
    %3764 = vmatprep.subr.mxu0 0.0
    %3765 = vmatpush1.msra.mxu0 0.0
    %3766 = vmatprep.subr.mxu0 0.0
    %3767 = vmatpush1.msra.mxu0 0.0
    %3768 = vmatprep.subr.mxu0 0.0
    %3769 = vmatpush1.msra.mxu0 0.0
    %3770 = vmatprep.subr.mxu0 0.0
    %3771 = vmatpush1.msra.mxu0 0.0
    %3772 = vmatprep.subr.mxu0 0.0
    %3773 = vmatpush1.msra.mxu0 0.0
    %3774 = vmatprep.subr.mxu0 0.0
    %3775 = vmatpush1.msra.mxu0 0.0
    %3776 = vmatprep.subr.mxu0 0.0
    %3777 = vmatpush1.msra.mxu0 0.0
    %3778 = vmatprep.subr.mxu0 0.0
    %3779 = vmatpush1.msra.mxu0 0.0
    %3780 = vmatprep.subr.mxu0 0.0
    %3781 = vmatpush1.msra.mxu0 0.0
    %3782 = vmatprep.subr.mxu0 0.0
    %3783 = vmatpush1.msra.mxu0 0.0
    %3784 = vmatprep.subr.mxu0 0.0
    %3785 = vmatpush1.msra.mxu0 0.0
    %3786 = vmatprep.subr.mxu0 0.0
    %3787 = vmatpush1.msra.mxu0 0.0
    %3788 = vmatprep.subr.mxu0 0.0
    %3789 = vmatpush1.msra.mxu0 0.0
    %3790 = vmatprep.subr.mxu0 0.0
    %3791 = vmatpush1.msra.mxu0 0.0
    %3792 = vmatprep.subr.mxu0 0.0
    %3793 = vmatpush1.msra.mxu0 0.0
    %3794 = vmatprep.subr.mxu0 0.0
    %3795 = vmatpush1.msra.mxu0 0.0
    %3796 = vmatprep.subr.mxu0 0.0
    %3797 = vmatpush1.msra.mxu0 0.0
    %3798 = vmatprep.mubr.f32.mxu0 0.0
    %3799 = vmatmul.mubr.f32.gmra.mrb[0].mxu0 %v3730
    %v3800 = vpop.f32.mrb[0].mxu0
    %v3801 = vadd.f32 0.0, %v3800
    %v3802 = vpop.f32.mrb[0].mxu0
    %3803 = vdwg.mxu0
    %3804 = vrot.lane.b32.xlu0 %v3471, 112
    %v3805 = vpop.permute.xlu0 %3804
    %3806 = vrot.lane.b32.xlu0 %v3471, 80
    %v3807 = vpop.permute.xlu0 %3806
    %v3808 = vsel %vm529, %v3805, 0
    %v3810 = vsel %vm529, %v3807, 0
    %3812 = vmatprep.subr.mxu0 0.0
    %3813 = vmatpush1.xpose.msra.mxu0 %v3810
    %3814 = vmatprep.subr.mxu0 0.0
    %3815 = vmatpush1.xpose.msra.mxu0 0.0
    %3816 = vmatprep.subr.mxu0 0.0
    %3817 = vmatpush1.xpose.msra.mxu0 0.0
    %3818 = vmatprep.subr.mxu0 0.0
    %3819 = vmatpush1.xpose.msra.mxu0 0.0
    %3820 = vmatprep.subr.mxu0 0.0
    %3821 = vmatpush1.xpose.msra.mxu0 0.0
    %3822 = vmatprep.subr.mxu0 0.0
    %3823 = vmatpush1.xpose.msra.mxu0 0.0
    %3824 = vmatprep.subr.mxu0 0.0
    %3825 = vmatpush1.xpose.msra.mxu0 0.0
    %3826 = vmatprep.subr.mxu0 0.0
    %3827 = vmatpush1.xpose.msra.mxu0 0.0
    %3828 = vmatprep.subr.mxu0 0.0
    %3829 = vmatpush1.xpose.msra.mxu0 0.0
    %3830 = vmatprep.subr.mxu0 0.0
    %3831 = vmatpush1.xpose.msra.mxu0 0.0
    %3832 = vmatprep.subr.mxu0 0.0
    %3833 = vmatpush1.xpose.msra.mxu0 0.0
    %3834 = vmatprep.subr.mxu0 0.0
    %3835 = vmatpush1.xpose.msra.mxu0 0.0
    %3836 = vmatprep.subr.mxu0 0.0
    %3837 = vmatpush1.xpose.msra.mxu0 0.0
    %3838 = vmatprep.subr.mxu0 0.0
    %3839 = vmatpush1.xpose.msra.mxu0 0.0
    %3840 = vmatprep.subr.mxu0 0.0
    %3841 = vmatpush1.xpose.msra.mxu0 0.0
    %3842 = vmatprep.subr.mxu0 0.0
    %3843 = vmatpush1.xpose.msra.mxu0 0.0
    %3844 = vmatprep.subr.mxu0 0.0
    %3845 = vmatpush1.xpose.msra.mxu0 0.0
    %3846 = vmatprep.subr.mxu0 0.0
    %3847 = vmatpush1.xpose.msra.mxu0 0.0
    %3848 = vmatprep.subr.mxu0 0.0
    %3849 = vmatpush1.xpose.msra.mxu0 0.0
    %3850 = vmatprep.subr.mxu0 0.0
    %3851 = vmatpush1.xpose.msra.mxu0 0.0
    %3852 = vmatprep.subr.mxu0 0.0
    %3853 = vmatpush1.xpose.msra.mxu0 0.0
    %3854 = vmatprep.subr.mxu0 0.0
    %3855 = vmatpush1.xpose.msra.mxu0 0.0
    %3856 = vmatprep.subr.mxu0 0.0
    %3857 = vmatpush1.xpose.msra.mxu0 0.0
    %3858 = vmatprep.subr.mxu0 0.0
    %3859 = vmatpush1.xpose.msra.mxu0 0.0
    %3860 = vmatprep.subr.mxu0 0.0
    %3861 = vmatpush1.xpose.msra.mxu0 0.0
    %3862 = vmatprep.subr.mxu0 0.0
    %3863 = vmatpush1.xpose.msra.mxu0 0.0
    %3864 = vmatprep.subr.mxu0 0.0
    %3865 = vmatpush1.xpose.msra.mxu0 0.0
    %3866 = vmatprep.subr.mxu0 0.0
    %3867 = vmatpush1.xpose.msra.mxu0 0.0
    %3868 = vmatprep.subr.mxu0 0.0
    %3869 = vmatpush1.xpose.msra.mxu0 0.0
    %3870 = vmatprep.subr.mxu0 0.0
    %3871 = vmatpush1.xpose.msra.mxu0 0.0
    %3872 = vmatprep.subr.mxu0 0.0
    %3873 = vmatpush1.xpose.msra.mxu0 0.0
    %3874 = vmatprep.subr.mxu0 0.0
    %3875 = vmatpush1.xpose.msra.mxu0 0.0
    %3876 = vmatprep.mubr.f32.mxu0 0.0
    %3877 = vmatmul.mubr.f32.gmra.mrb[0].mxu0 %v3808
    %v3878 = vpop.f32.mrb[0].mxu0
    %v3879 = vadd.f32 0.0, %v3878
    %v3880 = vpop.f32.mrb[0].mxu0
    %3881 = vdwg.mxu0
    %v3882 = vmul.f32 %v3879, 0.35355338
    %v3883 = vsel %vm2866, %v3882, -inf
    %3884 = vmax.xlane.f32.xlu0 %v3883
    %v3885 = vpop.xlane.xlu0 %3884
    %v3886 = vsub.f32 %v3882, %v3885
    %v3887 = vmul.f32 %v3886, 1.442695
    %v3888 = vpow.pop %v3887
    %v3889 = vsel %vm2866, %v3888, 0.0
    %3890 = vadd.xlane.f32.xlu0 %v3889
    %v3891 = vpop.xlane.xlu0 %3890
    %v3892 = vrcp.pop %v3891
    %v3893 = vmul.f32 %v3888, %v3892
    %3894 = vrot.lane.b32.xlu0 %v3471, 48
    %v3895 = vpop.permute.xlu0 %3894
    %v3897 = vsel %vm667, %v3893, 0
    %v3899 = vsel %vm695, %v3895, 0
    %3901 = vmatprep.subr.mxu0 0.0
    %3902 = vmatpush1.msra.mxu0 %v3899
    %3903 = vmatprep.subr.mxu0 0.0
    %3904 = vmatpush1.msra.mxu0 0.0
    %3905 = vmatprep.subr.mxu0 0.0
    %3906 = vmatpush1.msra.mxu0 0.0
    %3907 = vmatprep.subr.mxu0 0.0
    %3908 = vmatpush1.msra.mxu0 0.0
    %3909 = vmatprep.subr.mxu0 0.0
    %3910 = vmatpush1.msra.mxu0 0.0
    %3911 = vmatprep.subr.mxu0 0.0
    %3912 = vmatpush1.msra.mxu0 0.0
    %3913 = vmatprep.subr.mxu0 0.0
    %3914 = vmatpush1.msra.mxu0 0.0
    %3915 = vmatprep.subr.mxu0 0.0
    %3916 = vmatpush1.msra.mxu0 0.0
    %3917 = vmatprep.subr.mxu0 0.0
    %3918 = vmatpush1.msra.mxu0 0.0
    %3919 = vmatprep.subr.mxu0 0.0
    %3920 = vmatpush1.msra.mxu0 0.0
    %3921 = vmatprep.subr.mxu0 0.0
    %3922 = vmatpush1.msra.mxu0 0.0
    %3923 = vmatprep.subr.mxu0 0.0
    %3924 = vmatpush1.msra.mxu0 0.0
    %3925 = vmatprep.subr.mxu0 0.0
    %3926 = vmatpush1.msra.mxu0 0.0
    %3927 = vmatprep.subr.mxu0 0.0
    %3928 = vmatpush1.msra.mxu0 0.0
    %3929 = vmatprep.subr.mxu0 0.0
    %3930 = vmatpush1.msra.mxu0 0.0
    %3931 = vmatprep.subr.mxu0 0.0
    %3932 = vmatpush1.msra.mxu0 0.0
    %3933 = vmatprep.subr.mxu0 0.0
    %3934 = vmatpush1.msra.mxu0 0.0
    %3935 = vmatprep.subr.mxu0 0.0
    %3936 = vmatpush1.msra.mxu0 0.0
    %3937 = vmatprep.subr.mxu0 0.0
    %3938 = vmatpush1.msra.mxu0 0.0
    %3939 = vmatprep.subr.mxu0 0.0
    %3940 = vmatpush1.msra.mxu0 0.0
    %3941 = vmatprep.subr.mxu0 0.0
    %3942 = vmatpush1.msra.mxu0 0.0
    %3943 = vmatprep.subr.mxu0 0.0
    %3944 = vmatpush1.msra.mxu0 0.0
    %3945 = vmatprep.subr.mxu0 0.0
    %3946 = vmatpush1.msra.mxu0 0.0
    %3947 = vmatprep.subr.mxu0 0.0
    %3948 = vmatpush1.msra.mxu0 0.0
    %3949 = vmatprep.subr.mxu0 0.0
    %3950 = vmatpush1.msra.mxu0 0.0
    %3951 = vmatprep.subr.mxu0 0.0
    %3952 = vmatpush1.msra.mxu0 0.0
    %3953 = vmatprep.subr.mxu0 0.0
    %3954 = vmatpush1.msra.mxu0 0.0
    %3955 = vmatprep.subr.mxu0 0.0
    %3956 = vmatpush1.msra.mxu0 0.0
    %3957 = vmatprep.subr.mxu0 0.0
    %3958 = vmatpush1.msra.mxu0 0.0
    %3959 = vmatprep.subr.mxu0 0.0
    %3960 = vmatpush1.msra.mxu0 0.0
    %3961 = vmatprep.subr.mxu0 0.0
    %3962 = vmatpush1.msra.mxu0 0.0
    %3963 = vmatprep.subr.mxu0 0.0
    %3964 = vmatpush1.msra.mxu0 0.0
    %3965 = vmatprep.mubr.f32.mxu0 0.0
    %3966 = vmatmul.mubr.f32.gmra.mrb[0].mxu0 %v3897
    %v3967 = vpop.f32.mrb[0].mxu0
    %v3968 = vadd.f32 0.0, %v3967
    %v3969 = vpop.f32.mrb[0].mxu0
    %3970 = vdwg.mxu0
    %3971 = vrot.lane.b32.xlu0 %v3471, 104
    %v3972 = vpop.permute.xlu0 %3971
    %3973 = vrot.lane.b32.xlu0 %v3471, 72
    %v3974 = vpop.permute.xlu0 %3973
    %v3975 = vsel %vm529, %v3972, 0
    %v3977 = vsel %vm529, %v3974, 0
    %3979 = vmatprep.subr.mxu0 0.0
    %3980 = vmatpush1.xpose.msra.mxu0 %v3977
    %3981 = vmatprep.subr.mxu0 0.0
    %3982 = vmatpush1.xpose.msra.mxu0 0.0
    %3983 = vmatprep.subr.mxu0 0.0
    %3984 = vmatpush1.xpose.msra.mxu0 0.0
    %3985 = vmatprep.subr.mxu0 0.0
    %3986 = vmatpush1.xpose.msra.mxu0 0.0
    %3987 = vmatprep.subr.mxu0 0.0
    %3988 = vmatpush1.xpose.msra.mxu0 0.0
    %3989 = vmatprep.subr.mxu0 0.0
    %3990 = vmatpush1.xpose.msra.mxu0 0.0
    %3991 = vmatprep.subr.mxu0 0.0
    %3992 = vmatpush1.xpose.msra.mxu0 0.0
    %3993 = vmatprep.subr.mxu0 0.0
    %3994 = vmatpush1.xpose.msra.mxu0 0.0
    %3995 = vmatprep.subr.mxu0 0.0
    %3996 = vmatpush1.xpose.msra.mxu0 0.0
    %3997 = vmatprep.subr.mxu0 0.0
    %3998 = vmatpush1.xpose.msra.mxu0 0.0
    %3999 = vmatprep.subr.mxu0 0.0
    %4000 = vmatpush1.xpose.msra.mxu0 0.0
    %4001 = vmatprep.subr.mxu0 0.0
    %4002 = vmatpush1.xpose.msra.mxu0 0.0
    %4003 = vmatprep.subr.mxu0 0.0
    %4004 = vmatpush1.xpose.msra.mxu0 0.0
    %4005 = vmatprep.subr.mxu0 0.0
    %4006 = vmatpush1.xpose.msra.mxu0 0.0
    %4007 = vmatprep.subr.mxu0 0.0
    %4008 = vmatpush1.xpose.msra.mxu0 0.0
    %4009 = vmatprep.subr.mxu0 0.0
    %4010 = vmatpush1.xpose.msra.mxu0 0.0
    %4011 = vmatprep.subr.mxu0 0.0
    %4012 = vmatpush1.xpose.msra.mxu0 0.0
    %4013 = vmatprep.subr.mxu0 0.0
    %4014 = vmatpush1.xpose.msra.mxu0 0.0
    %4015 = vmatprep.subr.mxu0 0.0
    %4016 = vmatpush1.xpose.msra.mxu0 0.0
    %4017 = vmatprep.subr.mxu0 0.0
    %4018 = vmatpush1.xpose.msra.mxu0 0.0
    %4019 = vmatprep.subr.mxu0 0.0
    %4020 = vmatpush1.xpose.msra.mxu0 0.0
    %4021 = vmatprep.subr.mxu0 0.0
    %4022 = vmatpush1.xpose.msra.mxu0 0.0
    %4023 = vmatprep.subr.mxu0 0.0
    %4024 = vmatpush1.xpose.msra.mxu0 0.0
    %4025 = vmatprep.subr.mxu0 0.0
    %4026 = vmatpush1.xpose.msra.mxu0 0.0
    %4027 = vmatprep.subr.mxu0 0.0
    %4028 = vmatpush1.xpose.msra.mxu0 0.0
    %4029 = vmatprep.subr.mxu0 0.0
    %4030 = vmatpush1.xpose.msra.mxu0 0.0
    %4031 = vmatprep.subr.mxu0 0.0
    %4032 = vmatpush1.xpose.msra.mxu0 0.0
    %4033 = vmatprep.subr.mxu0 0.0
    %4034 = vmatpush1.xpose.msra.mxu0 0.0
    %4035 = vmatprep.subr.mxu0 0.0
    %4036 = vmatpush1.xpose.msra.mxu0 0.0
    %4037 = vmatprep.subr.mxu0 0.0
    %4038 = vmatpush1.xpose.msra.mxu0 0.0
    %4039 = vmatprep.subr.mxu0 0.0
    %4040 = vmatpush1.xpose.msra.mxu0 0.0
    %4041 = vmatprep.subr.mxu0 0.0
    %4042 = vmatpush1.xpose.msra.mxu0 0.0
    %4043 = vmatprep.mubr.f32.mxu0 0.0
    %4044 = vmatmul.mubr.f32.gmra.mrb[0].mxu0 %v3975
    %v4045 = vpop.f32.mrb[0].mxu0
    %v4046 = vadd.f32 0.0, %v4045
    %v4047 = vpop.f32.mrb[0].mxu0
    %4048 = vdwg.mxu0
    %v4049 = vmul.f32 %v4046, 0.35355338
    %v4050 = vsel %vm2866, %v4049, -inf
    %4051 = vmax.xlane.f32.xlu0 %v4050
    %v4052 = vpop.xlane.xlu0 %4051
    %v4053 = vsub.f32 %v4049, %v4052
    %v4054 = vmul.f32 %v4053, 1.442695
    %v4055 = vpow.pop %v4054
    %v4056 = vsel %vm2866, %v4055, 0.0
    %4057 = vadd.xlane.f32.xlu0 %v4056
    %v4058 = vpop.xlane.xlu0 %4057
    %v4059 = vrcp.pop %v4058
    %v4060 = vmul.f32 %v4055, %v4059
    %4061 = vrot.lane.b32.xlu0 %v3471, 40
    %v4062 = vpop.permute.xlu0 %4061
    %v4064 = vsel %vm667, %v4060, 0
    %v4066 = vsel %vm695, %v4062, 0
    %4068 = vmatprep.subr.mxu0 0.0
    %4069 = vmatpush1.msra.mxu0 %v4066
    %4070 = vmatprep.subr.mxu0 0.0
    %4071 = vmatpush1.msra.mxu0 0.0
    %4072 = vmatprep.subr.mxu0 0.0
    %4073 = vmatpush1.msra.mxu0 0.0
    %4074 = vmatprep.subr.mxu0 0.0
    %4075 = vmatpush1.msra.mxu0 0.0
    %4076 = vmatprep.subr.mxu0 0.0
    %4077 = vmatpush1.msra.mxu0 0.0
    %4078 = vmatprep.subr.mxu0 0.0
    %4079 = vmatpush1.msra.mxu0 0.0
    %4080 = vmatprep.subr.mxu0 0.0
    %4081 = vmatpush1.msra.mxu0 0.0
    %4082 = vmatprep.subr.mxu0 0.0
    %4083 = vmatpush1.msra.mxu0 0.0
    %4084 = vmatprep.subr.mxu0 0.0
    %4085 = vmatpush1.msra.mxu0 0.0
    %4086 = vmatprep.subr.mxu0 0.0
    %4087 = vmatpush1.msra.mxu0 0.0
    %4088 = vmatprep.subr.mxu0 0.0
    %4089 = vmatpush1.msra.mxu0 0.0
    %4090 = vmatprep.subr.mxu0 0.0
    %4091 = vmatpush1.msra.mxu0 0.0
    %4092 = vmatprep.subr.mxu0 0.0
    %4093 = vmatpush1.msra.mxu0 0.0
    %4094 = vmatprep.subr.mxu0 0.0
    %4095 = vmatpush1.msra.mxu0 0.0
    %4096 = vmatprep.subr.mxu0 0.0
    %4097 = vmatpush1.msra.mxu0 0.0
    %4098 = vmatprep.subr.mxu0 0.0
    %4099 = vmatpush1.msra.mxu0 0.0
    %4100 = vmatprep.subr.mxu0 0.0
    %4101 = vmatpush1.msra.mxu0 0.0
    %4102 = vmatprep.subr.mxu0 0.0
    %4103 = vmatpush1.msra.mxu0 0.0
    %4104 = vmatprep.subr.mxu0 0.0
    %4105 = vmatpush1.msra.mxu0 0.0
    %4106 = vmatprep.subr.mxu0 0.0
    %4107 = vmatpush1.msra.mxu0 0.0
    %4108 = vmatprep.subr.mxu0 0.0
    %4109 = vmatpush1.msra.mxu0 0.0
    %4110 = vmatprep.subr.mxu0 0.0
    %4111 = vmatpush1.msra.mxu0 0.0
    %4112 = vmatprep.subr.mxu0 0.0
    %4113 = vmatpush1.msra.mxu0 0.0
    %4114 = vmatprep.subr.mxu0 0.0
    %4115 = vmatpush1.msra.mxu0 0.0
    %4116 = vmatprep.subr.mxu0 0.0
    %4117 = vmatpush1.msra.mxu0 0.0
    %4118 = vmatprep.subr.mxu0 0.0
    %4119 = vmatpush1.msra.mxu0 0.0
    %4120 = vmatprep.subr.mxu0 0.0
    %4121 = vmatpush1.msra.mxu0 0.0
    %4122 = vmatprep.subr.mxu0 0.0
    %4123 = vmatpush1.msra.mxu0 0.0
    %4124 = vmatprep.subr.mxu0 0.0
    %4125 = vmatpush1.msra.mxu0 0.0
    %4126 = vmatprep.subr.mxu0 0.0
    %4127 = vmatpush1.msra.mxu0 0.0
    %4128 = vmatprep.subr.mxu0 0.0
    %4129 = vmatpush1.msra.mxu0 0.0
    %4130 = vmatprep.subr.mxu0 0.0
    %4131 = vmatpush1.msra.mxu0 0.0
    %4132 = vmatprep.mubr.f32.mxu0 0.0
    %4133 = vmatmul.mubr.f32.gmra.mrb[0].mxu0 %v4064
    %v4134 = vpop.f32.mrb[0].mxu0
    %v4135 = vadd.f32 0.0, %v4134
    %v4136 = vpop.f32.mrb[0].mxu0
    %4137 = vdwg.mxu0
    %4139 = vrot.lane.b32.xlu0 %v3801, 8
    %v4140 = vpop.permute.xlu0 %4139
    %4143 = vrot.lane.b32.xlu0 %v3968, 16
    %v4144 = vpop.permute.xlu0 %4143
    %4147 = vrot.lane.b32.xlu0 %v4135, 24
    %v4148 = vpop.permute.xlu0 %4147
    %v4150 = vsel %vm529, %v3634, %v4140
    %v4151 = vsel %vm1574, %v4150, %v4144
    %v4152 = vsel %vm1576, %v4151, %v4148
    %v4154 = vrot.slane %v4152, 6
    %v4156 = vsel %vm695, %v3470, %v4154
    %v4158 = vlaneseq
    %v4159 = vshrl.u32 %v4158, 7
    %v4160 = vsub.s32 0, %v4159
    %v4161 = vrot.slane %v2673, %v4160
    %v4164 = vsel %vm811, %v4156, 0
    %4166 = vmatprep.subr.mxu0 0.0
    %4167 = vmatpush1.msra.mxu0 %v2669
    %4168 = vmatprep.subr.mxu0 0.0
    %4169 = vmatpush1.msra.mxu0 %v2670
    %4170 = vmatprep.subr.mxu0 0.0
    %4171 = vmatpush1.msra.mxu0 %v2671
    %4172 = vmatprep.subr.mxu0 0.0
    %4173 = vmatpush1.msra.mxu0 %v2672
    %4174 = vmatprep.subr.mxu0 0.0
    %4175 = vmatpush1.msra.mxu0 0.0
    %4176 = vmatprep.subr.mxu0 0.0
    %4177 = vmatpush1.msra.mxu0 0.0
    %4178 = vmatprep.subr.mxu0 0.0
    %4179 = vmatpush1.msra.mxu0 0.0
    %4180 = vmatprep.subr.mxu0 0.0
    %4181 = vmatpush1.msra.mxu0 0.0
    %4182 = vmatprep.subr.mxu0 0.0
    %4183 = vmatpush1.msra.mxu0 0.0
    %4184 = vmatprep.subr.mxu0 0.0
    %4185 = vmatpush1.msra.mxu0 0.0
    %4186 = vmatprep.subr.mxu0 0.0
    %4187 = vmatpush1.msra.mxu0 0.0
    %4188 = vmatprep.subr.mxu0 0.0
    %4189 = vmatpush1.msra.mxu0 0.0
    %4190 = vmatprep.subr.mxu0 0.0
    %4191 = vmatpush1.msra.mxu0 0.0
    %4192 = vmatprep.subr.mxu0 0.0
    %4193 = vmatpush1.msra.mxu0 0.0
    %4194 = vmatprep.subr.mxu0 0.0
    %4195 = vmatpush1.msra.mxu0 0.0
    %4196 = vmatprep.subr.mxu0 0.0
    %4197 = vmatpush1.msra.mxu0 0.0
    %4198 = vmatprep.subr.mxu0 0.0
    %4199 = vmatpush1.msra.mxu0 0.0
    %4200 = vmatprep.subr.mxu0 0.0
    %4201 = vmatpush1.msra.mxu0 0.0
    %4202 = vmatprep.subr.mxu0 0.0
    %4203 = vmatpush1.msra.mxu0 0.0
    %4204 = vmatprep.subr.mxu0 0.0
    %4205 = vmatpush1.msra.mxu0 0.0
    %4206 = vmatprep.subr.mxu0 0.0
    %4207 = vmatpush1.msra.mxu0 0.0
    %4208 = vmatprep.subr.mxu0 0.0
    %4209 = vmatpush1.msra.mxu0 0.0
    %4210 = vmatprep.subr.mxu0 0.0
    %4211 = vmatpush1.msra.mxu0 0.0
    %4212 = vmatprep.subr.mxu0 0.0
    %4213 = vmatpush1.msra.mxu0 0.0
    %4214 = vmatprep.subr.mxu0 0.0
    %4215 = vmatpush1.msra.mxu0 0.0
    %4216 = vmatprep.subr.mxu0 0.0
    %4217 = vmatpush1.msra.mxu0 0.0
    %4218 = vmatprep.subr.mxu0 0.0
    %4219 = vmatpush1.msra.mxu0 0.0
    %4220 = vmatprep.subr.mxu0 0.0
    %4221 = vmatpush1.msra.mxu0 0.0
    %4222 = vmatprep.subr.mxu0 0.0
    %4223 = vmatpush1.msra.mxu0 0.0
    %4224 = vmatprep.subr.mxu0 0.0
    %4225 = vmatpush1.msra.mxu0 0.0
    %4226 = vmatprep.subr.mxu0 0.0
    %4227 = vmatpush1.msra.mxu0 0.0
    %4228 = vmatprep.subr.mxu0 0.0
    %4229 = vmatpush1.msra.mxu0 0.0
    %4230 = vmatprep.mubr.f32.mxu0 0.0
    %4231 = vmatmul.mubr.f32.gmra.mrb[0].mxu0 %v4164
    %v4232 = vpop.f32.mrb[0].mxu0
    %v4233 = vadd.f32 %v4161, %v4232
    %v4234 = vpop.f32.mrb[0].mxu0
    %4235 = vdwg.mxu0
    %v4236 = vadd.f32 %v774, %v4233
    %v4237 = vsel %vm2358, %v4236, 0.0
    %4238 = vadd.xlane.f32.xlu0 %v4237
    %v4239 = vpop.xlane.xlu0 %4238
    %v4240 = vmul.f32 %v4239, %v2362
    %v4241 = vsub.f32 %v4236, %v4240
    %v4242 = vmul.f32 %v4241, %v4241
    %v4243 = vsel %vm2358, %v4242, 0.0
    %4244 = vadd.xlane.f32.xlu0 %v4243
    %v4245 = vpop.xlane.xlu0 %4244
    %v4246 = vmul.f32 %v4245, %v2362
    %v4247 = vadd.f32 %v4246, 1e-05
    %v4248 = vrsqrt.pop %v4247
    %v4249 = vmul.f32 %v4241, %v4248
    %v4251 = vlaneseq
    %v4252 = vshrl.u32 %v4251, 7
    %v4253 = vsub.s32 0, %v4252
    %v4254 = vrot.slane %v2674, %v4253
    %v4256 = vmul.f32 %v4249, %v4254
    %v4258 = vlaneseq
    %v4259 = vshrl.u32 %v4258, 7
    %v4260 = vsub.s32 0, %v4259
    %v4261 = vrot.slane %v2675, %v4260
    %v4263 = vadd.f32 %v4256, %v4261
    %v4265 = vlaneseq
    %v4266 = vshrl.u32 %v4265, 7
    %v4267 = vsub.s32 0, %v4266
    %v4268 = vrot.slane %v2680, %v4267
    %v4271 = vsel %vm811, %v4263, 0
    %4273 = vmatprep.subr.mxu0 0.0
    %4274 = vmatpush1.msra.mxu0 %v2676
    %4275 = vmatprep.subr.mxu0 0.0
    %4276 = vmatpush1.msra.mxu0 %v2677
    %4277 = vmatprep.subr.mxu0 0.0
    %4278 = vmatpush1.msra.mxu0 %v2678
    %4279 = vmatprep.subr.mxu0 0.0
    %4280 = vmatpush1.msra.mxu0 %v2679
    %4281 = vmatprep.subr.mxu0 0.0
    %4282 = vmatpush1.msra.mxu0 0.0
    %4283 = vmatprep.subr.mxu0 0.0
    %4284 = vmatpush1.msra.mxu0 0.0
    %4285 = vmatprep.subr.mxu0 0.0
    %4286 = vmatpush1.msra.mxu0 0.0
    %4287 = vmatprep.subr.mxu0 0.0
    %4288 = vmatpush1.msra.mxu0 0.0
    %4289 = vmatprep.subr.mxu0 0.0
    %4290 = vmatpush1.msra.mxu0 0.0
    %4291 = vmatprep.subr.mxu0 0.0
    %4292 = vmatpush1.msra.mxu0 0.0
    %4293 = vmatprep.subr.mxu0 0.0
    %4294 = vmatpush1.msra.mxu0 0.0
    %4295 = vmatprep.subr.mxu0 0.0
    %4296 = vmatpush1.msra.mxu0 0.0
    %4297 = vmatprep.subr.mxu0 0.0
    %4298 = vmatpush1.msra.mxu0 0.0
    %4299 = vmatprep.subr.mxu0 0.0
    %4300 = vmatpush1.msra.mxu0 0.0
    %4301 = vmatprep.subr.mxu0 0.0
    %4302 = vmatpush1.msra.mxu0 0.0
    %4303 = vmatprep.subr.mxu0 0.0
    %4304 = vmatpush1.msra.mxu0 0.0
    %4305 = vmatprep.subr.mxu0 0.0
    %4306 = vmatpush1.msra.mxu0 0.0
    %4307 = vmatprep.subr.mxu0 0.0
    %4308 = vmatpush1.msra.mxu0 0.0
    %4309 = vmatprep.subr.mxu0 0.0
    %4310 = vmatpush1.msra.mxu0 0.0
    %4311 = vmatprep.subr.mxu0 0.0
    %4312 = vmatpush1.msra.mxu0 0.0
    %4313 = vmatprep.subr.mxu0 0.0
    %4314 = vmatpush1.msra.mxu0 0.0
    %4315 = vmatprep.subr.mxu0 0.0
    %4316 = vmatpush1.msra.mxu0 0.0
    %4317 = vmatprep.subr.mxu0 0.0
    %4318 = vmatpush1.msra.mxu0 0.0
    %4319 = vmatprep.subr.mxu0 0.0
    %4320 = vmatpush1.msra.mxu0 0.0
    %4321 = vmatprep.subr.mxu0 0.0
    %4322 = vmatpush1.msra.mxu0 0.0
    %4323 = vmatprep.subr.mxu0 0.0
    %4324 = vmatpush1.msra.mxu0 0.0
    %4325 = vmatprep.subr.mxu0 0.0
    %4326 = vmatpush1.msra.mxu0 0.0
    %4327 = vmatprep.subr.mxu0 0.0
    %4328 = vmatpush1.msra.mxu0 0.0
    %4329 = vmatprep.subr.mxu0 0.0
    %4330 = vmatpush1.msra.mxu0 0.0
    %4331 = vmatprep.subr.mxu0 0.0
    %4332 = vmatpush1.msra.mxu0 0.0
    %4333 = vmatprep.subr.mxu0 0.0
    %4334 = vmatpush1.msra.mxu0 0.0
    %4335 = vmatprep.subr.mxu0 0.0
    %4336 = vmatpush1.msra.mxu0 0.0
    %4337 = vmatprep.mubr.f32.mxu0 0.0
    %4338 = vmatmul.mubr.f32.gmra.mrb[0].mxu0 %v4271
    %v4339 = vpop.f32.mrb[0].mxu0
    %v4340 = vadd.f32 %v4268, %v4339
    %v4341 = vpop.f32.mrb[0].mxu0
    %4342 = vdwg.mxu0
    %v4344 = vlaneseq
    %v4345 = vshrl.u32 %v4344, 7
    %v4346 = vsub.s32 0, %v4345
    %v4347 = vrot.slane %v2685, %v4346
    %v4350 = vsel %vm811, %v2662, 0
    %v4353 = vsel %vm811, %v2663, 0
    %4355 = vmatprep.subr.mxu0 0.0
    %4356 = vmatpush1.msra.mxu0 %v2681
    %4357 = vmatprep.subr.mxu0 0.0
    %4358 = vmatpush1.msra.mxu0 %v2682
    %4359 = vmatprep.subr.mxu0 0.0
    %4360 = vmatpush1.msra.mxu0 %v2683
    %4361 = vmatprep.subr.mxu0 0.0
    %4362 = vmatpush1.msra.mxu0 %v2684
    %4363 = vmatprep.subr.mxu0 0.0
    %4364 = vmatpush1.msra.mxu0 0.0
    %4365 = vmatprep.subr.mxu0 0.0
    %4366 = vmatpush1.msra.mxu0 0.0
    %4367 = vmatprep.subr.mxu0 0.0
    %4368 = vmatpush1.msra.mxu0 0.0
    %4369 = vmatprep.subr.mxu0 0.0
    %4370 = vmatpush1.msra.mxu0 0.0
    %4371 = vmatprep.subr.mxu0 0.0
    %4372 = vmatpush1.msra.mxu0 0.0
    %4373 = vmatprep.subr.mxu0 0.0
    %4374 = vmatpush1.msra.mxu0 0.0
    %4375 = vmatprep.subr.mxu0 0.0
    %4376 = vmatpush1.msra.mxu0 0.0
    %4377 = vmatprep.subr.mxu0 0.0
    %4378 = vmatpush1.msra.mxu0 0.0
    %4379 = vmatprep.subr.mxu0 0.0
    %4380 = vmatpush1.msra.mxu0 0.0
    %4381 = vmatprep.subr.mxu0 0.0
    %4382 = vmatpush1.msra.mxu0 0.0
    %4383 = vmatprep.subr.mxu0 0.0
    %4384 = vmatpush1.msra.mxu0 0.0
    %4385 = vmatprep.subr.mxu0 0.0
    %4386 = vmatpush1.msra.mxu0 0.0
    %4387 = vmatprep.subr.mxu0 0.0
    %4388 = vmatpush1.msra.mxu0 0.0
    %4389 = vmatprep.subr.mxu0 0.0
    %4390 = vmatpush1.msra.mxu0 0.0
    %4391 = vmatprep.subr.mxu0 0.0
    %4392 = vmatpush1.msra.mxu0 0.0
    %4393 = vmatprep.subr.mxu0 0.0
    %4394 = vmatpush1.msra.mxu0 0.0
    %4395 = vmatprep.subr.mxu0 0.0
    %4396 = vmatpush1.msra.mxu0 0.0
    %4397 = vmatprep.subr.mxu0 0.0
    %4398 = vmatpush1.msra.mxu0 0.0
    %4399 = vmatprep.subr.mxu0 0.0
    %4400 = vmatpush1.msra.mxu0 0.0
    %4401 = vmatprep.subr.mxu0 0.0
    %4402 = vmatpush1.msra.mxu0 0.0
    %4403 = vmatprep.subr.mxu0 0.0
    %4404 = vmatpush1.msra.mxu0 0.0
    %4405 = vmatprep.subr.mxu0 0.0
    %4406 = vmatpush1.msra.mxu0 0.0
    %4407 = vmatprep.subr.mxu0 0.0
    %4408 = vmatpush1.msra.mxu0 0.0
    %4409 = vmatprep.subr.mxu0 0.0
    %4410 = vmatpush1.msra.mxu0 0.0
    %4411 = vmatprep.subr.mxu0 0.0
    %4412 = vmatpush1.msra.mxu0 0.0
    %4413 = vmatprep.subr.mxu0 0.0
    %4414 = vmatpush1.msra.mxu0 0.0
    %4415 = vmatprep.subr.mxu0 0.0
    %4416 = vmatpush1.msra.mxu0 0.0
    %4417 = vmatprep.subr.mxu0 0.0
    %4418 = vmatpush1.msra.mxu0 0.0
    %4419 = vmatprep.mubr.f32.mxu0 0.0
    %4420 = vmatmul.mubr.f32.gmra.mrb[0].mxu0 %v4350
    %v4421 = vpop.f32.mrb[0].mxu0
    %v4422 = vadd.f32 %v4347, %v4421
    %v4423 = vpop.f32.mrb[0].mxu0
    %4424 = vmatprep.mubr.f32.mxu0 0.0
    %4425 = vmatmul.mubr.f32.gmra.mrb[0].mxu0 %v4353
    %v4426 = vpop.f32.mrb[0].mxu0
    %v4427 = vadd.f32 %v4347, %v4426
    %v4428 = vpop.f32.mrb[0].mxu0
    %4429 = vdwg.mxu0
    %v4431 = vsel %vm529, %v4340, 0
    %v4434 = vsel %vm529, %v4422, 0
    %4436 = vmatprep.subr.mxu0 0.0
    %4437 = vmatpush1.xpose.msra.mxu0 %v4434
    %4438 = vmatprep.subr.mxu0 0.0
    %4439 = vmatpush1.xpose.msra.mxu0 0.0
    %4440 = vmatprep.subr.mxu0 0.0
    %4441 = vmatpush1.xpose.msra.mxu0 0.0
    %4442 = vmatprep.subr.mxu0 0.0
    %4443 = vmatpush1.xpose.msra.mxu0 0.0
    %4444 = vmatprep.subr.mxu0 0.0
    %4445 = vmatpush1.xpose.msra.mxu0 0.0
    %4446 = vmatprep.subr.mxu0 0.0
    %4447 = vmatpush1.xpose.msra.mxu0 0.0
    %4448 = vmatprep.subr.mxu0 0.0
    %4449 = vmatpush1.xpose.msra.mxu0 0.0
    %4450 = vmatprep.subr.mxu0 0.0
    %4451 = vmatpush1.xpose.msra.mxu0 0.0
    %4452 = vmatprep.subr.mxu0 0.0
    %4453 = vmatpush1.xpose.msra.mxu0 0.0
    %4454 = vmatprep.subr.mxu0 0.0
    %4455 = vmatpush1.xpose.msra.mxu0 0.0
    %4456 = vmatprep.subr.mxu0 0.0
    %4457 = vmatpush1.xpose.msra.mxu0 0.0
    %4458 = vmatprep.subr.mxu0 0.0
    %4459 = vmatpush1.xpose.msra.mxu0 0.0
    %4460 = vmatprep.subr.mxu0 0.0
    %4461 = vmatpush1.xpose.msra.mxu0 0.0
    %4462 = vmatprep.subr.mxu0 0.0
    %4463 = vmatpush1.xpose.msra.mxu0 0.0
    %4464 = vmatprep.subr.mxu0 0.0
    %4465 = vmatpush1.xpose.msra.mxu0 0.0
    %4466 = vmatprep.subr.mxu0 0.0
    %4467 = vmatpush1.xpose.msra.mxu0 0.0
    %4468 = vmatprep.subr.mxu0 0.0
    %4469 = vmatpush1.xpose.msra.mxu0 0.0
    %4470 = vmatprep.subr.mxu0 0.0
    %4471 = vmatpush1.xpose.msra.mxu0 0.0
    %4472 = vmatprep.subr.mxu0 0.0
    %4473 = vmatpush1.xpose.msra.mxu0 0.0
    %4474 = vmatprep.subr.mxu0 0.0
    %4475 = vmatpush1.xpose.msra.mxu0 0.0
    %4476 = vmatprep.subr.mxu0 0.0
    %4477 = vmatpush1.xpose.msra.mxu0 0.0
    %4478 = vmatprep.subr.mxu0 0.0
    %4479 = vmatpush1.xpose.msra.mxu0 0.0
    %4480 = vmatprep.subr.mxu0 0.0
    %4481 = vmatpush1.xpose.msra.mxu0 0.0
    %4482 = vmatprep.subr.mxu0 0.0
    %4483 = vmatpush1.xpose.msra.mxu0 0.0
    %4484 = vmatprep.subr.mxu0 0.0
    %4485 = vmatpush1.xpose.msra.mxu0 0.0
    %4486 = vmatprep.subr.mxu0 0.0
    %4487 = vmatpush1.xpose.msra.mxu0 0.0
    %4488 = vmatprep.subr.mxu0 0.0
    %4489 = vmatpush1.xpose.msra.mxu0 0.0
    %4490 = vmatprep.subr.mxu0 0.0
    %4491 = vmatpush1.xpose.msra.mxu0 0.0
    %4492 = vmatprep.subr.mxu0 0.0
    %4493 = vmatpush1.xpose.msra.mxu0 0.0
    %4494 = vmatprep.subr.mxu0 0.0
    %4495 = vmatpush1.xpose.msra.mxu0 0.0
    %4496 = vmatprep.subr.mxu0 0.0
    %4497 = vmatpush1.xpose.msra.mxu0 0.0
    %4498 = vmatprep.subr.mxu0 0.0
    %4499 = vmatpush1.xpose.msra.mxu0 0.0
    %4500 = vmatprep.mubr.f32.mxu0 0.0
    %4501 = vmatmul.mubr.f32.gmra.mrb[0].mxu0 %v4431
    %v4502 = vpop.f32.mrb[0].mxu0
    %v4503 = vadd.f32 0.0, %v4502
    %v4504 = vpop.f32.mrb[0].mxu0
    %4505 = vdwg.mxu0
    %v4506 = vmul.f32 %v4503, 0.35355338
    %vm4507 = vcmask 41984
    %v4508 = vsel %vm4507, %v4506, -inf
    %4509 = vmax.xlane.f32.xlu0 %v4508
    %v4510 = vpop.xlane.xlu0 %4509
    %v4511 = vsub.f32 %v4506, %v4510
    %v4512 = vmul.f32 %v4511, 1.442695
    %v4513 = vpow.pop %v4512
    %v4514 = vsel %vm4507, %v4513, 0.0
    %4515 = vadd.xlane.f32.xlu0 %v4514
    %v4516 = vpop.xlane.xlu0 %4515
    %v4517 = vrcp.pop %v4516
    %v4518 = vmul.f32 %v4513, %v4517
    %4519 = vrot.lane.b32.xlu0 %v4422, 96
    %v4520 = vpop.permute.xlu0 %4519
    %v4522 = vsel %vm700, %v4518, 0
    %v4524 = vsel %vm556, %v4520, 0
    %4526 = vmatprep.subr.mxu0 0.0
    %4527 = vmatpush1.msra.mxu0 %v4524
    %4528 = vmatprep.subr.mxu0 0.0
    %4529 = vmatpush1.msra.mxu0 0.0
    %4530 = vmatprep.subr.mxu0 0.0
    %4531 = vmatpush1.msra.mxu0 0.0
    %4532 = vmatprep.subr.mxu0 0.0
    %4533 = vmatpush1.msra.mxu0 0.0
    %4534 = vmatprep.subr.mxu0 0.0
    %4535 = vmatpush1.msra.mxu0 0.0
    %4536 = vmatprep.subr.mxu0 0.0
    %4537 = vmatpush1.msra.mxu0 0.0
    %4538 = vmatprep.subr.mxu0 0.0
    %4539 = vmatpush1.msra.mxu0 0.0
    %4540 = vmatprep.subr.mxu0 0.0
    %4541 = vmatpush1.msra.mxu0 0.0
    %4542 = vmatprep.subr.mxu0 0.0
    %4543 = vmatpush1.msra.mxu0 0.0
    %4544 = vmatprep.subr.mxu0 0.0
    %4545 = vmatpush1.msra.mxu0 0.0
    %4546 = vmatprep.subr.mxu0 0.0
    %4547 = vmatpush1.msra.mxu0 0.0
    %4548 = vmatprep.subr.mxu0 0.0
    %4549 = vmatpush1.msra.mxu0 0.0
    %4550 = vmatprep.subr.mxu0 0.0
    %4551 = vmatpush1.msra.mxu0 0.0
    %4552 = vmatprep.subr.mxu0 0.0
    %4553 = vmatpush1.msra.mxu0 0.0
    %4554 = vmatprep.subr.mxu0 0.0
    %4555 = vmatpush1.msra.mxu0 0.0
    %4556 = vmatprep.subr.mxu0 0.0
    %4557 = vmatpush1.msra.mxu0 0.0
    %4558 = vmatprep.subr.mxu0 0.0
    %4559 = vmatpush1.msra.mxu0 0.0
    %4560 = vmatprep.subr.mxu0 0.0
    %4561 = vmatpush1.msra.mxu0 0.0
    %4562 = vmatprep.subr.mxu0 0.0
    %4563 = vmatpush1.msra.mxu0 0.0
    %4564 = vmatprep.subr.mxu0 0.0
    %4565 = vmatpush1.msra.mxu0 0.0
    %4566 = vmatprep.subr.mxu0 0.0
    %4567 = vmatpush1.msra.mxu0 0.0
    %4568 = vmatprep.subr.mxu0 0.0
    %4569 = vmatpush1.msra.mxu0 0.0
    %4570 = vmatprep.subr.mxu0 0.0
    %4571 = vmatpush1.msra.mxu0 0.0
    %4572 = vmatprep.subr.mxu0 0.0
    %4573 = vmatpush1.msra.mxu0 0.0
    %4574 = vmatprep.subr.mxu0 0.0
    %4575 = vmatpush1.msra.mxu0 0.0
    %4576 = vmatprep.subr.mxu0 0.0
    %4577 = vmatpush1.msra.mxu0 0.0
    %4578 = vmatprep.subr.mxu0 0.0
    %4579 = vmatpush1.msra.mxu0 0.0
    %4580 = vmatprep.subr.mxu0 0.0
    %4581 = vmatpush1.msra.mxu0 0.0
    %4582 = vmatprep.subr.mxu0 0.0
    %4583 = vmatpush1.msra.mxu0 0.0
    %4584 = vmatprep.subr.mxu0 0.0
    %4585 = vmatpush1.msra.mxu0 0.0
    %4586 = vmatprep.subr.mxu0 0.0
    %4587 = vmatpush1.msra.mxu0 0.0
    %4588 = vmatprep.subr.mxu0 0.0
    %4589 = vmatpush1.msra.mxu0 0.0
    %4590 = vmatprep.mubr.f32.mxu0 0.0
    %4591 = vmatmul.mubr.f32.gmra.mrb[0].mxu0 %v4522
    %v4592 = vpop.f32.mrb[0].mxu0
    %v4593 = vadd.f32 0.0, %v4592
    %v4594 = vpop.f32.mrb[0].mxu0
    %4595 = vdwg.mxu0
    %4596 = vrot.lane.b32.xlu0 %v4340, 120
    %v4597 = vpop.permute.xlu0 %4596
    %4598 = vrot.lane.b32.xlu0 %v4422, 120
    %v4599 = vpop.permute.xlu0 %4598
    %v4600 = vsel %vm529, %v4597, 0
    %v4602 = vsel %vm529, %v4599, 0
    %4604 = vmatprep.subr.mxu0 0.0
    %4605 = vmatpush1.xpose.msra.mxu0 %v4602
    %4606 = vmatprep.subr.mxu0 0.0
    %4607 = vmatpush1.xpose.msra.mxu0 0.0
    %4608 = vmatprep.subr.mxu0 0.0
    %4609 = vmatpush1.xpose.msra.mxu0 0.0
    %4610 = vmatprep.subr.mxu0 0.0
    %4611 = vmatpush1.xpose.msra.mxu0 0.0
    %4612 = vmatprep.subr.mxu0 0.0
    %4613 = vmatpush1.xpose.msra.mxu0 0.0
    %4614 = vmatprep.subr.mxu0 0.0
    %4615 = vmatpush1.xpose.msra.mxu0 0.0
    %4616 = vmatprep.subr.mxu0 0.0
    %4617 = vmatpush1.xpose.msra.mxu0 0.0
    %4618 = vmatprep.subr.mxu0 0.0
    %4619 = vmatpush1.xpose.msra.mxu0 0.0
    %4620 = vmatprep.subr.mxu0 0.0
    %4621 = vmatpush1.xpose.msra.mxu0 0.0
    %4622 = vmatprep.subr.mxu0 0.0
    %4623 = vmatpush1.xpose.msra.mxu0 0.0
    %4624 = vmatprep.subr.mxu0 0.0
    %4625 = vmatpush1.xpose.msra.mxu0 0.0
    %4626 = vmatprep.subr.mxu0 0.0
    %4627 = vmatpush1.xpose.msra.mxu0 0.0
    %4628 = vmatprep.subr.mxu0 0.0
    %4629 = vmatpush1.xpose.msra.mxu0 0.0
    %4630 = vmatprep.subr.mxu0 0.0
    %4631 = vmatpush1.xpose.msra.mxu0 0.0
    %4632 = vmatprep.subr.mxu0 0.0
    %4633 = vmatpush1.xpose.msra.mxu0 0.0
    %4634 = vmatprep.subr.mxu0 0.0
    %4635 = vmatpush1.xpose.msra.mxu0 0.0
    %4636 = vmatprep.subr.mxu0 0.0
    %4637 = vmatpush1.xpose.msra.mxu0 0.0
    %4638 = vmatprep.subr.mxu0 0.0
    %4639 = vmatpush1.xpose.msra.mxu0 0.0
    %4640 = vmatprep.subr.mxu0 0.0
    %4641 = vmatpush1.xpose.msra.mxu0 0.0
    %4642 = vmatprep.subr.mxu0 0.0
    %4643 = vmatpush1.xpose.msra.mxu0 0.0
    %4644 = vmatprep.subr.mxu0 0.0
    %4645 = vmatpush1.xpose.msra.mxu0 0.0
    %4646 = vmatprep.subr.mxu0 0.0
    %4647 = vmatpush1.xpose.msra.mxu0 0.0
    %4648 = vmatprep.subr.mxu0 0.0
    %4649 = vmatpush1.xpose.msra.mxu0 0.0
    %4650 = vmatprep.subr.mxu0 0.0
    %4651 = vmatpush1.xpose.msra.mxu0 0.0
    %4652 = vmatprep.subr.mxu0 0.0
    %4653 = vmatpush1.xpose.msra.mxu0 0.0
    %4654 = vmatprep.subr.mxu0 0.0
    %4655 = vmatpush1.xpose.msra.mxu0 0.0
    %4656 = vmatprep.subr.mxu0 0.0
    %4657 = vmatpush1.xpose.msra.mxu0 0.0
    %4658 = vmatprep.subr.mxu0 0.0
    %4659 = vmatpush1.xpose.msra.mxu0 0.0
    %4660 = vmatprep.subr.mxu0 0.0
    %4661 = vmatpush1.xpose.msra.mxu0 0.0
    %4662 = vmatprep.subr.mxu0 0.0
    %4663 = vmatpush1.xpose.msra.mxu0 0.0
    %4664 = vmatprep.subr.mxu0 0.0
    %4665 = vmatpush1.xpose.msra.mxu0 0.0
    %4666 = vmatprep.subr.mxu0 0.0
    %4667 = vmatpush1.xpose.msra.mxu0 0.0
    %4668 = vmatprep.mubr.f32.mxu0 0.0
    %4669 = vmatmul.mubr.f32.gmra.mrb[0].mxu0 %v4600
    %v4670 = vpop.f32.mrb[0].mxu0
    %v4671 = vadd.f32 0.0, %v4670
    %v4672 = vpop.f32.mrb[0].mxu0
    %4673 = vdwg.mxu0
    %v4674 = vmul.f32 %v4671, 0.35355338
    %v4675 = vsel %vm4507, %v4674, -inf
    %4676 = vmax.xlane.f32.xlu0 %v4675
    %v4677 = vpop.xlane.xlu0 %4676
    %v4678 = vsub.f32 %v4674, %v4677
    %v4679 = vmul.f32 %v4678, 1.442695
    %v4680 = vpow.pop %v4679
    %v4681 = vsel %vm4507, %v4680, 0.0
    %4682 = vadd.xlane.f32.xlu0 %v4681
    %v4683 = vpop.xlane.xlu0 %4682
    %v4684 = vrcp.pop %v4683
    %v4685 = vmul.f32 %v4680, %v4684
    %4686 = vrot.lane.b32.xlu0 %v4422, 88
    %v4687 = vpop.permute.xlu0 %4686
    %v4689 = vsel %vm700, %v4685, 0
    %v4691 = vsel %vm556, %v4687, 0
    %4693 = vmatprep.subr.mxu0 0.0
    %4694 = vmatpush1.msra.mxu0 %v4691
    %4695 = vmatprep.subr.mxu0 0.0
    %4696 = vmatpush1.msra.mxu0 0.0
    %4697 = vmatprep.subr.mxu0 0.0
    %4698 = vmatpush1.msra.mxu0 0.0
    %4699 = vmatprep.subr.mxu0 0.0
    %4700 = vmatpush1.msra.mxu0 0.0
    %4701 = vmatprep.subr.mxu0 0.0
    %4702 = vmatpush1.msra.mxu0 0.0
    %4703 = vmatprep.subr.mxu0 0.0
    %4704 = vmatpush1.msra.mxu0 0.0
    %4705 = vmatprep.subr.mxu0 0.0
    %4706 = vmatpush1.msra.mxu0 0.0
    %4707 = vmatprep.subr.mxu0 0.0
    %4708 = vmatpush1.msra.mxu0 0.0
    %4709 = vmatprep.subr.mxu0 0.0
    %4710 = vmatpush1.msra.mxu0 0.0
    %4711 = vmatprep.subr.mxu0 0.0
    %4712 = vmatpush1.msra.mxu0 0.0
    %4713 = vmatprep.subr.mxu0 0.0
    %4714 = vmatpush1.msra.mxu0 0.0
    %4715 = vmatprep.subr.mxu0 0.0
    %4716 = vmatpush1.msra.mxu0 0.0
    %4717 = vmatprep.subr.mxu0 0.0
    %4718 = vmatpush1.msra.mxu0 0.0
    %4719 = vmatprep.subr.mxu0 0.0
    %4720 = vmatpush1.msra.mxu0 0.0
    %4721 = vmatprep.subr.mxu0 0.0
    %4722 = vmatpush1.msra.mxu0 0.0
    %4723 = vmatprep.subr.mxu0 0.0
    %4724 = vmatpush1.msra.mxu0 0.0
    %4725 = vmatprep.subr.mxu0 0.0
    %4726 = vmatpush1.msra.mxu0 0.0
    %4727 = vmatprep.subr.mxu0 0.0
    %4728 = vmatpush1.msra.mxu0 0.0
    %4729 = vmatprep.subr.mxu0 0.0
    %4730 = vmatpush1.msra.mxu0 0.0
    %4731 = vmatprep.subr.mxu0 0.0
    %4732 = vmatpush1.msra.mxu0 0.0
    %4733 = vmatprep.subr.mxu0 0.0
    %4734 = vmatpush1.msra.mxu0 0.0
    %4735 = vmatprep.subr.mxu0 0.0
    %4736 = vmatpush1.msra.mxu0 0.0
    %4737 = vmatprep.subr.mxu0 0.0
    %4738 = vmatpush1.msra.mxu0 0.0
    %4739 = vmatprep.subr.mxu0 0.0
    %4740 = vmatpush1.msra.mxu0 0.0
    %4741 = vmatprep.subr.mxu0 0.0
    %4742 = vmatpush1.msra.mxu0 0.0
    %4743 = vmatprep.subr.mxu0 0.0
    %4744 = vmatpush1.msra.mxu0 0.0
    %4745 = vmatprep.subr.mxu0 0.0
    %4746 = vmatpush1.msra.mxu0 0.0
    %4747 = vmatprep.subr.mxu0 0.0
    %4748 = vmatpush1.msra.mxu0 0.0
    %4749 = vmatprep.subr.mxu0 0.0
    %4750 = vmatpush1.msra.mxu0 0.0
    %4751 = vmatprep.subr.mxu0 0.0
    %4752 = vmatpush1.msra.mxu0 0.0
    %4753 = vmatprep.subr.mxu0 0.0
    %4754 = vmatpush1.msra.mxu0 0.0
    %4755 = vmatprep.subr.mxu0 0.0
    %4756 = vmatpush1.msra.mxu0 0.0
    %4757 = vmatprep.mubr.f32.mxu0 0.0
    %4758 = vmatmul.mubr.f32.gmra.mrb[0].mxu0 %v4689
    %v4759 = vpop.f32.mrb[0].mxu0
    %v4760 = vadd.f32 0.0, %v4759
    %v4761 = vpop.f32.mrb[0].mxu0
    %4762 = vdwg.mxu0
    %4763 = vrot.lane.b32.xlu0 %v4340, 112
    %v4764 = vpop.permute.xlu0 %4763
    %4765 = vrot.lane.b32.xlu0 %v4422, 112
    %v4766 = vpop.permute.xlu0 %4765
    %v4767 = vsel %vm529, %v4764, 0
    %v4769 = vsel %vm529, %v4766, 0
    %4771 = vmatprep.subr.mxu0 0.0
    %4772 = vmatpush1.xpose.msra.mxu0 %v4769
    %4773 = vmatprep.subr.mxu0 0.0
    %4774 = vmatpush1.xpose.msra.mxu0 0.0
    %4775 = vmatprep.subr.mxu0 0.0
    %4776 = vmatpush1.xpose.msra.mxu0 0.0
    %4777 = vmatprep.subr.mxu0 0.0
    %4778 = vmatpush1.xpose.msra.mxu0 0.0
    %4779 = vmatprep.subr.mxu0 0.0
    %4780 = vmatpush1.xpose.msra.mxu0 0.0
    %4781 = vmatprep.subr.mxu0 0.0
    %4782 = vmatpush1.xpose.msra.mxu0 0.0
    %4783 = vmatprep.subr.mxu0 0.0
    %4784 = vmatpush1.xpose.msra.mxu0 0.0
    %4785 = vmatprep.subr.mxu0 0.0
    %4786 = vmatpush1.xpose.msra.mxu0 0.0
    %4787 = vmatprep.subr.mxu0 0.0
    %4788 = vmatpush1.xpose.msra.mxu0 0.0
    %4789 = vmatprep.subr.mxu0 0.0
    %4790 = vmatpush1.xpose.msra.mxu0 0.0
    %4791 = vmatprep.subr.mxu0 0.0
    %4792 = vmatpush1.xpose.msra.mxu0 0.0
    %4793 = vmatprep.subr.mxu0 0.0
    %4794 = vmatpush1.xpose.msra.mxu0 0.0
    %4795 = vmatprep.subr.mxu0 0.0
    %4796 = vmatpush1.xpose.msra.mxu0 0.0
    %4797 = vmatprep.subr.mxu0 0.0
    %4798 = vmatpush1.xpose.msra.mxu0 0.0
    %4799 = vmatprep.subr.mxu0 0.0
    %4800 = vmatpush1.xpose.msra.mxu0 0.0
    %4801 = vmatprep.subr.mxu0 0.0
    %4802 = vmatpush1.xpose.msra.mxu0 0.0
    %4803 = vmatprep.subr.mxu0 0.0
    %4804 = vmatpush1.xpose.msra.mxu0 0.0
    %4805 = vmatprep.subr.mxu0 0.0
    %4806 = vmatpush1.xpose.msra.mxu0 0.0
    %4807 = vmatprep.subr.mxu0 0.0
    %4808 = vmatpush1.xpose.msra.mxu0 0.0
    %4809 = vmatprep.subr.mxu0 0.0
    %4810 = vmatpush1.xpose.msra.mxu0 0.0
    %4811 = vmatprep.subr.mxu0 0.0
    %4812 = vmatpush1.xpose.msra.mxu0 0.0
    %4813 = vmatprep.subr.mxu0 0.0
    %4814 = vmatpush1.xpose.msra.mxu0 0.0
    %4815 = vmatprep.subr.mxu0 0.0
    %4816 = vmatpush1.xpose.msra.mxu0 0.0
    %4817 = vmatprep.subr.mxu0 0.0
    %4818 = vmatpush1.xpose.msra.mxu0 0.0
    %4819 = vmatprep.subr.mxu0 0.0
    %4820 = vmatpush1.xpose.msra.mxu0 0.0
    %4821 = vmatprep.subr.mxu0 0.0
    %4822 = vmatpush1.xpose.msra.mxu0 0.0
    %4823 = vmatprep.subr.mxu0 0.0
    %4824 = vmatpush1.xpose.msra.mxu0 0.0
    %4825 = vmatprep.subr.mxu0 0.0
    %4826 = vmatpush1.xpose.msra.mxu0 0.0
    %4827 = vmatprep.subr.mxu0 0.0
    %4828 = vmatpush1.xpose.msra.mxu0 0.0
    %4829 = vmatprep.subr.mxu0 0.0
    %4830 = vmatpush1.xpose.msra.mxu0 0.0
    %4831 = vmatprep.subr.mxu0 0.0
    %4832 = vmatpush1.xpose.msra.mxu0 0.0
    %4833 = vmatprep.subr.mxu0 0.0
    %4834 = vmatpush1.xpose.msra.mxu0 0.0
    %4835 = vmatprep.mubr.f32.mxu0 0.0
    %4836 = vmatmul.mubr.f32.gmra.mrb[0].mxu0 %v4767
    %v4837 = vpop.f32.mrb[0].mxu0
    %v4838 = vadd.f32 0.0, %v4837
    %v4839 = vpop.f32.mrb[0].mxu0
    %4840 = vdwg.mxu0
    %v4841 = vmul.f32 %v4838, 0.35355338
    %v4842 = vsel %vm4507, %v4841, -inf
    %4843 = vmax.xlane.f32.xlu0 %v4842
    %v4844 = vpop.xlane.xlu0 %4843
    %v4845 = vsub.f32 %v4841, %v4844
    %v4846 = vmul.f32 %v4845, 1.442695
    %v4847 = vpow.pop %v4846
    %v4848 = vsel %vm4507, %v4847, 0.0
    %4849 = vadd.xlane.f32.xlu0 %v4848
    %v4850 = vpop.xlane.xlu0 %4849
    %v4851 = vrcp.pop %v4850
    %v4852 = vmul.f32 %v4847, %v4851
    %4853 = vrot.lane.b32.xlu0 %v4422, 80
    %v4854 = vpop.permute.xlu0 %4853
    %v4856 = vsel %vm700, %v4852, 0
    %v4858 = vsel %vm556, %v4854, 0
    %4860 = vmatprep.subr.mxu0 0.0
    %4861 = vmatpush1.msra.mxu0 %v4858
    %4862 = vmatprep.subr.mxu0 0.0
    %4863 = vmatpush1.msra.mxu0 0.0
    %4864 = vmatprep.subr.mxu0 0.0
    %4865 = vmatpush1.msra.mxu0 0.0
    %4866 = vmatprep.subr.mxu0 0.0
    %4867 = vmatpush1.msra.mxu0 0.0
    %4868 = vmatprep.subr.mxu0 0.0
    %4869 = vmatpush1.msra.mxu0 0.0
    %4870 = vmatprep.subr.mxu0 0.0
    %4871 = vmatpush1.msra.mxu0 0.0
    %4872 = vmatprep.subr.mxu0 0.0
    %4873 = vmatpush1.msra.mxu0 0.0
    %4874 = vmatprep.subr.mxu0 0.0
    %4875 = vmatpush1.msra.mxu0 0.0
    %4876 = vmatprep.subr.mxu0 0.0
    %4877 = vmatpush1.msra.mxu0 0.0
    %4878 = vmatprep.subr.mxu0 0.0
    %4879 = vmatpush1.msra.mxu0 0.0
    %4880 = vmatprep.subr.mxu0 0.0
    %4881 = vmatpush1.msra.mxu0 0.0
    %4882 = vmatprep.subr.mxu0 0.0
    %4883 = vmatpush1.msra.mxu0 0.0
    %4884 = vmatprep.subr.mxu0 0.0
    %4885 = vmatpush1.msra.mxu0 0.0
    %4886 = vmatprep.subr.mxu0 0.0
    %4887 = vmatpush1.msra.mxu0 0.0
    %4888 = vmatprep.subr.mxu0 0.0
    %4889 = vmatpush1.msra.mxu0 0.0
    %4890 = vmatprep.subr.mxu0 0.0
    %4891 = vmatpush1.msra.mxu0 0.0
    %4892 = vmatprep.subr.mxu0 0.0
    %4893 = vmatpush1.msra.mxu0 0.0
    %4894 = vmatprep.subr.mxu0 0.0
    %4895 = vmatpush1.msra.mxu0 0.0
    %4896 = vmatprep.subr.mxu0 0.0
    %4897 = vmatpush1.msra.mxu0 0.0
    %4898 = vmatprep.subr.mxu0 0.0
    %4899 = vmatpush1.msra.mxu0 0.0
    %4900 = vmatprep.subr.mxu0 0.0
    %4901 = vmatpush1.msra.mxu0 0.0
    %4902 = vmatprep.subr.mxu0 0.0
    %4903 = vmatpush1.msra.mxu0 0.0
    %4904 = vmatprep.subr.mxu0 0.0
    %4905 = vmatpush1.msra.mxu0 0.0
    %4906 = vmatprep.subr.mxu0 0.0
    %4907 = vmatpush1.msra.mxu0 0.0
    %4908 = vmatprep.subr.mxu0 0.0
    %4909 = vmatpush1.msra.mxu0 0.0
    %4910 = vmatprep.subr.mxu0 0.0
    %4911 = vmatpush1.msra.mxu0 0.0
    %4912 = vmatprep.subr.mxu0 0.0
    %4913 = vmatpush1.msra.mxu0 0.0
    %4914 = vmatprep.subr.mxu0 0.0
    %4915 = vmatpush1.msra.mxu0 0.0
    %4916 = vmatprep.subr.mxu0 0.0
    %4917 = vmatpush1.msra.mxu0 0.0
    %4918 = vmatprep.subr.mxu0 0.0
    %4919 = vmatpush1.msra.mxu0 0.0
    %4920 = vmatprep.subr.mxu0 0.0
    %4921 = vmatpush1.msra.mxu0 0.0
    %4922 = vmatprep.subr.mxu0 0.0
    %4923 = vmatpush1.msra.mxu0 0.0
    %4924 = vmatprep.mubr.f32.mxu0 0.0
    %4925 = vmatmul.mubr.f32.gmra.mrb[0].mxu0 %v4856
    %v4926 = vpop.f32.mrb[0].mxu0
    %v4927 = vadd.f32 0.0, %v4926
    %v4928 = vpop.f32.mrb[0].mxu0
    %4929 = vdwg.mxu0
    %4930 = vrot.lane.b32.xlu0 %v4340, 104
    %v4931 = vpop.permute.xlu0 %4930
    %4932 = vrot.lane.b32.xlu0 %v4422, 104
    %v4933 = vpop.permute.xlu0 %4932
    %v4934 = vsel %vm529, %v4931, 0
    %v4936 = vsel %vm529, %v4933, 0
    %4938 = vmatprep.subr.mxu0 0.0
    %4939 = vmatpush1.xpose.msra.mxu0 %v4936
    %4940 = vmatprep.subr.mxu0 0.0
    %4941 = vmatpush1.xpose.msra.mxu0 0.0
    %4942 = vmatprep.subr.mxu0 0.0
    %4943 = vmatpush1.xpose.msra.mxu0 0.0
    %4944 = vmatprep.subr.mxu0 0.0
    %4945 = vmatpush1.xpose.msra.mxu0 0.0
    %4946 = vmatprep.subr.mxu0 0.0
    %4947 = vmatpush1.xpose.msra.mxu0 0.0
    %4948 = vmatprep.subr.mxu0 0.0
    %4949 = vmatpush1.xpose.msra.mxu0 0.0
    %4950 = vmatprep.subr.mxu0 0.0
    %4951 = vmatpush1.xpose.msra.mxu0 0.0
    %4952 = vmatprep.subr.mxu0 0.0
    %4953 = vmatpush1.xpose.msra.mxu0 0.0
    %4954 = vmatprep.subr.mxu0 0.0
    %4955 = vmatpush1.xpose.msra.mxu0 0.0
    %4956 = vmatprep.subr.mxu0 0.0
    %4957 = vmatpush1.xpose.msra.mxu0 0.0
    %4958 = vmatprep.subr.mxu0 0.0
    %4959 = vmatpush1.xpose.msra.mxu0 0.0
    %4960 = vmatprep.subr.mxu0 0.0
    %4961 = vmatpush1.xpose.msra.mxu0 0.0
    %4962 = vmatprep.subr.mxu0 0.0
    %4963 = vmatpush1.xpose.msra.mxu0 0.0
    %4964 = vmatprep.subr.mxu0 0.0
    %4965 = vmatpush1.xpose.msra.mxu0 0.0
    %4966 = vmatprep.subr.mxu0 0.0
    %4967 = vmatpush1.xpose.msra.mxu0 0.0
    %4968 = vmatprep.subr.mxu0 0.0
    %4969 = vmatpush1.xpose.msra.mxu0 0.0
    %4970 = vmatprep.subr.mxu0 0.0
    %4971 = vmatpush1.xpose.msra.mxu0 0.0
    %4972 = vmatprep.subr.mxu0 0.0
    %4973 = vmatpush1.xpose.msra.mxu0 0.0
    %4974 = vmatprep.subr.mxu0 0.0
    %4975 = vmatpush1.xpose.msra.mxu0 0.0
    %4976 = vmatprep.subr.mxu0 0.0
    %4977 = vmatpush1.xpose.msra.mxu0 0.0
    %4978 = vmatprep.subr.mxu0 0.0
    %4979 = vmatpush1.xpose.msra.mxu0 0.0
    %4980 = vmatprep.subr.mxu0 0.0
    %4981 = vmatpush1.xpose.msra.mxu0 0.0
    %4982 = vmatprep.subr.mxu0 0.0
    %4983 = vmatpush1.xpose.msra.mxu0 0.0
    %4984 = vmatprep.subr.mxu0 0.0
    %4985 = vmatpush1.xpose.msra.mxu0 0.0
    %4986 = vmatprep.subr.mxu0 0.0
    %4987 = vmatpush1.xpose.msra.mxu0 0.0
    %4988 = vmatprep.subr.mxu0 0.0
    %4989 = vmatpush1.xpose.msra.mxu0 0.0
    %4990 = vmatprep.subr.mxu0 0.0
    %4991 = vmatpush1.xpose.msra.mxu0 0.0
    %4992 = vmatprep.subr.mxu0 0.0
    %4993 = vmatpush1.xpose.msra.mxu0 0.0
    %4994 = vmatprep.subr.mxu0 0.0
    %4995 = vmatpush1.xpose.msra.mxu0 0.0
    %4996 = vmatprep.subr.mxu0 0.0
    %4997 = vmatpush1.xpose.msra.mxu0 0.0
    %4998 = vmatprep.subr.mxu0 0.0
    %4999 = vmatpush1.xpose.msra.mxu0 0.0
    %5000 = vmatprep.subr.mxu0 0.0
    %5001 = vmatpush1.xpose.msra.mxu0 0.0
    %5002 = vmatprep.mubr.f32.mxu0 0.0
    %5003 = vmatmul.mubr.f32.gmra.mrb[0].mxu0 %v4934
    %v5004 = vpop.f32.mrb[0].mxu0
    %v5005 = vadd.f32 0.0, %v5004
    %v5006 = vpop.f32.mrb[0].mxu0
    %5007 = vdwg.mxu0
    %v5008 = vmul.f32 %v5005, 0.35355338
    %v5009 = vsel %vm4507, %v5008, -inf
    %5010 = vmax.xlane.f32.xlu0 %v5009
    %v5011 = vpop.xlane.xlu0 %5010
    %v5012 = vsub.f32 %v5008, %v5011
    %v5013 = vmul.f32 %v5012, 1.442695
    %v5014 = vpow.pop %v5013
    %v5015 = vsel %vm4507, %v5014, 0.0
    %5016 = vadd.xlane.f32.xlu0 %v5015
    %v5017 = vpop.xlane.xlu0 %5016
    %v5018 = vrcp.pop %v5017
    %v5019 = vmul.f32 %v5014, %v5018
    %5020 = vrot.lane.b32.xlu0 %v4422, 72
    %v5021 = vpop.permute.xlu0 %5020
    %v5023 = vsel %vm700, %v5019, 0
    %v5025 = vsel %vm556, %v5021, 0
    %5027 = vmatprep.subr.mxu0 0.0
    %5028 = vmatpush1.msra.mxu0 %v5025
    %5029 = vmatprep.subr.mxu0 0.0
    %5030 = vmatpush1.msra.mxu0 0.0
    %5031 = vmatprep.subr.mxu0 0.0
    %5032 = vmatpush1.msra.mxu0 0.0
    %5033 = vmatprep.subr.mxu0 0.0
    %5034 = vmatpush1.msra.mxu0 0.0
    %5035 = vmatprep.subr.mxu0 0.0
    %5036 = vmatpush1.msra.mxu0 0.0
    %5037 = vmatprep.subr.mxu0 0.0
    %5038 = vmatpush1.msra.mxu0 0.0
    %5039 = vmatprep.subr.mxu0 0.0
    %5040 = vmatpush1.msra.mxu0 0.0
    %5041 = vmatprep.subr.mxu0 0.0
    %5042 = vmatpush1.msra.mxu0 0.0
    %5043 = vmatprep.subr.mxu0 0.0
    %5044 = vmatpush1.msra.mxu0 0.0
    %5045 = vmatprep.subr.mxu0 0.0
    %5046 = vmatpush1.msra.mxu0 0.0
    %5047 = vmatprep.subr.mxu0 0.0
    %5048 = vmatpush1.msra.mxu0 0.0
    %5049 = vmatprep.subr.mxu0 0.0
    %5050 = vmatpush1.msra.mxu0 0.0
    %5051 = vmatprep.subr.mxu0 0.0
    %5052 = vmatpush1.msra.mxu0 0.0
    %5053 = vmatprep.subr.mxu0 0.0
    %5054 = vmatpush1.msra.mxu0 0.0
    %5055 = vmatprep.subr.mxu0 0.0
    %5056 = vmatpush1.msra.mxu0 0.0
    %5057 = vmatprep.subr.mxu0 0.0
    %5058 = vmatpush1.msra.mxu0 0.0
    %5059 = vmatprep.subr.mxu0 0.0
    %5060 = vmatpush1.msra.mxu0 0.0
    %5061 = vmatprep.subr.mxu0 0.0
    %5062 = vmatpush1.msra.mxu0 0.0
    %5063 = vmatprep.subr.mxu0 0.0
    %5064 = vmatpush1.msra.mxu0 0.0
    %5065 = vmatprep.subr.mxu0 0.0
    %5066 = vmatpush1.msra.mxu0 0.0
    %5067 = vmatprep.subr.mxu0 0.0
    %5068 = vmatpush1.msra.mxu0 0.0
    %5069 = vmatprep.subr.mxu0 0.0
    %5070 = vmatpush1.msra.mxu0 0.0
    %5071 = vmatprep.subr.mxu0 0.0
    %5072 = vmatpush1.msra.mxu0 0.0
    %5073 = vmatprep.subr.mxu0 0.0
    %5074 = vmatpush1.msra.mxu0 0.0
    %5075 = vmatprep.subr.mxu0 0.0
    %5076 = vmatpush1.msra.mxu0 0.0
    %5077 = vmatprep.subr.mxu0 0.0
    %5078 = vmatpush1.msra.mxu0 0.0
    %5079 = vmatprep.subr.mxu0 0.0
    %5080 = vmatpush1.msra.mxu0 0.0
    %5081 = vmatprep.subr.mxu0 0.0
    %5082 = vmatpush1.msra.mxu0 0.0
    %5083 = vmatprep.subr.mxu0 0.0
    %5084 = vmatpush1.msra.mxu0 0.0
    %5085 = vmatprep.subr.mxu0 0.0
    %5086 = vmatpush1.msra.mxu0 0.0
    %5087 = vmatprep.subr.mxu0 0.0
    %5088 = vmatpush1.msra.mxu0 0.0
    %5089 = vmatprep.subr.mxu0 0.0
    %5090 = vmatpush1.msra.mxu0 0.0
    %5091 = vmatprep.mubr.f32.mxu0 0.0
    %5092 = vmatmul.mubr.f32.gmra.mrb[0].mxu0 %v5023
    %v5093 = vpop.f32.mrb[0].mxu0
    %v5094 = vadd.f32 0.0, %v5093
    %v5095 = vpop.f32.mrb[0].mxu0
    %5096 = vdwg.mxu0
    %5098 = vrot.lane.b32.xlu0 %v4760, 8
    %v5099 = vpop.permute.xlu0 %5098
    %5102 = vrot.lane.b32.xlu0 %v4927, 16
    %v5103 = vpop.permute.xlu0 %5102
    %5106 = vrot.lane.b32.xlu0 %v5094, 24
    %v5107 = vpop.permute.xlu0 %5106
    %v5109 = vsel %vm529, %v4593, %v5099
    %v5110 = vsel %vm1574, %v5109, %v5103
    %v5111 = vsel %vm1576, %v5110, %v5107
    %v5112 = vrot.slane %v4340, 2
    %v5114 = vrot.slane %v4422, 6
    %v5115 = vrot.slane %v4427, 6
    %v5116 = vsel %vm695, %v5114, %v5115
    %v5117 = vsel %vm529, %v5112, 0
    %v5119 = vsel %vm529, %v5116, 0
    %5121 = vmatprep.subr.mxu0 0.0
    %5122 = vmatpush1.xpose.msra.mxu0 %v5119
    %5123 = vmatprep.subr.mxu0 0.0
    %5124 = vmatpush1.xpose.msra.mxu0 0.0
    %5125 = vmatprep.subr.mxu0 0.0
    %5126 = vmatpush1.xpose.msra.mxu0 0.0
    %5127 = vmatprep.subr.mxu0 0.0
    %5128 = vmatpush1.xpose.msra.mxu0 0.0
    %5129 = vmatprep.subr.mxu0 0.0
    %5130 = vmatpush1.xpose.msra.mxu0 0.0
    %5131 = vmatprep.subr.mxu0 0.0
    %5132 = vmatpush1.xpose.msra.mxu0 0.0
    %5133 = vmatprep.subr.mxu0 0.0
    %5134 = vmatpush1.xpose.msra.mxu0 0.0
    %5135 = vmatprep.subr.mxu0 0.0
    %5136 = vmatpush1.xpose.msra.mxu0 0.0
    %5137 = vmatprep.subr.mxu0 0.0
    %5138 = vmatpush1.xpose.msra.mxu0 0.0
    %5139 = vmatprep.subr.mxu0 0.0
    %5140 = vmatpush1.xpose.msra.mxu0 0.0
    %5141 = vmatprep.subr.mxu0 0.0
    %5142 = vmatpush1.xpose.msra.mxu0 0.0
    %5143 = vmatprep.subr.mxu0 0.0
    %5144 = vmatpush1.xpose.msra.mxu0 0.0
    %5145 = vmatprep.subr.mxu0 0.0
    %5146 = vmatpush1.xpose.msra.mxu0 0.0
    %5147 = vmatprep.subr.mxu0 0.0
    %5148 = vmatpush1.xpose.msra.mxu0 0.0
    %5149 = vmatprep.subr.mxu0 0.0
    %5150 = vmatpush1.xpose.msra.mxu0 0.0
    %5151 = vmatprep.subr.mxu0 0.0
    %5152 = vmatpush1.xpose.msra.mxu0 0.0
    %5153 = vmatprep.subr.mxu0 0.0
    %5154 = vmatpush1.xpose.msra.mxu0 0.0
    %5155 = vmatprep.subr.mxu0 0.0
    %5156 = vmatpush1.xpose.msra.mxu0 0.0
    %5157 = vmatprep.subr.mxu0 0.0
    %5158 = vmatpush1.xpose.msra.mxu0 0.0
    %5159 = vmatprep.subr.mxu0 0.0
    %5160 = vmatpush1.xpose.msra.mxu0 0.0
    %5161 = vmatprep.subr.mxu0 0.0
    %5162 = vmatpush1.xpose.msra.mxu0 0.0
    %5163 = vmatprep.subr.mxu0 0.0
    %5164 = vmatpush1.xpose.msra.mxu0 0.0
    %5165 = vmatprep.subr.mxu0 0.0
    %5166 = vmatpush1.xpose.msra.mxu0 0.0
    %5167 = vmatprep.subr.mxu0 0.0
    %5168 = vmatpush1.xpose.msra.mxu0 0.0
    %5169 = vmatprep.subr.mxu0 0.0
    %5170 = vmatpush1.xpose.msra.mxu0 0.0
    %5171 = vmatprep.subr.mxu0 0.0
    %5172 = vmatpush1.xpose.msra.mxu0 0.0
    %5173 = vmatprep.subr.mxu0 0.0
    %5174 = vmatpush1.xpose.msra.mxu0 0.0
    %5175 = vmatprep.subr.mxu0 0.0
    %5176 = vmatpush1.xpose.msra.mxu0 0.0
    %5177 = vmatprep.subr.mxu0 0.0
    %5178 = vmatpush1.xpose.msra.mxu0 0.0
    %5179 = vmatprep.subr.mxu0 0.0
    %5180 = vmatpush1.xpose.msra.mxu0 0.0
    %5181 = vmatprep.subr.mxu0 0.0
    %5182 = vmatpush1.xpose.msra.mxu0 0.0
    %5183 = vmatprep.subr.mxu0 0.0
    %5184 = vmatpush1.xpose.msra.mxu0 0.0
    %5185 = vmatprep.mubr.f32.mxu0 0.0
    %5186 = vmatmul.mubr.f32.gmra.mrb[0].mxu0 %v5117
    %v5187 = vpop.f32.mrb[0].mxu0
    %v5188 = vadd.f32 0.0, %v5187
    %v5189 = vpop.f32.mrb[0].mxu0
    %5190 = vdwg.mxu0
    %v5191 = vmul.f32 %v5188, 0.35355338
    %v5192 = vsel %vm4507, %v5191, -inf
    %5193 = vmax.xlane.f32.xlu0 %v5192
    %v5194 = vpop.xlane.xlu0 %5193
    %v5195 = vsub.f32 %v5191, %v5194
    %v5196 = vmul.f32 %v5195, 1.442695
    %v5197 = vpow.pop %v5196
    %v5198 = vsel %vm4507, %v5197, 0.0
    %5199 = vadd.xlane.f32.xlu0 %v5198
    %v5200 = vpop.xlane.xlu0 %5199
    %v5201 = vrcp.pop %v5200
    %v5202 = vmul.f32 %v5197, %v5201
    %5203 = vrot.lane.b32.xlu0 %v5116, 96
    %v5204 = vpop.permute.xlu0 %5203
    %v5206 = vsel %vm700, %v5202, 0
    %v5208 = vsel %vm556, %v5204, 0
    %5210 = vmatprep.subr.mxu0 0.0
    %5211 = vmatpush1.msra.mxu0 %v5208
    %5212 = vmatprep.subr.mxu0 0.0
    %5213 = vmatpush1.msra.mxu0 0.0
    %5214 = vmatprep.subr.mxu0 0.0
    %5215 = vmatpush1.msra.mxu0 0.0
    %5216 = vmatprep.subr.mxu0 0.0
    %5217 = vmatpush1.msra.mxu0 0.0
    %5218 = vmatprep.subr.mxu0 0.0
    %5219 = vmatpush1.msra.mxu0 0.0
    %5220 = vmatprep.subr.mxu0 0.0
    %5221 = vmatpush1.msra.mxu0 0.0
    %5222 = vmatprep.subr.mxu0 0.0
    %5223 = vmatpush1.msra.mxu0 0.0
    %5224 = vmatprep.subr.mxu0 0.0
    %5225 = vmatpush1.msra.mxu0 0.0
    %5226 = vmatprep.subr.mxu0 0.0
    %5227 = vmatpush1.msra.mxu0 0.0
    %5228 = vmatprep.subr.mxu0 0.0
    %5229 = vmatpush1.msra.mxu0 0.0
    %5230 = vmatprep.subr.mxu0 0.0
    %5231 = vmatpush1.msra.mxu0 0.0
    %5232 = vmatprep.subr.mxu0 0.0
    %5233 = vmatpush1.msra.mxu0 0.0
    %5234 = vmatprep.subr.mxu0 0.0
    %5235 = vmatpush1.msra.mxu0 0.0
    %5236 = vmatprep.subr.mxu0 0.0
    %5237 = vmatpush1.msra.mxu0 0.0
    %5238 = vmatprep.subr.mxu0 0.0
    %5239 = vmatpush1.msra.mxu0 0.0
    %5240 = vmatprep.subr.mxu0 0.0
    %5241 = vmatpush1.msra.mxu0 0.0
    %5242 = vmatprep.subr.mxu0 0.0
    %5243 = vmatpush1.msra.mxu0 0.0
    %5244 = vmatprep.subr.mxu0 0.0
    %5245 = vmatpush1.msra.mxu0 0.0
    %5246 = vmatprep.subr.mxu0 0.0
    %5247 = vmatpush1.msra.mxu0 0.0
    %5248 = vmatprep.subr.mxu0 0.0
    %5249 = vmatpush1.msra.mxu0 0.0
    %5250 = vmatprep.subr.mxu0 0.0
    %5251 = vmatpush1.msra.mxu0 0.0
    %5252 = vmatprep.subr.mxu0 0.0
    %5253 = vmatpush1.msra.mxu0 0.0
    %5254 = vmatprep.subr.mxu0 0.0
    %5255 = vmatpush1.msra.mxu0 0.0
    %5256 = vmatprep.subr.mxu0 0.0
    %5257 = vmatpush1.msra.mxu0 0.0
    %5258 = vmatprep.subr.mxu0 0.0
    %5259 = vmatpush1.msra.mxu0 0.0
    %5260 = vmatprep.subr.mxu0 0.0
    %5261 = vmatpush1.msra.mxu0 0.0
    %5262 = vmatprep.subr.mxu0 0.0
    %5263 = vmatpush1.msra.mxu0 0.0
    %5264 = vmatprep.subr.mxu0 0.0
    %5265 = vmatpush1.msra.mxu0 0.0
    %5266 = vmatprep.subr.mxu0 0.0
    %5267 = vmatpush1.msra.mxu0 0.0
    %5268 = vmatprep.subr.mxu0 0.0
    %5269 = vmatpush1.msra.mxu0 0.0
    %5270 = vmatprep.subr.mxu0 0.0
    %5271 = vmatpush1.msra.mxu0 0.0
    %5272 = vmatprep.subr.mxu0 0.0
    %5273 = vmatpush1.msra.mxu0 0.0
    %5274 = vmatprep.mubr.f32.mxu0 0.0
    %5275 = vmatmul.mubr.f32.gmra.mrb[0].mxu0 %v5206
    %v5276 = vpop.f32.mrb[0].mxu0
    %v5277 = vadd.f32 0.0, %v5276
    %v5278 = vpop.f32.mrb[0].mxu0
    %5279 = vdwg.mxu0
    %5280 = vrot.lane.b32.xlu0 %v5112, 120
    %v5281 = vpop.permute.xlu0 %5280
    %5282 = vrot.lane.b32.xlu0 %v5116, 120
    %v5283 = vpop.permute.xlu0 %5282
    %v5284 = vsel %vm529, %v5281, 0
    %v5286 = vsel %vm529, %v5283, 0
    %5288 = vmatprep.subr.mxu0 0.0
    %5289 = vmatpush1.xpose.msra.mxu0 %v5286
    %5290 = vmatprep.subr.mxu0 0.0
    %5291 = vmatpush1.xpose.msra.mxu0 0.0
    %5292 = vmatprep.subr.mxu0 0.0
    %5293 = vmatpush1.xpose.msra.mxu0 0.0
    %5294 = vmatprep.subr.mxu0 0.0
    %5295 = vmatpush1.xpose.msra.mxu0 0.0
    %5296 = vmatprep.subr.mxu0 0.0
    %5297 = vmatpush1.xpose.msra.mxu0 0.0
    %5298 = vmatprep.subr.mxu0 0.0
    %5299 = vmatpush1.xpose.msra.mxu0 0.0
    %5300 = vmatprep.subr.mxu0 0.0
    %5301 = vmatpush1.xpose.msra.mxu0 0.0
    %5302 = vmatprep.subr.mxu0 0.0
    %5303 = vmatpush1.xpose.msra.mxu0 0.0
    %5304 = vmatprep.subr.mxu0 0.0
    %5305 = vmatpush1.xpose.msra.mxu0 0.0
    %5306 = vmatprep.subr.mxu0 0.0
    %5307 = vmatpush1.xpose.msra.mxu0 0.0
    %5308 = vmatprep.subr.mxu0 0.0
    %5309 = vmatpush1.xpose.msra.mxu0 0.0
    %5310 = vmatprep.subr.mxu0 0.0
    %5311 = vmatpush1.xpose.msra.mxu0 0.0
    %5312 = vmatprep.subr.mxu0 0.0
    %5313 = vmatpush1.xpose.msra.mxu0 0.0
    %5314 = vmatprep.subr.mxu0 0.0
    %5315 = vmatpush1.xpose.msra.mxu0 0.0
    %5316 = vmatprep.subr.mxu0 0.0
    %5317 = vmatpush1.xpose.msra.mxu0 0.0
    %5318 = vmatprep.subr.mxu0 0.0
    %5319 = vmatpush1.xpose.msra.mxu0 0.0
    %5320 = vmatprep.subr.mxu0 0.0
    %5321 = vmatpush1.xpose.msra.mxu0 0.0
    %5322 = vmatprep.subr.mxu0 0.0
    %5323 = vmatpush1.xpose.msra.mxu0 0.0
    %5324 = vmatprep.subr.mxu0 0.0
    %5325 = vmatpush1.xpose.msra.mxu0 0.0
    %5326 = vmatprep.subr.mxu0 0.0
    %5327 = vmatpush1.xpose.msra.mxu0 0.0
    %5328 = vmatprep.subr.mxu0 0.0
    %5329 = vmatpush1.xpose.msra.mxu0 0.0
    %5330 = vmatprep.subr.mxu0 0.0
    %5331 = vmatpush1.xpose.msra.mxu0 0.0
    %5332 = vmatprep.subr.mxu0 0.0
    %5333 = vmatpush1.xpose.msra.mxu0 0.0
    %5334 = vmatprep.subr.mxu0 0.0
    %5335 = vmatpush1.xpose.msra.mxu0 0.0
    %5336 = vmatprep.subr.mxu0 0.0
    %5337 = vmatpush1.xpose.msra.mxu0 0.0
    %5338 = vmatprep.subr.mxu0 0.0
    %5339 = vmatpush1.xpose.msra.mxu0 0.0
    %5340 = vmatprep.subr.mxu0 0.0
    %5341 = vmatpush1.xpose.msra.mxu0 0.0
    %5342 = vmatprep.subr.mxu0 0.0
    %5343 = vmatpush1.xpose.msra.mxu0 0.0
    %5344 = vmatprep.subr.mxu0 0.0
    %5345 = vmatpush1.xpose.msra.mxu0 0.0
    %5346 = vmatprep.subr.mxu0 0.0
    %5347 = vmatpush1.xpose.msra.mxu0 0.0
    %5348 = vmatprep.subr.mxu0 0.0
    %5349 = vmatpush1.xpose.msra.mxu0 0.0
    %5350 = vmatprep.subr.mxu0 0.0
    %5351 = vmatpush1.xpose.msra.mxu0 0.0
    %5352 = vmatprep.mubr.f32.mxu0 0.0
    %5353 = vmatmul.mubr.f32.gmra.mrb[0].mxu0 %v5284
    %v5354 = vpop.f32.mrb[0].mxu0
    %v5355 = vadd.f32 0.0, %v5354
    %v5356 = vpop.f32.mrb[0].mxu0
    %5357 = vdwg.mxu0
    %v5358 = vmul.f32 %v5355, 0.35355338
    %v5359 = vsel %vm4507, %v5358, -inf
    %5360 = vmax.xlane.f32.xlu0 %v5359
    %v5361 = vpop.xlane.xlu0 %5360
    %v5362 = vsub.f32 %v5358, %v5361
    %v5363 = vmul.f32 %v5362, 1.442695
    %v5364 = vpow.pop %v5363
    %v5365 = vsel %vm4507, %v5364, 0.0
    %5366 = vadd.xlane.f32.xlu0 %v5365
    %v5367 = vpop.xlane.xlu0 %5366
    %v5368 = vrcp.pop %v5367
    %v5369 = vmul.f32 %v5364, %v5368
    %5370 = vrot.lane.b32.xlu0 %v5116, 88
    %v5371 = vpop.permute.xlu0 %5370
    %v5373 = vsel %vm700, %v5369, 0
    %v5375 = vsel %vm556, %v5371, 0
    %5377 = vmatprep.subr.mxu0 0.0
    %5378 = vmatpush1.msra.mxu0 %v5375
    %5379 = vmatprep.subr.mxu0 0.0
    %5380 = vmatpush1.msra.mxu0 0.0
    %5381 = vmatprep.subr.mxu0 0.0
    %5382 = vmatpush1.msra.mxu0 0.0
    %5383 = vmatprep.subr.mxu0 0.0
    %5384 = vmatpush1.msra.mxu0 0.0
    %5385 = vmatprep.subr.mxu0 0.0
    %5386 = vmatpush1.msra.mxu0 0.0
    %5387 = vmatprep.subr.mxu0 0.0
    %5388 = vmatpush1.msra.mxu0 0.0
    %5389 = vmatprep.subr.mxu0 0.0
    %5390 = vmatpush1.msra.mxu0 0.0
    %5391 = vmatprep.subr.mxu0 0.0
    %5392 = vmatpush1.msra.mxu0 0.0
    %5393 = vmatprep.subr.mxu0 0.0
    %5394 = vmatpush1.msra.mxu0 0.0
    %5395 = vmatprep.subr.mxu0 0.0
    %5396 = vmatpush1.msra.mxu0 0.0
    %5397 = vmatprep.subr.mxu0 0.0
    %5398 = vmatpush1.msra.mxu0 0.0
    %5399 = vmatprep.subr.mxu0 0.0
    %5400 = vmatpush1.msra.mxu0 0.0
    %5401 = vmatprep.subr.mxu0 0.0
    %5402 = vmatpush1.msra.mxu0 0.0
    %5403 = vmatprep.subr.mxu0 0.0
    %5404 = vmatpush1.msra.mxu0 0.0
    %5405 = vmatprep.subr.mxu0 0.0
    %5406 = vmatpush1.msra.mxu0 0.0
    %5407 = vmatprep.subr.mxu0 0.0
    %5408 = vmatpush1.msra.mxu0 0.0
    %5409 = vmatprep.subr.mxu0 0.0
    %5410 = vmatpush1.msra.mxu0 0.0
    %5411 = vmatprep.subr.mxu0 0.0
    %5412 = vmatpush1.msra.mxu0 0.0
    %5413 = vmatprep.subr.mxu0 0.0
    %5414 = vmatpush1.msra.mxu0 0.0
    %5415 = vmatprep.subr.mxu0 0.0
    %5416 = vmatpush1.msra.mxu0 0.0
    %5417 = vmatprep.subr.mxu0 0.0
    %5418 = vmatpush1.msra.mxu0 0.0
    %5419 = vmatprep.subr.mxu0 0.0
    %5420 = vmatpush1.msra.mxu0 0.0
    %5421 = vmatprep.subr.mxu0 0.0
    %5422 = vmatpush1.msra.mxu0 0.0
    %5423 = vmatprep.subr.mxu0 0.0
    %5424 = vmatpush1.msra.mxu0 0.0
    %5425 = vmatprep.subr.mxu0 0.0
    %5426 = vmatpush1.msra.mxu0 0.0
    %5427 = vmatprep.subr.mxu0 0.0
    %5428 = vmatpush1.msra.mxu0 0.0
    %5429 = vmatprep.subr.mxu0 0.0
    %5430 = vmatpush1.msra.mxu0 0.0
    %5431 = vmatprep.subr.mxu0 0.0
    %5432 = vmatpush1.msra.mxu0 0.0
    %5433 = vmatprep.subr.mxu0 0.0
    %5434 = vmatpush1.msra.mxu0 0.0
    %5435 = vmatprep.subr.mxu0 0.0
    %5436 = vmatpush1.msra.mxu0 0.0
    %5437 = vmatprep.subr.mxu0 0.0
    %5438 = vmatpush1.msra.mxu0 0.0
    %5439 = vmatprep.subr.mxu0 0.0
    %5440 = vmatpush1.msra.mxu0 0.0
    %5441 = vmatprep.mubr.f32.mxu0 0.0
    %5442 = vmatmul.mubr.f32.gmra.mrb[0].mxu0 %v5373
    %v5443 = vpop.f32.mrb[0].mxu0
    %v5444 = vadd.f32 0.0, %v5443
    %v5445 = vpop.f32.mrb[0].mxu0
    %5446 = vdwg.mxu0
    %5447 = vrot.lane.b32.xlu0 %v5112, 112
    %v5448 = vpop.permute.xlu0 %5447
    %5449 = vrot.lane.b32.xlu0 %v5116, 112
    %v5450 = vpop.permute.xlu0 %5449
    %v5451 = vsel %vm529, %v5448, 0
    %v5453 = vsel %vm529, %v5450, 0
    %5455 = vmatprep.subr.mxu0 0.0
    %5456 = vmatpush1.xpose.msra.mxu0 %v5453
    %5457 = vmatprep.subr.mxu0 0.0
    %5458 = vmatpush1.xpose.msra.mxu0 0.0
    %5459 = vmatprep.subr.mxu0 0.0
    %5460 = vmatpush1.xpose.msra.mxu0 0.0
    %5461 = vmatprep.subr.mxu0 0.0
    %5462 = vmatpush1.xpose.msra.mxu0 0.0
    %5463 = vmatprep.subr.mxu0 0.0
    %5464 = vmatpush1.xpose.msra.mxu0 0.0
    %5465 = vmatprep.subr.mxu0 0.0
    %5466 = vmatpush1.xpose.msra.mxu0 0.0
    %5467 = vmatprep.subr.mxu0 0.0
    %5468 = vmatpush1.xpose.msra.mxu0 0.0
    %5469 = vmatprep.subr.mxu0 0.0
    %5470 = vmatpush1.xpose.msra.mxu0 0.0
    %5471 = vmatprep.subr.mxu0 0.0
    %5472 = vmatpush1.xpose.msra.mxu0 0.0
    %5473 = vmatprep.subr.mxu0 0.0
    %5474 = vmatpush1.xpose.msra.mxu0 0.0
    %5475 = vmatprep.subr.mxu0 0.0
    %5476 = vmatpush1.xpose.msra.mxu0 0.0
    %5477 = vmatprep.subr.mxu0 0.0
    %5478 = vmatpush1.xpose.msra.mxu0 0.0
    %5479 = vmatprep.subr.mxu0 0.0
    %5480 = vmatpush1.xpose.msra.mxu0 0.0
    %5481 = vmatprep.subr.mxu0 0.0
    %5482 = vmatpush1.xpose.msra.mxu0 0.0
    %5483 = vmatprep.subr.mxu0 0.0
    %5484 = vmatpush1.xpose.msra.mxu0 0.0
    %5485 = vmatprep.subr.mxu0 0.0
    %5486 = vmatpush1.xpose.msra.mxu0 0.0
    %5487 = vmatprep.subr.mxu0 0.0
    %5488 = vmatpush1.xpose.msra.mxu0 0.0
    %5489 = vmatprep.subr.mxu0 0.0
    %5490 = vmatpush1.xpose.msra.mxu0 0.0
    %5491 = vmatprep.subr.mxu0 0.0
    %5492 = vmatpush1.xpose.msra.mxu0 0.0
    %5493 = vmatprep.subr.mxu0 0.0
    %5494 = vmatpush1.xpose.msra.mxu0 0.0
    %5495 = vmatprep.subr.mxu0 0.0
    %5496 = vmatpush1.xpose.msra.mxu0 0.0
    %5497 = vmatprep.subr.mxu0 0.0
    %5498 = vmatpush1.xpose.msra.mxu0 0.0
    %5499 = vmatprep.subr.mxu0 0.0
    %5500 = vmatpush1.xpose.msra.mxu0 0.0
    %5501 = vmatprep.subr.mxu0 0.0
    %5502 = vmatpush1.xpose.msra.mxu0 0.0
    %5503 = vmatprep.subr.mxu0 0.0
    %5504 = vmatpush1.xpose.msra.mxu0 0.0
    %5505 = vmatprep.subr.mxu0 0.0
    %5506 = vmatpush1.xpose.msra.mxu0 0.0
    %5507 = vmatprep.subr.mxu0 0.0
    %5508 = vmatpush1.xpose.msra.mxu0 0.0
    %5509 = vmatprep.subr.mxu0 0.0
    %5510 = vmatpush1.xpose.msra.mxu0 0.0
    %5511 = vmatprep.subr.mxu0 0.0
    %5512 = vmatpush1.xpose.msra.mxu0 0.0
    %5513 = vmatprep.subr.mxu0 0.0
    %5514 = vmatpush1.xpose.msra.mxu0 0.0
    %5515 = vmatprep.subr.mxu0 0.0
    %5516 = vmatpush1.xpose.msra.mxu0 0.0
    %5517 = vmatprep.subr.mxu0 0.0
    %5518 = vmatpush1.xpose.msra.mxu0 0.0
    %5519 = vmatprep.mubr.f32.mxu0 0.0
    %5520 = vmatmul.mubr.f32.gmra.mrb[0].mxu0 %v5451
    %v5521 = vpop.f32.mrb[0].mxu0
    %v5522 = vadd.f32 0.0, %v5521
    %v5523 = vpop.f32.mrb[0].mxu0
    %5524 = vdwg.mxu0
    %v5525 = vmul.f32 %v5522, 0.35355338
    %v5526 = vsel %vm4507, %v5525, -inf
    %5527 = vmax.xlane.f32.xlu0 %v5526
    %v5528 = vpop.xlane.xlu0 %5527
    %v5529 = vsub.f32 %v5525, %v5528
    %v5530 = vmul.f32 %v5529, 1.442695
    %v5531 = vpow.pop %v5530
    %v5532 = vsel %vm4507, %v5531, 0.0
    %5533 = vadd.xlane.f32.xlu0 %v5532
    %v5534 = vpop.xlane.xlu0 %5533
    %v5535 = vrcp.pop %v5534
    %v5536 = vmul.f32 %v5531, %v5535
    %5537 = vrot.lane.b32.xlu0 %v5116, 80
    %v5538 = vpop.permute.xlu0 %5537
    %v5540 = vsel %vm700, %v5536, 0
    %v5542 = vsel %vm556, %v5538, 0
    %5544 = vmatprep.subr.mxu0 0.0
    %5545 = vmatpush1.msra.mxu0 %v5542
    %5546 = vmatprep.subr.mxu0 0.0
    %5547 = vmatpush1.msra.mxu0 0.0
    %5548 = vmatprep.subr.mxu0 0.0
    %5549 = vmatpush1.msra.mxu0 0.0
    %5550 = vmatprep.subr.mxu0 0.0
    %5551 = vmatpush1.msra.mxu0 0.0
    %5552 = vmatprep.subr.mxu0 0.0
    %5553 = vmatpush1.msra.mxu0 0.0
    %5554 = vmatprep.subr.mxu0 0.0
    %5555 = vmatpush1.msra.mxu0 0.0
    %5556 = vmatprep.subr.mxu0 0.0
    %5557 = vmatpush1.msra.mxu0 0.0
    %5558 = vmatprep.subr.mxu0 0.0
    %5559 = vmatpush1.msra.mxu0 0.0
    %5560 = vmatprep.subr.mxu0 0.0
    %5561 = vmatpush1.msra.mxu0 0.0
    %5562 = vmatprep.subr.mxu0 0.0
    %5563 = vmatpush1.msra.mxu0 0.0
    %5564 = vmatprep.subr.mxu0 0.0
    %5565 = vmatpush1.msra.mxu0 0.0
    %5566 = vmatprep.subr.mxu0 0.0
    %5567 = vmatpush1.msra.mxu0 0.0
    %5568 = vmatprep.subr.mxu0 0.0
    %5569 = vmatpush1.msra.mxu0 0.0
    %5570 = vmatprep.subr.mxu0 0.0
    %5571 = vmatpush1.msra.mxu0 0.0
    %5572 = vmatprep.subr.mxu0 0.0
    %5573 = vmatpush1.msra.mxu0 0.0
    %5574 = vmatprep.subr.mxu0 0.0
    %5575 = vmatpush1.msra.mxu0 0.0
    %5576 = vmatprep.subr.mxu0 0.0
    %5577 = vmatpush1.msra.mxu0 0.0
    %5578 = vmatprep.subr.mxu0 0.0
    %5579 = vmatpush1.msra.mxu0 0.0
    %5580 = vmatprep.subr.mxu0 0.0
    %5581 = vmatpush1.msra.mxu0 0.0
    %5582 = vmatprep.subr.mxu0 0.0
    %5583 = vmatpush1.msra.mxu0 0.0
    %5584 = vmatprep.subr.mxu0 0.0
    %5585 = vmatpush1.msra.mxu0 0.0
    %5586 = vmatprep.subr.mxu0 0.0
    %5587 = vmatpush1.msra.mxu0 0.0
    %5588 = vmatprep.subr.mxu0 0.0
    %5589 = vmatpush1.msra.mxu0 0.0
    %5590 = vmatprep.subr.mxu0 0.0
    %5591 = vmatpush1.msra.mxu0 0.0
    %5592 = vmatprep.subr.mxu0 0.0
    %5593 = vmatpush1.msra.mxu0 0.0
    %5594 = vmatprep.subr.mxu0 0.0
    %5595 = vmatpush1.msra.mxu0 0.0
    %5596 = vmatprep.subr.mxu0 0.0
    %5597 = vmatpush1.msra.mxu0 0.0
    %5598 = vmatprep.subr.mxu0 0.0
    %5599 = vmatpush1.msra.mxu0 0.0
    %5600 = vmatprep.subr.mxu0 0.0
    %5601 = vmatpush1.msra.mxu0 0.0
    %5602 = vmatprep.subr.mxu0 0.0
    %5603 = vmatpush1.msra.mxu0 0.0
    %5604 = vmatprep.subr.mxu0 0.0
    %5605 = vmatpush1.msra.mxu0 0.0
    %5606 = vmatprep.subr.mxu0 0.0
    %5607 = vmatpush1.msra.mxu0 0.0
    %5608 = vmatprep.mubr.f32.mxu0 0.0
    %5609 = vmatmul.mubr.f32.gmra.mrb[0].mxu0 %v5540
    %v5610 = vpop.f32.mrb[0].mxu0
    %v5611 = vadd.f32 0.0, %v5610
    %v5612 = vpop.f32.mrb[0].mxu0
    %5613 = vdwg.mxu0
    %5614 = vrot.lane.b32.xlu0 %v5112, 104
    %v5615 = vpop.permute.xlu0 %5614
    %5616 = vrot.lane.b32.xlu0 %v5116, 104
    %v5617 = vpop.permute.xlu0 %5616
    %v5618 = vsel %vm529, %v5615, 0
    %v5620 = vsel %vm529, %v5617, 0
    %5622 = vmatprep.subr.mxu0 0.0
    %5623 = vmatpush1.xpose.msra.mxu0 %v5620
    %5624 = vmatprep.subr.mxu0 0.0
    %5625 = vmatpush1.xpose.msra.mxu0 0.0
    %5626 = vmatprep.subr.mxu0 0.0
    %5627 = vmatpush1.xpose.msra.mxu0 0.0
    %5628 = vmatprep.subr.mxu0 0.0
    %5629 = vmatpush1.xpose.msra.mxu0 0.0
    %5630 = vmatprep.subr.mxu0 0.0
    %5631 = vmatpush1.xpose.msra.mxu0 0.0
    %5632 = vmatprep.subr.mxu0 0.0
    %5633 = vmatpush1.xpose.msra.mxu0 0.0
    %5634 = vmatprep.subr.mxu0 0.0
    %5635 = vmatpush1.xpose.msra.mxu0 0.0
    %5636 = vmatprep.subr.mxu0 0.0
    %5637 = vmatpush1.xpose.msra.mxu0 0.0
    %5638 = vmatprep.subr.mxu0 0.0
    %5639 = vmatpush1.xpose.msra.mxu0 0.0
    %5640 = vmatprep.subr.mxu0 0.0
    %5641 = vmatpush1.xpose.msra.mxu0 0.0
    %5642 = vmatprep.subr.mxu0 0.0
    %5643 = vmatpush1.xpose.msra.mxu0 0.0
    %5644 = vmatprep.subr.mxu0 0.0
    %5645 = vmatpush1.xpose.msra.mxu0 0.0
    %5646 = vmatprep.subr.mxu0 0.0
    %5647 = vmatpush1.xpose.msra.mxu0 0.0
    %5648 = vmatprep.subr.mxu0 0.0
    %5649 = vmatpush1.xpose.msra.mxu0 0.0
    %5650 = vmatprep.subr.mxu0 0.0
    %5651 = vmatpush1.xpose.msra.mxu0 0.0
    %5652 = vmatprep.subr.mxu0 0.0
    %5653 = vmatpush1.xpose.msra.mxu0 0.0
    %5654 = vmatprep.subr.mxu0 0.0
    %5655 = vmatpush1.xpose.msra.mxu0 0.0
    %5656 = vmatprep.subr.mxu0 0.0
    %5657 = vmatpush1.xpose.msra.mxu0 0.0
    %5658 = vmatprep.subr.mxu0 0.0
    %5659 = vmatpush1.xpose.msra.mxu0 0.0
    %5660 = vmatprep.subr.mxu0 0.0
    %5661 = vmatpush1.xpose.msra.mxu0 0.0
    %5662 = vmatprep.subr.mxu0 0.0
    %5663 = vmatpush1.xpose.msra.mxu0 0.0
    %5664 = vmatprep.subr.mxu0 0.0
    %5665 = vmatpush1.xpose.msra.mxu0 0.0
    %5666 = vmatprep.subr.mxu0 0.0
    %5667 = vmatpush1.xpose.msra.mxu0 0.0
    %5668 = vmatprep.subr.mxu0 0.0
    %5669 = vmatpush1.xpose.msra.mxu0 0.0
    %5670 = vmatprep.subr.mxu0 0.0
    %5671 = vmatpush1.xpose.msra.mxu0 0.0
    %5672 = vmatprep.subr.mxu0 0.0
    %5673 = vmatpush1.xpose.msra.mxu0 0.0
    %5674 = vmatprep.subr.mxu0 0.0
    %5675 = vmatpush1.xpose.msra.mxu0 0.0
    %5676 = vmatprep.subr.mxu0 0.0
    %5677 = vmatpush1.xpose.msra.mxu0 0.0
    %5678 = vmatprep.subr.mxu0 0.0
    %5679 = vmatpush1.xpose.msra.mxu0 0.0
    %5680 = vmatprep.subr.mxu0 0.0
    %5681 = vmatpush1.xpose.msra.mxu0 0.0
    %5682 = vmatprep.subr.mxu0 0.0
    %5683 = vmatpush1.xpose.msra.mxu0 0.0
    %5684 = vmatprep.subr.mxu0 0.0
    %5685 = vmatpush1.xpose.msra.mxu0 0.0
    %5686 = vmatprep.mubr.f32.mxu0 0.0
    %5687 = vmatmul.mubr.f32.gmra.mrb[0].mxu0 %v5618
    %v5688 = vpop.f32.mrb[0].mxu0
    %v5689 = vadd.f32 0.0, %v5688
    %v5690 = vpop.f32.mrb[0].mxu0
    %5691 = vdwg.mxu0
    %v5692 = vmul.f32 %v5689, 0.35355338
    %v5693 = vsel %vm4507, %v5692, -inf
    %5694 = vmax.xlane.f32.xlu0 %v5693
    %v5695 = vpop.xlane.xlu0 %5694
    %v5696 = vsub.f32 %v5692, %v5695
    %v5697 = vmul.f32 %v5696, 1.442695
    %v5698 = vpow.pop %v5697
    %v5699 = vsel %vm4507, %v5698, 0.0
    %5700 = vadd.xlane.f32.xlu0 %v5699
    %v5701 = vpop.xlane.xlu0 %5700
    %v5702 = vrcp.pop %v5701
    %v5703 = vmul.f32 %v5698, %v5702
    %5704 = vrot.lane.b32.xlu0 %v5116, 72
    %v5705 = vpop.permute.xlu0 %5704
    %v5707 = vsel %vm700, %v5703, 0
    %v5709 = vsel %vm556, %v5705, 0
    %5711 = vmatprep.subr.mxu0 0.0
    %5712 = vmatpush1.msra.mxu0 %v5709
    %5713 = vmatprep.subr.mxu0 0.0
    %5714 = vmatpush1.msra.mxu0 0.0
    %5715 = vmatprep.subr.mxu0 0.0
    %5716 = vmatpush1.msra.mxu0 0.0
    %5717 = vmatprep.subr.mxu0 0.0
    %5718 = vmatpush1.msra.mxu0 0.0
    %5719 = vmatprep.subr.mxu0 0.0
    %5720 = vmatpush1.msra.mxu0 0.0
    %5721 = vmatprep.subr.mxu0 0.0
    %5722 = vmatpush1.msra.mxu0 0.0
    %5723 = vmatprep.subr.mxu0 0.0
    %5724 = vmatpush1.msra.mxu0 0.0
    %5725 = vmatprep.subr.mxu0 0.0
    %5726 = vmatpush1.msra.mxu0 0.0
    %5727 = vmatprep.subr.mxu0 0.0
    %5728 = vmatpush1.msra.mxu0 0.0
    %5729 = vmatprep.subr.mxu0 0.0
    %5730 = vmatpush1.msra.mxu0 0.0
    %5731 = vmatprep.subr.mxu0 0.0
    %5732 = vmatpush1.msra.mxu0 0.0
    %5733 = vmatprep.subr.mxu0 0.0
    %5734 = vmatpush1.msra.mxu0 0.0
    %5735 = vmatprep.subr.mxu0 0.0
    %5736 = vmatpush1.msra.mxu0 0.0
    %5737 = vmatprep.subr.mxu0 0.0
    %5738 = vmatpush1.msra.mxu0 0.0
    %5739 = vmatprep.subr.mxu0 0.0
    %5740 = vmatpush1.msra.mxu0 0.0
    %5741 = vmatprep.subr.mxu0 0.0
    %5742 = vmatpush1.msra.mxu0 0.0
    %5743 = vmatprep.subr.mxu0 0.0
    %5744 = vmatpush1.msra.mxu0 0.0
    %5745 = vmatprep.subr.mxu0 0.0
    %5746 = vmatpush1.msra.mxu0 0.0
    %5747 = vmatprep.subr.mxu0 0.0
    %5748 = vmatpush1.msra.mxu0 0.0
    %5749 = vmatprep.subr.mxu0 0.0
    %5750 = vmatpush1.msra.mxu0 0.0
    %5751 = vmatprep.subr.mxu0 0.0
    %5752 = vmatpush1.msra.mxu0 0.0
    %5753 = vmatprep.subr.mxu0 0.0
    %5754 = vmatpush1.msra.mxu0 0.0
    %5755 = vmatprep.subr.mxu0 0.0
    %5756 = vmatpush1.msra.mxu0 0.0
    %5757 = vmatprep.subr.mxu0 0.0
    %5758 = vmatpush1.msra.mxu0 0.0
    %5759 = vmatprep.subr.mxu0 0.0
    %5760 = vmatpush1.msra.mxu0 0.0
    %5761 = vmatprep.subr.mxu0 0.0
    %5762 = vmatpush1.msra.mxu0 0.0
    %5763 = vmatprep.subr.mxu0 0.0
    %5764 = vmatpush1.msra.mxu0 0.0
    %5765 = vmatprep.subr.mxu0 0.0
    %5766 = vmatpush1.msra.mxu0 0.0
    %5767 = vmatprep.subr.mxu0 0.0
    %5768 = vmatpush1.msra.mxu0 0.0
    %5769 = vmatprep.subr.mxu0 0.0
    %5770 = vmatpush1.msra.mxu0 0.0
    %5771 = vmatprep.subr.mxu0 0.0
    %5772 = vmatpush1.msra.mxu0 0.0
    %5773 = vmatprep.subr.mxu0 0.0
    %5774 = vmatpush1.msra.mxu0 0.0
    %5775 = vmatprep.mubr.f32.mxu0 0.0
    %5776 = vmatmul.mubr.f32.gmra.mrb[0].mxu0 %v5707
    %v5777 = vpop.f32.mrb[0].mxu0
    %v5778 = vadd.f32 0.0, %v5777
    %v5779 = vpop.f32.mrb[0].mxu0
    %5780 = vdwg.mxu0
    %5782 = vrot.lane.b32.xlu0 %v5444, 8
    %v5783 = vpop.permute.xlu0 %5782
    %5786 = vrot.lane.b32.xlu0 %v5611, 16
    %v5787 = vpop.permute.xlu0 %5786
    %5790 = vrot.lane.b32.xlu0 %v5778, 24
    %v5791 = vpop.permute.xlu0 %5790
    %v5793 = vsel %vm529, %v5277, %v5783
    %v5794 = vsel %vm1574, %v5793, %v5787
    %v5795 = vsel %vm1576, %v5794, %v5791
    %v5797 = vrot.slane %v5795, 6
    %v5799 = vsel %vm695, %v5111, %v5797
    %v5801 = vlaneseq
    %v5802 = vshrl.u32 %v5801, 7
    %v5803 = vsub.s32 0, %v5802
    %v5804 = vrot.slane %v2690, %v5803
    %v5807 = vsel %vm811, %v5799, 0
    %5809 = vmatprep.subr.mxu0 0.0
    %5810 = vmatpush1.msra.mxu0 %v2686
    %5811 = vmatprep.subr.mxu0 0.0
    %5812 = vmatpush1.msra.mxu0 %v2687
    %5813 = vmatprep.subr.mxu0 0.0
    %5814 = vmatpush1.msra.mxu0 %v2688
    %5815 = vmatprep.subr.mxu0 0.0
    %5816 = vmatpush1.msra.mxu0 %v2689
    %5817 = vmatprep.subr.mxu0 0.0
    %5818 = vmatpush1.msra.mxu0 0.0
    %5819 = vmatprep.subr.mxu0 0.0
    %5820 = vmatpush1.msra.mxu0 0.0
    %5821 = vmatprep.subr.mxu0 0.0
    %5822 = vmatpush1.msra.mxu0 0.0
    %5823 = vmatprep.subr.mxu0 0.0
    %5824 = vmatpush1.msra.mxu0 0.0
    %5825 = vmatprep.subr.mxu0 0.0
    %5826 = vmatpush1.msra.mxu0 0.0
    %5827 = vmatprep.subr.mxu0 0.0
    %5828 = vmatpush1.msra.mxu0 0.0
    %5829 = vmatprep.subr.mxu0 0.0
    %5830 = vmatpush1.msra.mxu0 0.0
    %5831 = vmatprep.subr.mxu0 0.0
    %5832 = vmatpush1.msra.mxu0 0.0
    %5833 = vmatprep.subr.mxu0 0.0
    %5834 = vmatpush1.msra.mxu0 0.0
    %5835 = vmatprep.subr.mxu0 0.0
    %5836 = vmatpush1.msra.mxu0 0.0
    %5837 = vmatprep.subr.mxu0 0.0
    %5838 = vmatpush1.msra.mxu0 0.0
    %5839 = vmatprep.subr.mxu0 0.0
    %5840 = vmatpush1.msra.mxu0 0.0
    %5841 = vmatprep.subr.mxu0 0.0
    %5842 = vmatpush1.msra.mxu0 0.0
    %5843 = vmatprep.subr.mxu0 0.0
    %5844 = vmatpush1.msra.mxu0 0.0
    %5845 = vmatprep.subr.mxu0 0.0
    %5846 = vmatpush1.msra.mxu0 0.0
    %5847 = vmatprep.subr.mxu0 0.0
    %5848 = vmatpush1.msra.mxu0 0.0
    %5849 = vmatprep.subr.mxu0 0.0
    %5850 = vmatpush1.msra.mxu0 0.0
    %5851 = vmatprep.subr.mxu0 0.0
    %5852 = vmatpush1.msra.mxu0 0.0
    %5853 = vmatprep.subr.mxu0 0.0
    %5854 = vmatpush1.msra.mxu0 0.0
    %5855 = vmatprep.subr.mxu0 0.0
    %5856 = vmatpush1.msra.mxu0 0.0
    %5857 = vmatprep.subr.mxu0 0.0
    %5858 = vmatpush1.msra.mxu0 0.0
    %5859 = vmatprep.subr.mxu0 0.0
    %5860 = vmatpush1.msra.mxu0 0.0
    %5861 = vmatprep.subr.mxu0 0.0
    %5862 = vmatpush1.msra.mxu0 0.0
    %5863 = vmatprep.subr.mxu0 0.0
    %5864 = vmatpush1.msra.mxu0 0.0
    %5865 = vmatprep.subr.mxu0 0.0
    %5866 = vmatpush1.msra.mxu0 0.0
    %5867 = vmatprep.subr.mxu0 0.0
    %5868 = vmatpush1.msra.mxu0 0.0
    %5869 = vmatprep.subr.mxu0 0.0
    %5870 = vmatpush1.msra.mxu0 0.0
    %5871 = vmatprep.subr.mxu0 0.0
    %5872 = vmatpush1.msra.mxu0 0.0
    %5873 = vmatprep.mubr.f32.mxu0 0.0
    %5874 = vmatmul.mubr.f32.gmra.mrb[0].mxu0 %v5807
    %v5875 = vpop.f32.mrb[0].mxu0
    %v5876 = vadd.f32 %v5804, %v5875
    %v5877 = vpop.f32.mrb[0].mxu0
    %5878 = vdwg.mxu0
    %v5879 = vadd.f32 %v4263, %v5876
    %v5880 = vsel %vm2358, %v5879, 0.0
    %5881 = vadd.xlane.f32.xlu0 %v5880
    %v5882 = vpop.xlane.xlu0 %5881
    %v5883 = vmul.f32 %v5882, %v2362
    %v5884 = vsub.f32 %v5879, %v5883
    %v5885 = vmul.f32 %v5884, %v5884
    %v5886 = vsel %vm2358, %v5885, 0.0
    %5887 = vadd.xlane.f32.xlu0 %v5886
    %v5888 = vpop.xlane.xlu0 %5887
    %v5889 = vmul.f32 %v5888, %v2362
    %v5890 = vadd.f32 %v5889, 1e-05
    %v5891 = vrsqrt.pop %v5890
    %v5892 = vmul.f32 %v5884, %v5891
    %v5894 = vlaneseq
    %v5895 = vshrl.u32 %v5894, 7
    %v5896 = vsub.s32 0, %v5895
    %v5897 = vrot.slane %v2691, %v5896
    %v5899 = vmul.f32 %v5892, %v5897
    %v5901 = vlaneseq
    %v5902 = vshrl.u32 %v5901, 7
    %v5903 = vsub.s32 0, %v5902
    %v5904 = vrot.slane %v2692, %v5903
    %v5906 = vadd.f32 %v5899, %v5904
    %v5908 = vlaneseq
    %v5909 = vshrl.u32 %v5908, 7
    %v5910 = vsub.s32 0, %v5909
    %v5911 = vrot.slane %v2697, %v5910
    %v5914 = vsel %vm811, %v5906, 0
    %5916 = vmatprep.subr.mxu0 0.0
    %5917 = vmatpush1.msra.mxu0 %v2693
    %5918 = vmatprep.subr.mxu0 0.0
    %5919 = vmatpush1.msra.mxu0 %v2694
    %5920 = vmatprep.subr.mxu0 0.0
    %5921 = vmatpush1.msra.mxu0 %v2695
    %5922 = vmatprep.subr.mxu0 0.0
    %5923 = vmatpush1.msra.mxu0 %v2696
    %5924 = vmatprep.subr.mxu0 0.0
    %5925 = vmatpush1.msra.mxu0 0.0
    %5926 = vmatprep.subr.mxu0 0.0
    %5927 = vmatpush1.msra.mxu0 0.0
    %5928 = vmatprep.subr.mxu0 0.0
    %5929 = vmatpush1.msra.mxu0 0.0
    %5930 = vmatprep.subr.mxu0 0.0
    %5931 = vmatpush1.msra.mxu0 0.0
    %5932 = vmatprep.subr.mxu0 0.0
    %5933 = vmatpush1.msra.mxu0 0.0
    %5934 = vmatprep.subr.mxu0 0.0
    %5935 = vmatpush1.msra.mxu0 0.0
    %5936 = vmatprep.subr.mxu0 0.0
    %5937 = vmatpush1.msra.mxu0 0.0
    %5938 = vmatprep.subr.mxu0 0.0
    %5939 = vmatpush1.msra.mxu0 0.0
    %5940 = vmatprep.subr.mxu0 0.0
    %5941 = vmatpush1.msra.mxu0 0.0
    %5942 = vmatprep.subr.mxu0 0.0
    %5943 = vmatpush1.msra.mxu0 0.0
    %5944 = vmatprep.subr.mxu0 0.0
    %5945 = vmatpush1.msra.mxu0 0.0
    %5946 = vmatprep.subr.mxu0 0.0
    %5947 = vmatpush1.msra.mxu0 0.0
    %5948 = vmatprep.subr.mxu0 0.0
    %5949 = vmatpush1.msra.mxu0 0.0
    %5950 = vmatprep.subr.mxu0 0.0
    %5951 = vmatpush1.msra.mxu0 0.0
    %5952 = vmatprep.subr.mxu0 0.0
    %5953 = vmatpush1.msra.mxu0 0.0
    %5954 = vmatprep.subr.mxu0 0.0
    %5955 = vmatpush1.msra.mxu0 0.0
    %5956 = vmatprep.subr.mxu0 0.0
    %5957 = vmatpush1.msra.mxu0 0.0
    %5958 = vmatprep.subr.mxu0 0.0
    %5959 = vmatpush1.msra.mxu0 0.0
    %5960 = vmatprep.subr.mxu0 0.0
    %5961 = vmatpush1.msra.mxu0 0.0
    %5962 = vmatprep.subr.mxu0 0.0
    %5963 = vmatpush1.msra.mxu0 0.0
    %5964 = vmatprep.subr.mxu0 0.0
    %5965 = vmatpush1.msra.mxu0 0.0
    %5966 = vmatprep.subr.mxu0 0.0
    %5967 = vmatpush1.msra.mxu0 0.0
    %5968 = vmatprep.subr.mxu0 0.0
    %5969 = vmatpush1.msra.mxu0 0.0
    %5970 = vmatprep.subr.mxu0 0.0
    %5971 = vmatpush1.msra.mxu0 0.0
    %5972 = vmatprep.subr.mxu0 0.0
    %5973 = vmatpush1.msra.mxu0 0.0
    %5974 = vmatprep.subr.mxu0 0.0
    %5975 = vmatpush1.msra.mxu0 0.0
    %5976 = vmatprep.subr.mxu0 0.0
    %5977 = vmatpush1.msra.mxu0 0.0
    %5978 = vmatprep.subr.mxu0 0.0
    %5979 = vmatpush1.msra.mxu0 0.0
    %5980 = vmatprep.mubr.f32.mxu0 0.0
    %5981 = vmatmul.mubr.f32.gmra.mrb[0].mxu0 %v5914
    %v5982 = vpop.f32.mrb[0].mxu0
    %v5983 = vadd.f32 %v5911, %v5982
    %v5984 = vpop.f32.mrb[0].mxu0
    %5985 = vdwg.mxu0
    %v5986 = vmax.f32 %v5983, 0.0
    %v5988 = vlaneseq
    %v5989 = vshrl.u32 %v5988, 7
    %v5990 = vsub.s32 0, %v5989
    %v5991 = vrot.slane %v2706, %v5990
    %v5994 = vsel %vm2494, %v5986, 0
    %5996 = vmatprep.subr.mxu0 0.0
    %5997 = vmatpush1.msra.mxu0 %v2698
    %5998 = vmatprep.subr.mxu0 0.0
    %5999 = vmatpush1.msra.mxu0 %v2699
    %6000 = vmatprep.subr.mxu0 0.0
    %6001 = vmatpush1.msra.mxu0 %v2700
    %6002 = vmatprep.subr.mxu0 0.0
    %6003 = vmatpush1.msra.mxu0 %v2701
    %6004 = vmatprep.subr.mxu0 0.0
    %6005 = vmatpush1.msra.mxu0 %v2702
    %6006 = vmatprep.subr.mxu0 0.0
    %6007 = vmatpush1.msra.mxu0 %v2703
    %6008 = vmatprep.subr.mxu0 0.0
    %6009 = vmatpush1.msra.mxu0 %v2704
    %6010 = vmatprep.subr.mxu0 0.0
    %6011 = vmatpush1.msra.mxu0 %v2705
    %6012 = vmatprep.subr.mxu0 0.0
    %6013 = vmatpush1.msra.mxu0 0.0
    %6014 = vmatprep.subr.mxu0 0.0
    %6015 = vmatpush1.msra.mxu0 0.0
    %6016 = vmatprep.subr.mxu0 0.0
    %6017 = vmatpush1.msra.mxu0 0.0
    %6018 = vmatprep.subr.mxu0 0.0
    %6019 = vmatpush1.msra.mxu0 0.0
    %6020 = vmatprep.subr.mxu0 0.0
    %6021 = vmatpush1.msra.mxu0 0.0
    %6022 = vmatprep.subr.mxu0 0.0
    %6023 = vmatpush1.msra.mxu0 0.0
    %6024 = vmatprep.subr.mxu0 0.0
    %6025 = vmatpush1.msra.mxu0 0.0
    %6026 = vmatprep.subr.mxu0 0.0
    %6027 = vmatpush1.msra.mxu0 0.0
    %6028 = vmatprep.subr.mxu0 0.0
    %6029 = vmatpush1.msra.mxu0 0.0
    %6030 = vmatprep.subr.mxu0 0.0
    %6031 = vmatpush1.msra.mxu0 0.0
    %6032 = vmatprep.subr.mxu0 0.0
    %6033 = vmatpush1.msra.mxu0 0.0
    %6034 = vmatprep.subr.mxu0 0.0
    %6035 = vmatpush1.msra.mxu0 0.0
    %6036 = vmatprep.subr.mxu0 0.0
    %6037 = vmatpush1.msra.mxu0 0.0
    %6038 = vmatprep.subr.mxu0 0.0
    %6039 = vmatpush1.msra.mxu0 0.0
    %6040 = vmatprep.subr.mxu0 0.0
    %6041 = vmatpush1.msra.mxu0 0.0
    %6042 = vmatprep.subr.mxu0 0.0
    %6043 = vmatpush1.msra.mxu0 0.0
    %6044 = vmatprep.subr.mxu0 0.0
    %6045 = vmatpush1.msra.mxu0 0.0
    %6046 = vmatprep.subr.mxu0 0.0
    %6047 = vmatpush1.msra.mxu0 0.0
    %6048 = vmatprep.subr.mxu0 0.0
    %6049 = vmatpush1.msra.mxu0 0.0
    %6050 = vmatprep.subr.mxu0 0.0
    %6051 = vmatpush1.msra.mxu0 0.0
    %6052 = vmatprep.subr.mxu0 0.0
    %6053 = vmatpush1.msra.mxu0 0.0
    %6054 = vmatprep.subr.mxu0 0.0
    %6055 = vmatpush1.msra.mxu0 0.0
    %6056 = vmatprep.subr.mxu0 0.0
    %6057 = vmatpush1.msra.mxu0 0.0
    %6058 = vmatprep.subr.mxu0 0.0
    %6059 = vmatpush1.msra.mxu0 0.0
    %6060 = vmatprep.mubr.f32.mxu0 0.0
    %6061 = vmatmul.mubr.f32.gmra.mrb[0].mxu0 %v5994
    %v6062 = vpop.f32.mrb[0].mxu0
    %v6063 = vadd.f32 %v5991, %v6062
    %v6064 = vpop.f32.mrb[0].mxu0
    %6065 = vdwg.mxu0
    %v6066 = vadd.f32 %v5906, %v6063
    %v6067 = vsel %vm2358, %v6066, 0.0
    %6068 = vadd.xlane.f32.xlu0 %v6067
    %v6069 = vpop.xlane.xlu0 %6068
    %v6070 = vmul.f32 %v6069, %v2362
    %v6071 = vsub.f32 %v6066, %v6070
    %v6072 = vmul.f32 %v6071, %v6071
    %v6073 = vsel %vm2358, %v6072, 0.0
    %6074 = vadd.xlane.f32.xlu0 %v6073
    %v6075 = vpop.xlane.xlu0 %6074
    %v6076 = vmul.f32 %v6075, %v2362
    %v6077 = vadd.f32 %v6076, 1e-05
    %v6078 = vrsqrt.pop %v6077
    %v6079 = vmul.f32 %v6071, %v6078
    %v6081 = vlaneseq
    %v6082 = vshrl.u32 %v6081, 7
    %v6083 = vsub.s32 0, %v6082
    %v6084 = vrot.slane %v2707, %v6083
    %v6086 = vmul.f32 %v6079, %v6084
    %v6088 = vlaneseq
    %v6089 = vshrl.u32 %v6088, 7
    %v6090 = vsub.s32 0, %v6089
    %v6091 = vrot.slane %v2708, %v6090
    %v6093 = vadd.f32 %v6086, %v6091
    %v6094 = vld [vmem:[%s79] sm:$0x1]
    %v6095 = vld [vmem:[%s81] sm:$0x1]
    %v6097 = vrot.slane %v6093, 1
    %v6099 = vrot.slane %v6093, 2
    %v6101 = vsel %vm514, %v6097, %v6099
    %vm6102 = vcmask 254976
    %v6103 = vsel %vm6102, %v6101, 0.0
    %6104 = vadd.xlane.f32.xlu0 %v6103
    %v6105 = vpop.xlane.xlu0 %6104
    %v6106 = vmul.f32 %v6105, %v2362
    %v6107 = vsub.f32 %v6101, %v6106
    %v6108 = vmul.f32 %v6107, %v6107
    %v6109 = vsel %vm6102, %v6108, 0.0
    %6110 = vadd.xlane.f32.xlu0 %v6109
    %v6111 = vpop.xlane.xlu0 %6110
    %v6112 = vmul.f32 %v6111, %v2362
    %v6113 = vadd.f32 %v6112, 1e-05
    %v6114 = vrsqrt.pop %v6113
    %v6115 = vmul.f32 %v6107, %v6114
    %v6117 = vlaneseq
    %v6118 = vshrl.u32 %v6117, 7
    %v6119 = vsub.s32 0, %v6118
    %v6120 = vrot.slane %v6094, %v6119
    %v6122 = vmul.f32 %v6115, %v6120
    %v6124 = vlaneseq
    %v6125 = vshrl.u32 %v6124, 7
    %v6126 = vsub.s32 0, %v6125
    %v6127 = vrot.slane %v6095, %v6126
    %v6129 = vadd.f32 %v6122, %v6127
    %v6130 = vld [vmem:[%s83] sm:$0xff]
    %v6131 = vld [vmem:[%s83 + $0x8] sm:$0xff]
    %v6132 = vld [vmem:[%s83 + $0x10] sm:$0xff]
    %v6133 = vld [vmem:[%s83 + $0x18] sm:$0xff]
    %v6134 = vld [vmem:[%s85] sm:$0x1]
    %v6135 = vld [vmem:[%s87] sm:$0x1]
    %v6136 = vld [vmem:[%s89] sm:$0x1]
    %v6138 = vlaneseq
    %v6139 = vshrl.u32 %v6138, 7
    %v6140 = vsub.s32 0, %v6139
    %v6141 = vrot.slane %v6134, %v6140
    %v6144 = vsel %vm811, %v6129, 0
    %6146 = vmatprep.subr.mxu0 0.0
    %6147 = vmatpush1.msra.mxu0 %v6130
    %6148 = vmatprep.subr.mxu0 0.0
    %6149 = vmatpush1.msra.mxu0 %v6131
    %6150 = vmatprep.subr.mxu0 0.0
    %6151 = vmatpush1.msra.mxu0 %v6132
    %6152 = vmatprep.subr.mxu0 0.0
    %6153 = vmatpush1.msra.mxu0 %v6133
    %6154 = vmatprep.subr.mxu0 0.0
    %6155 = vmatpush1.msra.mxu0 0.0
    %6156 = vmatprep.subr.mxu0 0.0
    %6157 = vmatpush1.msra.mxu0 0.0
    %6158 = vmatprep.subr.mxu0 0.0
    %6159 = vmatpush1.msra.mxu0 0.0
    %6160 = vmatprep.subr.mxu0 0.0
    %6161 = vmatpush1.msra.mxu0 0.0
    %6162 = vmatprep.subr.mxu0 0.0
    %6163 = vmatpush1.msra.mxu0 0.0
    %6164 = vmatprep.subr.mxu0 0.0
    %6165 = vmatpush1.msra.mxu0 0.0
    %6166 = vmatprep.subr.mxu0 0.0
    %6167 = vmatpush1.msra.mxu0 0.0
    %6168 = vmatprep.subr.mxu0 0.0
    %6169 = vmatpush1.msra.mxu0 0.0
    %6170 = vmatprep.subr.mxu0 0.0
    %6171 = vmatpush1.msra.mxu0 0.0
    %6172 = vmatprep.subr.mxu0 0.0
    %6173 = vmatpush1.msra.mxu0 0.0
    %6174 = vmatprep.subr.mxu0 0.0
    %6175 = vmatpush1.msra.mxu0 0.0
    %6176 = vmatprep.subr.mxu0 0.0
    %6177 = vmatpush1.msra.mxu0 0.0
    %6178 = vmatprep.subr.mxu0 0.0
    %6179 = vmatpush1.msra.mxu0 0.0
    %6180 = vmatprep.subr.mxu0 0.0
    %6181 = vmatpush1.msra.mxu0 0.0
    %6182 = vmatprep.subr.mxu0 0.0
    %6183 = vmatpush1.msra.mxu0 0.0
    %6184 = vmatprep.subr.mxu0 0.0
    %6185 = vmatpush1.msra.mxu0 0.0
    %6186 = vmatprep.subr.mxu0 0.0
    %6187 = vmatpush1.msra.mxu0 0.0
    %6188 = vmatprep.subr.mxu0 0.0
    %6189 = vmatpush1.msra.mxu0 0.0
    %6190 = vmatprep.subr.mxu0 0.0
    %6191 = vmatpush1.msra.mxu0 0.0
    %6192 = vmatprep.subr.mxu0 0.0
    %6193 = vmatpush1.msra.mxu0 0.0
    %6194 = vmatprep.subr.mxu0 0.0
    %6195 = vmatpush1.msra.mxu0 0.0
    %6196 = vmatprep.subr.mxu0 0.0
    %6197 = vmatpush1.msra.mxu0 0.0
    %6198 = vmatprep.subr.mxu0 0.0
    %6199 = vmatpush1.msra.mxu0 0.0
    %6200 = vmatprep.subr.mxu0 0.0
    %6201 = vmatpush1.msra.mxu0 0.0
    %6202 = vmatprep.subr.mxu0 0.0
    %6203 = vmatpush1.msra.mxu0 0.0
    %6204 = vmatprep.subr.mxu0 0.0
    %6205 = vmatpush1.msra.mxu0 0.0
    %6206 = vmatprep.subr.mxu0 0.0
    %6207 = vmatpush1.msra.mxu0 0.0
    %6208 = vmatprep.subr.mxu0 0.0
    %6209 = vmatpush1.msra.mxu0 0.0
    %6210 = vmatprep.mubr.f32.mxu0 0.0
    %6211 = vmatmul.mubr.f32.gmra.mrb[0].mxu0 %v6144
    %v6212 = vpop.f32.mrb[0].mxu0
    %v6213 = vadd.f32 %v6141, %v6212
    %v6214 = vpop.f32.mrb[0].mxu0
    %6215 = vdwg.mxu0
    %v6216 = vsel %vm6102, %v6213, 0.0
    %6217 = vadd.xlane.f32.xlu0 %v6216
    %v6218 = vpop.xlane.xlu0 %6217
    %v6219 = vmul.f32 %v6218, %v2362
    %v6220 = vsub.f32 %v6213, %v6219
    %v6221 = vmul.f32 %v6220, %v6220
    %v6222 = vsel %vm6102, %v6221, 0.0
    %6223 = vadd.xlane.f32.xlu0 %v6222
    %v6224 = vpop.xlane.xlu0 %6223
    %v6225 = vmul.f32 %v6224, %v2362
    %v6226 = vadd.f32 %v6225, 1e-05
    %v6227 = vrsqrt.pop %v6226
    %v6228 = vmul.f32 %v6220, %v6227
    %v6230 = vlaneseq
    %v6231 = vshrl.u32 %v6230, 7
    %v6232 = vsub.s32 0, %v6231
    %v6233 = vrot.slane %v6135, %v6232
    %v6235 = vmul.f32 %v6228, %v6233
    %v6237 = vlaneseq
    %v6238 = vshrl.u32 %v6237, 7
    %v6239 = vsub.s32 0, %v6238
    %v6240 = vrot.slane %v6136, %v6239
    %v6242 = vadd.f32 %v6235, %v6240
    %v6243 = vtanh.pop %v6242
    %v6244 = vld [vmem:[%s91] sm:$0xff]
    %v6245 = vld [vmem:[%s91 + $0x8] sm:$0xff]
    %v6246 = vld [vmem:[%s91 + $0x10] sm:$0xff]
    %v6247 = vld [vmem:[%s91 + $0x18] sm:$0xff]
    %v6248 = vld [vmem:[%s93] sm:$0x1]
    %v6249 = vld [vmem:[%s95] sm:$0x1]
    %v6250 = vld [vmem:[#allocation20] sm:$0x1]
    %v6252 = vlaneseq
    %v6253 = vshrl.u32 %v6252, 7
    %v6254 = vsub.s32 0, %v6253
    %v6255 = vrot.slane %v6248, %v6254
    %v6258 = vsel %vm811, %v6243, 0
    %6260 = vmatprep.subr.mxu0 0.0
    %6261 = vmatpush1.msra.mxu0 %v6244
    %6262 = vmatprep.subr.mxu0 0.0
    %6263 = vmatpush1.msra.mxu0 %v6245
    %6264 = vmatprep.subr.mxu0 0.0
    %6265 = vmatpush1.msra.mxu0 %v6246
    %6266 = vmatprep.subr.mxu0 0.0
    %6267 = vmatpush1.msra.mxu0 %v6247
    %6268 = vmatprep.subr.mxu0 0.0
    %6269 = vmatpush1.msra.mxu0 0.0
    %6270 = vmatprep.subr.mxu0 0.0
    %6271 = vmatpush1.msra.mxu0 0.0
    %6272 = vmatprep.subr.mxu0 0.0
    %6273 = vmatpush1.msra.mxu0 0.0
    %6274 = vmatprep.subr.mxu0 0.0
    %6275 = vmatpush1.msra.mxu0 0.0
    %6276 = vmatprep.subr.mxu0 0.0
    %6277 = vmatpush1.msra.mxu0 0.0
    %6278 = vmatprep.subr.mxu0 0.0
    %6279 = vmatpush1.msra.mxu0 0.0
    %6280 = vmatprep.subr.mxu0 0.0
    %6281 = vmatpush1.msra.mxu0 0.0
    %6282 = vmatprep.subr.mxu0 0.0
    %6283 = vmatpush1.msra.mxu0 0.0
    %6284 = vmatprep.subr.mxu0 0.0
    %6285 = vmatpush1.msra.mxu0 0.0
    %6286 = vmatprep.subr.mxu0 0.0
    %6287 = vmatpush1.msra.mxu0 0.0
    %6288 = vmatprep.subr.mxu0 0.0
    %6289 = vmatpush1.msra.mxu0 0.0
    %6290 = vmatprep.subr.mxu0 0.0
    %6291 = vmatpush1.msra.mxu0 0.0
    %6292 = vmatprep.subr.mxu0 0.0
    %6293 = vmatpush1.msra.mxu0 0.0
    %6294 = vmatprep.subr.mxu0 0.0
    %6295 = vmatpush1.msra.mxu0 0.0
    %6296 = vmatprep.subr.mxu0 0.0
    %6297 = vmatpush1.msra.mxu0 0.0
    %6298 = vmatprep.subr.mxu0 0.0
    %6299 = vmatpush1.msra.mxu0 0.0
    %6300 = vmatprep.subr.mxu0 0.0
    %6301 = vmatpush1.msra.mxu0 0.0
    %6302 = vmatprep.subr.mxu0 0.0
    %6303 = vmatpush1.msra.mxu0 0.0
    %6304 = vmatprep.subr.mxu0 0.0
    %6305 = vmatpush1.msra.mxu0 0.0
    %6306 = vmatprep.subr.mxu0 0.0
    %6307 = vmatpush1.msra.mxu0 0.0
    %6308 = vmatprep.subr.mxu0 0.0
    %6309 = vmatpush1.msra.mxu0 0.0
    %6310 = vmatprep.subr.mxu0 0.0
    %6311 = vmatpush1.msra.mxu0 0.0
    %6312 = vmatprep.subr.mxu0 0.0
    %6313 = vmatpush1.msra.mxu0 0.0
    %6314 = vmatprep.subr.mxu0 0.0
    %6315 = vmatpush1.msra.mxu0 0.0
    %6316 = vmatprep.subr.mxu0 0.0
    %6317 = vmatpush1.msra.mxu0 0.0
    %6318 = vmatprep.subr.mxu0 0.0
    %6319 = vmatpush1.msra.mxu0 0.0
    %6320 = vmatprep.subr.mxu0 0.0
    %6321 = vmatpush1.msra.mxu0 0.0
    %6322 = vmatprep.subr.mxu0 0.0
    %6323 = vmatpush1.msra.mxu0 0.0
    %6324 = vmatprep.mubr.f32.mxu0 0.0
    %6325 = vmatmul.mubr.f32.gmra.mrb[0].mxu0 %v6258
    %v6326 = vpop.f32.mrb[0].mxu0
    %v6327 = vadd.f32 %v6255, %v6326
    %v6328 = vpop.f32.mrb[0].mxu0
    %6329 = vdwg.mxu0
    %v6330 = vsel %vm695, %v6327, 0.0
    %6331 = vadd.xlane.f32.xlu0 %v6330
    %v6332 = vpop.xlane.xlu0 %6331
    %v6333 = vrcp.pop 128.0
    %v6334 = vmul.f32 %v6332, %v6333
    %v6335 = vsub.f32 %v6327, %v6334
    %v6336 = vmul.f32 %v6335, %v6335
    %v6337 = vsel %vm695, %v6336, 0.0
    %6338 = vadd.xlane.f32.xlu0 %v6337
    %v6339 = vpop.xlane.xlu0 %6338
    %v6340 = vmul.f32 %v6339, %v6333
    %v6341 = vadd.f32 %v6340, 1e-05
    %v6342 = vrsqrt.pop %v6341
    %v6343 = vmul.f32 %v6335, %v6342
    %v6345 = vlaneseq
    %v6346 = vshrl.u32 %v6345, 7
    %v6347 = vsub.s32 0, %v6346
    %v6348 = vrot.slane %v6249, %v6347
    %v6350 = vmul.f32 %v6343, %v6348
    %v6352 = vlaneseq
    %v6353 = vshrl.u32 %v6352, 7
    %v6354 = vsub.s32 0, %v6353
    %v6355 = vrot.slane %v6250, %v6354
    %v6357 = vadd.f32 %v6350, %v6355
    %v6358 = vtanh.pop %v6357
    %v6359 = vld [vmem:[%s99] sm:$0xff]
    %v6360 = vld [vmem:[%s99 + $0x8] sm:$0xff]
    %v6361 = vld [vmem:[%s99 + $0x10] sm:$0xff]
    %v6362 = vld [vmem:[%s99 + $0x18] sm:$0xff]
    %v6363 = vld [vmem:[%s99 + $0x20] sm:$0xff]
    %v6364 = vld [vmem:[%s99 + $0x28] sm:$0xff]
    %v6365 = vld [vmem:[%s99 + $0x30] sm:$0xff]
    %v6366 = vld [vmem:[%s99 + $0x38] sm:$0xff]
    %v6367 = vld [vmem:[%s99 + $0x40] sm:$0xff]
    %v6368 = vld [vmem:[%s99 + $0x48] sm:$0xff]
    %v6369 = vld [vmem:[%s99 + $0x50] sm:$0xff]
    %v6370 = vld [vmem:[%s99 + $0x58] sm:$0xff]
    %v6371 = vld [vmem:[%s99 + $0x60] sm:$0xff]
    %v6372 = vld [vmem:[%s99 + $0x68] sm:$0xff]
    %v6373 = vld [vmem:[%s99 + $0x70] sm:$0xff]
    %v6374 = vld [vmem:[%s99 + $0x78] sm:$0xff]
    %v6375 = vld [vmem:[#allocation22] sm:$0x1]
    %v6376 = vld [vmem:[#allocation23] sm:$0x1]
    %v6377 = vld [vmem:[#allocation25] sm:$0x1]
    %v6379 = vlaneseq
    %v6380 = vshrl.u32 %v6379, 7
    %v6381 = vsub.s32 0, %v6380
    %v6382 = vrot.slane %v6375, %v6381
    %6384 = vmatprep.subr.mxu0 0.0
    %6385 = vmatpush1.msra.mxu0 %v6359
    %6386 = vmatprep.subr.mxu0 0.0
    %6387 = vmatpush1.msra.mxu0 %v6360
    %6388 = vmatprep.subr.mxu0 0.0
    %6389 = vmatpush1.msra.mxu0 %v6361
    %6390 = vmatprep.subr.mxu0 0.0
    %6391 = vmatpush1.msra.mxu0 %v6362
    %6392 = vmatprep.subr.mxu0 0.0
    %6393 = vmatpush1.msra.mxu0 %v6363
    %6394 = vmatprep.subr.mxu0 0.0
    %6395 = vmatpush1.msra.mxu0 %v6364
    %6396 = vmatprep.subr.mxu0 0.0
    %6397 = vmatpush1.msra.mxu0 %v6365
    %6398 = vmatprep.subr.mxu0 0.0
    %6399 = vmatpush1.msra.mxu0 %v6366
    %6400 = vmatprep.subr.mxu0 0.0
    %6401 = vmatpush1.msra.mxu0 %v6367
    %6402 = vmatprep.subr.mxu0 0.0
    %6403 = vmatpush1.msra.mxu0 %v6368
    %6404 = vmatprep.subr.mxu0 0.0
    %6405 = vmatpush1.msra.mxu0 %v6369
    %6406 = vmatprep.subr.mxu0 0.0
    %6407 = vmatpush1.msra.mxu0 %v6370
    %6408 = vmatprep.subr.mxu0 0.0
    %6409 = vmatpush1.msra.mxu0 %v6371
    %6410 = vmatprep.subr.mxu0 0.0
    %6411 = vmatpush1.msra.mxu0 %v6372
    %6412 = vmatprep.subr.mxu0 0.0
    %6413 = vmatpush1.msra.mxu0 %v6373
    %6414 = vmatprep.subr.mxu0 0.0
    %6415 = vmatpush1.msra.mxu0 %v6374
    %6416 = vmatprep.subr.mxu0 0.0
    %6417 = vmatpush1.msra.mxu0 0.0
    %6418 = vmatprep.subr.mxu0 0.0
    %6419 = vmatpush1.msra.mxu0 0.0
    %6420 = vmatprep.subr.mxu0 0.0
    %6421 = vmatpush1.msra.mxu0 0.0
    %6422 = vmatprep.subr.mxu0 0.0
    %6423 = vmatpush1.msra.mxu0 0.0
    %6424 = vmatprep.subr.mxu0 0.0
    %6425 = vmatpush1.msra.mxu0 0.0
    %6426 = vmatprep.subr.mxu0 0.0
    %6427 = vmatpush1.msra.mxu0 0.0
    %6428 = vmatprep.subr.mxu0 0.0
    %6429 = vmatpush1.msra.mxu0 0.0
    %6430 = vmatprep.subr.mxu0 0.0
    %6431 = vmatpush1.msra.mxu0 0.0
    %6432 = vmatprep.subr.mxu0 0.0
    %6433 = vmatpush1.msra.mxu0 0.0
    %6434 = vmatprep.subr.mxu0 0.0
    %6435 = vmatpush1.msra.mxu0 0.0
    %6436 = vmatprep.subr.mxu0 0.0
    %6437 = vmatpush1.msra.mxu0 0.0
    %6438 = vmatprep.subr.mxu0 0.0
    %6439 = vmatpush1.msra.mxu0 0.0
    %6440 = vmatprep.subr.mxu0 0.0
    %6441 = vmatpush1.msra.mxu0 0.0
    %6442 = vmatprep.subr.mxu0 0.0
    %6443 = vmatpush1.msra.mxu0 0.0
    %6444 = vmatprep.subr.mxu0 0.0
    %6445 = vmatpush1.msra.mxu0 0.0
    %6446 = vmatprep.subr.mxu0 0.0
    %6447 = vmatpush1.msra.mxu0 0.0
    %6448 = vmatprep.mubr.f32.mxu0 0.0
    %6449 = vmatmul.mubr.f32.gmra.mrb[0].mxu0 %v6358
    %v6450 = vpop.f32.mrb[0].mxu0
    %v6451 = vadd.f32 %v6382, %v6450
    %v6452 = vpop.f32.mrb[0].mxu0
    %6453 = vdwg.mxu0
    %v6454 = vsel %vm695, %v6451, 0.0
    %6455 = vadd.xlane.f32.xlu0 %v6454
    %v6456 = vpop.xlane.xlu0 %6455
    %v6457 = vmul.f32 %v6456, %v6333
    %v6458 = vsub.f32 %v6451, %v6457
    %v6459 = vmul.f32 %v6458, %v6458
    %v6460 = vsel %vm695, %v6459, 0.0
    %6461 = vadd.xlane.f32.xlu0 %v6460
    %v6462 = vpop.xlane.xlu0 %6461
    %v6463 = vmul.f32 %v6462, %v6333
    %v6464 = vadd.f32 %v6463, 1e-05
    %v6465 = vrsqrt.pop %v6464
    %v6466 = vmul.f32 %v6458, %v6465
    %v6468 = vlaneseq
    %v6469 = vshrl.u32 %v6468, 7
    %v6470 = vsub.s32 0, %v6469
    %v6471 = vrot.slane %v6376, %v6470
    %v6473 = vmul.f32 %v6466, %v6471
    %v6475 = vlaneseq
    %v6476 = vshrl.u32 %v6475, 7
    %v6477 = vsub.s32 0, %v6476
    %v6478 = vrot.slane %v6377, %v6477
    %v6480 = vadd.f32 %v6473, %v6478
    %v6481 = vtanh.pop %v6480
    %v6482 = vld [vmem:[%s107] sm:$0xff]
    %v6483 = vld [vmem:[%s107 + $0x8] sm:$0xff]
    %v6484 = vld [vmem:[%s107 + $0x10] sm:$0xff]
    %v6485 = vld [vmem:[%s107 + $0x18] sm:$0xff]
    %v6486 = vld [vmem:[%s107 + $0x20] sm:$0xff]
    %v6487 = vld [vmem:[%s107 + $0x28] sm:$0xff]
    %v6488 = vld [vmem:[%s107 + $0x30] sm:$0xff]
    %v6489 = vld [vmem:[%s107 + $0x38] sm:$0xff]
    %v6490 = vld [vmem:[%s107 + $0x40] sm:$0xff]
    %v6491 = vld [vmem:[%s107 + $0x48] sm:$0xff]
    %v6492 = vld [vmem:[%s107 + $0x50] sm:$0xff]
    %v6493 = vld [vmem:[%s107 + $0x58] sm:$0xff]
    %v6494 = vld [vmem:[%s107 + $0x60] sm:$0xff]
    %v6495 = vld [vmem:[%s107 + $0x68] sm:$0xff]
    %v6496 = vld [vmem:[%s107 + $0x70] sm:$0xff]
    %v6497 = vld [vmem:[%s107 + $0x78] sm:$0xff]
    %v6498 = vld [vmem:[#allocation26] sm:$0x1]
    %v6499 = vld [vmem:[#allocation28] sm:$0x1]
    %v6500 = vld [vmem:[#allocation29] sm:$0x1]
    %v6502 = vlaneseq
    %v6503 = vshrl.u32 %v6502, 7
    %v6504 = vsub.s32 0, %v6503
    %v6505 = vrot.slane %v6498, %v6504
    %6507 = vmatprep.subr.mxu0 0.0
    %6508 = vmatpush1.msra.mxu0 %v6482
    %6509 = vmatprep.subr.mxu0 0.0
    %6510 = vmatpush1.msra.mxu0 %v6483
    %6511 = vmatprep.subr.mxu0 0.0
    %6512 = vmatpush1.msra.mxu0 %v6484
    %6513 = vmatprep.subr.mxu0 0.0
    %6514 = vmatpush1.msra.mxu0 %v6485
    %6515 = vmatprep.subr.mxu0 0.0
    %6516 = vmatpush1.msra.mxu0 %v6486
    %6517 = vmatprep.subr.mxu0 0.0
    %6518 = vmatpush1.msra.mxu0 %v6487
    %6519 = vmatprep.subr.mxu0 0.0
    %6520 = vmatpush1.msra.mxu0 %v6488
    %6521 = vmatprep.subr.mxu0 0.0
    %6522 = vmatpush1.msra.mxu0 %v6489
    %6523 = vmatprep.subr.mxu0 0.0
    %6524 = vmatpush1.msra.mxu0 %v6490
    %6525 = vmatprep.subr.mxu0 0.0
    %6526 = vmatpush1.msra.mxu0 %v6491
    %6527 = vmatprep.subr.mxu0 0.0
    %6528 = vmatpush1.msra.mxu0 %v6492
    %6529 = vmatprep.subr.mxu0 0.0
    %6530 = vmatpush1.msra.mxu0 %v6493
    %6531 = vmatprep.subr.mxu0 0.0
    %6532 = vmatpush1.msra.mxu0 %v6494
    %6533 = vmatprep.subr.mxu0 0.0
    %6534 = vmatpush1.msra.mxu0 %v6495
    %6535 = vmatprep.subr.mxu0 0.0
    %6536 = vmatpush1.msra.mxu0 %v6496
    %6537 = vmatprep.subr.mxu0 0.0
    %6538 = vmatpush1.msra.mxu0 %v6497
    %6539 = vmatprep.subr.mxu0 0.0
    %6540 = vmatpush1.msra.mxu0 0.0
    %6541 = vmatprep.subr.mxu0 0.0
    %6542 = vmatpush1.msra.mxu0 0.0
    %6543 = vmatprep.subr.mxu0 0.0
    %6544 = vmatpush1.msra.mxu0 0.0
    %6545 = vmatprep.subr.mxu0 0.0
    %6546 = vmatpush1.msra.mxu0 0.0
    %6547 = vmatprep.subr.mxu0 0.0
    %6548 = vmatpush1.msra.mxu0 0.0
    %6549 = vmatprep.subr.mxu0 0.0
    %6550 = vmatpush1.msra.mxu0 0.0
    %6551 = vmatprep.subr.mxu0 0.0
    %6552 = vmatpush1.msra.mxu0 0.0
    %6553 = vmatprep.subr.mxu0 0.0
    %6554 = vmatpush1.msra.mxu0 0.0
    %6555 = vmatprep.subr.mxu0 0.0
    %6556 = vmatpush1.msra.mxu0 0.0
    %6557 = vmatprep.subr.mxu0 0.0
    %6558 = vmatpush1.msra.mxu0 0.0
    %6559 = vmatprep.subr.mxu0 0.0
    %6560 = vmatpush1.msra.mxu0 0.0
    %6561 = vmatprep.subr.mxu0 0.0
    %6562 = vmatpush1.msra.mxu0 0.0
    %6563 = vmatprep.subr.mxu0 0.0
    %6564 = vmatpush1.msra.mxu0 0.0
    %6565 = vmatprep.subr.mxu0 0.0
    %6566 = vmatpush1.msra.mxu0 0.0
    %6567 = vmatprep.subr.mxu0 0.0
    %6568 = vmatpush1.msra.mxu0 0.0
    %6569 = vmatprep.subr.mxu0 0.0
    %6570 = vmatpush1.msra.mxu0 0.0
    %6571 = vmatprep.mubr.f32.mxu0 0.0
    %6572 = vmatmul.mubr.f32.gmra.mrb[0].mxu0 %v6481
    %v6573 = vpop.f32.mrb[0].mxu0
    %v6574 = vadd.f32 %v6505, %v6573
    %v6575 = vpop.f32.mrb[0].mxu0
    %6576 = vdwg.mxu0
    %vm6577 = vcmask 517120
    %v6578 = vsel %vm6577, %v6574, 0.0
    %6579 = vadd.xlane.f32.xlu0 %v6578
    %v6580 = vpop.xlane.xlu0 %6579
    %v6581 = vrcp.pop 64.0
    %v6582 = vmul.f32 %v6580, %v6581
    %v6583 = vsub.f32 %v6574, %v6582
    %v6584 = vmul.f32 %v6583, %v6583
    %v6585 = vsel %vm6577, %v6584, 0.0
    %6586 = vadd.xlane.f32.xlu0 %v6585
    %v6587 = vpop.xlane.xlu0 %6586
    %v6588 = vmul.f32 %v6587, %v6581
    %v6589 = vadd.f32 %v6588, 1e-05
    %v6590 = vrsqrt.pop %v6589
    %v6591 = vmul.f32 %v6583, %v6590
    %v6593 = vlaneseq
    %v6594 = vshrl.u32 %v6593, 7
    %v6595 = vsub.s32 0, %v6594
    %v6596 = vrot.slane %v6499, %v6595
    %v6598 = vmul.f32 %v6591, %v6596
    %v6600 = vlaneseq
    %v6601 = vshrl.u32 %v6600, 7
    %v6602 = vsub.s32 0, %v6601
    %v6603 = vrot.slane %v6500, %v6602
    %v6605 = vadd.f32 %v6598, %v6603
    %v6606 = vtanh.pop %v6605
    %v6607 = vld [vmem:[%s115] sm:$0xff]
    %v6608 = vld [vmem:[%s115 + $0x8] sm:$0xff]
    %v6609 = vld [vmem:[%s115 + $0x10] sm:$0xff]
    %v6610 = vld [vmem:[%s115 + $0x18] sm:$0xff]
    %v6611 = vld [vmem:[%s115 + $0x20] sm:$0xff]
    %v6612 = vld [vmem:[%s115 + $0x28] sm:$0xff]
    %v6613 = vld [vmem:[%s115 + $0x30] sm:$0xff]
    %v6614 = vld [vmem:[%s115 + $0x38] sm:$0xff]
    %v6615 = vld [vmem:[#allocation31] sm:$0x1]
    %v6616 = vld [vmem:[#allocation32] sm:$0x1]
    %v6617 = vld [vmem:[#allocation34] sm:$0x1]
    %v6619 = vlaneseq
    %v6620 = vshrl.u32 %v6619, 7
    %v6621 = vsub.s32 0, %v6620
    %v6622 = vrot.slane %v6615, %v6621
    %v6625 = vsel %vm2494, %v6606, 0
    %6627 = vmatprep.subr.mxu0 0.0
    %6628 = vmatpush1.msra.mxu0 %v6607
    %6629 = vmatprep.subr.mxu0 0.0
    %6630 = vmatpush1.msra.mxu0 %v6608
    %6631 = vmatprep.subr.mxu0 0.0
    %6632 = vmatpush1.msra.mxu0 %v6609
    %6633 = vmatprep.subr.mxu0 0.0
    %6634 = vmatpush1.msra.mxu0 %v6610
    %6635 = vmatprep.subr.mxu0 0.0
    %6636 = vmatpush1.msra.mxu0 %v6611
    %6637 = vmatprep.subr.mxu0 0.0
    %6638 = vmatpush1.msra.mxu0 %v6612
    %6639 = vmatprep.subr.mxu0 0.0
    %6640 = vmatpush1.msra.mxu0 %v6613
    %6641 = vmatprep.subr.mxu0 0.0
    %6642 = vmatpush1.msra.mxu0 %v6614
    %6643 = vmatprep.subr.mxu0 0.0
    %6644 = vmatpush1.msra.mxu0 0.0
    %6645 = vmatprep.subr.mxu0 0.0
    %6646 = vmatpush1.msra.mxu0 0.0
    %6647 = vmatprep.subr.mxu0 0.0
    %6648 = vmatpush1.msra.mxu0 0.0
    %6649 = vmatprep.subr.mxu0 0.0
    %6650 = vmatpush1.msra.mxu0 0.0
    %6651 = vmatprep.subr.mxu0 0.0
    %6652 = vmatpush1.msra.mxu0 0.0
    %6653 = vmatprep.subr.mxu0 0.0
    %6654 = vmatpush1.msra.mxu0 0.0
    %6655 = vmatprep.subr.mxu0 0.0
    %6656 = vmatpush1.msra.mxu0 0.0
    %6657 = vmatprep.subr.mxu0 0.0
    %6658 = vmatpush1.msra.mxu0 0.0
    %6659 = vmatprep.subr.mxu0 0.0
    %6660 = vmatpush1.msra.mxu0 0.0
    %6661 = vmatprep.subr.mxu0 0.0
    %6662 = vmatpush1.msra.mxu0 0.0
    %6663 = vmatprep.subr.mxu0 0.0
    %6664 = vmatpush1.msra.mxu0 0.0
    %6665 = vmatprep.subr.mxu0 0.0
    %6666 = vmatpush1.msra.mxu0 0.0
    %6667 = vmatprep.subr.mxu0 0.0
    %6668 = vmatpush1.msra.mxu0 0.0
    %6669 = vmatprep.subr.mxu0 0.0
    %6670 = vmatpush1.msra.mxu0 0.0
    %6671 = vmatprep.subr.mxu0 0.0
    %6672 = vmatpush1.msra.mxu0 0.0
    %6673 = vmatprep.subr.mxu0 0.0
    %6674 = vmatpush1.msra.mxu0 0.0
    %6675 = vmatprep.subr.mxu0 0.0
    %6676 = vmatpush1.msra.mxu0 0.0
    %6677 = vmatprep.subr.mxu0 0.0
    %6678 = vmatpush1.msra.mxu0 0.0
    %6679 = vmatprep.subr.mxu0 0.0
    %6680 = vmatpush1.msra.mxu0 0.0
    %6681 = vmatprep.subr.mxu0 0.0
    %6682 = vmatpush1.msra.mxu0 0.0
    %6683 = vmatprep.subr.mxu0 0.0
    %6684 = vmatpush1.msra.mxu0 0.0
    %6685 = vmatprep.subr.mxu0 0.0
    %6686 = vmatpush1.msra.mxu0 0.0
    %6687 = vmatprep.subr.mxu0 0.0
    %6688 = vmatpush1.msra.mxu0 0.0
    %6689 = vmatprep.subr.mxu0 0.0
    %6690 = vmatpush1.msra.mxu0 0.0
    %6691 = vmatprep.mubr.f32.mxu0 0.0
    %6692 = vmatmul.mubr.f32.gmra.mrb[0].mxu0 %v6625
    %v6693 = vpop.f32.mrb[0].mxu0
    %v6694 = vadd.f32 %v6622, %v6693
    %v6695 = vpop.f32.mrb[0].mxu0
    %6696 = vdwg.mxu0
    %v6697 = vsel %vm6577, %v6694, 0.0
    %6698 = vadd.xlane.f32.xlu0 %v6697
    %v6699 = vpop.xlane.xlu0 %6698
    %v6700 = vmul.f32 %v6699, %v6581
    %v6701 = vsub.f32 %v6694, %v6700
    %v6702 = vmul.f32 %v6701, %v6701
    %v6703 = vsel %vm6577, %v6702, 0.0
    %6704 = vadd.xlane.f32.xlu0 %v6703
    %v6705 = vpop.xlane.xlu0 %6704
    %v6706 = vmul.f32 %v6705, %v6581
    %v6707 = vadd.f32 %v6706, 1e-05
    %v6708 = vrsqrt.pop %v6707
    %v6709 = vmul.f32 %v6701, %v6708
    %v6711 = vlaneseq
    %v6712 = vshrl.u32 %v6711, 7
    %v6713 = vsub.s32 0, %v6712
    %v6714 = vrot.slane %v6616, %v6713
    %v6716 = vmul.f32 %v6709, %v6714
    %v6718 = vlaneseq
    %v6719 = vshrl.u32 %v6718, 7
    %v6720 = vsub.s32 0, %v6719
    %v6721 = vrot.slane %v6617, %v6720
    %v6723 = vadd.f32 %v6716, %v6721
    %v6724 = vtanh.pop %v6723
    %v6725 = vld [vmem:[%s123] sm:$0xff]
    %v6726 = vld [vmem:[%s123 + $0x8] sm:$0xff]
    %v6727 = vld [vmem:[%s123 + $0x10] sm:$0xff]
    %v6728 = vld [vmem:[%s123 + $0x18] sm:$0xff]
    %v6729 = vld [vmem:[%s123 + $0x20] sm:$0xff]
    %v6730 = vld [vmem:[%s123 + $0x28] sm:$0xff]
    %v6731 = vld [vmem:[%s123 + $0x30] sm:$0xff]
    %v6732 = vld [vmem:[%s123 + $0x38] sm:$0xff]
    %v6733 = vld [vmem:[#allocation2] sm:$0x1]
    %v6735 = vlaneseq
    %v6736 = vshrl.u32 %v6735, 7
    %v6737 = vsub.s32 0, %v6736
    %v6738 = vrot.slane %v6733, %v6737
    %v6741 = vsel %vm2494, %v6724, 0
    %6743 = vmatprep.subr.mxu0 0.0
    %6744 = vmatpush1.msra.mxu0 %v6725
    %6745 = vmatprep.subr.mxu0 0.0
    %6746 = vmatpush1.msra.mxu0 %v6726
    %6747 = vmatprep.subr.mxu0 0.0
    %6748 = vmatpush1.msra.mxu0 %v6727
    %6749 = vmatprep.subr.mxu0 0.0
    %6750 = vmatpush1.msra.mxu0 %v6728
    %6751 = vmatprep.subr.mxu0 0.0
    %6752 = vmatpush1.msra.mxu0 %v6729
    %6753 = vmatprep.subr.mxu0 0.0
    %6754 = vmatpush1.msra.mxu0 %v6730
    %6755 = vmatprep.subr.mxu0 0.0
    %6756 = vmatpush1.msra.mxu0 %v6731
    %6757 = vmatprep.subr.mxu0 0.0
    %6758 = vmatpush1.msra.mxu0 %v6732
    %6759 = vmatprep.subr.mxu0 0.0
    %6760 = vmatpush1.msra.mxu0 0.0
    %6761 = vmatprep.subr.mxu0 0.0
    %6762 = vmatpush1.msra.mxu0 0.0
    %6763 = vmatprep.subr.mxu0 0.0
    %6764 = vmatpush1.msra.mxu0 0.0
    %6765 = vmatprep.subr.mxu0 0.0
    %6766 = vmatpush1.msra.mxu0 0.0
    %6767 = vmatprep.subr.mxu0 0.0
    %6768 = vmatpush1.msra.mxu0 0.0
    %6769 = vmatprep.subr.mxu0 0.0
    %6770 = vmatpush1.msra.mxu0 0.0
    %6771 = vmatprep.subr.mxu0 0.0
    %6772 = vmatpush1.msra.mxu0 0.0
    %6773 = vmatprep.subr.mxu0 0.0
    %6774 = vmatpush1.msra.mxu0 0.0
    %6775 = vmatprep.subr.mxu0 0.0
    %6776 = vmatpush1.msra.mxu0 0.0
    %6777 = vmatprep.subr.mxu0 0.0
    %6778 = vmatpush1.msra.mxu0 0.0
    %6779 = vmatprep.subr.mxu0 0.0
    %6780 = vmatpush1.msra.mxu0 0.0
    %6781 = vmatprep.subr.mxu0 0.0
    %6782 = vmatpush1.msra.mxu0 0.0
    %6783 = vmatprep.subr.mxu0 0.0
    %6784 = vmatpush1.msra.mxu0 0.0
    %6785 = vmatprep.subr.mxu0 0.0
    %6786 = vmatpush1.msra.mxu0 0.0
    %6787 = vmatprep.subr.mxu0 0.0
    %6788 = vmatpush1.msra.mxu0 0.0
    %6789 = vmatprep.subr.mxu0 0.0
    %6790 = vmatpush1.msra.mxu0 0.0
    %6791 = vmatprep.subr.mxu0 0.0
    %6792 = vmatpush1.msra.mxu0 0.0
    %6793 = vmatprep.subr.mxu0 0.0
    %6794 = vmatpush1.msra.mxu0 0.0
    %6795 = vmatprep.subr.mxu0 0.0
    %6796 = vmatpush1.msra.mxu0 0.0
    %6797 = vmatprep.subr.mxu0 0.0
    %6798 = vmatpush1.msra.mxu0 0.0
    %6799 = vmatprep.subr.mxu0 0.0
    %6800 = vmatpush1.msra.mxu0 0.0
    %6801 = vmatprep.subr.mxu0 0.0
    %6802 = vmatpush1.msra.mxu0 0.0
    %6803 = vmatprep.subr.mxu0 0.0
    %6804 = vmatpush1.msra.mxu0 0.0
    %6805 = vmatprep.subr.mxu0 0.0
    %6806 = vmatpush1.msra.mxu0 0.0
    %6807 = vmatprep.mubr.f32.mxu0 0.0
    %6808 = vmatmul.mubr.f32.gmra.mrb[0].mxu0 %v6741
    %v6809 = vpop.f32.mrb[0].mxu0
    %v6810 = vadd.f32 %v6738, %v6809
    %v6811 = vpop.f32.mrb[0].mxu0
    %6812 = vdwg.mxu0
    %vm6813 = vcmask 1024
    %6814 = vst.msk [vmem:[%s127] sm:$0x3] %vm6813, %v6810
    // Predicated region
    $region338: #{transformer_forward.1} parent=1 // pred_check
      _
    $region339: #{transformer_forward.1} parent=1 // pred_check_branch
      %6816 = sbr.rel (0) target = $region341
    $region340: #{transformer_forward.1} parent=1 // pred_region
      _
    $region341: #{transformer_forward.1} parent=1 // pred_fallthru
      _
    // Predicated region
    $region342: #{transformer_forward.1} parent=1 // pred_check
      _
    $region343: #{transformer_forward.1} parent=1 // pred_check_branch
      %6818 = sbr.rel (0) target = $region345
    $region344: #{transformer_forward.1} parent=1 // pred_region
      _
    $region345: #{transformer_forward.1} parent=1 // pred_fallthru
      _
    %6819 = vsyncpa [#allocation4], 1
    %6820 = vsyncpa [#allocation6], 1
    %6821 = vsyncpa [#allocation9], 1
    %6822 = vsyncpa [#allocation12], 1
    %6823 = vsyncpa [#allocation15], 1
    %6824 = vsyncpa [#allocation18], 1
    %6825 = vsyncpa [#allocation21], 1
    %6826 = vsyncpa [#allocation24], 1
    %6827 = vsyncpa [#allocation27], 1
    %6828 = vsyncpa [#allocation30], 1
    %6829 = vsyncpa [#allocation33], 1

</llo_original>
